<compile_context>
chip_gen: v7x
topology: tpu7x:2x2x1
jax: 0.10.0
libtpu: 0.0.40
codegen_flags: <defaults>
</compile_context>

<pallas_src>
import functools
import math

import jax
import jax.numpy as jnp
from jax.experimental import pallas as pl
from jax.experimental.pallas import tpu as pltpu

# Model hyper-parameters (small, consistent with the module).
NUM_HEADS = 4
INPUT_DIM = 32
OUTPUT_DIM = 32                       # per-head dim == W_O output dim (PyTorch spec)
HIDDEN = NUM_HEADS * OUTPUT_DIM       # 128 -> lane-dense projections
MASK_FILL = -1000000000.0             # matches scores.masked_fill_(mask == 0, -1e9)

_ROWS_TARGET = 256                    # ~256 projection rows per grid step (v6e/v7x MXU)
_MAX_B_TILE = 16                      # bound the static per-sequence unroll


# ----------------------------- Pallas kernel ------------------------------ #
def _mha_kernel(x_ref, mask_ref, wqkv_ref, bqkv_ref, wo_ref, o_ref, ctx_ref, *,
                b_tile, seq, num_heads, head_dim, shared_mask, precision):
    hd = num_heads * head_dim

    # One stacked QKV projection for all b_tile*seq rows: (rows, in) @ (in, 3*HD).
    xw = jnp.dot(x_ref[...], wqkv_ref[...], precision=precision,
                 preferred_element_type=jnp.float32) + bqkv_ref[...]
    q = xw[:, 0 * hd:1 * hd]          # 1/sqrt(head_dim) already folded into W_Q / b_Q
    k = xw[:, 1 * hd:2 * hd]
    v = xw[:, 2 * hd:3 * hd]

    if shared_mask:
        zero_mask = mask_ref[...] == 0            # (seq, seq), shared by every sequence

    for b in range(b_tile):                       # static unroll over sequences in tile
        rows = slice(b * seq, (b + 1) * seq)
        if not shared_mask:
            zero_mask = mask_ref[b] == 0          # (seq, seq) for this batch element
        qb, kb, vb = q[rows, :], k[rows, :], v[rows, :]
        for h in range(num_heads):                # static unroll over heads
            cols = slice(h * head_dim, (h + 1) * head_dim)
            qh, kh, vh = qb[:, cols], kb[:, cols], vb[:, cols]
            # scores: contract on the last dim of both operands (no explicit kh.T).
            s = jax.lax.dot_general(qh, kh, (((1,), (1,)), ((), ())),
                                    precision=precision,
                                    preferred_element_type=jnp.float32)
            s = jnp.where(zero_mask, MASK_FILL, s)
            p = jnp.exp(s - jnp.max(s, axis=-1, keepdims=True))
            denom = jnp.sum(p, axis=-1, keepdims=True)
            p = p * pl.reciprocal(denom, approx=True)       # EUP slot, ~free
            ctx_ref[rows, cols] = jnp.dot(p, vh, precision=precision,
                                          preferred_element_type=jnp.float32)

    # Single (rows, 128) @ (128, D) output projection — no per-head concatenate.
    out = jnp.dot(ctx_ref[...], wo_ref[...], precision=precision,
                  preferred_element_type=jnp.float32)
    o_ref[0] = out.astype(o_ref.dtype)


# ------------------------------- wrapper ----------------------------------- #
def multi_head_attention(x, attn_mask, params, *,
                         precision=jax.lax.Precision.HIGHEST):
    """x: (B, N, INPUT_DIM); attn_mask: (N, N) shared or (B, N, N) of 0/1 values."""
    B, N, in_dim = x.shape
    assert in_dim == INPUT_DIM
    H, D, HD = NUM_HEADS, OUTPUT_DIM, HIDDEN

    shared_mask = attn_mask.ndim == 2
    attn_mask = attn_mask.astype(jnp.float32)

    # Several batch elements per grid step: amortizes per-step overhead and fills
    # the MXU M dimension with b_tile*N stacked rows (~256 on v6e/v7x).
    b_tile = max(1, min(B, _ROWS_TARGET // N, _MAX_B_TILE))
    num_tiles = pl.cdiv(B, b_tile)
    b_pad = num_tiles * b_tile
    if b_pad != B:
        x = jnp.pad(x, ((0, b_pad - B), (0, 0), (0, 0)))
        if not shared_mask:
            attn_mask = jnp.pad(attn_mask, ((0, b_pad - B), (0, 0), (0, 0)),
                                constant_values=1.0)

    rows = b_tile * N
    # Block sublane dim must be 8-aligned unless it spans the whole array.
    assert rows % 8 == 0 or num_tiles == 1, (rows, num_tiles)

    x_rows = x.reshape(b_pad * N, in_dim)          # contiguous stack, free reshape

    if shared_mask:
        # Constant index_map -> mask stays VMEM-resident, no per-batch HBM copies.
        mask_spec = pl.BlockSpec((N, N), lambda i: (0, 0))
    else:
        mask_spec = pl.BlockSpec((b_tile, N, N), lambda i: (i, 0, 0))

    kernel = functools.partial(
        _mha_kernel, b_tile=b_tile, seq=N, num_heads=H, head_dim=D,
        shared_mask=shared_mask, precision=precision)

    flops = b_pad * (2 * N * in_dim * 3 * HD       # fused QKV projection
                     + H * 4 * N * N * D           # scores + context
                     + 2 * N * HD * D)             # output projection
    bytes_accessed = 4 * (x_rows.size + attn_mask.size
                          + in_dim * 3 * HD + 3 * HD + HD * D + b_pad * N * D)
    cost = pl.CostEstimate(flops=flops,
                           transcendentals=b_pad * H * N * (N + 1),
                           bytes_accessed=bytes_accessed)

    out = pl.pallas_call(
        kernel,
        out_shape=jax.ShapeDtypeStruct((num_tiles, rows, D), jnp.float32),
        grid=(num_tiles,),
        in_specs=[
            pl.BlockSpec((rows, in_dim), lambda i: (i, 0)),        # stacked x rows
            mask_spec,                                             # attention mask
            pl.BlockSpec((in_dim, 3 * HD), lambda i: (0, 0)),      # fused W_QKV
            pl.BlockSpec((1, 3 * HD), lambda i: (0, 0)),           # fused b_QKV
            pl.BlockSpec((HD, D), lambda i: (0, 0)),               # W_O
        ],
        out_specs=pl.BlockSpec((1, rows, D), lambda i: (i, 0, 0)),
        scratch_shapes=[pltpu.VMEM((rows, HD), jnp.float32)],      # context slab
        compiler_params=pltpu.CompilerParams(
            dimension_semantics=("parallel",)),                    # v7x: tiles across TCs
        cost_estimate=cost,
    )(x_rows, attn_mask, params["w_qkv"], params["b_qkv"], params["wo"])

    return out.reshape(b_pad, N, D)[:B]


# --------------------------- parameter handling ---------------------------- #
def init_params(key):
    """PyTorch nn.Linear-style U(-1/sqrt(fan_in), 1/sqrt(fan_in)), stored
    matmul-ready: W as (in, out), b as (1, out)."""
    def uni(k, shape, fan_in):
        bound = 1.0 / math.sqrt(float(fan_in))
        return jax.random.uniform(k, shape, jnp.float32, -bound, bound)

    ks = jax.random.split(key, 7)
    return {
        "wq": uni(ks[0], (INPUT_DIM, HIDDEN), INPUT_DIM),
        "bq": uni(ks[1], (1, HIDDEN), INPUT_DIM),
        "wk": uni(ks[2], (INPUT_DIM, HIDDEN), INPUT_DIM),
        "bk": uni(ks[3], (1, HIDDEN), INPUT_DIM),
        "wv": uni(ks[4], (INPUT_DIM, HIDDEN), INPUT_DIM),
        "bv": uni(ks[5], (1, HIDDEN), INPUT_DIM),
        "wo": uni(ks[6], (HIDDEN, OUTPUT_DIM), HIDDEN),
    }


def prepare_params(params):
    """One-time kernel param prep: fuse W_Q/W_K/W_V into one (in, 3*H*D) matmul
    and fold the 1/sqrt(head_dim) score scale into the Q projection."""
    scale = 1.0 / math.sqrt(float(OUTPUT_DIM))
    w_qkv = jnp.concatenate([params["wq"] * scale, params["wk"], params["wv"]], axis=1)
    b_qkv = jnp.concatenate([params["bq"] * scale, params["bk"], params["bv"]], axis=1)
    return {"w_qkv": w_qkv, "b_qkv": b_qkv, "wo": params["wo"]}


# ------------------------------ reference ---------------------------------- #
def reference_forward(x, attn_mask, params):
    B, N, _ = x.shape
    H, D = NUM_HEADS, OUTPUT_DIM
    hi = jax.lax.Precision.HIGHEST
    q = jnp.matmul(x, params["wq"], precision=hi) + params["bq"]
    k = jnp.matmul(x, params["wk"], precision=hi) + params["bk"]
    v = jnp.matmul(x, params["wv"], precision=hi) + params["bv"]
    q = q.reshape(B, N, H, D).transpose(0, 2, 1, 3)
    k = k.reshape(B, N, H, D).transpose(0, 2, 1, 3)
    v = v.reshape(B, N, H, D).transpose(0, 2, 1, 3)
    scores = jnp.einsum("bhnd,bhmd->bhnm", q, k, precision=hi) / (D ** 0.5)
    if attn_mask.ndim == 2:
        attn_mask = attn_mask[None]
    scores = jnp.where(attn_mask[:, None, :, :] == 0, MASK_FILL, scores)
    attn = jax.nn.softmax(scores, axis=-1)
    ctx = jnp.einsum("bhnm,bhmd->bhnd", attn, v, precision=hi)
    ctx = ctx.transpose(0, 2, 1, 3).reshape(B, N, H * D)
    return jnp.matmul(ctx, params["wo"], precision=hi)


if __name__ == "__main__":
    key = jax.random.PRNGKey(0)
    pkey, xkey, mkey = jax.random.split(key, 3)
    raw = init_params(pkey)
    prep = prepare_params(raw)

    B, N = 2, 8                                   # batch, num_agents
    x = jax.random.normal(xkey, (B, N, INPUT_DIM), jnp.float32)
    # Random 0/1 mask with the diagonal forced on (no fully masked rows).
    mask = (jax.random.uniform(mkey, (B, N, N)) > 0.3).astype(jnp.float32)
    mask = jnp.maximum(mask, jnp.eye(N, dtype=jnp.float32)[None])

    # Prefer full-f32 MXU contractions (matches the PyTorch autocast-disabled f32
    # path); fall back to default precision (documented, looser tolerance) if the
    # installed Mosaic build rejects the precision attribute.
    precision, tol = jax.lax.Precision.HIGHEST, 2e-3
    try:
        jax.block_until_ready(multi_head_attention(x, mask, prep, precision=precision))
    except Exception:
        precision, tol = jax.lax.Precision.DEFAULT, 5e-3   # bf16 MXU passes -> ~1e-3 diffs

    fwd = jax.jit(functools.partial(multi_head_attention, precision=precision))

    # 3-D (per-batch) mask path.
    out = jax.block_until_ready(fwd(x, mask, prep))
    assert out.shape == (B, N, OUTPUT_DIM), out.shape
    ref = reference_forward(x, mask, raw)
    err = float(jnp.max(jnp.abs(out - ref)))
    assert err <= tol, err

    # Shared 2-D mask path: mask stays (N, N) (no per-batch replication).
    # PyTorch only permits a 2-D mask when batch == 1, so check with B = 1.
    x1, m1 = x[:1], mask[0]
    out1 = jax.block_until_ready(fwd(x1, m1, prep))
    ref1 = reference_forward(x1, m1[None], raw)
    err1 = float(jnp.max(jnp.abs(out1 - ref1)))
    assert err1 <= tol, err1

    print("KERNEL_OK")
</pallas_src>

<mosaic_0001>
module attributes {stable_mosaic.version = 11 : i64} {
  func.func @_mha_kernel(%arg0: i32, %arg1: memref<16x32xf32, #tpu.memory_space<vmem>>, %arg2: memref<2x8x8xf32, #tpu.memory_space<vmem>>, %arg3: memref<32x384xf32, #tpu.memory_space<vmem>>, %arg4: memref<1x384xf32, #tpu.memory_space<vmem>>, %arg5: memref<128x32xf32, #tpu.memory_space<vmem>>, %arg6: memref<1x16x32xf32, #tpu.memory_space<vmem>>, %arg7: memref<16x128xf32, #tpu.memory_space<vmem>>) attributes {dimension_semantics = [#tpu.dimension_semantics<parallel>], iteration_bounds = array<i64: 1>, scalar_prefetch = 0 : i64, scratch_operands = 1 : i64, tpu.core_type = #tpu.core_type<tc>, window_params = [{transform_indices = @transform_0, window_bounds = array<i64: 16, 32>}, {transform_indices = @transform_1, window_bounds = array<i64: 2, 8, 8>}, {pipeline_mode = #tpu.pipeline_mode<synchronous>, transform_indices = @transform_2, window_bounds = array<i64: 32, 384>}, {pipeline_mode = #tpu.pipeline_mode<synchronous>, transform_indices = @transform_3, window_bounds = array<i64: 1, 384>}, {pipeline_mode = #tpu.pipeline_mode<synchronous>, transform_indices = @transform_4, window_bounds = array<i64: 128, 32>}, {transform_indices = @transform_5, window_bounds = array<i64: 1, 16, 32>}]} {
    %c0 = arith.constant 0 : index
    %c0_0 = arith.constant 0 : index
    %0 = vector.load %arg1[%c0, %c0_0] : memref<16x32xf32, #tpu.memory_space<vmem>>, vector<16x32xf32>
    %c0_1 = arith.constant 0 : index
    %c0_2 = arith.constant 0 : index
    %1 = vector.load %arg3[%c0_1, %c0_2] : memref<32x384xf32, #tpu.memory_space<vmem>>, vector<32x384xf32>
    %cst = arith.constant dense<0.000000e+00> : vector<16x384xf32>
    %2 = tpu.matmul %0, %1, %cst {dimension_numbers = #tpu.dot_dimension_numbers<[1], [0], [0], [1], [0, 0, 1, 1], [], []>, precision = #tpu.contract_precision<fp32>} : vector<16x32xf32>, vector<32x384xf32>, vector<16x384xf32> -> vector<16x384xf32>
    %c0_3 = arith.constant 0 : index
    %c0_4 = arith.constant 0 : index
    %3 = vector.load %arg4[%c0_3, %c0_4] : memref<1x384xf32, #tpu.memory_space<vmem>>, vector<1x384xf32>
    %4 = vector.broadcast %3 : vector<1x384xf32> to vector<16x384xf32>
    %5 = arith.addf %2, %4 : vector<16x384xf32>
    %6 = vector.extract_strided_slice %5 {offsets = [0, 0], sizes = [16, 128], strides = [1, 1]} : vector<16x384xf32> to vector<16x128xf32>
    %7 = vector.extract_strided_slice %5 {offsets = [0, 128], sizes = [16, 128], strides = [1, 1]} : vector<16x384xf32> to vector<16x128xf32>
    %8 = vector.extract_strided_slice %5 {offsets = [0, 256], sizes = [16, 128], strides = [1, 1]} : vector<16x384xf32> to vector<16x128xf32>
    %c0_5 = arith.constant 0 : index
    %c0_6 = arith.constant 0 : index
    %c0_7 = arith.constant 0 : index
    %9 = vector.load %arg2[%c0_5, %c0_6, %c0_7] : memref<2x8x8xf32, #tpu.memory_space<vmem>>, vector<1x8x8xf32>
    %10 = vector.shape_cast %9 : vector<1x8x8xf32> to vector<8x8xf32>
    %cst_8 = arith.constant 0.000000e+00 : f32
    %11 = vector.broadcast %cst_8 : f32 to vector<8x8xf32>
    %12 = arith.cmpf oeq, %10, %11 : vector<8x8xf32>
    %13 = vector.extract_strided_slice %6 {offsets = [0, 0], sizes = [8, 128], strides = [1, 1]} : vector<16x128xf32> to vector<8x128xf32>
    %14 = vector.extract_strided_slice %7 {offsets = [0, 0], sizes = [8, 128], strides = [1, 1]} : vector<16x128xf32> to vector<8x128xf32>
    %15 = vector.extract_strided_slice %8 {offsets = [0, 0], sizes = [8, 128], strides = [1, 1]} : vector<16x128xf32> to vector<8x128xf32>
    %16 = vector.extract_strided_slice %13 {offsets = [0, 0], sizes = [8, 32], strides = [1, 1]} : vector<8x128xf32> to vector<8x32xf32>
    %17 = vector.extract_strided_slice %14 {offsets = [0, 0], sizes = [8, 32], strides = [1, 1]} : vector<8x128xf32> to vector<8x32xf32>
    %18 = vector.extract_strided_slice %15 {offsets = [0, 0], sizes = [8, 32], strides = [1, 1]} : vector<8x128xf32> to vector<8x32xf32>
    %cst_9 = arith.constant dense<0.000000e+00> : vector<8x8xf32>
    %19 = tpu.matmul %16, %17, %cst_9 {dimension_numbers = #tpu.dot_dimension_numbers<[1], [1], [0], [0], [0, 0, 1, 0], [], []>, precision = #tpu.contract_precision<fp32>} : vector<8x32xf32>, vector<8x32xf32>, vector<8x8xf32> -> vector<8x8xf32>
    %cst_10 = arith.constant -1.000000e+09 : f32
    %20 = vector.broadcast %cst_10 : f32 to vector<8x8xf32>
    %21 = arith.select %12, %20, %19 : vector<8x8xi1>, vector<8x8xf32>
    %cst_11 = arith.constant dense<0xFF800000> : vector<8xf32>
    %22 = vector.multi_reduction <maximumf>, %21, %cst_11 [1] : vector<8x8xf32> to vector<8xf32>
    %23 = vector.shape_cast %22 : vector<8xf32> to vector<8x1xf32>
    %24 = vector.broadcast %23 : vector<8x1xf32> to vector<8x8xf32>
    %25 = arith.subf %21, %24 : vector<8x8xf32>
    %26 = math.exp %25 : vector<8x8xf32>
    %cst_12 = arith.constant dense<0.000000e+00> : vector<8xf32>
    %27 = vector.multi_reduction <add>, %26, %cst_12 [1] : vector<8x8xf32> to vector<8xf32>
    %28 = vector.shape_cast %27 : vector<8xf32> to vector<8x1xf32>
    %29 = tpu.reciprocal %28 {approx = true} : vector<8x1xf32> -> vector<8x1xf32>
    %30 = vector.broadcast %29 : vector<8x1xf32> to vector<8x8xf32>
    %31 = arith.mulf %26, %30 : vector<8x8xf32>
    %cst_13 = arith.constant dense<0.000000e+00> : vector<8x32xf32>
    %32 = tpu.matmul %31, %18, %cst_13 {dimension_numbers = #tpu.dot_dimension_numbers<[1], [0], [0], [1], [0, 0, 1, 1], [], []>, precision = #tpu.contract_precision<fp32>} : vector<8x8xf32>, vector<8x32xf32>, vector<8x32xf32> -> vector<8x32xf32>
    %c0_14 = arith.constant 0 : index
    %c0_15 = arith.constant 0 : index
    %33 = vector.load %arg7[%c0_14, %c0_15] : memref<16x128xf32, #tpu.memory_space<vmem>>, vector<8x32xf32>
    tpu.vector_store %arg7[%c0_14, %c0_15], %32 {strides = array<i32>} : memref<16x128xf32, #tpu.memory_space<vmem>>, vector<8x32xf32>,
    %34 = vector.extract_strided_slice %13 {offsets = [0, 32], sizes = [8, 32], strides = [1, 1]} : vector<8x128xf32> to vector<8x32xf32>
    %35 = vector.extract_strided_slice %14 {offsets = [0, 32], sizes = [8, 32], strides = [1, 1]} : vector<8x128xf32> to vector<8x32xf32>
    %36 = vector.extract_strided_slice %15 {offsets = [0, 32], sizes = [8, 32], strides = [1, 1]} : vector<8x128xf32> to vector<8x32xf32>
    %cst_16 = arith.constant dense<0.000000e+00> : vector<8x8xf32>
    %37 = tpu.matmul %34, %35, %cst_16 {dimension_numbers = #tpu.dot_dimension_numbers<[1], [1], [0], [0], [0, 0, 1, 0], [], []>, precision = #tpu.contract_precision<fp32>} : vector<8x32xf32>, vector<8x32xf32>, vector<8x8xf32> -> vector<8x8xf32>
    %cst_17 = arith.constant -1.000000e+09 : f32
    %38 = vector.broadcast %cst_17 : f32 to vector<8x8xf32>
    %39 = arith.select %12, %38, %37 : vector<8x8xi1>, vector<8x8xf32>
    %cst_18 = arith.constant dense<0xFF800000> : vector<8xf32>
    %40 = vector.multi_reduction <maximumf>, %39, %cst_18 [1] : vector<8x8xf32> to vector<8xf32>
    %41 = vector.shape_cast %40 : vector<8xf32> to vector<8x1xf32>
    %42 = vector.broadcast %41 : vector<8x1xf32> to vector<8x8xf32>
    %43 = arith.subf %39, %42 : vector<8x8xf32>
    %44 = math.exp %43 : vector<8x8xf32>
    %cst_19 = arith.constant dense<0.000000e+00> : vector<8xf32>
    %45 = vector.multi_reduction <add>, %44, %cst_19 [1] : vector<8x8xf32> to vector<8xf32>
    %46 = vector.shape_cast %45 : vector<8xf32> to vector<8x1xf32>
    %47 = tpu.reciprocal %46 {approx = true} : vector<8x1xf32> -> vector<8x1xf32>
    %48 = vector.broadcast %47 : vector<8x1xf32> to vector<8x8xf32>
    %49 = arith.mulf %44, %48 : vector<8x8xf32>
    %cst_20 = arith.constant dense<0.000000e+00> : vector<8x32xf32>
    %50 = tpu.matmul %49, %36, %cst_20 {dimension_numbers = #tpu.dot_dimension_numbers<[1], [0], [0], [1], [0, 0, 1, 1], [], []>, precision = #tpu.contract_precision<fp32>} : vector<8x8xf32>, vector<8x32xf32>, vector<8x32xf32> -> vector<8x32xf32>
    %c0_21 = arith.constant 0 : index
    %c32 = arith.constant 32 : index
    %51 = vector.load %arg7[%c0_21, %c32] : memref<16x128xf32, #tpu.memory_space<vmem>>, vector<8x32xf32>
    tpu.vector_store %arg7[%c0_21, %c32], %50 {strides = array<i32>} : memref<16x128xf32, #tpu.memory_space<vmem>>, vector<8x32xf32>,
    %52 = vector.extract_strided_slice %13 {offsets = [0, 64], sizes = [8, 32], strides = [1, 1]} : vector<8x128xf32> to vector<8x32xf32>
    %53 = vector.extract_strided_slice %14 {offsets = [0, 64], sizes = [8, 32], strides = [1, 1]} : vector<8x128xf32> to vector<8x32xf32>
    %54 = vector.extract_strided_slice %15 {offsets = [0, 64], sizes = [8, 32], strides = [1, 1]} : vector<8x128xf32> to vector<8x32xf32>
    %cst_22 = arith.constant dense<0.000000e+00> : vector<8x8xf32>
    %55 = tpu.matmul %52, %53, %cst_22 {dimension_numbers = #tpu.dot_dimension_numbers<[1], [1], [0], [0], [0, 0, 1, 0], [], []>, precision = #tpu.contract_precision<fp32>} : vector<8x32xf32>, vector<8x32xf32>, vector<8x8xf32> -> vector<8x8xf32>
    %cst_23 = arith.constant -1.000000e+09 : f32
    %56 = vector.broadcast %cst_23 : f32 to vector<8x8xf32>
    %57 = arith.select %12, %56, %55 : vector<8x8xi1>, vector<8x8xf32>
    %cst_24 = arith.constant dense<0xFF800000> : vector<8xf32>
    %58 = vector.multi_reduction <maximumf>, %57, %cst_24 [1] : vector<8x8xf32> to vector<8xf32>
    %59 = vector.shape_cast %58 : vector<8xf32> to vector<8x1xf32>
    %60 = vector.broadcast %59 : vector<8x1xf32> to vector<8x8xf32>
    %61 = arith.subf %57, %60 : vector<8x8xf32>
    %62 = math.exp %61 : vector<8x8xf32>
    %cst_25 = arith.constant dense<0.000000e+00> : vector<8xf32>
    %63 = vector.multi_reduction <add>, %62, %cst_25 [1] : vector<8x8xf32> to vector<8xf32>
    %64 = vector.shape_cast %63 : vector<8xf32> to vector<8x1xf32>
    %65 = tpu.reciprocal %64 {approx = true} : vector<8x1xf32> -> vector<8x1xf32>
    %66 = vector.broadcast %65 : vector<8x1xf32> to vector<8x8xf32>
    %67 = arith.mulf %62, %66 : vector<8x8xf32>
    %cst_26 = arith.constant dense<0.000000e+00> : vector<8x32xf32>
    %68 = tpu.matmul %67, %54, %cst_26 {dimension_numbers = #tpu.dot_dimension_numbers<[1], [0], [0], [1], [0, 0, 1, 1], [], []>, precision = #tpu.contract_precision<fp32>} : vector<8x8xf32>, vector<8x32xf32>, vector<8x32xf32> -> vector<8x32xf32>
    %c0_27 = arith.constant 0 : index
    %c64 = arith.constant 64 : index
    %69 = vector.load %arg7[%c0_27, %c64] : memref<16x128xf32, #tpu.memory_space<vmem>>, vector<8x32xf32>
    tpu.vector_store %arg7[%c0_27, %c64], %68 {strides = array<i32>} : memref<16x128xf32, #tpu.memory_space<vmem>>, vector<8x32xf32>,
    %70 = vector.extract_strided_slice %13 {offsets = [0, 96], sizes = [8, 32], strides = [1, 1]} : vector<8x128xf32> to vector<8x32xf32>
    %71 = vector.extract_strided_slice %14 {offsets = [0, 96], sizes = [8, 32], strides = [1, 1]} : vector<8x128xf32> to vector<8x32xf32>
    %72 = vector.extract_strided_slice %15 {offsets = [0, 96], sizes = [8, 32], strides = [1, 1]} : vector<8x128xf32> to vector<8x32xf32>
    %cst_28 = arith.constant dense<0.000000e+00> : vector<8x8xf32>
    %73 = tpu.matmul %70, %71, %cst_28 {dimension_numbers = #tpu.dot_dimension_numbers<[1], [1], [0], [0], [0, 0, 1, 0], [], []>, precision = #tpu.contract_precision<fp32>} : vector<8x32xf32>, vector<8x32xf32>, vector<8x8xf32> -> vector<8x8xf32>
    %cst_29 = arith.constant -1.000000e+09 : f32
    %74 = vector.broadcast %cst_29 : f32 to vector<8x8xf32>
    %75 = arith.select %12, %74, %73 : vector<8x8xi1>, vector<8x8xf32>
    %cst_30 = arith.constant dense<0xFF800000> : vector<8xf32>
    %76 = vector.multi_reduction <maximumf>, %75, %cst_30 [1] : vector<8x8xf32> to vector<8xf32>
    %77 = vector.shape_cast %76 : vector<8xf32> to vector<8x1xf32>
    %78 = vector.broadcast %77 : vector<8x1xf32> to vector<8x8xf32>
    %79 = arith.subf %75, %78 : vector<8x8xf32>
    %80 = math.exp %79 : vector<8x8xf32>
    %cst_31 = arith.constant dense<0.000000e+00> : vector<8xf32>
    %81 = vector.multi_reduction <add>, %80, %cst_31 [1] : vector<8x8xf32> to vector<8xf32>
    %82 = vector.shape_cast %81 : vector<8xf32> to vector<8x1xf32>
    %83 = tpu.reciprocal %82 {approx = true} : vector<8x1xf32> -> vector<8x1xf32>
    %84 = vector.broadcast %83 : vector<8x1xf32> to vector<8x8xf32>
    %85 = arith.mulf %80, %84 : vector<8x8xf32>
    %cst_32 = arith.constant dense<0.000000e+00> : vector<8x32xf32>
    %86 = tpu.matmul %85, %72, %cst_32 {dimension_numbers = #tpu.dot_dimension_numbers<[1], [0], [0], [1], [0, 0, 1, 1], [], []>, precision = #tpu.contract_precision<fp32>} : vector<8x8xf32>, vector<8x32xf32>, vector<8x32xf32> -> vector<8x32xf32>
    %c0_33 = arith.constant 0 : index
    %c96 = arith.constant 96 : index
    %87 = vector.load %arg7[%c0_33, %c96] : memref<16x128xf32, #tpu.memory_space<vmem>>, vector<8x32xf32>
    tpu.vector_store %arg7[%c0_33, %c96], %86 {strides = array<i32>} : memref<16x128xf32, #tpu.memory_space<vmem>>, vector<8x32xf32>,
    %c1 = arith.constant 1 : index
    %c0_34 = arith.constant 0 : index
    %c0_35 = arith.constant 0 : index
    %88 = vector.load %arg2[%c1, %c0_34, %c0_35] : memref<2x8x8xf32, #tpu.memory_space<vmem>>, vector<1x8x8xf32>
    %89 = vector.shape_cast %88 : vector<1x8x8xf32> to vector<8x8xf32>
    %cst_36 = arith.constant 0.000000e+00 : f32
    %90 = vector.broadcast %cst_36 : f32 to vector<8x8xf32>
    %91 = arith.cmpf oeq, %89, %90 : vector<8x8xf32>
    %92 = vector.extract_strided_slice %6 {offsets = [8, 0], sizes = [8, 128], strides = [1, 1]} : vector<16x128xf32> to vector<8x128xf32>
    %93 = vector.extract_strided_slice %7 {offsets = [8, 0], sizes = [8, 128], strides = [1, 1]} : vector<16x128xf32> to vector<8x128xf32>
    %94 = vector.extract_strided_slice %8 {offsets = [8, 0], sizes = [8, 128], strides = [1, 1]} : vector<16x128xf32> to vector<8x128xf32>
    %95 = vector.extract_strided_slice %92 {offsets = [0, 0], sizes = [8, 32], strides = [1, 1]} : vector<8x128xf32> to vector<8x32xf32>
    %96 = vector.extract_strided_slice %93 {offsets = [0, 0], sizes = [8, 32], strides = [1, 1]} : vector<8x128xf32> to vector<8x32xf32>
    %97 = vector.extract_strided_slice %94 {offsets = [0, 0], sizes = [8, 32], strides = [1, 1]} : vector<8x128xf32> to vector<8x32xf32>
    %cst_37 = arith.constant dense<0.000000e+00> : vector<8x8xf32>
    %98 = tpu.matmul %95, %96, %cst_37 {dimension_numbers = #tpu.dot_dimension_numbers<[1], [1], [0], [0], [0, 0, 1, 0], [], []>, precision = #tpu.contract_precision<fp32>} : vector<8x32xf32>, vector<8x32xf32>, vector<8x8xf32> -> vector<8x8xf32>
    %cst_38 = arith.constant -1.000000e+09 : f32
    %99 = vector.broadcast %cst_38 : f32 to vector<8x8xf32>
    %100 = arith.select %91, %99, %98 : vector<8x8xi1>, vector<8x8xf32>
    %cst_39 = arith.constant dense<0xFF800000> : vector<8xf32>
    %101 = vector.multi_reduction <maximumf>, %100, %cst_39 [1] : vector<8x8xf32> to vector<8xf32>
    %102 = vector.shape_cast %101 : vector<8xf32> to vector<8x1xf32>
    %103 = vector.broadcast %102 : vector<8x1xf32> to vector<8x8xf32>
    %104 = arith.subf %100, %103 : vector<8x8xf32>
    %105 = math.exp %104 : vector<8x8xf32>
    %cst_40 = arith.constant dense<0.000000e+00> : vector<8xf32>
    %106 = vector.multi_reduction <add>, %105, %cst_40 [1] : vector<8x8xf32> to vector<8xf32>
    %107 = vector.shape_cast %106 : vector<8xf32> to vector<8x1xf32>
    %108 = tpu.reciprocal %107 {approx = true} : vector<8x1xf32> -> vector<8x1xf32>
    %109 = vector.broadcast %108 : vector<8x1xf32> to vector<8x8xf32>
    %110 = arith.mulf %105, %109 : vector<8x8xf32>
    %cst_41 = arith.constant dense<0.000000e+00> : vector<8x32xf32>
    %111 = tpu.matmul %110, %97, %cst_41 {dimension_numbers = #tpu.dot_dimension_numbers<[1], [0], [0], [1], [0, 0, 1, 1], [], []>, precision = #tpu.contract_precision<fp32>} : vector<8x8xf32>, vector<8x32xf32>, vector<8x32xf32> -> vector<8x32xf32>
    %c8 = arith.constant 8 : index
    %c0_42 = arith.constant 0 : index
    %112 = vector.load %arg7[%c8, %c0_42] : memref<16x128xf32, #tpu.memory_space<vmem>>, vector<8x32xf32>
    tpu.vector_store %arg7[%c8, %c0_42], %111 {strides = array<i32>} : memref<16x128xf32, #tpu.memory_space<vmem>>, vector<8x32xf32>,
    %113 = vector.extract_strided_slice %92 {offsets = [0, 32], sizes = [8, 32], strides = [1, 1]} : vector<8x128xf32> to vector<8x32xf32>
    %114 = vector.extract_strided_slice %93 {offsets = [0, 32], sizes = [8, 32], strides = [1, 1]} : vector<8x128xf32> to vector<8x32xf32>
    %115 = vector.extract_strided_slice %94 {offsets = [0, 32], sizes = [8, 32], strides = [1, 1]} : vector<8x128xf32> to vector<8x32xf32>
    %cst_43 = arith.constant dense<0.000000e+00> : vector<8x8xf32>
    %116 = tpu.matmul %113, %114, %cst_43 {dimension_numbers = #tpu.dot_dimension_numbers<[1], [1], [0], [0], [0, 0, 1, 0], [], []>, precision = #tpu.contract_precision<fp32>} : vector<8x32xf32>, vector<8x32xf32>, vector<8x8xf32> -> vector<8x8xf32>
    %cst_44 = arith.constant -1.000000e+09 : f32
    %117 = vector.broadcast %cst_44 : f32 to vector<8x8xf32>
    %118 = arith.select %91, %117, %116 : vector<8x8xi1>, vector<8x8xf32>
    %cst_45 = arith.constant dense<0xFF800000> : vector<8xf32>
    %119 = vector.multi_reduction <maximumf>, %118, %cst_45 [1] : vector<8x8xf32> to vector<8xf32>
    %120 = vector.shape_cast %119 : vector<8xf32> to vector<8x1xf32>
    %121 = vector.broadcast %120 : vector<8x1xf32> to vector<8x8xf32>
    %122 = arith.subf %118, %121 : vector<8x8xf32>
    %123 = math.exp %122 : vector<8x8xf32>
    %cst_46 = arith.constant dense<0.000000e+00> : vector<8xf32>
    %124 = vector.multi_reduction <add>, %123, %cst_46 [1] : vector<8x8xf32> to vector<8xf32>
    %125 = vector.shape_cast %124 : vector<8xf32> to vector<8x1xf32>
    %126 = tpu.reciprocal %125 {approx = true} : vector<8x1xf32> -> vector<8x1xf32>
    %127 = vector.broadcast %126 : vector<8x1xf32> to vector<8x8xf32>
    %128 = arith.mulf %123, %127 : vector<8x8xf32>
    %cst_47 = arith.constant dense<0.000000e+00> : vector<8x32xf32>
    %129 = tpu.matmul %128, %115, %cst_47 {dimension_numbers = #tpu.dot_dimension_numbers<[1], [0], [0], [1], [0, 0, 1, 1], [], []>, precision = #tpu.contract_precision<fp32>} : vector<8x8xf32>, vector<8x32xf32>, vector<8x32xf32> -> vector<8x32xf32>
    %c8_48 = arith.constant 8 : index
    %c32_49 = arith.constant 32 : index
    %130 = vector.load %arg7[%c8_48, %c32_49] : memref<16x128xf32, #tpu.memory_space<vmem>>, vector<8x32xf32>
    tpu.vector_store %arg7[%c8_48, %c32_49], %129 {strides = array<i32>} : memref<16x128xf32, #tpu.memory_space<vmem>>, vector<8x32xf32>,
    %131 = vector.extract_strided_slice %92 {offsets = [0, 64], sizes = [8, 32], strides = [1, 1]} : vector<8x128xf32> to vector<8x32xf32>
    %132 = vector.extract_strided_slice %93 {offsets = [0, 64], sizes = [8, 32], strides = [1, 1]} : vector<8x128xf32> to vector<8x32xf32>
    %133 = vector.extract_strided_slice %94 {offsets = [0, 64], sizes = [8, 32], strides = [1, 1]} : vector<8x128xf32> to vector<8x32xf32>
    %cst_50 = arith.constant dense<0.000000e+00> : vector<8x8xf32>
    %134 = tpu.matmul %131, %132, %cst_50 {dimension_numbers = #tpu.dot_dimension_numbers<[1], [1], [0], [0], [0, 0, 1, 0], [], []>, precision = #tpu.contract_precision<fp32>} : vector<8x32xf32>, vector<8x32xf32>, vector<8x8xf32> -> vector<8x8xf32>
    %cst_51 = arith.constant -1.000000e+09 : f32
    %135 = vector.broadcast %cst_51 : f32 to vector<8x8xf32>
    %136 = arith.select %91, %135, %134 : vector<8x8xi1>, vector<8x8xf32>
    %cst_52 = arith.constant dense<0xFF800000> : vector<8xf32>
    %137 = vector.multi_reduction <maximumf>, %136, %cst_52 [1] : vector<8x8xf32> to vector<8xf32>
    %138 = vector.shape_cast %137 : vector<8xf32> to vector<8x1xf32>
    %139 = vector.broadcast %138 : vector<8x1xf32> to vector<8x8xf32>
    %140 = arith.subf %136, %139 : vector<8x8xf32>
    %141 = math.exp %140 : vector<8x8xf32>
    %cst_53 = arith.constant dense<0.000000e+00> : vector<8xf32>
    %142 = vector.multi_reduction <add>, %141, %cst_53 [1] : vector<8x8xf32> to vector<8xf32>
    %143 = vector.shape_cast %142 : vector<8xf32> to vector<8x1xf32>
    %144 = tpu.reciprocal %143 {approx = true} : vector<8x1xf32> -> vector<8x1xf32>
    %145 = vector.broadcast %144 : vector<8x1xf32> to vector<8x8xf32>
    %146 = arith.mulf %141, %145 : vector<8x8xf32>
    %cst_54 = arith.constant dense<0.000000e+00> : vector<8x32xf32>
    %147 = tpu.matmul %146, %133, %cst_54 {dimension_numbers = #tpu.dot_dimension_numbers<[1], [0], [0], [1], [0, 0, 1, 1], [], []>, precision = #tpu.contract_precision<fp32>} : vector<8x8xf32>, vector<8x32xf32>, vector<8x32xf32> -> vector<8x32xf32>
    %c8_55 = arith.constant 8 : index
    %c64_56 = arith.constant 64 : index
    %148 = vector.load %arg7[%c8_55, %c64_56] : memref<16x128xf32, #tpu.memory_space<vmem>>, vector<8x32xf32>
    tpu.vector_store %arg7[%c8_55, %c64_56], %147 {strides = array<i32>} : memref<16x128xf32, #tpu.memory_space<vmem>>, vector<8x32xf32>,
    %149 = vector.extract_strided_slice %92 {offsets = [0, 96], sizes = [8, 32], strides = [1, 1]} : vector<8x128xf32> to vector<8x32xf32>
    %150 = vector.extract_strided_slice %93 {offsets = [0, 96], sizes = [8, 32], strides = [1, 1]} : vector<8x128xf32> to vector<8x32xf32>
    %151 = vector.extract_strided_slice %94 {offsets = [0, 96], sizes = [8, 32], strides = [1, 1]} : vector<8x128xf32> to vector<8x32xf32>
    %cst_57 = arith.constant dense<0.000000e+00> : vector<8x8xf32>
    %152 = tpu.matmul %149, %150, %cst_57 {dimension_numbers = #tpu.dot_dimension_numbers<[1], [1], [0], [0], [0, 0, 1, 0], [], []>, precision = #tpu.contract_precision<fp32>} : vector<8x32xf32>, vector<8x32xf32>, vector<8x8xf32> -> vector<8x8xf32>
    %cst_58 = arith.constant -1.000000e+09 : f32
    %153 = vector.broadcast %cst_58 : f32 to vector<8x8xf32>
    %154 = arith.select %91, %153, %152 : vector<8x8xi1>, vector<8x8xf32>
    %cst_59 = arith.constant dense<0xFF800000> : vector<8xf32>
    %155 = vector.multi_reduction <maximumf>, %154, %cst_59 [1] : vector<8x8xf32> to vector<8xf32>
    %156 = vector.shape_cast %155 : vector<8xf32> to vector<8x1xf32>
    %157 = vector.broadcast %156 : vector<8x1xf32> to vector<8x8xf32>
    %158 = arith.subf %154, %157 : vector<8x8xf32>
    %159 = math.exp %158 : vector<8x8xf32>
    %cst_60 = arith.constant dense<0.000000e+00> : vector<8xf32>
    %160 = vector.multi_reduction <add>, %159, %cst_60 [1] : vector<8x8xf32> to vector<8xf32>
    %161 = vector.shape_cast %160 : vector<8xf32> to vector<8x1xf32>
    %162 = tpu.reciprocal %161 {approx = true} : vector<8x1xf32> -> vector<8x1xf32>
    %163 = vector.broadcast %162 : vector<8x1xf32> to vector<8x8xf32>
    %164 = arith.mulf %159, %163 : vector<8x8xf32>
    %cst_61 = arith.constant dense<0.000000e+00> : vector<8x32xf32>
    %165 = tpu.matmul %164, %151, %cst_61 {dimension_numbers = #tpu.dot_dimension_numbers<[1], [0], [0], [1], [0, 0, 1, 1], [], []>, precision = #tpu.contract_precision<fp32>} : vector<8x8xf32>, vector<8x32xf32>, vector<8x32xf32> -> vector<8x32xf32>
    %c8_62 = arith.constant 8 : index
    %c96_63 = arith.constant 96 : index
    %166 = vector.load %arg7[%c8_62, %c96_63] : memref<16x128xf32, #tpu.memory_space<vmem>>, vector<8x32xf32>
    tpu.vector_store %arg7[%c8_62, %c96_63], %165 {strides = array<i32>} : memref<16x128xf32, #tpu.memory_space<vmem>>, vector<8x32xf32>,
    %c0_64 = arith.constant 0 : index
    %c0_65 = arith.constant 0 : index
    %167 = vector.load %arg7[%c0_64, %c0_65] : memref<16x128xf32, #tpu.memory_space<vmem>>, vector<16x128xf32>
    %c0_66 = arith.constant 0 : index
    %c0_67 = arith.constant 0 : index
    %168 = vector.load %arg5[%c0_66, %c0_67] : memref<128x32xf32, #tpu.memory_space<vmem>>, vector<128x32xf32>
    %cst_68 = arith.constant dense<0.000000e+00> : vector<16x32xf32>
    %169 = tpu.matmul %167, %168, %cst_68 {dimension_numbers = #tpu.dot_dimension_numbers<[1], [0], [0], [1], [0, 0, 1, 1], [], []>, precision = #tpu.contract_precision<fp32>} : vector<16x128xf32>, vector<128x32xf32>, vector<16x32xf32> -> vector<16x32xf32>
    %c0_69 = arith.constant 0 : index
    %c0_70 = arith.constant 0 : index
    %c0_71 = arith.constant 0 : index
    %170 = vector.load %arg6[%c0_69, %c0_70, %c0_71] : memref<1x16x32xf32, #tpu.memory_space<vmem>>, vector<1x16x32xf32>
    %171 = vector.shape_cast %170 : vector<1x16x32xf32> to vector<16x32xf32>
    %172 = vector.shape_cast %169 : vector<16x32xf32> to vector<1x16x32xf32>
    tpu.vector_store %arg6[%c0_69, %c0_70, %c0_71], %172 {strides = array<i32>} : memref<1x16x32xf32, #tpu.memory_space<vmem>>, vector<1x16x32xf32>,
    return
  }
  func.func @transform_0(%arg0: i32) -> (i32, i32) {
    %c0_i32 = arith.constant 0 : i32
    %c0_i32_0 = arith.constant 0 : i32
    return %arg0, %c0_i32 : i32, i32
  }
  func.func @transform_1(%arg0: i32) -> (i32, i32, i32) {
    %c0_i32 = arith.constant 0 : i32
    %c0_i32_0 = arith.constant 0 : i32
    %c0_i32_1 = arith.constant 0 : i32
    return %arg0, %c0_i32, %c0_i32_0 : i32, i32, i32
  }
  func.func @transform_2(%arg0: i32) -> (i32, i32) {
    %c0_i32 = arith.constant 0 : i32
    %c0_i32_0 = arith.constant 0 : i32
    %c0_i32_1 = arith.constant 0 : i32
    return %c0_i32, %c0_i32_0 : i32, i32
  }
  func.func @transform_3(%arg0: i32) -> (i32, i32) {
    %c0_i32 = arith.constant 0 : i32
    %c0_i32_0 = arith.constant 0 : i32
    %c0_i32_1 = arith.constant 0 : i32
    return %c0_i32, %c0_i32_0 : i32, i32
  }
  func.func @transform_4(%arg0: i32) -> (i32, i32) {
    %c0_i32 = arith.constant 0 : i32
    %c0_i32_0 = arith.constant 0 : i32
    %c0_i32_1 = arith.constant 0 : i32
    return %c0_i32, %c0_i32_0 : i32, i32
  }
  func.func @transform_5(%arg0: i32) -> (i32, i32, i32) {
    %c0_i32 = arith.constant 0 : i32
    %c0_i32_0 = arith.constant 0 : i32
    %c0_i32_1 = arith.constant 0 : i32
    return %arg0, %c0_i32, %c0_i32_0 : i32, i32, i32
  }
}

module attributes {stable_mosaic.version = 11 : i64} {
  func.func @_mha_kernel(%arg0: i32, %arg1: memref<16x32xf32, #tpu.memory_space<vmem>>, %arg2: memref<2x8x8xf32, #tpu.memory_space<vmem>>, %arg3: memref<32x384xf32, #tpu.memory_space<vmem>>, %arg4: memref<1x384xf32, #tpu.memory_space<vmem>>, %arg5: memref<128x32xf32, #tpu.memory_space<vmem>>, %arg6: memref<1x16x32xf32, #tpu.memory_space<vmem>>, %arg7: memref<16x128xf32, #tpu.memory_space<vmem>>) attributes {dimension_semantics = [#tpu.dimension_semantics<parallel>], iteration_bounds = array<i64: 1>, scalar_prefetch = 0 : i64, scratch_operands = 1 : i64, tpu.core_type = #tpu.core_type<tc>, window_params = [{transform_indices = @transform_0, window_bounds = array<i64: 16, 32>}, {transform_indices = @transform_1, window_bounds = array<i64: 2, 8, 8>}, {pipeline_mode = #tpu.pipeline_mode<synchronous>, transform_indices = @transform_2, window_bounds = array<i64: 32, 384>}, {pipeline_mode = #tpu.pipeline_mode<synchronous>, transform_indices = @transform_3, window_bounds = array<i64: 1, 384>}, {pipeline_mode = #tpu.pipeline_mode<synchronous>, transform_indices = @transform_4, window_bounds = array<i64: 128, 32>}, {transform_indices = @transform_5, window_bounds = array<i64: 1, 16, 32>}]} {
    %c0 = arith.constant 0 : index
    %c0_0 = arith.constant 0 : index
    %0 = vector.load %arg1[%c0, %c0_0] : memref<16x32xf32, #tpu.memory_space<vmem>>, vector<16x32xf32>
    %c0_1 = arith.constant 0 : index
    %c0_2 = arith.constant 0 : index
    %1 = vector.load %arg3[%c0_1, %c0_2] : memref<32x384xf32, #tpu.memory_space<vmem>>, vector<32x384xf32>
    %cst = arith.constant dense<0.000000e+00> : vector<16x384xf32>
    %2 = tpu.matmul %0, %1, %cst {dimension_numbers = #tpu.dot_dimension_numbers<[1], [0], [0], [1], [0, 0, 1, 1], [], []>} : vector<16x32xf32>, vector<32x384xf32>, vector<16x384xf32> -> vector<16x384xf32>
    %c0_3 = arith.constant 0 : index
    %c0_4 = arith.constant 0 : index
    %3 = vector.load %arg4[%c0_3, %c0_4] : memref<1x384xf32, #tpu.memory_space<vmem>>, vector<1x384xf32>
    %4 = vector.broadcast %3 : vector<1x384xf32> to vector<16x384xf32>
    %5 = arith.addf %2, %4 : vector<16x384xf32>
    %6 = vector.extract_strided_slice %5 {offsets = [0, 0], sizes = [16, 128], strides = [1, 1]} : vector<16x384xf32> to vector<16x128xf32>
    %7 = vector.extract_strided_slice %5 {offsets = [0, 128], sizes = [16, 128], strides = [1, 1]} : vector<16x384xf32> to vector<16x128xf32>
    %8 = vector.extract_strided_slice %5 {offsets = [0, 256], sizes = [16, 128], strides = [1, 1]} : vector<16x384xf32> to vector<16x128xf32>
    %c0_5 = arith.constant 0 : index
    %c0_6 = arith.constant 0 : index
    %c0_7 = arith.constant 0 : index
    %9 = vector.load %arg2[%c0_5, %c0_6, %c0_7] : memref<2x8x8xf32, #tpu.memory_space<vmem>>, vector<1x8x8xf32>
    %10 = vector.shape_cast %9 : vector<1x8x8xf32> to vector<8x8xf32>
    %cst_8 = arith.constant 0.000000e+00 : f32
    %11 = vector.broadcast %cst_8 : f32 to vector<8x8xf32>
    %12 = arith.cmpf oeq, %10, %11 : vector<8x8xf32>
    %13 = vector.extract_strided_slice %6 {offsets = [0, 0], sizes = [8, 128], strides = [1, 1]} : vector<16x128xf32> to vector<8x128xf32>
    %14 = vector.extract_strided_slice %7 {offsets = [0, 0], sizes = [8, 128], strides = [1, 1]} : vector<16x128xf32> to vector<8x128xf32>
    %15 = vector.extract_strided_slice %8 {offsets = [0, 0], sizes = [8, 128], strides = [1, 1]} : vector<16x128xf32> to vector<8x128xf32>
    %16 = vector.extract_strided_slice %13 {offsets = [0, 0], sizes = [8, 32], strides = [1, 1]} : vector<8x128xf32> to vector<8x32xf32>
    %17 = vector.extract_strided_slice %14 {offsets = [0, 0], sizes = [8, 32], strides = [1, 1]} : vector<8x128xf32> to vector<8x32xf32>
    %18 = vector.extract_strided_slice %15 {offsets = [0, 0], sizes = [8, 32], strides = [1, 1]} : vector<8x128xf32> to vector<8x32xf32>
    %cst_9 = arith.constant dense<0.000000e+00> : vector<8x8xf32>
    %19 = tpu.matmul %16, %17, %cst_9 {dimension_numbers = #tpu.dot_dimension_numbers<[1], [1], [0], [0], [0, 0, 1, 0], [], []>} : vector<8x32xf32>, vector<8x32xf32>, vector<8x8xf32> -> vector<8x8xf32>
    %cst_10 = arith.constant -1.000000e+09 : f32
    %20 = vector.broadcast %cst_10 : f32 to vector<8x8xf32>
    %21 = arith.select %12, %20, %19 : vector<8x8xi1>, vector<8x8xf32>
    %cst_11 = arith.constant dense<0xFF800000> : vector<8xf32>
    %22 = vector.multi_reduction <maximumf>, %21, %cst_11 [1] : vector<8x8xf32> to vector<8xf32>
    %23 = vector.shape_cast %22 : vector<8xf32> to vector<8x1xf32>
    %24 = vector.broadcast %23 : vector<8x1xf32> to vector<8x8xf32>
    %25 = arith.subf %21, %24 : vector<8x8xf32>
    %26 = math.exp %25 : vector<8x8xf32>
    %cst_12 = arith.constant dense<0.000000e+00> : vector<8xf32>
    %27 = vector.multi_reduction <add>, %26, %cst_12 [1] : vector<8x8xf32> to vector<8xf32>
    %28 = vector.shape_cast %27 : vector<8xf32> to vector<8x1xf32>
    %29 = tpu.reciprocal %28 {approx = true} : vector<8x1xf32> -> vector<8x1xf32>
    %30 = vector.broadcast %29 : vector<8x1xf32> to vector<8x8xf32>
    %31 = arith.mulf %26, %30 : vector<8x8xf32>
    %cst_13 = arith.constant dense<0.000000e+00> : vector<8x32xf32>
    %32 = tpu.matmul %31, %18, %cst_13 {dimension_numbers = #tpu.dot_dimension_numbers<[1], [0], [0], [1], [0, 0, 1, 1], [], []>} : vector<8x8xf32>, vector<8x32xf32>, vector<8x32xf32> -> vector<8x32xf32>
    %c0_14 = arith.constant 0 : index
    %c0_15 = arith.constant 0 : index
    %33 = vector.load %arg7[%c0_14, %c0_15] : memref<16x128xf32, #tpu.memory_space<vmem>>, vector<8x32xf32>
    tpu.vector_store %arg7[%c0_14, %c0_15], %32 {strides = array<i32>} : memref<16x128xf32, #tpu.memory_space<vmem>>, vector<8x32xf32>,
    %34 = vector.extract_strided_slice %13 {offsets = [0, 32], sizes = [8, 32], strides = [1, 1]} : vector<8x128xf32> to vector<8x32xf32>
    %35 = vector.extract_strided_slice %14 {offsets = [0, 32], sizes = [8, 32], strides = [1, 1]} : vector<8x128xf32> to vector<8x32xf32>
    %36 = vector.extract_strided_slice %15 {offsets = [0, 32], sizes = [8, 32], strides = [1, 1]} : vector<8x128xf32> to vector<8x32xf32>
    %cst_16 = arith.constant dense<0.000000e+00> : vector<8x8xf32>
    %37 = tpu.matmul %34, %35, %cst_16 {dimension_numbers = #tpu.dot_dimension_numbers<[1], [1], [0], [0], [0, 0, 1, 0], [], []>} : vector<8x32xf32>, vector<8x32xf32>, vector<8x8xf32> -> vector<8x8xf32>
    %cst_17 = arith.constant -1.000000e+09 : f32
    %38 = vector.broadcast %cst_17 : f32 to vector<8x8xf32>
    %39 = arith.select %12, %38, %37 : vector<8x8xi1>, vector<8x8xf32>
    %cst_18 = arith.constant dense<0xFF800000> : vector<8xf32>
    %40 = vector.multi_reduction <maximumf>, %39, %cst_18 [1] : vector<8x8xf32> to vector<8xf32>
    %41 = vector.shape_cast %40 : vector<8xf32> to vector<8x1xf32>
    %42 = vector.broadcast %41 : vector<8x1xf32> to vector<8x8xf32>
    %43 = arith.subf %39, %42 : vector<8x8xf32>
    %44 = math.exp %43 : vector<8x8xf32>
    %cst_19 = arith.constant dense<0.000000e+00> : vector<8xf32>
    %45 = vector.multi_reduction <add>, %44, %cst_19 [1] : vector<8x8xf32> to vector<8xf32>
    %46 = vector.shape_cast %45 : vector<8xf32> to vector<8x1xf32>
    %47 = tpu.reciprocal %46 {approx = true} : vector<8x1xf32> -> vector<8x1xf32>
    %48 = vector.broadcast %47 : vector<8x1xf32> to vector<8x8xf32>
    %49 = arith.mulf %44, %48 : vector<8x8xf32>
    %cst_20 = arith.constant dense<0.000000e+00> : vector<8x32xf32>
    %50 = tpu.matmul %49, %36, %cst_20 {dimension_numbers = #tpu.dot_dimension_numbers<[1], [0], [0], [1], [0, 0, 1, 1], [], []>} : vector<8x8xf32>, vector<8x32xf32>, vector<8x32xf32> -> vector<8x32xf32>
    %c0_21 = arith.constant 0 : index
    %c32 = arith.constant 32 : index
    %51 = vector.load %arg7[%c0_21, %c32] : memref<16x128xf32, #tpu.memory_space<vmem>>, vector<8x32xf32>
    tpu.vector_store %arg7[%c0_21, %c32], %50 {strides = array<i32>} : memref<16x128xf32, #tpu.memory_space<vmem>>, vector<8x32xf32>,
    %52 = vector.extract_strided_slice %13 {offsets = [0, 64], sizes = [8, 32], strides = [1, 1]} : vector<8x128xf32> to vector<8x32xf32>
    %53 = vector.extract_strided_slice %14 {offsets = [0, 64], sizes = [8, 32], strides = [1, 1]} : vector<8x128xf32> to vector<8x32xf32>
    %54 = vector.extract_strided_slice %15 {offsets = [0, 64], sizes = [8, 32], strides = [1, 1]} : vector<8x128xf32> to vector<8x32xf32>
    %cst_22 = arith.constant dense<0.000000e+00> : vector<8x8xf32>
    %55 = tpu.matmul %52, %53, %cst_22 {dimension_numbers = #tpu.dot_dimension_numbers<[1], [1], [0], [0], [0, 0, 1, 0], [], []>} : vector<8x32xf32>, vector<8x32xf32>, vector<8x8xf32> -> vector<8x8xf32>
    %cst_23 = arith.constant -1.000000e+09 : f32
    %56 = vector.broadcast %cst_23 : f32 to vector<8x8xf32>
    %57 = arith.select %12, %56, %55 : vector<8x8xi1>, vector<8x8xf32>
    %cst_24 = arith.constant dense<0xFF800000> : vector<8xf32>
    %58 = vector.multi_reduction <maximumf>, %57, %cst_24 [1] : vector<8x8xf32> to vector<8xf32>
    %59 = vector.shape_cast %58 : vector<8xf32> to vector<8x1xf32>
    %60 = vector.broadcast %59 : vector<8x1xf32> to vector<8x8xf32>
    %61 = arith.subf %57, %60 : vector<8x8xf32>
    %62 = math.exp %61 : vector<8x8xf32>
    %cst_25 = arith.constant dense<0.000000e+00> : vector<8xf32>
    %63 = vector.multi_reduction <add>, %62, %cst_25 [1] : vector<8x8xf32> to vector<8xf32>
    %64 = vector.shape_cast %63 : vector<8xf32> to vector<8x1xf32>
    %65 = tpu.reciprocal %64 {approx = true} : vector<8x1xf32> -> vector<8x1xf32>
    %66 = vector.broadcast %65 : vector<8x1xf32> to vector<8x8xf32>
    %67 = arith.mulf %62, %66 : vector<8x8xf32>
    %cst_26 = arith.constant dense<0.000000e+00> : vector<8x32xf32>
    %68 = tpu.matmul %67, %54, %cst_26 {dimension_numbers = #tpu.dot_dimension_numbers<[1], [0], [0], [1], [0, 0, 1, 1], [], []>} : vector<8x8xf32>, vector<8x32xf32>, vector<8x32xf32> -> vector<8x32xf32>
    %c0_27 = arith.constant 0 : index
    %c64 = arith.constant 64 : index
    %69 = vector.load %arg7[%c0_27, %c64] : memref<16x128xf32, #tpu.memory_space<vmem>>, vector<8x32xf32>
    tpu.vector_store %arg7[%c0_27, %c64], %68 {strides = array<i32>} : memref<16x128xf32, #tpu.memory_space<vmem>>, vector<8x32xf32>,
    %70 = vector.extract_strided_slice %13 {offsets = [0, 96], sizes = [8, 32], strides = [1, 1]} : vector<8x128xf32> to vector<8x32xf32>
    %71 = vector.extract_strided_slice %14 {offsets = [0, 96], sizes = [8, 32], strides = [1, 1]} : vector<8x128xf32> to vector<8x32xf32>
    %72 = vector.extract_strided_slice %15 {offsets = [0, 96], sizes = [8, 32], strides = [1, 1]} : vector<8x128xf32> to vector<8x32xf32>
    %cst_28 = arith.constant dense<0.000000e+00> : vector<8x8xf32>
    %73 = tpu.matmul %70, %71, %cst_28 {dimension_numbers = #tpu.dot_dimension_numbers<[1], [1], [0], [0], [0, 0, 1, 0], [], []>} : vector<8x32xf32>, vector<8x32xf32>, vector<8x8xf32> -> vector<8x8xf32>
    %cst_29 = arith.constant -1.000000e+09 : f32
    %74 = vector.broadcast %cst_29 : f32 to vector<8x8xf32>
    %75 = arith.select %12, %74, %73 : vector<8x8xi1>, vector<8x8xf32>
    %cst_30 = arith.constant dense<0xFF800000> : vector<8xf32>
    %76 = vector.multi_reduction <maximumf>, %75, %cst_30 [1] : vector<8x8xf32> to vector<8xf32>
    %77 = vector.shape_cast %76 : vector<8xf32> to vector<8x1xf32>
    %78 = vector.broadcast %77 : vector<8x1xf32> to vector<8x8xf32>
    %79 = arith.subf %75, %78 : vector<8x8xf32>
    %80 = math.exp %79 : vector<8x8xf32>
    %cst_31 = arith.constant dense<0.000000e+00> : vector<8xf32>
    %81 = vector.multi_reduction <add>, %80, %cst_31 [1] : vector<8x8xf32> to vector<8xf32>
    %82 = vector.shape_cast %81 : vector<8xf32> to vector<8x1xf32>
    %83 = tpu.reciprocal %82 {approx = true} : vector<8x1xf32> -> vector<8x1xf32>
    %84 = vector.broadcast %83 : vector<8x1xf32> to vector<8x8xf32>
    %85 = arith.mulf %80, %84 : vector<8x8xf32>
    %cst_32 = arith.constant dense<0.000000e+00> : vector<8x32xf32>
    %86 = tpu.matmul %85, %72, %cst_32 {dimension_numbers = #tpu.dot_dimension_numbers<[1], [0], [0], [1], [0, 0, 1, 1], [], []>} : vector<8x8xf32>, vector<8x32xf32>, vector<8x32xf32> -> vector<8x32xf32>
    %c0_33 = arith.constant 0 : index
    %c96 = arith.constant 96 : index
    %87 = vector.load %arg7[%c0_33, %c96] : memref<16x128xf32, #tpu.memory_space<vmem>>, vector<8x32xf32>
    tpu.vector_store %arg7[%c0_33, %c96], %86 {strides = array<i32>} : memref<16x128xf32, #tpu.memory_space<vmem>>, vector<8x32xf32>,
    %c1 = arith.constant 1 : index
    %c0_34 = arith.constant 0 : index
    %c0_35 = arith.constant 0 : index
    %88 = vector.load %arg2[%c1, %c0_34, %c0_35] : memref<2x8x8xf32, #tpu.memory_space<vmem>>, vector<1x8x8xf32>
    %89 = vector.shape_cast %88 : vector<1x8x8xf32> to vector<8x8xf32>
    %cst_36 = arith.constant 0.000000e+00 : f32
    %90 = vector.broadcast %cst_36 : f32 to vector<8x8xf32>
    %91 = arith.cmpf oeq, %89, %90 : vector<8x8xf32>
    %92 = vector.extract_strided_slice %6 {offsets = [8, 0], sizes = [8, 128], strides = [1, 1]} : vector<16x128xf32> to vector<8x128xf32>
    %93 = vector.extract_strided_slice %7 {offsets = [8, 0], sizes = [8, 128], strides = [1, 1]} : vector<16x128xf32> to vector<8x128xf32>
    %94 = vector.extract_strided_slice %8 {offsets = [8, 0], sizes = [8, 128], strides = [1, 1]} : vector<16x128xf32> to vector<8x128xf32>
    %95 = vector.extract_strided_slice %92 {offsets = [0, 0], sizes = [8, 32], strides = [1, 1]} : vector<8x128xf32> to vector<8x32xf32>
    %96 = vector.extract_strided_slice %93 {offsets = [0, 0], sizes = [8, 32], strides = [1, 1]} : vector<8x128xf32> to vector<8x32xf32>
    %97 = vector.extract_strided_slice %94 {offsets = [0, 0], sizes = [8, 32], strides = [1, 1]} : vector<8x128xf32> to vector<8x32xf32>
    %cst_37 = arith.constant dense<0.000000e+00> : vector<8x8xf32>
    %98 = tpu.matmul %95, %96, %cst_37 {dimension_numbers = #tpu.dot_dimension_numbers<[1], [1], [0], [0], [0, 0, 1, 0], [], []>} : vector<8x32xf32>, vector<8x32xf32>, vector<8x8xf32> -> vector<8x8xf32>
    %cst_38 = arith.constant -1.000000e+09 : f32
    %99 = vector.broadcast %cst_38 : f32 to vector<8x8xf32>
    %100 = arith.select %91, %99, %98 : vector<8x8xi1>, vector<8x8xf32>
    %cst_39 = arith.constant dense<0xFF800000> : vector<8xf32>
    %101 = vector.multi_reduction <maximumf>, %100, %cst_39 [1] : vector<8x8xf32> to vector<8xf32>
    %102 = vector.shape_cast %101 : vector<8xf32> to vector<8x1xf32>
    %103 = vector.broadcast %102 : vector<8x1xf32> to vector<8x8xf32>
    %104 = arith.subf %100, %103 : vector<8x8xf32>
    %105 = math.exp %104 : vector<8x8xf32>
    %cst_40 = arith.constant dense<0.000000e+00> : vector<8xf32>
    %106 = vector.multi_reduction <add>, %105, %cst_40 [1] : vector<8x8xf32> to vector<8xf32>
    %107 = vector.shape_cast %106 : vector<8xf32> to vector<8x1xf32>
    %108 = tpu.reciprocal %107 {approx = true} : vector<8x1xf32> -> vector<8x1xf32>
    %109 = vector.broadcast %108 : vector<8x1xf32> to vector<8x8xf32>
    %110 = arith.mulf %105, %109 : vector<8x8xf32>
    %cst_41 = arith.constant dense<0.000000e+00> : vector<8x32xf32>
    %111 = tpu.matmul %110, %97, %cst_41 {dimension_numbers = #tpu.dot_dimension_numbers<[1], [0], [0], [1], [0, 0, 1, 1], [], []>} : vector<8x8xf32>, vector<8x32xf32>, vector<8x32xf32> -> vector<8x32xf32>
    %c8 = arith.constant 8 : index
    %c0_42 = arith.constant 0 : index
    %112 = vector.load %arg7[%c8, %c0_42] : memref<16x128xf32, #tpu.memory_space<vmem>>, vector<8x32xf32>
    tpu.vector_store %arg7[%c8, %c0_42], %111 {strides = array<i32>} : memref<16x128xf32, #tpu.memory_space<vmem>>, vector<8x32xf32>,
    %113 = vector.extract_strided_slice %92 {offsets = [0, 32], sizes = [8, 32], strides = [1, 1]} : vector<8x128xf32> to vector<8x32xf32>
    %114 = vector.extract_strided_slice %93 {offsets = [0, 32], sizes = [8, 32], strides = [1, 1]} : vector<8x128xf32> to vector<8x32xf32>
    %115 = vector.extract_strided_slice %94 {offsets = [0, 32], sizes = [8, 32], strides = [1, 1]} : vector<8x128xf32> to vector<8x32xf32>
    %cst_43 = arith.constant dense<0.000000e+00> : vector<8x8xf32>
    %116 = tpu.matmul %113, %114, %cst_43 {dimension_numbers = #tpu.dot_dimension_numbers<[1], [1], [0], [0], [0, 0, 1, 0], [], []>} : vector<8x32xf32>, vector<8x32xf32>, vector<8x8xf32> -> vector<8x8xf32>
    %cst_44 = arith.constant -1.000000e+09 : f32
    %117 = vector.broadcast %cst_44 : f32 to vector<8x8xf32>
    %118 = arith.select %91, %117, %116 : vector<8x8xi1>, vector<8x8xf32>
    %cst_45 = arith.constant dense<0xFF800000> : vector<8xf32>
    %119 = vector.multi_reduction <maximumf>, %118, %cst_45 [1] : vector<8x8xf32> to vector<8xf32>
    %120 = vector.shape_cast %119 : vector<8xf32> to vector<8x1xf32>
    %121 = vector.broadcast %120 : vector<8x1xf32> to vector<8x8xf32>
    %122 = arith.subf %118, %121 : vector<8x8xf32>
    %123 = math.exp %122 : vector<8x8xf32>
    %cst_46 = arith.constant dense<0.000000e+00> : vector<8xf32>
    %124 = vector.multi_reduction <add>, %123, %cst_46 [1] : vector<8x8xf32> to vector<8xf32>
    %125 = vector.shape_cast %124 : vector<8xf32> to vector<8x1xf32>
    %126 = tpu.reciprocal %125 {approx = true} : vector<8x1xf32> -> vector<8x1xf32>
    %127 = vector.broadcast %126 : vector<8x1xf32> to vector<8x8xf32>
    %128 = arith.mulf %123, %127 : vector<8x8xf32>
    %cst_47 = arith.constant dense<0.000000e+00> : vector<8x32xf32>
    %129 = tpu.matmul %128, %115, %cst_47 {dimension_numbers = #tpu.dot_dimension_numbers<[1], [0], [0], [1], [0, 0, 1, 1], [], []>} : vector<8x8xf32>, vector<8x32xf32>, vector<8x32xf32> -> vector<8x32xf32>
    %c8_48 = arith.constant 8 : index
    %c32_49 = arith.constant 32 : index
    %130 = vector.load %arg7[%c8_48, %c32_49] : memref<16x128xf32, #tpu.memory_space<vmem>>, vector<8x32xf32>
    tpu.vector_store %arg7[%c8_48, %c32_49], %129 {strides = array<i32>} : memref<16x128xf32, #tpu.memory_space<vmem>>, vector<8x32xf32>,
    %131 = vector.extract_strided_slice %92 {offsets = [0, 64], sizes = [8, 32], strides = [1, 1]} : vector<8x128xf32> to vector<8x32xf32>
    %132 = vector.extract_strided_slice %93 {offsets = [0, 64], sizes = [8, 32], strides = [1, 1]} : vector<8x128xf32> to vector<8x32xf32>
    %133 = vector.extract_strided_slice %94 {offsets = [0, 64], sizes = [8, 32], strides = [1, 1]} : vector<8x128xf32> to vector<8x32xf32>
    %cst_50 = arith.constant dense<0.000000e+00> : vector<8x8xf32>
    %134 = tpu.matmul %131, %132, %cst_50 {dimension_numbers = #tpu.dot_dimension_numbers<[1], [1], [0], [0], [0, 0, 1, 0], [], []>} : vector<8x32xf32>, vector<8x32xf32>, vector<8x8xf32> -> vector<8x8xf32>
    %cst_51 = arith.constant -1.000000e+09 : f32
    %135 = vector.broadcast %cst_51 : f32 to vector<8x8xf32>
    %136 = arith.select %91, %135, %134 : vector<8x8xi1>, vector<8x8xf32>
    %cst_52 = arith.constant dense<0xFF800000> : vector<8xf32>
    %137 = vector.multi_reduction <maximumf>, %136, %cst_52 [1] : vector<8x8xf32> to vector<8xf32>
    %138 = vector.shape_cast %137 : vector<8xf32> to vector<8x1xf32>
    %139 = vector.broadcast %138 : vector<8x1xf32> to vector<8x8xf32>
    %140 = arith.subf %136, %139 : vector<8x8xf32>
    %141 = math.exp %140 : vector<8x8xf32>
    %cst_53 = arith.constant dense<0.000000e+00> : vector<8xf32>
    %142 = vector.multi_reduction <add>, %141, %cst_53 [1] : vector<8x8xf32> to vector<8xf32>
    %143 = vector.shape_cast %142 : vector<8xf32> to vector<8x1xf32>
    %144 = tpu.reciprocal %143 {approx = true} : vector<8x1xf32> -> vector<8x1xf32>
    %145 = vector.broadcast %144 : vector<8x1xf32> to vector<8x8xf32>
    %146 = arith.mulf %141, %145 : vector<8x8xf32>
    %cst_54 = arith.constant dense<0.000000e+00> : vector<8x32xf32>
    %147 = tpu.matmul %146, %133, %cst_54 {dimension_numbers = #tpu.dot_dimension_numbers<[1], [0], [0], [1], [0, 0, 1, 1], [], []>} : vector<8x8xf32>, vector<8x32xf32>, vector<8x32xf32> -> vector<8x32xf32>
    %c8_55 = arith.constant 8 : index
    %c64_56 = arith.constant 64 : index
    %148 = vector.load %arg7[%c8_55, %c64_56] : memref<16x128xf32, #tpu.memory_space<vmem>>, vector<8x32xf32>
    tpu.vector_store %arg7[%c8_55, %c64_56], %147 {strides = array<i32>} : memref<16x128xf32, #tpu.memory_space<vmem>>, vector<8x32xf32>,
    %149 = vector.extract_strided_slice %92 {offsets = [0, 96], sizes = [8, 32], strides = [1, 1]} : vector<8x128xf32> to vector<8x32xf32>
    %150 = vector.extract_strided_slice %93 {offsets = [0, 96], sizes = [8, 32], strides = [1, 1]} : vector<8x128xf32> to vector<8x32xf32>
    %151 = vector.extract_strided_slice %94 {offsets = [0, 96], sizes = [8, 32], strides = [1, 1]} : vector<8x128xf32> to vector<8x32xf32>
    %cst_57 = arith.constant dense<0.000000e+00> : vector<8x8xf32>
    %152 = tpu.matmul %149, %150, %cst_57 {dimension_numbers = #tpu.dot_dimension_numbers<[1], [1], [0], [0], [0, 0, 1, 0], [], []>} : vector<8x32xf32>, vector<8x32xf32>, vector<8x8xf32> -> vector<8x8xf32>
    %cst_58 = arith.constant -1.000000e+09 : f32
    %153 = vector.broadcast %cst_58 : f32 to vector<8x8xf32>
    %154 = arith.select %91, %153, %152 : vector<8x8xi1>, vector<8x8xf32>
    %cst_59 = arith.constant dense<0xFF800000> : vector<8xf32>
    %155 = vector.multi_reduction <maximumf>, %154, %cst_59 [1] : vector<8x8xf32> to vector<8xf32>
    %156 = vector.shape_cast %155 : vector<8xf32> to vector<8x1xf32>
    %157 = vector.broadcast %156 : vector<8x1xf32> to vector<8x8xf32>
    %158 = arith.subf %154, %157 : vector<8x8xf32>
    %159 = math.exp %158 : vector<8x8xf32>
    %cst_60 = arith.constant dense<0.000000e+00> : vector<8xf32>
    %160 = vector.multi_reduction <add>, %159, %cst_60 [1] : vector<8x8xf32> to vector<8xf32>
    %161 = vector.shape_cast %160 : vector<8xf32> to vector<8x1xf32>
    %162 = tpu.reciprocal %161 {approx = true} : vector<8x1xf32> -> vector<8x1xf32>
    %163 = vector.broadcast %162 : vector<8x1xf32> to vector<8x8xf32>
    %164 = arith.mulf %159, %163 : vector<8x8xf32>
    %cst_61 = arith.constant dense<0.000000e+00> : vector<8x32xf32>
    %165 = tpu.matmul %164, %151, %cst_61 {dimension_numbers = #tpu.dot_dimension_numbers<[1], [0], [0], [1], [0, 0, 1, 1], [], []>} : vector<8x8xf32>, vector<8x32xf32>, vector<8x32xf32> -> vector<8x32xf32>
    %c8_62 = arith.constant 8 : index
    %c96_63 = arith.constant 96 : index
    %166 = vector.load %arg7[%c8_62, %c96_63] : memref<16x128xf32, #tpu.memory_space<vmem>>, vector<8x32xf32>
    tpu.vector_store %arg7[%c8_62, %c96_63], %165 {strides = array<i32>} : memref<16x128xf32, #tpu.memory_space<vmem>>, vector<8x32xf32>,
    %c0_64 = arith.constant 0 : index
    %c0_65 = arith.constant 0 : index
    %167 = vector.load %arg7[%c0_64, %c0_65] : memref<16x128xf32, #tpu.memory_space<vmem>>, vector<16x128xf32>
    %c0_66 = arith.constant 0 : index
    %c0_67 = arith.constant 0 : index
    %168 = vector.load %arg5[%c0_66, %c0_67] : memref<128x32xf32, #tpu.memory_space<vmem>>, vector<128x32xf32>
    %cst_68 = arith.constant dense<0.000000e+00> : vector<16x32xf32>
    %169 = tpu.matmul %167, %168, %cst_68 {dimension_numbers = #tpu.dot_dimension_numbers<[1], [0], [0], [1], [0, 0, 1, 1], [], []>} : vector<16x128xf32>, vector<128x32xf32>, vector<16x32xf32> -> vector<16x32xf32>
    %c0_69 = arith.constant 0 : index
    %c0_70 = arith.constant 0 : index
    %c0_71 = arith.constant 0 : index
    %170 = vector.load %arg6[%c0_69, %c0_70, %c0_71] : memref<1x16x32xf32, #tpu.memory_space<vmem>>, vector<1x16x32xf32>
    %171 = vector.shape_cast %170 : vector<1x16x32xf32> to vector<16x32xf32>
    %172 = vector.shape_cast %169 : vector<16x32xf32> to vector<1x16x32xf32>
    tpu.vector_store %arg6[%c0_69, %c0_70, %c0_71], %172 {strides = array<i32>} : memref<1x16x32xf32, #tpu.memory_space<vmem>>, vector<1x16x32xf32>,
    return
  }
  func.func @transform_0(%arg0: i32) -> (i32, i32) {
    %c0_i32 = arith.constant 0 : i32
    %c0_i32_0 = arith.constant 0 : i32
    return %arg0, %c0_i32 : i32, i32
  }
  func.func @transform_1(%arg0: i32) -> (i32, i32, i32) {
    %c0_i32 = arith.constant 0 : i32
    %c0_i32_0 = arith.constant 0 : i32
    %c0_i32_1 = arith.constant 0 : i32
    return %arg0, %c0_i32, %c0_i32_0 : i32, i32, i32
  }
  func.func @transform_2(%arg0: i32) -> (i32, i32) {
    %c0_i32 = arith.constant 0 : i32
    %c0_i32_0 = arith.constant 0 : i32
    %c0_i32_1 = arith.constant 0 : i32
    return %c0_i32, %c0_i32_0 : i32, i32
  }
  func.func @transform_3(%arg0: i32) -> (i32, i32) {
    %c0_i32 = arith.constant 0 : i32
    %c0_i32_0 = arith.constant 0 : i32
    %c0_i32_1 = arith.constant 0 : i32
    return %c0_i32, %c0_i32_0 : i32, i32
  }
  func.func @transform_4(%arg0: i32) -> (i32, i32) {
    %c0_i32 = arith.constant 0 : i32
    %c0_i32_0 = arith.constant 0 : i32
    %c0_i32_1 = arith.constant 0 : i32
    return %c0_i32, %c0_i32_0 : i32, i32
  }
  func.func @transform_5(%arg0: i32) -> (i32, i32, i32) {
    %c0_i32 = arith.constant 0 : i32
    %c0_i32_0 = arith.constant 0 : i32
    %c0_i32_1 = arith.constant 0 : i32
    return %arg0, %c0_i32, %c0_i32_0 : i32, i32, i32
  }
}

</mosaic_0001>

<llo_original>
// kernel: tpu_custom_call.1
$region0: #{tpu_custom_call.1}
  #allocation0 [shape = 'u32[]', space=smem, size = 0x4, offset = 0x4, fixed_abs, tag = 'smem constant byte address 0x4 - core index']
  #allocation1 [shape = 'u32[144,128]{1,0:T(1,128)}', space=vmem, size = 0x12000, scoped, tag = 'internal scratch']
  #allocation2 [shape = 'f32[16,128]{1,0:T(8,128)}', space=vmem, size = 0x2000, scoped, tag = 'scratch operand']
  %s0 = inlined_call_operand.vmem [shape: f32[16,32], index: 0, kind: input, shape index: {}]
  %s1 = inlined_call_operand.vmem [shape: f32[2,8,8], index: 1, kind: input, shape index: {}]
  %s2 = inlined_call_operand.vmem [shape: f32[32,384], index: 2, kind: input, shape index: {}]
  %s3 = inlined_call_operand.vmem [shape: f32[1,384], index: 3, kind: input, shape index: {}]
  %s4 = inlined_call_operand.vmem [shape: f32[128,32], index: 4, kind: input, shape index: {}]
  %s5 = inlined_call_operand.hbm [shape: f32[1,16,32], index: 5, kind: output, shape index: {}]
  %s6 = sld [smem:[#allocation0]]
  $region30: #{tpu_custom_call.1} parent=0
    _
  %s8 = ssub.s32 1, %s6
  %s9 = scalar_select 0, %s8, %s6
  $region1: #{tpu_custom_call.1} parent=0
    #allocation3 [shape = 'u8[8192]{0}', space=vmem, size = 0x2000, scoped, tag = 'output window, operand 0, single buffered']
    #allocation4 [shape = 's32[1]{0}', space=sflag, size = 0x4, scoped, tag = 'scoped memory for tpu_custom_call.1']
    %10 = vsyncpa [#allocation4], 0
    // Predicated region
    $region2: #{tpu_custom_call.1} parent=1 // pred_check
      _
    $region3: #{tpu_custom_call.1} parent=1 // pred_check_branch
      %12 = sbr.rel (0) target = $region5
    $region4: #{tpu_custom_call.1} parent=1 // pred_region
      _
    $region5: #{tpu_custom_call.1} parent=1 // pred_fallthru
      _
    // Predicated region
    $region6: #{tpu_custom_call.1} parent=1 // pred_check
      _
    $region7: #{tpu_custom_call.1} parent=1 // pred_check_branch
      %14 = sbr.rel (0) target = $region9
    $region8: #{tpu_custom_call.1} parent=1 // pred_region
      _
    $region9: #{tpu_custom_call.1} parent=1 // pred_fallthru
      _
    // Predicated region
    $region10: #{tpu_custom_call.1} parent=1 // pred_check
      _
    $region11: #{tpu_custom_call.1} parent=1 // pred_check_branch
      %16 = sbr.rel (0) target = $region13
    $region12: #{tpu_custom_call.1} parent=1 // pred_region
      _
    $region13: #{tpu_custom_call.1} parent=1 // pred_fallthru
      _
    // Predicated region
    $region14: #{tpu_custom_call.1} parent=1 // pred_check
      _
    $region15: #{tpu_custom_call.1} parent=1 // pred_check_branch
      %18 = sbr.rel (0) target = $region17
    $region16: #{tpu_custom_call.1} parent=1 // pred_region
      _
    $region17: #{tpu_custom_call.1} parent=1 // pred_fallthru
      _
    // Predicated region
    $region18: #{tpu_custom_call.1} parent=1 // pred_check
      _
    $region19: #{tpu_custom_call.1} parent=1 // pred_check_branch
      %20 = sbr.rel (0) target = $region21
    $region20: #{tpu_custom_call.1} parent=1 // pred_region
      _
    $region21: #{tpu_custom_call.1} parent=1 // pred_fallthru
      _
    %v21 = vld [vmem:[%s0] sm:$0xff]
    %v22 = vld [vmem:[%s0 + $0x8] sm:$0xff]
    %v23 = vld [vmem:[%s2] sm:$0xff]
    %v24 = vld [vmem:[%s2 + $0x8] sm:$0xff]
    %v25 = vld [vmem:[%s2 + $0x10] sm:$0xff]
    %v26 = vld [vmem:[%s2 + $0x18] sm:$0xff]
    %v27 = vld [vmem:[%s2 + $0x20] sm:$0xff]
    %v28 = vld [vmem:[%s2 + $0x28] sm:$0xff]
    %v29 = vld [vmem:[%s2 + $0x30] sm:$0xff]
    %v30 = vld [vmem:[%s2 + $0x38] sm:$0xff]
    %v31 = vld [vmem:[%s2 + $0x40] sm:$0xff]
    %v32 = vld [vmem:[%s2 + $0x48] sm:$0xff]
    %v33 = vld [vmem:[%s2 + $0x50] sm:$0xff]
    %v34 = vld [vmem:[%s2 + $0x58] sm:$0xff]
    %v35 = vld [vmem:[%s3] sm:$0x7]
    %v37 = vlaneseq
    %v38 = vshrl.u32 %v37, 7
    %v39 = vsub.s32 0, %v38
    %v40 = vrot.slane %v35, %v39
    %v41 = vlaneseq
    %v42 = vshrl.u32 %v41, 7
    %v43 = vsub.s32 1, %v42
    %v44 = vrot.slane %v35, %v43
    %v45 = vlaneseq
    %v46 = vshrl.u32 %v45, 7
    %v47 = vsub.s32 2, %v46
    %v48 = vrot.slane %v35, %v47
    %vm52 = vcmask 261120
    %v54 = vsel %vm52, %v21, 0
    %v57 = vsel %vm52, %v22, 0
    %v59 = vand.u32 %v24, 4294901760
    %60 = vmatprep.subr.mxu0 %v59
    %v61 = vand.u32 %v23, 4294901760
    %62 = vmatpush1.msra.mxu0 %v61
    %v63 = vand.u32 %v27, 4294901760
    %64 = vmatprep.subr.mxu0 %v63
    %v65 = vand.u32 %v26, 4294901760
    %66 = vmatpush1.msra.mxu0 %v65
    %v67 = vand.u32 %v30, 4294901760
    %68 = vmatprep.subr.mxu0 %v67
    %v69 = vand.u32 %v29, 4294901760
    %70 = vmatpush1.msra.mxu0 %v69
    %v71 = vand.u32 %v33, 4294901760
    %72 = vmatprep.subr.mxu0 %v71
    %v73 = vand.u32 %v32, 4294901760
    %74 = vmatpush1.msra.mxu0 %v73
    %75 = vmatprep.subr.mxu0 0.0
    %76 = vmatpush1.msra.mxu0 0.0
    %77 = vmatprep.subr.mxu0 0.0
    %78 = vmatpush1.msra.mxu0 0.0
    %79 = vmatprep.subr.mxu0 0.0
    %80 = vmatpush1.msra.mxu0 0.0
    %81 = vmatprep.subr.mxu0 0.0
    %82 = vmatpush1.msra.mxu0 0.0
    %83 = vmatprep.subr.mxu0 0.0
    %84 = vmatpush1.msra.mxu0 0.0
    %85 = vmatprep.subr.mxu0 0.0
    %86 = vmatpush1.msra.mxu0 0.0
    %87 = vmatprep.subr.mxu0 0.0
    %88 = vmatpush1.msra.mxu0 0.0
    %89 = vmatprep.subr.mxu0 0.0
    %90 = vmatpush1.msra.mxu0 0.0
    %91 = vmatprep.subr.mxu0 0.0
    %92 = vmatpush1.msra.mxu0 0.0
    %93 = vmatprep.subr.mxu0 0.0
    %94 = vmatpush1.msra.mxu0 0.0
    %95 = vmatprep.subr.mxu0 0.0
    %96 = vmatpush1.msra.mxu0 0.0
    %97 = vmatprep.subr.mxu0 0.0
    %98 = vmatpush1.msra.mxu0 0.0
    %99 = vmatprep.subr.mxu0 0.0
    %100 = vmatpush1.msra.mxu0 0.0
    %101 = vmatprep.subr.mxu0 0.0
    %102 = vmatpush1.msra.mxu0 0.0
    %103 = vmatprep.subr.mxu0 0.0
    %104 = vmatpush1.msra.mxu0 0.0
    %105 = vmatprep.subr.mxu0 0.0
    %106 = vmatpush1.msra.mxu0 0.0
    %107 = vmatprep.subr.mxu0 0.0
    %108 = vmatpush1.msra.mxu0 0.0
    %109 = vmatprep.subr.mxu0 0.0
    %110 = vmatpush1.msra.mxu0 0.0
    %111 = vmatprep.subr.mxu0 0.0
    %112 = vmatpush1.msra.mxu0 0.0
    %113 = vmatprep.subr.mxu0 0.0
    %114 = vmatpush1.msra.mxu0 0.0
    %115 = vmatprep.subr.mxu0 0.0
    %116 = vmatpush1.msra.mxu0 0.0
    %117 = vmatprep.subr.mxu0 0.0
    %118 = vmatpush1.msra.mxu0 0.0
    %119 = vmatprep.subr.mxu0 0.0
    %120 = vmatpush1.msra.mxu0 0.0
    %121 = vmatprep.subr.mxu0 0.0
    %122 = vmatpush1.msra.mxu0 0.0
    %123 = vmatprep.subr.mxu0 0.0
    %124 = vmatpush1.msra.mxu0 0.0
    %125 = vmatprep.subr.mxu0 0.0
    %126 = vmatpush1.msra.mxu0 0.0
    %127 = vmatprep.subr.mxu0 0.0
    %128 = vmatpush1.msra.mxu0 0.0
    %129 = vmatprep.subr.mxu0 0.0
    %130 = vmatpush1.msra.mxu0 0.0
    %131 = vmatprep.mubr.f32.mxu0 0.0
    %v132 = vand.u32 %v54, 4294901760
    %v133 = vsub.f32 %v54, %v132
    %v134 = vand.u32 %v133, 4294901760
    %v135 = vsub.f32 %v133, %v134
    %v136 = vand.u32 %v135, 4294901760
    %137 = vmatmul.mubr.f32.gmra.mrb[0].mxu0 %v136
    %v138 = vpop.f32.mrb[0].mxu0
    %v139 = vadd.f32 %v40, %v138
    %v140 = vpop.f32.mrb[0].mxu0
    %v141 = vadd.f32 %v44, %v140
    %142 = vmatprep.mubr.f32.mxu0 0.0
    %v143 = vand.u32 %v57, 4294901760
    %v144 = vsub.f32 %v57, %v143
    %v145 = vand.u32 %v144, 4294901760
    %v146 = vsub.f32 %v144, %v145
    %v147 = vand.u32 %v146, 4294901760
    %148 = vmatmul.mubr.f32.gmra.mrb[0].mxu0 %v147
    %v149 = vpop.f32.mrb[0].mxu0
    %v150 = vadd.f32 %v40, %v149
    %v151 = vpop.f32.mrb[0].mxu0
    %v152 = vadd.f32 %v44, %v151
    %153 = vdwg.mxu0
    %v154 = vand.u32 %v24, 4294901760
    %v155 = vsub.f32 %v24, %v154
    %v156 = vand.u32 %v155, 4294901760
    %v157 = vsub.f32 %v155, %v156
    %v158 = vand.u32 %v157, 4294901760
    %159 = vmatprep.subr.mxu0 %v158
    %v160 = vand.u32 %v23, 4294901760
    %v161 = vsub.f32 %v23, %v160
    %v162 = vand.u32 %v161, 4294901760
    %v163 = vsub.f32 %v161, %v162
    %v164 = vand.u32 %v163, 4294901760
    %165 = vmatpush1.msra.mxu0 %v164
    %v166 = vand.u32 %v27, 4294901760
    %v167 = vsub.f32 %v27, %v166
    %v168 = vand.u32 %v167, 4294901760
    %v169 = vsub.f32 %v167, %v168
    %v170 = vand.u32 %v169, 4294901760
    %171 = vmatprep.subr.mxu0 %v170
    %v172 = vand.u32 %v26, 4294901760
    %v173 = vsub.f32 %v26, %v172
    %v174 = vand.u32 %v173, 4294901760
    %v175 = vsub.f32 %v173, %v174
    %v176 = vand.u32 %v175, 4294901760
    %177 = vmatpush1.msra.mxu0 %v176
    %v178 = vand.u32 %v30, 4294901760
    %v179 = vsub.f32 %v30, %v178
    %v180 = vand.u32 %v179, 4294901760
    %v181 = vsub.f32 %v179, %v180
    %v182 = vand.u32 %v181, 4294901760
    %183 = vmatprep.subr.mxu0 %v182
    %v184 = vand.u32 %v29, 4294901760
    %v185 = vsub.f32 %v29, %v184
    %v186 = vand.u32 %v185, 4294901760
    %v187 = vsub.f32 %v185, %v186
    %v188 = vand.u32 %v187, 4294901760
    %189 = vmatpush1.msra.mxu0 %v188
    %v190 = vand.u32 %v33, 4294901760
    %v191 = vsub.f32 %v33, %v190
    %v192 = vand.u32 %v191, 4294901760
    %v193 = vsub.f32 %v191, %v192
    %v194 = vand.u32 %v193, 4294901760
    %195 = vmatprep.subr.mxu0 %v194
    %v196 = vand.u32 %v32, 4294901760
    %v197 = vsub.f32 %v32, %v196
    %v198 = vand.u32 %v197, 4294901760
    %v199 = vsub.f32 %v197, %v198
    %v200 = vand.u32 %v199, 4294901760
    %201 = vmatpush1.msra.mxu0 %v200
    %202 = vmatprep.subr.mxu0 0.0
    %203 = vmatpush1.msra.mxu0 0.0
    %204 = vmatprep.subr.mxu0 0.0
    %205 = vmatpush1.msra.mxu0 0.0
    %206 = vmatprep.subr.mxu0 0.0
    %207 = vmatpush1.msra.mxu0 0.0
    %208 = vmatprep.subr.mxu0 0.0
    %209 = vmatpush1.msra.mxu0 0.0
    %210 = vmatprep.subr.mxu0 0.0
    %211 = vmatpush1.msra.mxu0 0.0
    %212 = vmatprep.subr.mxu0 0.0
    %213 = vmatpush1.msra.mxu0 0.0
    %214 = vmatprep.subr.mxu0 0.0
    %215 = vmatpush1.msra.mxu0 0.0
    %216 = vmatprep.subr.mxu0 0.0
    %217 = vmatpush1.msra.mxu0 0.0
    %218 = vmatprep.subr.mxu0 0.0
    %219 = vmatpush1.msra.mxu0 0.0
    %220 = vmatprep.subr.mxu0 0.0
    %221 = vmatpush1.msra.mxu0 0.0
    %222 = vmatprep.subr.mxu0 0.0
    %223 = vmatpush1.msra.mxu0 0.0
    %224 = vmatprep.subr.mxu0 0.0
    %225 = vmatpush1.msra.mxu0 0.0
    %226 = vmatprep.subr.mxu0 0.0
    %227 = vmatpush1.msra.mxu0 0.0
    %228 = vmatprep.subr.mxu0 0.0
    %229 = vmatpush1.msra.mxu0 0.0
    %230 = vmatprep.subr.mxu0 0.0
    %231 = vmatpush1.msra.mxu0 0.0
    %232 = vmatprep.subr.mxu0 0.0
    %233 = vmatpush1.msra.mxu0 0.0
    %234 = vmatprep.subr.mxu0 0.0
    %235 = vmatpush1.msra.mxu0 0.0
    %236 = vmatprep.subr.mxu0 0.0
    %237 = vmatpush1.msra.mxu0 0.0
    %238 = vmatprep.subr.mxu0 0.0
    %239 = vmatpush1.msra.mxu0 0.0
    %240 = vmatprep.subr.mxu0 0.0
    %241 = vmatpush1.msra.mxu0 0.0
    %242 = vmatprep.subr.mxu0 0.0
    %243 = vmatpush1.msra.mxu0 0.0
    %244 = vmatprep.subr.mxu0 0.0
    %245 = vmatpush1.msra.mxu0 0.0
    %246 = vmatprep.subr.mxu0 0.0
    %247 = vmatpush1.msra.mxu0 0.0
    %248 = vmatprep.subr.mxu0 0.0
    %249 = vmatpush1.msra.mxu0 0.0
    %250 = vmatprep.subr.mxu0 0.0
    %251 = vmatpush1.msra.mxu0 0.0
    %252 = vmatprep.subr.mxu0 0.0
    %253 = vmatpush1.msra.mxu0 0.0
    %254 = vmatprep.subr.mxu0 0.0
    %255 = vmatpush1.msra.mxu0 0.0
    %256 = vmatprep.subr.mxu0 0.0
    %257 = vmatpush1.msra.mxu0 0.0
    %258 = vmatprep.mubr.f32.mxu0 0.0
    %v259 = vand.u32 %v54, 4294901760
    %260 = vmatmul.mubr.f32.gmra.mrb[0].mxu0 %v259
    %v261 = vpop.f32.mrb[0].mxu0
    %v262 = vadd.f32 %v139, %v261
    %v263 = vpop.f32.mrb[0].mxu0
    %v264 = vadd.f32 %v141, %v263
    %265 = vmatprep.mubr.f32.mxu0 0.0
    %v266 = vand.u32 %v57, 4294901760
    %267 = vmatmul.mubr.f32.gmra.mrb[0].mxu0 %v266
    %v268 = vpop.f32.mrb[0].mxu0
    %v269 = vadd.f32 %v150, %v268
    %v270 = vpop.f32.mrb[0].mxu0
    %v271 = vadd.f32 %v152, %v270
    %272 = vdwg.mxu0
    %v273 = vand.u32 %v24, 4294901760
    %v274 = vsub.f32 %v24, %v273
    %275 = vmatprep.subr.mxu0 %v274
    %v276 = vand.u32 %v23, 4294901760
    %v277 = vsub.f32 %v23, %v276
    %278 = vmatpush1.msra.mxu0 %v277
    %v279 = vand.u32 %v27, 4294901760
    %v280 = vsub.f32 %v27, %v279
    %281 = vmatprep.subr.mxu0 %v280
    %v282 = vand.u32 %v26, 4294901760
    %v283 = vsub.f32 %v26, %v282
    %284 = vmatpush1.msra.mxu0 %v283
    %v285 = vand.u32 %v30, 4294901760
    %v286 = vsub.f32 %v30, %v285
    %287 = vmatprep.subr.mxu0 %v286
    %v288 = vand.u32 %v29, 4294901760
    %v289 = vsub.f32 %v29, %v288
    %290 = vmatpush1.msra.mxu0 %v289
    %v291 = vand.u32 %v33, 4294901760
    %v292 = vsub.f32 %v33, %v291
    %293 = vmatprep.subr.mxu0 %v292
    %v294 = vand.u32 %v32, 4294901760
    %v295 = vsub.f32 %v32, %v294
    %296 = vmatpush1.msra.mxu0 %v295
    %297 = vmatprep.subr.mxu0 0.0
    %298 = vmatpush1.msra.mxu0 0.0
    %299 = vmatprep.subr.mxu0 0.0
    %300 = vmatpush1.msra.mxu0 0.0
    %301 = vmatprep.subr.mxu0 0.0
    %302 = vmatpush1.msra.mxu0 0.0
    %303 = vmatprep.subr.mxu0 0.0
    %304 = vmatpush1.msra.mxu0 0.0
    %305 = vmatprep.subr.mxu0 0.0
    %306 = vmatpush1.msra.mxu0 0.0
    %307 = vmatprep.subr.mxu0 0.0
    %308 = vmatpush1.msra.mxu0 0.0
    %309 = vmatprep.subr.mxu0 0.0
    %310 = vmatpush1.msra.mxu0 0.0
    %311 = vmatprep.subr.mxu0 0.0
    %312 = vmatpush1.msra.mxu0 0.0
    %313 = vmatprep.subr.mxu0 0.0
    %314 = vmatpush1.msra.mxu0 0.0
    %315 = vmatprep.subr.mxu0 0.0
    %316 = vmatpush1.msra.mxu0 0.0
    %317 = vmatprep.subr.mxu0 0.0
    %318 = vmatpush1.msra.mxu0 0.0
    %319 = vmatprep.subr.mxu0 0.0
    %320 = vmatpush1.msra.mxu0 0.0
    %321 = vmatprep.subr.mxu0 0.0
    %322 = vmatpush1.msra.mxu0 0.0
    %323 = vmatprep.subr.mxu0 0.0
    %324 = vmatpush1.msra.mxu0 0.0
    %325 = vmatprep.subr.mxu0 0.0
    %326 = vmatpush1.msra.mxu0 0.0
    %327 = vmatprep.subr.mxu0 0.0
    %328 = vmatpush1.msra.mxu0 0.0
    %329 = vmatprep.subr.mxu0 0.0
    %330 = vmatpush1.msra.mxu0 0.0
    %331 = vmatprep.subr.mxu0 0.0
    %332 = vmatpush1.msra.mxu0 0.0
    %333 = vmatprep.subr.mxu0 0.0
    %334 = vmatpush1.msra.mxu0 0.0
    %335 = vmatprep.subr.mxu0 0.0
    %336 = vmatpush1.msra.mxu0 0.0
    %337 = vmatprep.subr.mxu0 0.0
    %338 = vmatpush1.msra.mxu0 0.0
    %339 = vmatprep.subr.mxu0 0.0
    %340 = vmatpush1.msra.mxu0 0.0
    %341 = vmatprep.subr.mxu0 0.0
    %342 = vmatpush1.msra.mxu0 0.0
    %343 = vmatprep.subr.mxu0 0.0
    %344 = vmatpush1.msra.mxu0 0.0
    %345 = vmatprep.subr.mxu0 0.0
    %346 = vmatpush1.msra.mxu0 0.0
    %347 = vmatprep.subr.mxu0 0.0
    %348 = vmatpush1.msra.mxu0 0.0
    %349 = vmatprep.subr.mxu0 0.0
    %350 = vmatpush1.msra.mxu0 0.0
    %351 = vmatprep.subr.mxu0 0.0
    %352 = vmatpush1.msra.mxu0 0.0
    %353 = vmatprep.mubr.f32.mxu0 0.0
    %v354 = vand.u32 %v54, 4294901760
    %v355 = vsub.f32 %v54, %v354
    %356 = vmatmul.mubr.f32.gmra.mrb[0].mxu0 %v355
    %v357 = vpop.f32.mrb[0].mxu0
    %v358 = vadd.f32 %v262, %v357
    %v359 = vpop.f32.mrb[0].mxu0
    %v360 = vadd.f32 %v264, %v359
    %361 = vmatprep.mubr.f32.mxu0 0.0
    %v362 = vand.u32 %v57, 4294901760
    %v363 = vsub.f32 %v57, %v362
    %364 = vmatmul.mubr.f32.gmra.mrb[0].mxu0 %v363
    %v365 = vpop.f32.mrb[0].mxu0
    %v366 = vadd.f32 %v269, %v365
    %v367 = vpop.f32.mrb[0].mxu0
    %v368 = vadd.f32 %v271, %v367
    %369 = vdwg.mxu0
    %v370 = vand.u32 %v24, 4294901760
    %371 = vmatprep.subr.mxu0 %v370
    %v372 = vand.u32 %v23, 4294901760
    %373 = vmatpush1.msra.mxu0 %v372
    %v374 = vand.u32 %v27, 4294901760
    %375 = vmatprep.subr.mxu0 %v374
    %v376 = vand.u32 %v26, 4294901760
    %377 = vmatpush1.msra.mxu0 %v376
    %v378 = vand.u32 %v30, 4294901760
    %379 = vmatprep.subr.mxu0 %v378
    %v380 = vand.u32 %v29, 4294901760
    %381 = vmatpush1.msra.mxu0 %v380
    %v382 = vand.u32 %v33, 4294901760
    %383 = vmatprep.subr.mxu0 %v382
    %v384 = vand.u32 %v32, 4294901760
    %385 = vmatpush1.msra.mxu0 %v384
    %386 = vmatprep.subr.mxu0 0.0
    %387 = vmatpush1.msra.mxu0 0.0
    %388 = vmatprep.subr.mxu0 0.0
    %389 = vmatpush1.msra.mxu0 0.0
    %390 = vmatprep.subr.mxu0 0.0
    %391 = vmatpush1.msra.mxu0 0.0
    %392 = vmatprep.subr.mxu0 0.0
    %393 = vmatpush1.msra.mxu0 0.0
    %394 = vmatprep.subr.mxu0 0.0
    %395 = vmatpush1.msra.mxu0 0.0
    %396 = vmatprep.subr.mxu0 0.0
    %397 = vmatpush1.msra.mxu0 0.0
    %398 = vmatprep.subr.mxu0 0.0
    %399 = vmatpush1.msra.mxu0 0.0
    %400 = vmatprep.subr.mxu0 0.0
    %401 = vmatpush1.msra.mxu0 0.0
    %402 = vmatprep.subr.mxu0 0.0
    %403 = vmatpush1.msra.mxu0 0.0
    %404 = vmatprep.subr.mxu0 0.0
    %405 = vmatpush1.msra.mxu0 0.0
    %406 = vmatprep.subr.mxu0 0.0
    %407 = vmatpush1.msra.mxu0 0.0
    %408 = vmatprep.subr.mxu0 0.0
    %409 = vmatpush1.msra.mxu0 0.0
    %410 = vmatprep.subr.mxu0 0.0
    %411 = vmatpush1.msra.mxu0 0.0
    %412 = vmatprep.subr.mxu0 0.0
    %413 = vmatpush1.msra.mxu0 0.0
    %414 = vmatprep.subr.mxu0 0.0
    %415 = vmatpush1.msra.mxu0 0.0
    %416 = vmatprep.subr.mxu0 0.0
    %417 = vmatpush1.msra.mxu0 0.0
    %418 = vmatprep.subr.mxu0 0.0
    %419 = vmatpush1.msra.mxu0 0.0
    %420 = vmatprep.subr.mxu0 0.0
    %421 = vmatpush1.msra.mxu0 0.0
    %422 = vmatprep.subr.mxu0 0.0
    %423 = vmatpush1.msra.mxu0 0.0
    %424 = vmatprep.subr.mxu0 0.0
    %425 = vmatpush1.msra.mxu0 0.0
    %426 = vmatprep.subr.mxu0 0.0
    %427 = vmatpush1.msra.mxu0 0.0
    %428 = vmatprep.subr.mxu0 0.0
    %429 = vmatpush1.msra.mxu0 0.0
    %430 = vmatprep.subr.mxu0 0.0
    %431 = vmatpush1.msra.mxu0 0.0
    %432 = vmatprep.subr.mxu0 0.0
    %433 = vmatpush1.msra.mxu0 0.0
    %434 = vmatprep.subr.mxu0 0.0
    %435 = vmatpush1.msra.mxu0 0.0
    %436 = vmatprep.subr.mxu0 0.0
    %437 = vmatpush1.msra.mxu0 0.0
    %438 = vmatprep.subr.mxu0 0.0
    %439 = vmatpush1.msra.mxu0 0.0
    %440 = vmatprep.subr.mxu0 0.0
    %441 = vmatpush1.msra.mxu0 0.0
    %442 = vmatprep.mubr.f32.mxu0 0.0
    %v443 = vand.u32 %v54, 4294901760
    %v444 = vsub.f32 %v54, %v443
    %v445 = vand.u32 %v444, 4294901760
    %446 = vmatmul.mubr.f32.gmra.mrb[0].mxu0 %v445
    %v447 = vpop.f32.mrb[0].mxu0
    %v448 = vadd.f32 %v358, %v447
    %v449 = vpop.f32.mrb[0].mxu0
    %v450 = vadd.f32 %v360, %v449
    %451 = vmatprep.mubr.f32.mxu0 0.0
    %v452 = vand.u32 %v57, 4294901760
    %v453 = vsub.f32 %v57, %v452
    %v454 = vand.u32 %v453, 4294901760
    %455 = vmatmul.mubr.f32.gmra.mrb[0].mxu0 %v454
    %v456 = vpop.f32.mrb[0].mxu0
    %v457 = vadd.f32 %v366, %v456
    %v458 = vpop.f32.mrb[0].mxu0
    %v459 = vadd.f32 %v368, %v458
    %460 = vdwg.mxu0
    %v461 = vand.u32 %v24, 4294901760
    %v462 = vsub.f32 %v24, %v461
    %v463 = vand.u32 %v462, 4294901760
    %464 = vmatprep.subr.mxu0 %v463
    %v465 = vand.u32 %v23, 4294901760
    %v466 = vsub.f32 %v23, %v465
    %v467 = vand.u32 %v466, 4294901760
    %468 = vmatpush1.msra.mxu0 %v467
    %v469 = vand.u32 %v27, 4294901760
    %v470 = vsub.f32 %v27, %v469
    %v471 = vand.u32 %v470, 4294901760
    %472 = vmatprep.subr.mxu0 %v471
    %v473 = vand.u32 %v26, 4294901760
    %v474 = vsub.f32 %v26, %v473
    %v475 = vand.u32 %v474, 4294901760
    %476 = vmatpush1.msra.mxu0 %v475
    %v477 = vand.u32 %v30, 4294901760
    %v478 = vsub.f32 %v30, %v477
    %v479 = vand.u32 %v478, 4294901760
    %480 = vmatprep.subr.mxu0 %v479
    %v481 = vand.u32 %v29, 4294901760
    %v482 = vsub.f32 %v29, %v481
    %v483 = vand.u32 %v482, 4294901760
    %484 = vmatpush1.msra.mxu0 %v483
    %v485 = vand.u32 %v33, 4294901760
    %v486 = vsub.f32 %v33, %v485
    %v487 = vand.u32 %v486, 4294901760
    %488 = vmatprep.subr.mxu0 %v487
    %v489 = vand.u32 %v32, 4294901760
    %v490 = vsub.f32 %v32, %v489
    %v491 = vand.u32 %v490, 4294901760
    %492 = vmatpush1.msra.mxu0 %v491
    %493 = vmatprep.subr.mxu0 0.0
    %494 = vmatpush1.msra.mxu0 0.0
    %495 = vmatprep.subr.mxu0 0.0
    %496 = vmatpush1.msra.mxu0 0.0
    %497 = vmatprep.subr.mxu0 0.0
    %498 = vmatpush1.msra.mxu0 0.0
    %499 = vmatprep.subr.mxu0 0.0
    %500 = vmatpush1.msra.mxu0 0.0
    %501 = vmatprep.subr.mxu0 0.0
    %502 = vmatpush1.msra.mxu0 0.0
    %503 = vmatprep.subr.mxu0 0.0
    %504 = vmatpush1.msra.mxu0 0.0
    %505 = vmatprep.subr.mxu0 0.0
    %506 = vmatpush1.msra.mxu0 0.0
    %507 = vmatprep.subr.mxu0 0.0
    %508 = vmatpush1.msra.mxu0 0.0
    %509 = vmatprep.subr.mxu0 0.0
    %510 = vmatpush1.msra.mxu0 0.0
    %511 = vmatprep.subr.mxu0 0.0
    %512 = vmatpush1.msra.mxu0 0.0
    %513 = vmatprep.subr.mxu0 0.0
    %514 = vmatpush1.msra.mxu0 0.0
    %515 = vmatprep.subr.mxu0 0.0
    %516 = vmatpush1.msra.mxu0 0.0
    %517 = vmatprep.subr.mxu0 0.0
    %518 = vmatpush1.msra.mxu0 0.0
    %519 = vmatprep.subr.mxu0 0.0
    %520 = vmatpush1.msra.mxu0 0.0
    %521 = vmatprep.subr.mxu0 0.0
    %522 = vmatpush1.msra.mxu0 0.0
    %523 = vmatprep.subr.mxu0 0.0
    %524 = vmatpush1.msra.mxu0 0.0
    %525 = vmatprep.subr.mxu0 0.0
    %526 = vmatpush1.msra.mxu0 0.0
    %527 = vmatprep.subr.mxu0 0.0
    %528 = vmatpush1.msra.mxu0 0.0
    %529 = vmatprep.subr.mxu0 0.0
    %530 = vmatpush1.msra.mxu0 0.0
    %531 = vmatprep.subr.mxu0 0.0
    %532 = vmatpush1.msra.mxu0 0.0
    %533 = vmatprep.subr.mxu0 0.0
    %534 = vmatpush1.msra.mxu0 0.0
    %535 = vmatprep.subr.mxu0 0.0
    %536 = vmatpush1.msra.mxu0 0.0
    %537 = vmatprep.subr.mxu0 0.0
    %538 = vmatpush1.msra.mxu0 0.0
    %539 = vmatprep.subr.mxu0 0.0
    %540 = vmatpush1.msra.mxu0 0.0
    %541 = vmatprep.subr.mxu0 0.0
    %542 = vmatpush1.msra.mxu0 0.0
    %543 = vmatprep.subr.mxu0 0.0
    %544 = vmatpush1.msra.mxu0 0.0
    %545 = vmatprep.subr.mxu0 0.0
    %546 = vmatpush1.msra.mxu0 0.0
    %547 = vmatprep.subr.mxu0 0.0
    %548 = vmatpush1.msra.mxu0 0.0
    %549 = vmatprep.mubr.f32.mxu0 0.0
    %v550 = vand.u32 %v54, 4294901760
    %551 = vmatmul.mubr.f32.gmra.mrb[0].mxu0 %v550
    %v552 = vpop.f32.mrb[0].mxu0
    %v553 = vadd.f32 %v448, %v552
    %v554 = vpop.f32.mrb[0].mxu0
    %v555 = vadd.f32 %v450, %v554
    %556 = vmatprep.mubr.f32.mxu0 0.0
    %v557 = vand.u32 %v57, 4294901760
    %558 = vmatmul.mubr.f32.gmra.mrb[0].mxu0 %v557
    %v559 = vpop.f32.mrb[0].mxu0
    %v560 = vadd.f32 %v457, %v559
    %v561 = vpop.f32.mrb[0].mxu0
    %v562 = vadd.f32 %v459, %v561
    %563 = vdwg.mxu0
    %v564 = vand.u32 %v24, 4294901760
    %565 = vmatprep.subr.mxu0 %v564
    %v566 = vand.u32 %v23, 4294901760
    %567 = vmatpush1.msra.mxu0 %v566
    %v568 = vand.u32 %v27, 4294901760
    %569 = vmatprep.subr.mxu0 %v568
    %v570 = vand.u32 %v26, 4294901760
    %571 = vmatpush1.msra.mxu0 %v570
    %v572 = vand.u32 %v30, 4294901760
    %573 = vmatprep.subr.mxu0 %v572
    %v574 = vand.u32 %v29, 4294901760
    %575 = vmatpush1.msra.mxu0 %v574
    %v576 = vand.u32 %v33, 4294901760
    %577 = vmatprep.subr.mxu0 %v576
    %v578 = vand.u32 %v32, 4294901760
    %579 = vmatpush1.msra.mxu0 %v578
    %580 = vmatprep.subr.mxu0 0.0
    %581 = vmatpush1.msra.mxu0 0.0
    %582 = vmatprep.subr.mxu0 0.0
    %583 = vmatpush1.msra.mxu0 0.0
    %584 = vmatprep.subr.mxu0 0.0
    %585 = vmatpush1.msra.mxu0 0.0
    %586 = vmatprep.subr.mxu0 0.0
    %587 = vmatpush1.msra.mxu0 0.0
    %588 = vmatprep.subr.mxu0 0.0
    %589 = vmatpush1.msra.mxu0 0.0
    %590 = vmatprep.subr.mxu0 0.0
    %591 = vmatpush1.msra.mxu0 0.0
    %592 = vmatprep.subr.mxu0 0.0
    %593 = vmatpush1.msra.mxu0 0.0
    %594 = vmatprep.subr.mxu0 0.0
    %595 = vmatpush1.msra.mxu0 0.0
    %596 = vmatprep.subr.mxu0 0.0
    %597 = vmatpush1.msra.mxu0 0.0
    %598 = vmatprep.subr.mxu0 0.0
    %599 = vmatpush1.msra.mxu0 0.0
    %600 = vmatprep.subr.mxu0 0.0
    %601 = vmatpush1.msra.mxu0 0.0
    %602 = vmatprep.subr.mxu0 0.0
    %603 = vmatpush1.msra.mxu0 0.0
    %604 = vmatprep.subr.mxu0 0.0
    %605 = vmatpush1.msra.mxu0 0.0
    %606 = vmatprep.subr.mxu0 0.0
    %607 = vmatpush1.msra.mxu0 0.0
    %608 = vmatprep.subr.mxu0 0.0
    %609 = vmatpush1.msra.mxu0 0.0
    %610 = vmatprep.subr.mxu0 0.0
    %611 = vmatpush1.msra.mxu0 0.0
    %612 = vmatprep.subr.mxu0 0.0
    %613 = vmatpush1.msra.mxu0 0.0
    %614 = vmatprep.subr.mxu0 0.0
    %615 = vmatpush1.msra.mxu0 0.0
    %616 = vmatprep.subr.mxu0 0.0
    %617 = vmatpush1.msra.mxu0 0.0
    %618 = vmatprep.subr.mxu0 0.0
    %619 = vmatpush1.msra.mxu0 0.0
    %620 = vmatprep.subr.mxu0 0.0
    %621 = vmatpush1.msra.mxu0 0.0
    %622 = vmatprep.subr.mxu0 0.0
    %623 = vmatpush1.msra.mxu0 0.0
    %624 = vmatprep.subr.mxu0 0.0
    %625 = vmatpush1.msra.mxu0 0.0
    %626 = vmatprep.subr.mxu0 0.0
    %627 = vmatpush1.msra.mxu0 0.0
    %628 = vmatprep.subr.mxu0 0.0
    %629 = vmatpush1.msra.mxu0 0.0
    %630 = vmatprep.subr.mxu0 0.0
    %631 = vmatpush1.msra.mxu0 0.0
    %632 = vmatprep.subr.mxu0 0.0
    %633 = vmatpush1.msra.mxu0 0.0
    %634 = vmatprep.subr.mxu0 0.0
    %635 = vmatpush1.msra.mxu0 0.0
    %636 = vmatprep.mubr.f32.mxu0 0.0
    %v637 = vand.u32 %v54, 4294901760
    %638 = vmatmul.mubr.f32.gmra.mrb[0].mxu0 %v637
    %v639 = vpop.f32.mrb[0].mxu0
    %v640 = vadd.f32 %v553, %v639
    %v641 = vpop.f32.mrb[0].mxu0
    %v642 = vadd.f32 %v555, %v641
    %643 = vmatprep.mubr.f32.mxu0 0.0
    %v644 = vand.u32 %v57, 4294901760
    %645 = vmatmul.mubr.f32.gmra.mrb[0].mxu0 %v644
    %v646 = vpop.f32.mrb[0].mxu0
    %v647 = vadd.f32 %v560, %v646
    %v648 = vpop.f32.mrb[0].mxu0
    %v649 = vadd.f32 %v562, %v648
    %650 = vdwg.mxu0
    %651 = vmatprep.subr.mxu0 0.0
    %v652 = vand.u32 %v25, 4294901760
    %653 = vmatpush1.msra.mxu0 %v652
    %654 = vmatprep.subr.mxu0 0.0
    %v655 = vand.u32 %v28, 4294901760
    %656 = vmatpush1.msra.mxu0 %v655
    %657 = vmatprep.subr.mxu0 0.0
    %v658 = vand.u32 %v31, 4294901760
    %659 = vmatpush1.msra.mxu0 %v658
    %660 = vmatprep.subr.mxu0 0.0
    %v661 = vand.u32 %v34, 4294901760
    %662 = vmatpush1.msra.mxu0 %v661
    %663 = vmatprep.subr.mxu0 0.0
    %664 = vmatpush1.msra.mxu0 0.0
    %665 = vmatprep.subr.mxu0 0.0
    %666 = vmatpush1.msra.mxu0 0.0
    %667 = vmatprep.subr.mxu0 0.0
    %668 = vmatpush1.msra.mxu0 0.0
    %669 = vmatprep.subr.mxu0 0.0
    %670 = vmatpush1.msra.mxu0 0.0
    %671 = vmatprep.subr.mxu0 0.0
    %672 = vmatpush1.msra.mxu0 0.0
    %673 = vmatprep.subr.mxu0 0.0
    %674 = vmatpush1.msra.mxu0 0.0
    %675 = vmatprep.subr.mxu0 0.0
    %676 = vmatpush1.msra.mxu0 0.0
    %677 = vmatprep.subr.mxu0 0.0
    %678 = vmatpush1.msra.mxu0 0.0
    %679 = vmatprep.subr.mxu0 0.0
    %680 = vmatpush1.msra.mxu0 0.0
    %681 = vmatprep.subr.mxu0 0.0
    %682 = vmatpush1.msra.mxu0 0.0
    %683 = vmatprep.subr.mxu0 0.0
    %684 = vmatpush1.msra.mxu0 0.0
    %685 = vmatprep.subr.mxu0 0.0
    %686 = vmatpush1.msra.mxu0 0.0
    %687 = vmatprep.subr.mxu0 0.0
    %688 = vmatpush1.msra.mxu0 0.0
    %689 = vmatprep.subr.mxu0 0.0
    %690 = vmatpush1.msra.mxu0 0.0
    %691 = vmatprep.subr.mxu0 0.0
    %692 = vmatpush1.msra.mxu0 0.0
    %693 = vmatprep.subr.mxu0 0.0
    %694 = vmatpush1.msra.mxu0 0.0
    %695 = vmatprep.subr.mxu0 0.0
    %696 = vmatpush1.msra.mxu0 0.0
    %697 = vmatprep.subr.mxu0 0.0
    %698 = vmatpush1.msra.mxu0 0.0
    %699 = vmatprep.subr.mxu0 0.0
    %700 = vmatpush1.msra.mxu0 0.0
    %701 = vmatprep.subr.mxu0 0.0
    %702 = vmatpush1.msra.mxu0 0.0
    %703 = vmatprep.subr.mxu0 0.0
    %704 = vmatpush1.msra.mxu0 0.0
    %705 = vmatprep.subr.mxu0 0.0
    %706 = vmatpush1.msra.mxu0 0.0
    %707 = vmatprep.subr.mxu0 0.0
    %708 = vmatpush1.msra.mxu0 0.0
    %709 = vmatprep.subr.mxu0 0.0
    %710 = vmatpush1.msra.mxu0 0.0
    %711 = vmatprep.subr.mxu0 0.0
    %712 = vmatpush1.msra.mxu0 0.0
    %713 = vmatprep.subr.mxu0 0.0
    %714 = vmatpush1.msra.mxu0 0.0
    %715 = vmatprep.subr.mxu0 0.0
    %716 = vmatpush1.msra.mxu0 0.0
    %717 = vmatprep.subr.mxu0 0.0
    %718 = vmatpush1.msra.mxu0 0.0
    %719 = vmatprep.mubr.f32.mxu0 0.0
    %v720 = vand.u32 %v54, 4294901760
    %v721 = vsub.f32 %v54, %v720
    %v722 = vand.u32 %v721, 4294901760
    %v723 = vsub.f32 %v721, %v722
    %v724 = vand.u32 %v723, 4294901760
    %725 = vmatmul.mubr.f32.gmra.mrb[0].mxu0 %v724
    %v726 = vpop.f32.mrb[0].mxu0
    %v727 = vadd.f32 %v48, %v726
    %v728 = vpop.f32.mrb[0].mxu0
    %729 = vmatprep.mubr.f32.mxu0 0.0
    %v730 = vand.u32 %v57, 4294901760
    %v731 = vsub.f32 %v57, %v730
    %v732 = vand.u32 %v731, 4294901760
    %v733 = vsub.f32 %v731, %v732
    %v734 = vand.u32 %v733, 4294901760
    %735 = vmatmul.mubr.f32.gmra.mrb[0].mxu0 %v734
    %v736 = vpop.f32.mrb[0].mxu0
    %v737 = vadd.f32 %v48, %v736
    %v738 = vpop.f32.mrb[0].mxu0
    %739 = vdwg.mxu0
    %740 = vmatprep.subr.mxu0 0.0
    %v741 = vand.u32 %v25, 4294901760
    %v742 = vsub.f32 %v25, %v741
    %v743 = vand.u32 %v742, 4294901760
    %v744 = vsub.f32 %v742, %v743
    %v745 = vand.u32 %v744, 4294901760
    %746 = vmatpush1.msra.mxu0 %v745
    %747 = vmatprep.subr.mxu0 0.0
    %v748 = vand.u32 %v28, 4294901760
    %v749 = vsub.f32 %v28, %v748
    %v750 = vand.u32 %v749, 4294901760
    %v751 = vsub.f32 %v749, %v750
    %v752 = vand.u32 %v751, 4294901760
    %753 = vmatpush1.msra.mxu0 %v752
    %754 = vmatprep.subr.mxu0 0.0
    %v755 = vand.u32 %v31, 4294901760
    %v756 = vsub.f32 %v31, %v755
    %v757 = vand.u32 %v756, 4294901760
    %v758 = vsub.f32 %v756, %v757
    %v759 = vand.u32 %v758, 4294901760
    %760 = vmatpush1.msra.mxu0 %v759
    %761 = vmatprep.subr.mxu0 0.0
    %v762 = vand.u32 %v34, 4294901760
    %v763 = vsub.f32 %v34, %v762
    %v764 = vand.u32 %v763, 4294901760
    %v765 = vsub.f32 %v763, %v764
    %v766 = vand.u32 %v765, 4294901760
    %767 = vmatpush1.msra.mxu0 %v766
    %768 = vmatprep.subr.mxu0 0.0
    %769 = vmatpush1.msra.mxu0 0.0
    %770 = vmatprep.subr.mxu0 0.0
    %771 = vmatpush1.msra.mxu0 0.0
    %772 = vmatprep.subr.mxu0 0.0
    %773 = vmatpush1.msra.mxu0 0.0
    %774 = vmatprep.subr.mxu0 0.0
    %775 = vmatpush1.msra.mxu0 0.0
    %776 = vmatprep.subr.mxu0 0.0
    %777 = vmatpush1.msra.mxu0 0.0
    %778 = vmatprep.subr.mxu0 0.0
    %779 = vmatpush1.msra.mxu0 0.0
    %780 = vmatprep.subr.mxu0 0.0
    %781 = vmatpush1.msra.mxu0 0.0
    %782 = vmatprep.subr.mxu0 0.0
    %783 = vmatpush1.msra.mxu0 0.0
    %784 = vmatprep.subr.mxu0 0.0
    %785 = vmatpush1.msra.mxu0 0.0
    %786 = vmatprep.subr.mxu0 0.0
    %787 = vmatpush1.msra.mxu0 0.0
    %788 = vmatprep.subr.mxu0 0.0
    %789 = vmatpush1.msra.mxu0 0.0
    %790 = vmatprep.subr.mxu0 0.0
    %791 = vmatpush1.msra.mxu0 0.0
    %792 = vmatprep.subr.mxu0 0.0
    %793 = vmatpush1.msra.mxu0 0.0
    %794 = vmatprep.subr.mxu0 0.0
    %795 = vmatpush1.msra.mxu0 0.0
    %796 = vmatprep.subr.mxu0 0.0
    %797 = vmatpush1.msra.mxu0 0.0
    %798 = vmatprep.subr.mxu0 0.0
    %799 = vmatpush1.msra.mxu0 0.0
    %800 = vmatprep.subr.mxu0 0.0
    %801 = vmatpush1.msra.mxu0 0.0
    %802 = vmatprep.subr.mxu0 0.0
    %803 = vmatpush1.msra.mxu0 0.0
    %804 = vmatprep.subr.mxu0 0.0
    %805 = vmatpush1.msra.mxu0 0.0
    %806 = vmatprep.subr.mxu0 0.0
    %807 = vmatpush1.msra.mxu0 0.0
    %808 = vmatprep.subr.mxu0 0.0
    %809 = vmatpush1.msra.mxu0 0.0
    %810 = vmatprep.subr.mxu0 0.0
    %811 = vmatpush1.msra.mxu0 0.0
    %812 = vmatprep.subr.mxu0 0.0
    %813 = vmatpush1.msra.mxu0 0.0
    %814 = vmatprep.subr.mxu0 0.0
    %815 = vmatpush1.msra.mxu0 0.0
    %816 = vmatprep.subr.mxu0 0.0
    %817 = vmatpush1.msra.mxu0 0.0
    %818 = vmatprep.subr.mxu0 0.0
    %819 = vmatpush1.msra.mxu0 0.0
    %820 = vmatprep.subr.mxu0 0.0
    %821 = vmatpush1.msra.mxu0 0.0
    %822 = vmatprep.subr.mxu0 0.0
    %823 = vmatpush1.msra.mxu0 0.0
    %824 = vmatprep.mubr.f32.mxu0 0.0
    %v825 = vand.u32 %v54, 4294901760
    %826 = vmatmul.mubr.f32.gmra.mrb[0].mxu0 %v825
    %v827 = vpop.f32.mrb[0].mxu0
    %v828 = vadd.f32 %v727, %v827
    %v829 = vpop.f32.mrb[0].mxu0
    %830 = vmatprep.mubr.f32.mxu0 0.0
    %v831 = vand.u32 %v57, 4294901760
    %832 = vmatmul.mubr.f32.gmra.mrb[0].mxu0 %v831
    %v833 = vpop.f32.mrb[0].mxu0
    %v834 = vadd.f32 %v737, %v833
    %v835 = vpop.f32.mrb[0].mxu0
    %836 = vdwg.mxu0
    %837 = vmatprep.subr.mxu0 0.0
    %v838 = vand.u32 %v25, 4294901760
    %v839 = vsub.f32 %v25, %v838
    %840 = vmatpush1.msra.mxu0 %v839
    %841 = vmatprep.subr.mxu0 0.0
    %v842 = vand.u32 %v28, 4294901760
    %v843 = vsub.f32 %v28, %v842
    %844 = vmatpush1.msra.mxu0 %v843
    %845 = vmatprep.subr.mxu0 0.0
    %v846 = vand.u32 %v31, 4294901760
    %v847 = vsub.f32 %v31, %v846
    %848 = vmatpush1.msra.mxu0 %v847
    %849 = vmatprep.subr.mxu0 0.0
    %v850 = vand.u32 %v34, 4294901760
    %v851 = vsub.f32 %v34, %v850
    %852 = vmatpush1.msra.mxu0 %v851
    %853 = vmatprep.subr.mxu0 0.0
    %854 = vmatpush1.msra.mxu0 0.0
    %855 = vmatprep.subr.mxu0 0.0
    %856 = vmatpush1.msra.mxu0 0.0
    %857 = vmatprep.subr.mxu0 0.0
    %858 = vmatpush1.msra.mxu0 0.0
    %859 = vmatprep.subr.mxu0 0.0
    %860 = vmatpush1.msra.mxu0 0.0
    %861 = vmatprep.subr.mxu0 0.0
    %862 = vmatpush1.msra.mxu0 0.0
    %863 = vmatprep.subr.mxu0 0.0
    %864 = vmatpush1.msra.mxu0 0.0
    %865 = vmatprep.subr.mxu0 0.0
    %866 = vmatpush1.msra.mxu0 0.0
    %867 = vmatprep.subr.mxu0 0.0
    %868 = vmatpush1.msra.mxu0 0.0
    %869 = vmatprep.subr.mxu0 0.0
    %870 = vmatpush1.msra.mxu0 0.0
    %871 = vmatprep.subr.mxu0 0.0
    %872 = vmatpush1.msra.mxu0 0.0
    %873 = vmatprep.subr.mxu0 0.0
    %874 = vmatpush1.msra.mxu0 0.0
    %875 = vmatprep.subr.mxu0 0.0
    %876 = vmatpush1.msra.mxu0 0.0
    %877 = vmatprep.subr.mxu0 0.0
    %878 = vmatpush1.msra.mxu0 0.0
    %879 = vmatprep.subr.mxu0 0.0
    %880 = vmatpush1.msra.mxu0 0.0
    %881 = vmatprep.subr.mxu0 0.0
    %882 = vmatpush1.msra.mxu0 0.0
    %883 = vmatprep.subr.mxu0 0.0
    %884 = vmatpush1.msra.mxu0 0.0
    %885 = vmatprep.subr.mxu0 0.0
    %886 = vmatpush1.msra.mxu0 0.0
    %887 = vmatprep.subr.mxu0 0.0
    %888 = vmatpush1.msra.mxu0 0.0
    %889 = vmatprep.subr.mxu0 0.0
    %890 = vmatpush1.msra.mxu0 0.0
    %891 = vmatprep.subr.mxu0 0.0
    %892 = vmatpush1.msra.mxu0 0.0
    %893 = vmatprep.subr.mxu0 0.0
    %894 = vmatpush1.msra.mxu0 0.0
    %895 = vmatprep.subr.mxu0 0.0
    %896 = vmatpush1.msra.mxu0 0.0
    %897 = vmatprep.subr.mxu0 0.0
    %898 = vmatpush1.msra.mxu0 0.0
    %899 = vmatprep.subr.mxu0 0.0
    %900 = vmatpush1.msra.mxu0 0.0
    %901 = vmatprep.subr.mxu0 0.0
    %902 = vmatpush1.msra.mxu0 0.0
    %903 = vmatprep.subr.mxu0 0.0
    %904 = vmatpush1.msra.mxu0 0.0
    %905 = vmatprep.subr.mxu0 0.0
    %906 = vmatpush1.msra.mxu0 0.0
    %907 = vmatprep.subr.mxu0 0.0
    %908 = vmatpush1.msra.mxu0 0.0
    %909 = vmatprep.mubr.f32.mxu0 0.0
    %v910 = vand.u32 %v54, 4294901760
    %v911 = vsub.f32 %v54, %v910
    %912 = vmatmul.mubr.f32.gmra.mrb[0].mxu0 %v911
    %v913 = vpop.f32.mrb[0].mxu0
    %v914 = vadd.f32 %v828, %v913
    %v915 = vpop.f32.mrb[0].mxu0
    %916 = vmatprep.mubr.f32.mxu0 0.0
    %v917 = vand.u32 %v57, 4294901760
    %v918 = vsub.f32 %v57, %v917
    %919 = vmatmul.mubr.f32.gmra.mrb[0].mxu0 %v918
    %v920 = vpop.f32.mrb[0].mxu0
    %v921 = vadd.f32 %v834, %v920
    %v922 = vpop.f32.mrb[0].mxu0
    %923 = vdwg.mxu0
    %924 = vmatprep.subr.mxu0 0.0
    %v925 = vand.u32 %v25, 4294901760
    %926 = vmatpush1.msra.mxu0 %v925
    %927 = vmatprep.subr.mxu0 0.0
    %v928 = vand.u32 %v28, 4294901760
    %929 = vmatpush1.msra.mxu0 %v928
    %930 = vmatprep.subr.mxu0 0.0
    %v931 = vand.u32 %v31, 4294901760
    %932 = vmatpush1.msra.mxu0 %v931
    %933 = vmatprep.subr.mxu0 0.0
    %v934 = vand.u32 %v34, 4294901760
    %935 = vmatpush1.msra.mxu0 %v934
    %936 = vmatprep.subr.mxu0 0.0
    %937 = vmatpush1.msra.mxu0 0.0
    %938 = vmatprep.subr.mxu0 0.0
    %939 = vmatpush1.msra.mxu0 0.0
    %940 = vmatprep.subr.mxu0 0.0
    %941 = vmatpush1.msra.mxu0 0.0
    %942 = vmatprep.subr.mxu0 0.0
    %943 = vmatpush1.msra.mxu0 0.0
    %944 = vmatprep.subr.mxu0 0.0
    %945 = vmatpush1.msra.mxu0 0.0
    %946 = vmatprep.subr.mxu0 0.0
    %947 = vmatpush1.msra.mxu0 0.0
    %948 = vmatprep.subr.mxu0 0.0
    %949 = vmatpush1.msra.mxu0 0.0
    %950 = vmatprep.subr.mxu0 0.0
    %951 = vmatpush1.msra.mxu0 0.0
    %952 = vmatprep.subr.mxu0 0.0
    %953 = vmatpush1.msra.mxu0 0.0
    %954 = vmatprep.subr.mxu0 0.0
    %955 = vmatpush1.msra.mxu0 0.0
    %956 = vmatprep.subr.mxu0 0.0
    %957 = vmatpush1.msra.mxu0 0.0
    %958 = vmatprep.subr.mxu0 0.0
    %959 = vmatpush1.msra.mxu0 0.0
    %960 = vmatprep.subr.mxu0 0.0
    %961 = vmatpush1.msra.mxu0 0.0
    %962 = vmatprep.subr.mxu0 0.0
    %963 = vmatpush1.msra.mxu0 0.0
    %964 = vmatprep.subr.mxu0 0.0
    %965 = vmatpush1.msra.mxu0 0.0
    %966 = vmatprep.subr.mxu0 0.0
    %967 = vmatpush1.msra.mxu0 0.0
    %968 = vmatprep.subr.mxu0 0.0
    %969 = vmatpush1.msra.mxu0 0.0
    %970 = vmatprep.subr.mxu0 0.0
    %971 = vmatpush1.msra.mxu0 0.0
    %972 = vmatprep.subr.mxu0 0.0
    %973 = vmatpush1.msra.mxu0 0.0
    %974 = vmatprep.subr.mxu0 0.0
    %975 = vmatpush1.msra.mxu0 0.0
    %976 = vmatprep.subr.mxu0 0.0
    %977 = vmatpush1.msra.mxu0 0.0
    %978 = vmatprep.subr.mxu0 0.0
    %979 = vmatpush1.msra.mxu0 0.0
    %980 = vmatprep.subr.mxu0 0.0
    %981 = vmatpush1.msra.mxu0 0.0
    %982 = vmatprep.subr.mxu0 0.0
    %983 = vmatpush1.msra.mxu0 0.0
    %984 = vmatprep.subr.mxu0 0.0
    %985 = vmatpush1.msra.mxu0 0.0
    %986 = vmatprep.subr.mxu0 0.0
    %987 = vmatpush1.msra.mxu0 0.0
    %988 = vmatprep.subr.mxu0 0.0
    %989 = vmatpush1.msra.mxu0 0.0
    %990 = vmatprep.subr.mxu0 0.0
    %991 = vmatpush1.msra.mxu0 0.0
    %992 = vmatprep.mubr.f32.mxu0 0.0
    %v993 = vand.u32 %v54, 4294901760
    %v994 = vsub.f32 %v54, %v993
    %v995 = vand.u32 %v994, 4294901760
    %996 = vmatmul.mubr.f32.gmra.mrb[0].mxu0 %v995
    %v997 = vpop.f32.mrb[0].mxu0
    %v998 = vadd.f32 %v914, %v997
    %v999 = vpop.f32.mrb[0].mxu0
    %1000 = vmatprep.mubr.f32.mxu0 0.0
    %v1001 = vand.u32 %v57, 4294901760
    %v1002 = vsub.f32 %v57, %v1001
    %v1003 = vand.u32 %v1002, 4294901760
    %1004 = vmatmul.mubr.f32.gmra.mrb[0].mxu0 %v1003
    %v1005 = vpop.f32.mrb[0].mxu0
    %v1006 = vadd.f32 %v921, %v1005
    %v1007 = vpop.f32.mrb[0].mxu0
    %1008 = vdwg.mxu0
    %1009 = vmatprep.subr.mxu0 0.0
    %v1010 = vand.u32 %v25, 4294901760
    %v1011 = vsub.f32 %v25, %v1010
    %v1012 = vand.u32 %v1011, 4294901760
    %1013 = vmatpush1.msra.mxu0 %v1012
    %1014 = vmatprep.subr.mxu0 0.0
    %v1015 = vand.u32 %v28, 4294901760
    %v1016 = vsub.f32 %v28, %v1015
    %v1017 = vand.u32 %v1016, 4294901760
    %1018 = vmatpush1.msra.mxu0 %v1017
    %1019 = vmatprep.subr.mxu0 0.0
    %v1020 = vand.u32 %v31, 4294901760
    %v1021 = vsub.f32 %v31, %v1020
    %v1022 = vand.u32 %v1021, 4294901760
    %1023 = vmatpush1.msra.mxu0 %v1022
    %1024 = vmatprep.subr.mxu0 0.0
    %v1025 = vand.u32 %v34, 4294901760
    %v1026 = vsub.f32 %v34, %v1025
    %v1027 = vand.u32 %v1026, 4294901760
    %1028 = vmatpush1.msra.mxu0 %v1027
    %1029 = vmatprep.subr.mxu0 0.0
    %1030 = vmatpush1.msra.mxu0 0.0
    %1031 = vmatprep.subr.mxu0 0.0
    %1032 = vmatpush1.msra.mxu0 0.0
    %1033 = vmatprep.subr.mxu0 0.0
    %1034 = vmatpush1.msra.mxu0 0.0
    %1035 = vmatprep.subr.mxu0 0.0
    %1036 = vmatpush1.msra.mxu0 0.0
    %1037 = vmatprep.subr.mxu0 0.0
    %1038 = vmatpush1.msra.mxu0 0.0
    %1039 = vmatprep.subr.mxu0 0.0
    %1040 = vmatpush1.msra.mxu0 0.0
    %1041 = vmatprep.subr.mxu0 0.0
    %1042 = vmatpush1.msra.mxu0 0.0
    %1043 = vmatprep.subr.mxu0 0.0
    %1044 = vmatpush1.msra.mxu0 0.0
    %1045 = vmatprep.subr.mxu0 0.0
    %1046 = vmatpush1.msra.mxu0 0.0
    %1047 = vmatprep.subr.mxu0 0.0
    %1048 = vmatpush1.msra.mxu0 0.0
    %1049 = vmatprep.subr.mxu0 0.0
    %1050 = vmatpush1.msra.mxu0 0.0
    %1051 = vmatprep.subr.mxu0 0.0
    %1052 = vmatpush1.msra.mxu0 0.0
    %1053 = vmatprep.subr.mxu0 0.0
    %1054 = vmatpush1.msra.mxu0 0.0
    %1055 = vmatprep.subr.mxu0 0.0
    %1056 = vmatpush1.msra.mxu0 0.0
    %1057 = vmatprep.subr.mxu0 0.0
    %1058 = vmatpush1.msra.mxu0 0.0
    %1059 = vmatprep.subr.mxu0 0.0
    %1060 = vmatpush1.msra.mxu0 0.0
    %1061 = vmatprep.subr.mxu0 0.0
    %1062 = vmatpush1.msra.mxu0 0.0
    %1063 = vmatprep.subr.mxu0 0.0
    %1064 = vmatpush1.msra.mxu0 0.0
    %1065 = vmatprep.subr.mxu0 0.0
    %1066 = vmatpush1.msra.mxu0 0.0
    %1067 = vmatprep.subr.mxu0 0.0
    %1068 = vmatpush1.msra.mxu0 0.0
    %1069 = vmatprep.subr.mxu0 0.0
    %1070 = vmatpush1.msra.mxu0 0.0
    %1071 = vmatprep.subr.mxu0 0.0
    %1072 = vmatpush1.msra.mxu0 0.0
    %1073 = vmatprep.subr.mxu0 0.0
    %1074 = vmatpush1.msra.mxu0 0.0
    %1075 = vmatprep.subr.mxu0 0.0
    %1076 = vmatpush1.msra.mxu0 0.0
    %1077 = vmatprep.subr.mxu0 0.0
    %1078 = vmatpush1.msra.mxu0 0.0
    %1079 = vmatprep.subr.mxu0 0.0
    %1080 = vmatpush1.msra.mxu0 0.0
    %1081 = vmatprep.subr.mxu0 0.0
    %1082 = vmatpush1.msra.mxu0 0.0
    %1083 = vmatprep.subr.mxu0 0.0
    %1084 = vmatpush1.msra.mxu0 0.0
    %1085 = vmatprep.mubr.f32.mxu0 0.0
    %v1086 = vand.u32 %v54, 4294901760
    %1087 = vmatmul.mubr.f32.gmra.mrb[0].mxu0 %v1086
    %v1088 = vpop.f32.mrb[0].mxu0
    %v1089 = vadd.f32 %v998, %v1088
    %v1090 = vpop.f32.mrb[0].mxu0
    %1091 = vmatprep.mubr.f32.mxu0 0.0
    %v1092 = vand.u32 %v57, 4294901760
    %1093 = vmatmul.mubr.f32.gmra.mrb[0].mxu0 %v1092
    %v1094 = vpop.f32.mrb[0].mxu0
    %v1095 = vadd.f32 %v1006, %v1094
    %v1096 = vpop.f32.mrb[0].mxu0
    %1097 = vdwg.mxu0
    %1098 = vmatprep.subr.mxu0 0.0
    %v1099 = vand.u32 %v25, 4294901760
    %1100 = vmatpush1.msra.mxu0 %v1099
    %1101 = vmatprep.subr.mxu0 0.0
    %v1102 = vand.u32 %v28, 4294901760
    %1103 = vmatpush1.msra.mxu0 %v1102
    %1104 = vmatprep.subr.mxu0 0.0
    %v1105 = vand.u32 %v31, 4294901760
    %1106 = vmatpush1.msra.mxu0 %v1105
    %1107 = vmatprep.subr.mxu0 0.0
    %v1108 = vand.u32 %v34, 4294901760
    %1109 = vmatpush1.msra.mxu0 %v1108
    %1110 = vmatprep.subr.mxu0 0.0
    %1111 = vmatpush1.msra.mxu0 0.0
    %1112 = vmatprep.subr.mxu0 0.0
    %1113 = vmatpush1.msra.mxu0 0.0
    %1114 = vmatprep.subr.mxu0 0.0
    %1115 = vmatpush1.msra.mxu0 0.0
    %1116 = vmatprep.subr.mxu0 0.0
    %1117 = vmatpush1.msra.mxu0 0.0
    %1118 = vmatprep.subr.mxu0 0.0
    %1119 = vmatpush1.msra.mxu0 0.0
    %1120 = vmatprep.subr.mxu0 0.0
    %1121 = vmatpush1.msra.mxu0 0.0
    %1122 = vmatprep.subr.mxu0 0.0
    %1123 = vmatpush1.msra.mxu0 0.0
    %1124 = vmatprep.subr.mxu0 0.0
    %1125 = vmatpush1.msra.mxu0 0.0
    %1126 = vmatprep.subr.mxu0 0.0
    %1127 = vmatpush1.msra.mxu0 0.0
    %1128 = vmatprep.subr.mxu0 0.0
    %1129 = vmatpush1.msra.mxu0 0.0
    %1130 = vmatprep.subr.mxu0 0.0
    %1131 = vmatpush1.msra.mxu0 0.0
    %1132 = vmatprep.subr.mxu0 0.0
    %1133 = vmatpush1.msra.mxu0 0.0
    %1134 = vmatprep.subr.mxu0 0.0
    %1135 = vmatpush1.msra.mxu0 0.0
    %1136 = vmatprep.subr.mxu0 0.0
    %1137 = vmatpush1.msra.mxu0 0.0
    %1138 = vmatprep.subr.mxu0 0.0
    %1139 = vmatpush1.msra.mxu0 0.0
    %1140 = vmatprep.subr.mxu0 0.0
    %1141 = vmatpush1.msra.mxu0 0.0
    %1142 = vmatprep.subr.mxu0 0.0
    %1143 = vmatpush1.msra.mxu0 0.0
    %1144 = vmatprep.subr.mxu0 0.0
    %1145 = vmatpush1.msra.mxu0 0.0
    %1146 = vmatprep.subr.mxu0 0.0
    %1147 = vmatpush1.msra.mxu0 0.0
    %1148 = vmatprep.subr.mxu0 0.0
    %1149 = vmatpush1.msra.mxu0 0.0
    %1150 = vmatprep.subr.mxu0 0.0
    %1151 = vmatpush1.msra.mxu0 0.0
    %1152 = vmatprep.subr.mxu0 0.0
    %1153 = vmatpush1.msra.mxu0 0.0
    %1154 = vmatprep.subr.mxu0 0.0
    %1155 = vmatpush1.msra.mxu0 0.0
    %1156 = vmatprep.subr.mxu0 0.0
    %1157 = vmatpush1.msra.mxu0 0.0
    %1158 = vmatprep.subr.mxu0 0.0
    %1159 = vmatpush1.msra.mxu0 0.0
    %1160 = vmatprep.subr.mxu0 0.0
    %1161 = vmatpush1.msra.mxu0 0.0
    %1162 = vmatprep.subr.mxu0 0.0
    %1163 = vmatpush1.msra.mxu0 0.0
    %1164 = vmatprep.subr.mxu0 0.0
    %1165 = vmatpush1.msra.mxu0 0.0
    %1166 = vmatprep.mubr.f32.mxu0 0.0
    %v1167 = vand.u32 %v54, 4294901760
    %1168 = vmatmul.mubr.f32.gmra.mrb[0].mxu0 %v1167
    %v1169 = vpop.f32.mrb[0].mxu0
    %v1170 = vadd.f32 %v1089, %v1169
    %v1171 = vpop.f32.mrb[0].mxu0
    %1172 = vmatprep.mubr.f32.mxu0 0.0
    %v1173 = vand.u32 %v57, 4294901760
    %1174 = vmatmul.mubr.f32.gmra.mrb[0].mxu0 %v1173
    %v1175 = vpop.f32.mrb[0].mxu0
    %v1176 = vadd.f32 %v1095, %v1175
    %v1177 = vpop.f32.mrb[0].mxu0
    %1178 = vdwg.mxu0
    %v1179 = vld [vmem:[%s1] sm:$0xff]
    %vm1180 = vcmp.eq.f32.partialorder %v1179, 0.0
    %v1182 = vsel %vm52, %v640, 0
    %v1185 = vsel %vm52, %v642, 0
    %1187 = vmatprep.subr.mxu0 0.0
    %v1188 = vand.u32 %v1185, 4294901760
    %1189 = vmatpush1.xpose.msra.mxu0 %v1188
    %1190 = vmatprep.subr.mxu0 0.0
    %1191 = vmatpush1.xpose.msra.mxu0 0.0
    %1192 = vmatprep.subr.mxu0 0.0
    %1193 = vmatpush1.xpose.msra.mxu0 0.0
    %1194 = vmatprep.subr.mxu0 0.0
    %1195 = vmatpush1.xpose.msra.mxu0 0.0
    %1196 = vmatprep.subr.mxu0 0.0
    %1197 = vmatpush1.xpose.msra.mxu0 0.0
    %1198 = vmatprep.subr.mxu0 0.0
    %1199 = vmatpush1.xpose.msra.mxu0 0.0
    %1200 = vmatprep.subr.mxu0 0.0
    %1201 = vmatpush1.xpose.msra.mxu0 0.0
    %1202 = vmatprep.subr.mxu0 0.0
    %1203 = vmatpush1.xpose.msra.mxu0 0.0
    %1204 = vmatprep.subr.mxu0 0.0
    %1205 = vmatpush1.xpose.msra.mxu0 0.0
    %1206 = vmatprep.subr.mxu0 0.0
    %1207 = vmatpush1.xpose.msra.mxu0 0.0
    %1208 = vmatprep.subr.mxu0 0.0
    %1209 = vmatpush1.xpose.msra.mxu0 0.0
    %1210 = vmatprep.subr.mxu0 0.0
    %1211 = vmatpush1.xpose.msra.mxu0 0.0
    %1212 = vmatprep.subr.mxu0 0.0
    %1213 = vmatpush1.xpose.msra.mxu0 0.0
    %1214 = vmatprep.subr.mxu0 0.0
    %1215 = vmatpush1.xpose.msra.mxu0 0.0
    %1216 = vmatprep.subr.mxu0 0.0
    %1217 = vmatpush1.xpose.msra.mxu0 0.0
    %1218 = vmatprep.subr.mxu0 0.0
    %1219 = vmatpush1.xpose.msra.mxu0 0.0
    %1220 = vmatprep.subr.mxu0 0.0
    %1221 = vmatpush1.xpose.msra.mxu0 0.0
    %1222 = vmatprep.subr.mxu0 0.0
    %1223 = vmatpush1.xpose.msra.mxu0 0.0
    %1224 = vmatprep.subr.mxu0 0.0
    %1225 = vmatpush1.xpose.msra.mxu0 0.0
    %1226 = vmatprep.subr.mxu0 0.0
    %1227 = vmatpush1.xpose.msra.mxu0 0.0
    %1228 = vmatprep.subr.mxu0 0.0
    %1229 = vmatpush1.xpose.msra.mxu0 0.0
    %1230 = vmatprep.subr.mxu0 0.0
    %1231 = vmatpush1.xpose.msra.mxu0 0.0
    %1232 = vmatprep.subr.mxu0 0.0
    %1233 = vmatpush1.xpose.msra.mxu0 0.0
    %1234 = vmatprep.subr.mxu0 0.0
    %1235 = vmatpush1.xpose.msra.mxu0 0.0
    %1236 = vmatprep.subr.mxu0 0.0
    %1237 = vmatpush1.xpose.msra.mxu0 0.0
    %1238 = vmatprep.subr.mxu0 0.0
    %1239 = vmatpush1.xpose.msra.mxu0 0.0
    %1240 = vmatprep.subr.mxu0 0.0
    %1241 = vmatpush1.xpose.msra.mxu0 0.0
    %1242 = vmatprep.subr.mxu0 0.0
    %1243 = vmatpush1.xpose.msra.mxu0 0.0
    %1244 = vmatprep.subr.mxu0 0.0
    %1245 = vmatpush1.xpose.msra.mxu0 0.0
    %1246 = vmatprep.subr.mxu0 0.0
    %1247 = vmatpush1.xpose.msra.mxu0 0.0
    %1248 = vmatprep.subr.mxu0 0.0
    %1249 = vmatpush1.xpose.msra.mxu0 0.0
    %1250 = vmatprep.subr.mxu0 0.0
    %1251 = vmatpush1.xpose.msra.mxu0 0.0
    %1252 = vmatprep.mubr.f32.mxu0 0.0
    %v1253 = vand.u32 %v1182, 4294901760
    %v1254 = vsub.f32 %v1182, %v1253
    %v1255 = vand.u32 %v1254, 4294901760
    %v1256 = vsub.f32 %v1254, %v1255
    %v1257 = vand.u32 %v1256, 4294901760
    %1258 = vmatmul.mubr.f32.gmra.mrb[0].mxu0 %v1257
    %v1259 = vpop.f32.mrb[0].mxu0
    %v1260 = vadd.f32 0.0, %v1259
    %v1261 = vpop.f32.mrb[0].mxu0
    %1262 = vdwg.mxu0
    %1263 = vmatprep.subr.mxu0 0.0
    %v1264 = vand.u32 %v1185, 4294901760
    %v1265 = vsub.f32 %v1185, %v1264
    %v1266 = vand.u32 %v1265, 4294901760
    %v1267 = vsub.f32 %v1265, %v1266
    %v1268 = vand.u32 %v1267, 4294901760
    %1269 = vmatpush1.xpose.msra.mxu0 %v1268
    %1270 = vmatprep.subr.mxu0 0.0
    %1271 = vmatpush1.xpose.msra.mxu0 0.0
    %1272 = vmatprep.subr.mxu0 0.0
    %1273 = vmatpush1.xpose.msra.mxu0 0.0
    %1274 = vmatprep.subr.mxu0 0.0
    %1275 = vmatpush1.xpose.msra.mxu0 0.0
    %1276 = vmatprep.subr.mxu0 0.0
    %1277 = vmatpush1.xpose.msra.mxu0 0.0
    %1278 = vmatprep.subr.mxu0 0.0
    %1279 = vmatpush1.xpose.msra.mxu0 0.0
    %1280 = vmatprep.subr.mxu0 0.0
    %1281 = vmatpush1.xpose.msra.mxu0 0.0
    %1282 = vmatprep.subr.mxu0 0.0
    %1283 = vmatpush1.xpose.msra.mxu0 0.0
    %1284 = vmatprep.subr.mxu0 0.0
    %1285 = vmatpush1.xpose.msra.mxu0 0.0
    %1286 = vmatprep.subr.mxu0 0.0
    %1287 = vmatpush1.xpose.msra.mxu0 0.0
    %1288 = vmatprep.subr.mxu0 0.0
    %1289 = vmatpush1.xpose.msra.mxu0 0.0
    %1290 = vmatprep.subr.mxu0 0.0
    %1291 = vmatpush1.xpose.msra.mxu0 0.0
    %1292 = vmatprep.subr.mxu0 0.0
    %1293 = vmatpush1.xpose.msra.mxu0 0.0
    %1294 = vmatprep.subr.mxu0 0.0
    %1295 = vmatpush1.xpose.msra.mxu0 0.0
    %1296 = vmatprep.subr.mxu0 0.0
    %1297 = vmatpush1.xpose.msra.mxu0 0.0
    %1298 = vmatprep.subr.mxu0 0.0
    %1299 = vmatpush1.xpose.msra.mxu0 0.0
    %1300 = vmatprep.subr.mxu0 0.0
    %1301 = vmatpush1.xpose.msra.mxu0 0.0
    %1302 = vmatprep.subr.mxu0 0.0
    %1303 = vmatpush1.xpose.msra.mxu0 0.0
    %1304 = vmatprep.subr.mxu0 0.0
    %1305 = vmatpush1.xpose.msra.mxu0 0.0
    %1306 = vmatprep.subr.mxu0 0.0
    %1307 = vmatpush1.xpose.msra.mxu0 0.0
    %1308 = vmatprep.subr.mxu0 0.0
    %1309 = vmatpush1.xpose.msra.mxu0 0.0
    %1310 = vmatprep.subr.mxu0 0.0
    %1311 = vmatpush1.xpose.msra.mxu0 0.0
    %1312 = vmatprep.subr.mxu0 0.0
    %1313 = vmatpush1.xpose.msra.mxu0 0.0
    %1314 = vmatprep.subr.mxu0 0.0
    %1315 = vmatpush1.xpose.msra.mxu0 0.0
    %1316 = vmatprep.subr.mxu0 0.0
    %1317 = vmatpush1.xpose.msra.mxu0 0.0
    %1318 = vmatprep.subr.mxu0 0.0
    %1319 = vmatpush1.xpose.msra.mxu0 0.0
    %1320 = vmatprep.subr.mxu0 0.0
    %1321 = vmatpush1.xpose.msra.mxu0 0.0
    %1322 = vmatprep.subr.mxu0 0.0
    %1323 = vmatpush1.xpose.msra.mxu0 0.0
    %1324 = vmatprep.subr.mxu0 0.0
    %1325 = vmatpush1.xpose.msra.mxu0 0.0
    %1326 = vmatprep.subr.mxu0 0.0
    %1327 = vmatpush1.xpose.msra.mxu0 0.0
    %1328 = vmatprep.subr.mxu0 0.0
    %1329 = vmatpush1.xpose.msra.mxu0 0.0
    %1330 = vmatprep.subr.mxu0 0.0
    %1331 = vmatpush1.xpose.msra.mxu0 0.0
    %1332 = vmatprep.mubr.f32.mxu0 0.0
    %v1333 = vand.u32 %v1182, 4294901760
    %1334 = vmatmul.mubr.f32.gmra.mrb[0].mxu0 %v1333
    %v1335 = vpop.f32.mrb[0].mxu0
    %v1336 = vadd.f32 %v1260, %v1335
    %v1337 = vpop.f32.mrb[0].mxu0
    %1338 = vdwg.mxu0
    %1339 = vmatprep.subr.mxu0 0.0
    %v1340 = vand.u32 %v1185, 4294901760
    %v1341 = vsub.f32 %v1185, %v1340
    %1342 = vmatpush1.xpose.msra.mxu0 %v1341
    %1343 = vmatprep.subr.mxu0 0.0
    %1344 = vmatpush1.xpose.msra.mxu0 0.0
    %1345 = vmatprep.subr.mxu0 0.0
    %1346 = vmatpush1.xpose.msra.mxu0 0.0
    %1347 = vmatprep.subr.mxu0 0.0
    %1348 = vmatpush1.xpose.msra.mxu0 0.0
    %1349 = vmatprep.subr.mxu0 0.0
    %1350 = vmatpush1.xpose.msra.mxu0 0.0
    %1351 = vmatprep.subr.mxu0 0.0
    %1352 = vmatpush1.xpose.msra.mxu0 0.0
    %1353 = vmatprep.subr.mxu0 0.0
    %1354 = vmatpush1.xpose.msra.mxu0 0.0
    %1355 = vmatprep.subr.mxu0 0.0
    %1356 = vmatpush1.xpose.msra.mxu0 0.0
    %1357 = vmatprep.subr.mxu0 0.0
    %1358 = vmatpush1.xpose.msra.mxu0 0.0
    %1359 = vmatprep.subr.mxu0 0.0
    %1360 = vmatpush1.xpose.msra.mxu0 0.0
    %1361 = vmatprep.subr.mxu0 0.0
    %1362 = vmatpush1.xpose.msra.mxu0 0.0
    %1363 = vmatprep.subr.mxu0 0.0
    %1364 = vmatpush1.xpose.msra.mxu0 0.0
    %1365 = vmatprep.subr.mxu0 0.0
    %1366 = vmatpush1.xpose.msra.mxu0 0.0
    %1367 = vmatprep.subr.mxu0 0.0
    %1368 = vmatpush1.xpose.msra.mxu0 0.0
    %1369 = vmatprep.subr.mxu0 0.0
    %1370 = vmatpush1.xpose.msra.mxu0 0.0
    %1371 = vmatprep.subr.mxu0 0.0
    %1372 = vmatpush1.xpose.msra.mxu0 0.0
    %1373 = vmatprep.subr.mxu0 0.0
    %1374 = vmatpush1.xpose.msra.mxu0 0.0
    %1375 = vmatprep.subr.mxu0 0.0
    %1376 = vmatpush1.xpose.msra.mxu0 0.0
    %1377 = vmatprep.subr.mxu0 0.0
    %1378 = vmatpush1.xpose.msra.mxu0 0.0
    %1379 = vmatprep.subr.mxu0 0.0
    %1380 = vmatpush1.xpose.msra.mxu0 0.0
    %1381 = vmatprep.subr.mxu0 0.0
    %1382 = vmatpush1.xpose.msra.mxu0 0.0
    %1383 = vmatprep.subr.mxu0 0.0
    %1384 = vmatpush1.xpose.msra.mxu0 0.0
    %1385 = vmatprep.subr.mxu0 0.0
    %1386 = vmatpush1.xpose.msra.mxu0 0.0
    %1387 = vmatprep.subr.mxu0 0.0
    %1388 = vmatpush1.xpose.msra.mxu0 0.0
    %1389 = vmatprep.subr.mxu0 0.0
    %1390 = vmatpush1.xpose.msra.mxu0 0.0
    %1391 = vmatprep.subr.mxu0 0.0
    %1392 = vmatpush1.xpose.msra.mxu0 0.0
    %1393 = vmatprep.subr.mxu0 0.0
    %1394 = vmatpush1.xpose.msra.mxu0 0.0
    %1395 = vmatprep.subr.mxu0 0.0
    %1396 = vmatpush1.xpose.msra.mxu0 0.0
    %1397 = vmatprep.subr.mxu0 0.0
    %1398 = vmatpush1.xpose.msra.mxu0 0.0
    %1399 = vmatprep.subr.mxu0 0.0
    %1400 = vmatpush1.xpose.msra.mxu0 0.0
    %1401 = vmatprep.subr.mxu0 0.0
    %1402 = vmatpush1.xpose.msra.mxu0 0.0
    %1403 = vmatprep.subr.mxu0 0.0
    %1404 = vmatpush1.xpose.msra.mxu0 0.0
    %1405 = vmatprep.mubr.f32.mxu0 0.0
    %v1406 = vand.u32 %v1182, 4294901760
    %v1407 = vsub.f32 %v1182, %v1406
    %1408 = vmatmul.mubr.f32.gmra.mrb[0].mxu0 %v1407
    %v1409 = vpop.f32.mrb[0].mxu0
    %v1410 = vadd.f32 %v1336, %v1409
    %v1411 = vpop.f32.mrb[0].mxu0
    %1412 = vdwg.mxu0
    %1413 = vmatprep.subr.mxu0 0.0
    %v1414 = vand.u32 %v1185, 4294901760
    %1415 = vmatpush1.xpose.msra.mxu0 %v1414
    %1416 = vmatprep.subr.mxu0 0.0
    %1417 = vmatpush1.xpose.msra.mxu0 0.0
    %1418 = vmatprep.subr.mxu0 0.0
    %1419 = vmatpush1.xpose.msra.mxu0 0.0
    %1420 = vmatprep.subr.mxu0 0.0
    %1421 = vmatpush1.xpose.msra.mxu0 0.0
    %1422 = vmatprep.subr.mxu0 0.0
    %1423 = vmatpush1.xpose.msra.mxu0 0.0
    %1424 = vmatprep.subr.mxu0 0.0
    %1425 = vmatpush1.xpose.msra.mxu0 0.0
    %1426 = vmatprep.subr.mxu0 0.0
    %1427 = vmatpush1.xpose.msra.mxu0 0.0
    %1428 = vmatprep.subr.mxu0 0.0
    %1429 = vmatpush1.xpose.msra.mxu0 0.0
    %1430 = vmatprep.subr.mxu0 0.0
    %1431 = vmatpush1.xpose.msra.mxu0 0.0
    %1432 = vmatprep.subr.mxu0 0.0
    %1433 = vmatpush1.xpose.msra.mxu0 0.0
    %1434 = vmatprep.subr.mxu0 0.0
    %1435 = vmatpush1.xpose.msra.mxu0 0.0
    %1436 = vmatprep.subr.mxu0 0.0
    %1437 = vmatpush1.xpose.msra.mxu0 0.0
    %1438 = vmatprep.subr.mxu0 0.0
    %1439 = vmatpush1.xpose.msra.mxu0 0.0
    %1440 = vmatprep.subr.mxu0 0.0
    %1441 = vmatpush1.xpose.msra.mxu0 0.0
    %1442 = vmatprep.subr.mxu0 0.0
    %1443 = vmatpush1.xpose.msra.mxu0 0.0
    %1444 = vmatprep.subr.mxu0 0.0
    %1445 = vmatpush1.xpose.msra.mxu0 0.0
    %1446 = vmatprep.subr.mxu0 0.0
    %1447 = vmatpush1.xpose.msra.mxu0 0.0
    %1448 = vmatprep.subr.mxu0 0.0
    %1449 = vmatpush1.xpose.msra.mxu0 0.0
    %1450 = vmatprep.subr.mxu0 0.0
    %1451 = vmatpush1.xpose.msra.mxu0 0.0
    %1452 = vmatprep.subr.mxu0 0.0
    %1453 = vmatpush1.xpose.msra.mxu0 0.0
    %1454 = vmatprep.subr.mxu0 0.0
    %1455 = vmatpush1.xpose.msra.mxu0 0.0
    %1456 = vmatprep.subr.mxu0 0.0
    %1457 = vmatpush1.xpose.msra.mxu0 0.0
    %1458 = vmatprep.subr.mxu0 0.0
    %1459 = vmatpush1.xpose.msra.mxu0 0.0
    %1460 = vmatprep.subr.mxu0 0.0
    %1461 = vmatpush1.xpose.msra.mxu0 0.0
    %1462 = vmatprep.subr.mxu0 0.0
    %1463 = vmatpush1.xpose.msra.mxu0 0.0
    %1464 = vmatprep.subr.mxu0 0.0
    %1465 = vmatpush1.xpose.msra.mxu0 0.0
    %1466 = vmatprep.subr.mxu0 0.0
    %1467 = vmatpush1.xpose.msra.mxu0 0.0
    %1468 = vmatprep.subr.mxu0 0.0
    %1469 = vmatpush1.xpose.msra.mxu0 0.0
    %1470 = vmatprep.subr.mxu0 0.0
    %1471 = vmatpush1.xpose.msra.mxu0 0.0
    %1472 = vmatprep.subr.mxu0 0.0
    %1473 = vmatpush1.xpose.msra.mxu0 0.0
    %1474 = vmatprep.subr.mxu0 0.0
    %1475 = vmatpush1.xpose.msra.mxu0 0.0
    %1476 = vmatprep.subr.mxu0 0.0
    %1477 = vmatpush1.xpose.msra.mxu0 0.0
    %1478 = vmatprep.mubr.f32.mxu0 0.0
    %v1479 = vand.u32 %v1182, 4294901760
    %v1480 = vsub.f32 %v1182, %v1479
    %v1481 = vand.u32 %v1480, 4294901760
    %1482 = vmatmul.mubr.f32.gmra.mrb[0].mxu0 %v1481
    %v1483 = vpop.f32.mrb[0].mxu0
    %v1484 = vadd.f32 %v1410, %v1483
    %v1485 = vpop.f32.mrb[0].mxu0
    %1486 = vdwg.mxu0
    %1487 = vmatprep.subr.mxu0 0.0
    %v1488 = vand.u32 %v1185, 4294901760
    %v1489 = vsub.f32 %v1185, %v1488
    %v1490 = vand.u32 %v1489, 4294901760
    %1491 = vmatpush1.xpose.msra.mxu0 %v1490
    %1492 = vmatprep.subr.mxu0 0.0
    %1493 = vmatpush1.xpose.msra.mxu0 0.0
    %1494 = vmatprep.subr.mxu0 0.0
    %1495 = vmatpush1.xpose.msra.mxu0 0.0
    %1496 = vmatprep.subr.mxu0 0.0
    %1497 = vmatpush1.xpose.msra.mxu0 0.0
    %1498 = vmatprep.subr.mxu0 0.0
    %1499 = vmatpush1.xpose.msra.mxu0 0.0
    %1500 = vmatprep.subr.mxu0 0.0
    %1501 = vmatpush1.xpose.msra.mxu0 0.0
    %1502 = vmatprep.subr.mxu0 0.0
    %1503 = vmatpush1.xpose.msra.mxu0 0.0
    %1504 = vmatprep.subr.mxu0 0.0
    %1505 = vmatpush1.xpose.msra.mxu0 0.0
    %1506 = vmatprep.subr.mxu0 0.0
    %1507 = vmatpush1.xpose.msra.mxu0 0.0
    %1508 = vmatprep.subr.mxu0 0.0
    %1509 = vmatpush1.xpose.msra.mxu0 0.0
    %1510 = vmatprep.subr.mxu0 0.0
    %1511 = vmatpush1.xpose.msra.mxu0 0.0
    %1512 = vmatprep.subr.mxu0 0.0
    %1513 = vmatpush1.xpose.msra.mxu0 0.0
    %1514 = vmatprep.subr.mxu0 0.0
    %1515 = vmatpush1.xpose.msra.mxu0 0.0
    %1516 = vmatprep.subr.mxu0 0.0
    %1517 = vmatpush1.xpose.msra.mxu0 0.0
    %1518 = vmatprep.subr.mxu0 0.0
    %1519 = vmatpush1.xpose.msra.mxu0 0.0
    %1520 = vmatprep.subr.mxu0 0.0
    %1521 = vmatpush1.xpose.msra.mxu0 0.0
    %1522 = vmatprep.subr.mxu0 0.0
    %1523 = vmatpush1.xpose.msra.mxu0 0.0
    %1524 = vmatprep.subr.mxu0 0.0
    %1525 = vmatpush1.xpose.msra.mxu0 0.0
    %1526 = vmatprep.subr.mxu0 0.0
    %1527 = vmatpush1.xpose.msra.mxu0 0.0
    %1528 = vmatprep.subr.mxu0 0.0
    %1529 = vmatpush1.xpose.msra.mxu0 0.0
    %1530 = vmatprep.subr.mxu0 0.0
    %1531 = vmatpush1.xpose.msra.mxu0 0.0
    %1532 = vmatprep.subr.mxu0 0.0
    %1533 = vmatpush1.xpose.msra.mxu0 0.0
    %1534 = vmatprep.subr.mxu0 0.0
    %1535 = vmatpush1.xpose.msra.mxu0 0.0
    %1536 = vmatprep.subr.mxu0 0.0
    %1537 = vmatpush1.xpose.msra.mxu0 0.0
    %1538 = vmatprep.subr.mxu0 0.0
    %1539 = vmatpush1.xpose.msra.mxu0 0.0
    %1540 = vmatprep.subr.mxu0 0.0
    %1541 = vmatpush1.xpose.msra.mxu0 0.0
    %1542 = vmatprep.subr.mxu0 0.0
    %1543 = vmatpush1.xpose.msra.mxu0 0.0
    %1544 = vmatprep.subr.mxu0 0.0
    %1545 = vmatpush1.xpose.msra.mxu0 0.0
    %1546 = vmatprep.subr.mxu0 0.0
    %1547 = vmatpush1.xpose.msra.mxu0 0.0
    %1548 = vmatprep.subr.mxu0 0.0
    %1549 = vmatpush1.xpose.msra.mxu0 0.0
    %1550 = vmatprep.subr.mxu0 0.0
    %1551 = vmatpush1.xpose.msra.mxu0 0.0
    %1552 = vmatprep.subr.mxu0 0.0
    %1553 = vmatpush1.xpose.msra.mxu0 0.0
    %1554 = vmatprep.mubr.f32.mxu0 0.0
    %v1555 = vand.u32 %v1182, 4294901760
    %1556 = vmatmul.mubr.f32.gmra.mrb[0].mxu0 %v1555
    %v1557 = vpop.f32.mrb[0].mxu0
    %v1558 = vadd.f32 %v1484, %v1557
    %v1559 = vpop.f32.mrb[0].mxu0
    %1560 = vdwg.mxu0
    %1561 = vmatprep.subr.mxu0 0.0
    %v1562 = vand.u32 %v1185, 4294901760
    %1563 = vmatpush1.xpose.msra.mxu0 %v1562
    %1564 = vmatprep.subr.mxu0 0.0
    %1565 = vmatpush1.xpose.msra.mxu0 0.0
    %1566 = vmatprep.subr.mxu0 0.0
    %1567 = vmatpush1.xpose.msra.mxu0 0.0
    %1568 = vmatprep.subr.mxu0 0.0
    %1569 = vmatpush1.xpose.msra.mxu0 0.0
    %1570 = vmatprep.subr.mxu0 0.0
    %1571 = vmatpush1.xpose.msra.mxu0 0.0
    %1572 = vmatprep.subr.mxu0 0.0
    %1573 = vmatpush1.xpose.msra.mxu0 0.0
    %1574 = vmatprep.subr.mxu0 0.0
    %1575 = vmatpush1.xpose.msra.mxu0 0.0
    %1576 = vmatprep.subr.mxu0 0.0
    %1577 = vmatpush1.xpose.msra.mxu0 0.0
    %1578 = vmatprep.subr.mxu0 0.0
    %1579 = vmatpush1.xpose.msra.mxu0 0.0
    %1580 = vmatprep.subr.mxu0 0.0
    %1581 = vmatpush1.xpose.msra.mxu0 0.0
    %1582 = vmatprep.subr.mxu0 0.0
    %1583 = vmatpush1.xpose.msra.mxu0 0.0
    %1584 = vmatprep.subr.mxu0 0.0
    %1585 = vmatpush1.xpose.msra.mxu0 0.0
    %1586 = vmatprep.subr.mxu0 0.0
    %1587 = vmatpush1.xpose.msra.mxu0 0.0
    %1588 = vmatprep.subr.mxu0 0.0
    %1589 = vmatpush1.xpose.msra.mxu0 0.0
    %1590 = vmatprep.subr.mxu0 0.0
    %1591 = vmatpush1.xpose.msra.mxu0 0.0
    %1592 = vmatprep.subr.mxu0 0.0
    %1593 = vmatpush1.xpose.msra.mxu0 0.0
    %1594 = vmatprep.subr.mxu0 0.0
    %1595 = vmatpush1.xpose.msra.mxu0 0.0
    %1596 = vmatprep.subr.mxu0 0.0
    %1597 = vmatpush1.xpose.msra.mxu0 0.0
    %1598 = vmatprep.subr.mxu0 0.0
    %1599 = vmatpush1.xpose.msra.mxu0 0.0
    %1600 = vmatprep.subr.mxu0 0.0
    %1601 = vmatpush1.xpose.msra.mxu0 0.0
    %1602 = vmatprep.subr.mxu0 0.0
    %1603 = vmatpush1.xpose.msra.mxu0 0.0
    %1604 = vmatprep.subr.mxu0 0.0
    %1605 = vmatpush1.xpose.msra.mxu0 0.0
    %1606 = vmatprep.subr.mxu0 0.0
    %1607 = vmatpush1.xpose.msra.mxu0 0.0
    %1608 = vmatprep.subr.mxu0 0.0
    %1609 = vmatpush1.xpose.msra.mxu0 0.0
    %1610 = vmatprep.subr.mxu0 0.0
    %1611 = vmatpush1.xpose.msra.mxu0 0.0
    %1612 = vmatprep.subr.mxu0 0.0
    %1613 = vmatpush1.xpose.msra.mxu0 0.0
    %1614 = vmatprep.subr.mxu0 0.0
    %1615 = vmatpush1.xpose.msra.mxu0 0.0
    %1616 = vmatprep.subr.mxu0 0.0
    %1617 = vmatpush1.xpose.msra.mxu0 0.0
    %1618 = vmatprep.subr.mxu0 0.0
    %1619 = vmatpush1.xpose.msra.mxu0 0.0
    %1620 = vmatprep.subr.mxu0 0.0
    %1621 = vmatpush1.xpose.msra.mxu0 0.0
    %1622 = vmatprep.subr.mxu0 0.0
    %1623 = vmatpush1.xpose.msra.mxu0 0.0
    %1624 = vmatprep.subr.mxu0 0.0
    %1625 = vmatpush1.xpose.msra.mxu0 0.0
    %1626 = vmatprep.mubr.f32.mxu0 0.0
    %v1627 = vand.u32 %v1182, 4294901760
    %1628 = vmatmul.mubr.f32.gmra.mrb[0].mxu0 %v1627
    %v1629 = vpop.f32.mrb[0].mxu0
    %v1630 = vadd.f32 %v1558, %v1629
    %v1631 = vpop.f32.mrb[0].mxu0
    %1632 = vdwg.mxu0
    %v1633 = vsel %vm1180, -1e+09, %v1630
    %vm1634 = vcmask 64512
    %v1635 = vsel %vm1634, %v1633, -inf
    %1636 = vmax.xlane.f32.xlu0 %v1635
    %v1637 = vpop.xlane.xlu0 %1636
    %v1638 = vsub.f32 %v1633, %v1637
    %v1639 = vmul.f32 %v1638, 1.442695
    %v1640 = vpow.pop %v1639
    %v1641 = vsel %vm1634, %v1640, 0.0
    %1642 = vadd.xlane.f32.xlu0 %v1641
    %v1643 = vpop.xlane.xlu0 %1642
    %v1644 = vrcp.pop %v1643
    %v1645 = vmul.f32 %v1640, %v1644
    %v1647 = vsel %vm1634, %v1645, 0
    %1649 = vmatprep.subr.mxu0 0.0
    %v1650 = vand.u32 %v1170, 4294901760
    %1651 = vmatpush1.msra.mxu0 %v1650
    %1652 = vmatprep.subr.mxu0 0.0
    %1653 = vmatpush1.msra.mxu0 0.0
    %1654 = vmatprep.subr.mxu0 0.0
    %1655 = vmatpush1.msra.mxu0 0.0
    %1656 = vmatprep.subr.mxu0 0.0
    %1657 = vmatpush1.msra.mxu0 0.0
    %1658 = vmatprep.subr.mxu0 0.0
    %1659 = vmatpush1.msra.mxu0 0.0
    %1660 = vmatprep.subr.mxu0 0.0
    %1661 = vmatpush1.msra.mxu0 0.0
    %1662 = vmatprep.subr.mxu0 0.0
    %1663 = vmatpush1.msra.mxu0 0.0
    %1664 = vmatprep.subr.mxu0 0.0
    %1665 = vmatpush1.msra.mxu0 0.0
    %1666 = vmatprep.subr.mxu0 0.0
    %1667 = vmatpush1.msra.mxu0 0.0
    %1668 = vmatprep.subr.mxu0 0.0
    %1669 = vmatpush1.msra.mxu0 0.0
    %1670 = vmatprep.subr.mxu0 0.0
    %1671 = vmatpush1.msra.mxu0 0.0
    %1672 = vmatprep.subr.mxu0 0.0
    %1673 = vmatpush1.msra.mxu0 0.0
    %1674 = vmatprep.subr.mxu0 0.0
    %1675 = vmatpush1.msra.mxu0 0.0
    %1676 = vmatprep.subr.mxu0 0.0
    %1677 = vmatpush1.msra.mxu0 0.0
    %1678 = vmatprep.subr.mxu0 0.0
    %1679 = vmatpush1.msra.mxu0 0.0
    %1680 = vmatprep.subr.mxu0 0.0
    %1681 = vmatpush1.msra.mxu0 0.0
    %1682 = vmatprep.subr.mxu0 0.0
    %1683 = vmatpush1.msra.mxu0 0.0
    %1684 = vmatprep.subr.mxu0 0.0
    %1685 = vmatpush1.msra.mxu0 0.0
    %1686 = vmatprep.subr.mxu0 0.0
    %1687 = vmatpush1.msra.mxu0 0.0
    %1688 = vmatprep.subr.mxu0 0.0
    %1689 = vmatpush1.msra.mxu0 0.0
    %1690 = vmatprep.subr.mxu0 0.0
    %1691 = vmatpush1.msra.mxu0 0.0
    %1692 = vmatprep.subr.mxu0 0.0
    %1693 = vmatpush1.msra.mxu0 0.0
    %1694 = vmatprep.subr.mxu0 0.0
    %1695 = vmatpush1.msra.mxu0 0.0
    %1696 = vmatprep.subr.mxu0 0.0
    %1697 = vmatpush1.msra.mxu0 0.0
    %1698 = vmatprep.subr.mxu0 0.0
    %1699 = vmatpush1.msra.mxu0 0.0
    %1700 = vmatprep.subr.mxu0 0.0
    %1701 = vmatpush1.msra.mxu0 0.0
    %1702 = vmatprep.subr.mxu0 0.0
    %1703 = vmatpush1.msra.mxu0 0.0
    %1704 = vmatprep.subr.mxu0 0.0
    %1705 = vmatpush1.msra.mxu0 0.0
    %1706 = vmatprep.subr.mxu0 0.0
    %1707 = vmatpush1.msra.mxu0 0.0
    %1708 = vmatprep.subr.mxu0 0.0
    %1709 = vmatpush1.msra.mxu0 0.0
    %1710 = vmatprep.subr.mxu0 0.0
    %1711 = vmatpush1.msra.mxu0 0.0
    %1712 = vmatprep.subr.mxu0 0.0
    %1713 = vmatpush1.msra.mxu0 0.0
    %1714 = vmatprep.mubr.f32.mxu0 0.0
    %v1715 = vand.u32 %v1647, 4294901760
    %v1716 = vsub.f32 %v1647, %v1715
    %v1717 = vand.u32 %v1716, 4294901760
    %v1718 = vsub.f32 %v1716, %v1717
    %v1719 = vand.u32 %v1718, 4294901760
    %1720 = vmatmul.mubr.f32.gmra.mrb[0].mxu0 %v1719
    %v1721 = vpop.f32.mrb[0].mxu0
    %v1722 = vadd.f32 0.0, %v1721
    %v1723 = vpop.f32.mrb[0].mxu0
    %1724 = vdwg.mxu0
    %1725 = vmatprep.subr.mxu0 0.0
    %v1726 = vand.u32 %v1170, 4294901760
    %v1727 = vsub.f32 %v1170, %v1726
    %v1728 = vand.u32 %v1727, 4294901760
    %v1729 = vsub.f32 %v1727, %v1728
    %v1730 = vand.u32 %v1729, 4294901760
    %1731 = vmatpush1.msra.mxu0 %v1730
    %1732 = vmatprep.subr.mxu0 0.0
    %1733 = vmatpush1.msra.mxu0 0.0
    %1734 = vmatprep.subr.mxu0 0.0
    %1735 = vmatpush1.msra.mxu0 0.0
    %1736 = vmatprep.subr.mxu0 0.0
    %1737 = vmatpush1.msra.mxu0 0.0
    %1738 = vmatprep.subr.mxu0 0.0
    %1739 = vmatpush1.msra.mxu0 0.0
    %1740 = vmatprep.subr.mxu0 0.0
    %1741 = vmatpush1.msra.mxu0 0.0
    %1742 = vmatprep.subr.mxu0 0.0
    %1743 = vmatpush1.msra.mxu0 0.0
    %1744 = vmatprep.subr.mxu0 0.0
    %1745 = vmatpush1.msra.mxu0 0.0
    %1746 = vmatprep.subr.mxu0 0.0
    %1747 = vmatpush1.msra.mxu0 0.0
    %1748 = vmatprep.subr.mxu0 0.0
    %1749 = vmatpush1.msra.mxu0 0.0
    %1750 = vmatprep.subr.mxu0 0.0
    %1751 = vmatpush1.msra.mxu0 0.0
    %1752 = vmatprep.subr.mxu0 0.0
    %1753 = vmatpush1.msra.mxu0 0.0
    %1754 = vmatprep.subr.mxu0 0.0
    %1755 = vmatpush1.msra.mxu0 0.0
    %1756 = vmatprep.subr.mxu0 0.0
    %1757 = vmatpush1.msra.mxu0 0.0
    %1758 = vmatprep.subr.mxu0 0.0
    %1759 = vmatpush1.msra.mxu0 0.0
    %1760 = vmatprep.subr.mxu0 0.0
    %1761 = vmatpush1.msra.mxu0 0.0
    %1762 = vmatprep.subr.mxu0 0.0
    %1763 = vmatpush1.msra.mxu0 0.0
    %1764 = vmatprep.subr.mxu0 0.0
    %1765 = vmatpush1.msra.mxu0 0.0
    %1766 = vmatprep.subr.mxu0 0.0
    %1767 = vmatpush1.msra.mxu0 0.0
    %1768 = vmatprep.subr.mxu0 0.0
    %1769 = vmatpush1.msra.mxu0 0.0
    %1770 = vmatprep.subr.mxu0 0.0
    %1771 = vmatpush1.msra.mxu0 0.0
    %1772 = vmatprep.subr.mxu0 0.0
    %1773 = vmatpush1.msra.mxu0 0.0
    %1774 = vmatprep.subr.mxu0 0.0
    %1775 = vmatpush1.msra.mxu0 0.0
    %1776 = vmatprep.subr.mxu0 0.0
    %1777 = vmatpush1.msra.mxu0 0.0
    %1778 = vmatprep.subr.mxu0 0.0
    %1779 = vmatpush1.msra.mxu0 0.0
    %1780 = vmatprep.subr.mxu0 0.0
    %1781 = vmatpush1.msra.mxu0 0.0
    %1782 = vmatprep.subr.mxu0 0.0
    %1783 = vmatpush1.msra.mxu0 0.0
    %1784 = vmatprep.subr.mxu0 0.0
    %1785 = vmatpush1.msra.mxu0 0.0
    %1786 = vmatprep.subr.mxu0 0.0
    %1787 = vmatpush1.msra.mxu0 0.0
    %1788 = vmatprep.subr.mxu0 0.0
    %1789 = vmatpush1.msra.mxu0 0.0
    %1790 = vmatprep.subr.mxu0 0.0
    %1791 = vmatpush1.msra.mxu0 0.0
    %1792 = vmatprep.subr.mxu0 0.0
    %1793 = vmatpush1.msra.mxu0 0.0
    %1794 = vmatprep.mubr.f32.mxu0 0.0
    %v1795 = vand.u32 %v1647, 4294901760
    %1796 = vmatmul.mubr.f32.gmra.mrb[0].mxu0 %v1795
    %v1797 = vpop.f32.mrb[0].mxu0
    %v1798 = vadd.f32 %v1722, %v1797
    %v1799 = vpop.f32.mrb[0].mxu0
    %1800 = vdwg.mxu0
    %1801 = vmatprep.subr.mxu0 0.0
    %v1802 = vand.u32 %v1170, 4294901760
    %v1803 = vsub.f32 %v1170, %v1802
    %1804 = vmatpush1.msra.mxu0 %v1803
    %1805 = vmatprep.subr.mxu0 0.0
    %1806 = vmatpush1.msra.mxu0 0.0
    %1807 = vmatprep.subr.mxu0 0.0
    %1808 = vmatpush1.msra.mxu0 0.0
    %1809 = vmatprep.subr.mxu0 0.0
    %1810 = vmatpush1.msra.mxu0 0.0
    %1811 = vmatprep.subr.mxu0 0.0
    %1812 = vmatpush1.msra.mxu0 0.0
    %1813 = vmatprep.subr.mxu0 0.0
    %1814 = vmatpush1.msra.mxu0 0.0
    %1815 = vmatprep.subr.mxu0 0.0
    %1816 = vmatpush1.msra.mxu0 0.0
    %1817 = vmatprep.subr.mxu0 0.0
    %1818 = vmatpush1.msra.mxu0 0.0
    %1819 = vmatprep.subr.mxu0 0.0
    %1820 = vmatpush1.msra.mxu0 0.0
    %1821 = vmatprep.subr.mxu0 0.0
    %1822 = vmatpush1.msra.mxu0 0.0
    %1823 = vmatprep.subr.mxu0 0.0
    %1824 = vmatpush1.msra.mxu0 0.0
    %1825 = vmatprep.subr.mxu0 0.0
    %1826 = vmatpush1.msra.mxu0 0.0
    %1827 = vmatprep.subr.mxu0 0.0
    %1828 = vmatpush1.msra.mxu0 0.0
    %1829 = vmatprep.subr.mxu0 0.0
    %1830 = vmatpush1.msra.mxu0 0.0
    %1831 = vmatprep.subr.mxu0 0.0
    %1832 = vmatpush1.msra.mxu0 0.0
    %1833 = vmatprep.subr.mxu0 0.0
    %1834 = vmatpush1.msra.mxu0 0.0
    %1835 = vmatprep.subr.mxu0 0.0
    %1836 = vmatpush1.msra.mxu0 0.0
    %1837 = vmatprep.subr.mxu0 0.0
    %1838 = vmatpush1.msra.mxu0 0.0
    %1839 = vmatprep.subr.mxu0 0.0
    %1840 = vmatpush1.msra.mxu0 0.0
    %1841 = vmatprep.subr.mxu0 0.0
    %1842 = vmatpush1.msra.mxu0 0.0
    %1843 = vmatprep.subr.mxu0 0.0
    %1844 = vmatpush1.msra.mxu0 0.0
    %1845 = vmatprep.subr.mxu0 0.0
    %1846 = vmatpush1.msra.mxu0 0.0
    %1847 = vmatprep.subr.mxu0 0.0
    %1848 = vmatpush1.msra.mxu0 0.0
    %1849 = vmatprep.subr.mxu0 0.0
    %1850 = vmatpush1.msra.mxu0 0.0
    %1851 = vmatprep.subr.mxu0 0.0
    %1852 = vmatpush1.msra.mxu0 0.0
    %1853 = vmatprep.subr.mxu0 0.0
    %1854 = vmatpush1.msra.mxu0 0.0
    %1855 = vmatprep.subr.mxu0 0.0
    %1856 = vmatpush1.msra.mxu0 0.0
    %1857 = vmatprep.subr.mxu0 0.0
    %1858 = vmatpush1.msra.mxu0 0.0
    %1859 = vmatprep.subr.mxu0 0.0
    %1860 = vmatpush1.msra.mxu0 0.0
    %1861 = vmatprep.subr.mxu0 0.0
    %1862 = vmatpush1.msra.mxu0 0.0
    %1863 = vmatprep.subr.mxu0 0.0
    %1864 = vmatpush1.msra.mxu0 0.0
    %1865 = vmatprep.subr.mxu0 0.0
    %1866 = vmatpush1.msra.mxu0 0.0
    %1867 = vmatprep.mubr.f32.mxu0 0.0
    %v1868 = vand.u32 %v1647, 4294901760
    %v1869 = vsub.f32 %v1647, %v1868
    %1870 = vmatmul.mubr.f32.gmra.mrb[0].mxu0 %v1869
    %v1871 = vpop.f32.mrb[0].mxu0
    %v1872 = vadd.f32 %v1798, %v1871
    %v1873 = vpop.f32.mrb[0].mxu0
    %1874 = vdwg.mxu0
    %1875 = vmatprep.subr.mxu0 0.0
    %v1876 = vand.u32 %v1170, 4294901760
    %1877 = vmatpush1.msra.mxu0 %v1876
    %1878 = vmatprep.subr.mxu0 0.0
    %1879 = vmatpush1.msra.mxu0 0.0
    %1880 = vmatprep.subr.mxu0 0.0
    %1881 = vmatpush1.msra.mxu0 0.0
    %1882 = vmatprep.subr.mxu0 0.0
    %1883 = vmatpush1.msra.mxu0 0.0
    %1884 = vmatprep.subr.mxu0 0.0
    %1885 = vmatpush1.msra.mxu0 0.0
    %1886 = vmatprep.subr.mxu0 0.0
    %1887 = vmatpush1.msra.mxu0 0.0
    %1888 = vmatprep.subr.mxu0 0.0
    %1889 = vmatpush1.msra.mxu0 0.0
    %1890 = vmatprep.subr.mxu0 0.0
    %1891 = vmatpush1.msra.mxu0 0.0
    %1892 = vmatprep.subr.mxu0 0.0
    %1893 = vmatpush1.msra.mxu0 0.0
    %1894 = vmatprep.subr.mxu0 0.0
    %1895 = vmatpush1.msra.mxu0 0.0
    %1896 = vmatprep.subr.mxu0 0.0
    %1897 = vmatpush1.msra.mxu0 0.0
    %1898 = vmatprep.subr.mxu0 0.0
    %1899 = vmatpush1.msra.mxu0 0.0
    %1900 = vmatprep.subr.mxu0 0.0
    %1901 = vmatpush1.msra.mxu0 0.0
    %1902 = vmatprep.subr.mxu0 0.0
    %1903 = vmatpush1.msra.mxu0 0.0
    %1904 = vmatprep.subr.mxu0 0.0
    %1905 = vmatpush1.msra.mxu0 0.0
    %1906 = vmatprep.subr.mxu0 0.0
    %1907 = vmatpush1.msra.mxu0 0.0
    %1908 = vmatprep.subr.mxu0 0.0
    %1909 = vmatpush1.msra.mxu0 0.0
    %1910 = vmatprep.subr.mxu0 0.0
    %1911 = vmatpush1.msra.mxu0 0.0
    %1912 = vmatprep.subr.mxu0 0.0
    %1913 = vmatpush1.msra.mxu0 0.0
    %1914 = vmatprep.subr.mxu0 0.0
    %1915 = vmatpush1.msra.mxu0 0.0
    %1916 = vmatprep.subr.mxu0 0.0
    %1917 = vmatpush1.msra.mxu0 0.0
    %1918 = vmatprep.subr.mxu0 0.0
    %1919 = vmatpush1.msra.mxu0 0.0
    %1920 = vmatprep.subr.mxu0 0.0
    %1921 = vmatpush1.msra.mxu0 0.0
    %1922 = vmatprep.subr.mxu0 0.0
    %1923 = vmatpush1.msra.mxu0 0.0
    %1924 = vmatprep.subr.mxu0 0.0
    %1925 = vmatpush1.msra.mxu0 0.0
    %1926 = vmatprep.subr.mxu0 0.0
    %1927 = vmatpush1.msra.mxu0 0.0
    %1928 = vmatprep.subr.mxu0 0.0
    %1929 = vmatpush1.msra.mxu0 0.0
    %1930 = vmatprep.subr.mxu0 0.0
    %1931 = vmatpush1.msra.mxu0 0.0
    %1932 = vmatprep.subr.mxu0 0.0
    %1933 = vmatpush1.msra.mxu0 0.0
    %1934 = vmatprep.subr.mxu0 0.0
    %1935 = vmatpush1.msra.mxu0 0.0
    %1936 = vmatprep.subr.mxu0 0.0
    %1937 = vmatpush1.msra.mxu0 0.0
    %1938 = vmatprep.subr.mxu0 0.0
    %1939 = vmatpush1.msra.mxu0 0.0
    %1940 = vmatprep.mubr.f32.mxu0 0.0
    %v1941 = vand.u32 %v1647, 4294901760
    %v1942 = vsub.f32 %v1647, %v1941
    %v1943 = vand.u32 %v1942, 4294901760
    %1944 = vmatmul.mubr.f32.gmra.mrb[0].mxu0 %v1943
    %v1945 = vpop.f32.mrb[0].mxu0
    %v1946 = vadd.f32 %v1872, %v1945
    %v1947 = vpop.f32.mrb[0].mxu0
    %1948 = vdwg.mxu0
    %1949 = vmatprep.subr.mxu0 0.0
    %v1950 = vand.u32 %v1170, 4294901760
    %v1951 = vsub.f32 %v1170, %v1950
    %v1952 = vand.u32 %v1951, 4294901760
    %1953 = vmatpush1.msra.mxu0 %v1952
    %1954 = vmatprep.subr.mxu0 0.0
    %1955 = vmatpush1.msra.mxu0 0.0
    %1956 = vmatprep.subr.mxu0 0.0
    %1957 = vmatpush1.msra.mxu0 0.0
    %1958 = vmatprep.subr.mxu0 0.0
    %1959 = vmatpush1.msra.mxu0 0.0
    %1960 = vmatprep.subr.mxu0 0.0
    %1961 = vmatpush1.msra.mxu0 0.0
    %1962 = vmatprep.subr.mxu0 0.0
    %1963 = vmatpush1.msra.mxu0 0.0
    %1964 = vmatprep.subr.mxu0 0.0
    %1965 = vmatpush1.msra.mxu0 0.0
    %1966 = vmatprep.subr.mxu0 0.0
    %1967 = vmatpush1.msra.mxu0 0.0
    %1968 = vmatprep.subr.mxu0 0.0
    %1969 = vmatpush1.msra.mxu0 0.0
    %1970 = vmatprep.subr.mxu0 0.0
    %1971 = vmatpush1.msra.mxu0 0.0
    %1972 = vmatprep.subr.mxu0 0.0
    %1973 = vmatpush1.msra.mxu0 0.0
    %1974 = vmatprep.subr.mxu0 0.0
    %1975 = vmatpush1.msra.mxu0 0.0
    %1976 = vmatprep.subr.mxu0 0.0
    %1977 = vmatpush1.msra.mxu0 0.0
    %1978 = vmatprep.subr.mxu0 0.0
    %1979 = vmatpush1.msra.mxu0 0.0
    %1980 = vmatprep.subr.mxu0 0.0
    %1981 = vmatpush1.msra.mxu0 0.0
    %1982 = vmatprep.subr.mxu0 0.0
    %1983 = vmatpush1.msra.mxu0 0.0
    %1984 = vmatprep.subr.mxu0 0.0
    %1985 = vmatpush1.msra.mxu0 0.0
    %1986 = vmatprep.subr.mxu0 0.0
    %1987 = vmatpush1.msra.mxu0 0.0
    %1988 = vmatprep.subr.mxu0 0.0
    %1989 = vmatpush1.msra.mxu0 0.0
    %1990 = vmatprep.subr.mxu0 0.0
    %1991 = vmatpush1.msra.mxu0 0.0
    %1992 = vmatprep.subr.mxu0 0.0
    %1993 = vmatpush1.msra.mxu0 0.0
    %1994 = vmatprep.subr.mxu0 0.0
    %1995 = vmatpush1.msra.mxu0 0.0
    %1996 = vmatprep.subr.mxu0 0.0
    %1997 = vmatpush1.msra.mxu0 0.0
    %1998 = vmatprep.subr.mxu0 0.0
    %1999 = vmatpush1.msra.mxu0 0.0
    %2000 = vmatprep.subr.mxu0 0.0
    %2001 = vmatpush1.msra.mxu0 0.0
    %2002 = vmatprep.subr.mxu0 0.0
    %2003 = vmatpush1.msra.mxu0 0.0
    %2004 = vmatprep.subr.mxu0 0.0
    %2005 = vmatpush1.msra.mxu0 0.0
    %2006 = vmatprep.subr.mxu0 0.0
    %2007 = vmatpush1.msra.mxu0 0.0
    %2008 = vmatprep.subr.mxu0 0.0
    %2009 = vmatpush1.msra.mxu0 0.0
    %2010 = vmatprep.subr.mxu0 0.0
    %2011 = vmatpush1.msra.mxu0 0.0
    %2012 = vmatprep.subr.mxu0 0.0
    %2013 = vmatpush1.msra.mxu0 0.0
    %2014 = vmatprep.subr.mxu0 0.0
    %2015 = vmatpush1.msra.mxu0 0.0
    %2016 = vmatprep.mubr.f32.mxu0 0.0
    %v2017 = vand.u32 %v1647, 4294901760
    %2018 = vmatmul.mubr.f32.gmra.mrb[0].mxu0 %v2017
    %v2019 = vpop.f32.mrb[0].mxu0
    %v2020 = vadd.f32 %v1946, %v2019
    %v2021 = vpop.f32.mrb[0].mxu0
    %2022 = vdwg.mxu0
    %2023 = vmatprep.subr.mxu0 0.0
    %v2024 = vand.u32 %v1170, 4294901760
    %2025 = vmatpush1.msra.mxu0 %v2024
    %2026 = vmatprep.subr.mxu0 0.0
    %2027 = vmatpush1.msra.mxu0 0.0
    %2028 = vmatprep.subr.mxu0 0.0
    %2029 = vmatpush1.msra.mxu0 0.0
    %2030 = vmatprep.subr.mxu0 0.0
    %2031 = vmatpush1.msra.mxu0 0.0
    %2032 = vmatprep.subr.mxu0 0.0
    %2033 = vmatpush1.msra.mxu0 0.0
    %2034 = vmatprep.subr.mxu0 0.0
    %2035 = vmatpush1.msra.mxu0 0.0
    %2036 = vmatprep.subr.mxu0 0.0
    %2037 = vmatpush1.msra.mxu0 0.0
    %2038 = vmatprep.subr.mxu0 0.0
    %2039 = vmatpush1.msra.mxu0 0.0
    %2040 = vmatprep.subr.mxu0 0.0
    %2041 = vmatpush1.msra.mxu0 0.0
    %2042 = vmatprep.subr.mxu0 0.0
    %2043 = vmatpush1.msra.mxu0 0.0
    %2044 = vmatprep.subr.mxu0 0.0
    %2045 = vmatpush1.msra.mxu0 0.0
    %2046 = vmatprep.subr.mxu0 0.0
    %2047 = vmatpush1.msra.mxu0 0.0
    %2048 = vmatprep.subr.mxu0 0.0
    %2049 = vmatpush1.msra.mxu0 0.0
    %2050 = vmatprep.subr.mxu0 0.0
    %2051 = vmatpush1.msra.mxu0 0.0
    %2052 = vmatprep.subr.mxu0 0.0
    %2053 = vmatpush1.msra.mxu0 0.0
    %2054 = vmatprep.subr.mxu0 0.0
    %2055 = vmatpush1.msra.mxu0 0.0
    %2056 = vmatprep.subr.mxu0 0.0
    %2057 = vmatpush1.msra.mxu0 0.0
    %2058 = vmatprep.subr.mxu0 0.0
    %2059 = vmatpush1.msra.mxu0 0.0
    %2060 = vmatprep.subr.mxu0 0.0
    %2061 = vmatpush1.msra.mxu0 0.0
    %2062 = vmatprep.subr.mxu0 0.0
    %2063 = vmatpush1.msra.mxu0 0.0
    %2064 = vmatprep.subr.mxu0 0.0
    %2065 = vmatpush1.msra.mxu0 0.0
    %2066 = vmatprep.subr.mxu0 0.0
    %2067 = vmatpush1.msra.mxu0 0.0
    %2068 = vmatprep.subr.mxu0 0.0
    %2069 = vmatpush1.msra.mxu0 0.0
    %2070 = vmatprep.subr.mxu0 0.0
    %2071 = vmatpush1.msra.mxu0 0.0
    %2072 = vmatprep.subr.mxu0 0.0
    %2073 = vmatpush1.msra.mxu0 0.0
    %2074 = vmatprep.subr.mxu0 0.0
    %2075 = vmatpush1.msra.mxu0 0.0
    %2076 = vmatprep.subr.mxu0 0.0
    %2077 = vmatpush1.msra.mxu0 0.0
    %2078 = vmatprep.subr.mxu0 0.0
    %2079 = vmatpush1.msra.mxu0 0.0
    %2080 = vmatprep.subr.mxu0 0.0
    %2081 = vmatpush1.msra.mxu0 0.0
    %2082 = vmatprep.subr.mxu0 0.0
    %2083 = vmatpush1.msra.mxu0 0.0
    %2084 = vmatprep.subr.mxu0 0.0
    %2085 = vmatpush1.msra.mxu0 0.0
    %2086 = vmatprep.subr.mxu0 0.0
    %2087 = vmatpush1.msra.mxu0 0.0
    %2088 = vmatprep.mubr.f32.mxu0 0.0
    %v2089 = vand.u32 %v1647, 4294901760
    %2090 = vmatmul.mubr.f32.gmra.mrb[0].mxu0 %v2089
    %v2091 = vpop.f32.mrb[0].mxu0
    %v2092 = vadd.f32 %v2020, %v2091
    %v2093 = vpop.f32.mrb[0].mxu0
    %2094 = vdwg.mxu0
    %2095 = vst.msk [vmem:[#allocation2] sm:$0xff] %vm52, %v2092
    %2096 = vrot.lane.b32.xlu0 %v640, 96
    %v2097 = vpop.permute.xlu0 %2096
    %2098 = vrot.lane.b32.xlu0 %v642, 96
    %v2099 = vpop.permute.xlu0 %2098
    %v2100 = vsel %vm52, %v2097, 0
    %v2102 = vsel %vm52, %v2099, 0
    %2104 = vmatprep.subr.mxu0 0.0
    %v2105 = vand.u32 %v2102, 4294901760
    %2106 = vmatpush1.xpose.msra.mxu0 %v2105
    %2107 = vmatprep.subr.mxu0 0.0
    %2108 = vmatpush1.xpose.msra.mxu0 0.0
    %2109 = vmatprep.subr.mxu0 0.0
    %2110 = vmatpush1.xpose.msra.mxu0 0.0
    %2111 = vmatprep.subr.mxu0 0.0
    %2112 = vmatpush1.xpose.msra.mxu0 0.0
    %2113 = vmatprep.subr.mxu0 0.0
    %2114 = vmatpush1.xpose.msra.mxu0 0.0
    %2115 = vmatprep.subr.mxu0 0.0
    %2116 = vmatpush1.xpose.msra.mxu0 0.0
    %2117 = vmatprep.subr.mxu0 0.0
    %2118 = vmatpush1.xpose.msra.mxu0 0.0
    %2119 = vmatprep.subr.mxu0 0.0
    %2120 = vmatpush1.xpose.msra.mxu0 0.0
    %2121 = vmatprep.subr.mxu0 0.0
    %2122 = vmatpush1.xpose.msra.mxu0 0.0
    %2123 = vmatprep.subr.mxu0 0.0
    %2124 = vmatpush1.xpose.msra.mxu0 0.0
    %2125 = vmatprep.subr.mxu0 0.0
    %2126 = vmatpush1.xpose.msra.mxu0 0.0
    %2127 = vmatprep.subr.mxu0 0.0
    %2128 = vmatpush1.xpose.msra.mxu0 0.0
    %2129 = vmatprep.subr.mxu0 0.0
    %2130 = vmatpush1.xpose.msra.mxu0 0.0
    %2131 = vmatprep.subr.mxu0 0.0
    %2132 = vmatpush1.xpose.msra.mxu0 0.0
    %2133 = vmatprep.subr.mxu0 0.0
    %2134 = vmatpush1.xpose.msra.mxu0 0.0
    %2135 = vmatprep.subr.mxu0 0.0
    %2136 = vmatpush1.xpose.msra.mxu0 0.0
    %2137 = vmatprep.subr.mxu0 0.0
    %2138 = vmatpush1.xpose.msra.mxu0 0.0
    %2139 = vmatprep.subr.mxu0 0.0
    %2140 = vmatpush1.xpose.msra.mxu0 0.0
    %2141 = vmatprep.subr.mxu0 0.0
    %2142 = vmatpush1.xpose.msra.mxu0 0.0
    %2143 = vmatprep.subr.mxu0 0.0
    %2144 = vmatpush1.xpose.msra.mxu0 0.0
    %2145 = vmatprep.subr.mxu0 0.0
    %2146 = vmatpush1.xpose.msra.mxu0 0.0
    %2147 = vmatprep.subr.mxu0 0.0
    %2148 = vmatpush1.xpose.msra.mxu0 0.0
    %2149 = vmatprep.subr.mxu0 0.0
    %2150 = vmatpush1.xpose.msra.mxu0 0.0
    %2151 = vmatprep.subr.mxu0 0.0
    %2152 = vmatpush1.xpose.msra.mxu0 0.0
    %2153 = vmatprep.subr.mxu0 0.0
    %2154 = vmatpush1.xpose.msra.mxu0 0.0
    %2155 = vmatprep.subr.mxu0 0.0
    %2156 = vmatpush1.xpose.msra.mxu0 0.0
    %2157 = vmatprep.subr.mxu0 0.0
    %2158 = vmatpush1.xpose.msra.mxu0 0.0
    %2159 = vmatprep.subr.mxu0 0.0
    %2160 = vmatpush1.xpose.msra.mxu0 0.0
    %2161 = vmatprep.subr.mxu0 0.0
    %2162 = vmatpush1.xpose.msra.mxu0 0.0
    %2163 = vmatprep.subr.mxu0 0.0
    %2164 = vmatpush1.xpose.msra.mxu0 0.0
    %2165 = vmatprep.subr.mxu0 0.0
    %2166 = vmatpush1.xpose.msra.mxu0 0.0
    %2167 = vmatprep.subr.mxu0 0.0
    %2168 = vmatpush1.xpose.msra.mxu0 0.0
    %2169 = vmatprep.mubr.f32.mxu0 0.0
    %v2170 = vand.u32 %v2100, 4294901760
    %v2171 = vsub.f32 %v2100, %v2170
    %v2172 = vand.u32 %v2171, 4294901760
    %v2173 = vsub.f32 %v2171, %v2172
    %v2174 = vand.u32 %v2173, 4294901760
    %2175 = vmatmul.mubr.f32.gmra.mrb[0].mxu0 %v2174
    %v2176 = vpop.f32.mrb[0].mxu0
    %v2177 = vadd.f32 0.0, %v2176
    %v2178 = vpop.f32.mrb[0].mxu0
    %2179 = vdwg.mxu0
    %2180 = vmatprep.subr.mxu0 0.0
    %v2181 = vand.u32 %v2102, 4294901760
    %v2182 = vsub.f32 %v2102, %v2181
    %v2183 = vand.u32 %v2182, 4294901760
    %v2184 = vsub.f32 %v2182, %v2183
    %v2185 = vand.u32 %v2184, 4294901760
    %2186 = vmatpush1.xpose.msra.mxu0 %v2185
    %2187 = vmatprep.subr.mxu0 0.0
    %2188 = vmatpush1.xpose.msra.mxu0 0.0
    %2189 = vmatprep.subr.mxu0 0.0
    %2190 = vmatpush1.xpose.msra.mxu0 0.0
    %2191 = vmatprep.subr.mxu0 0.0
    %2192 = vmatpush1.xpose.msra.mxu0 0.0
    %2193 = vmatprep.subr.mxu0 0.0
    %2194 = vmatpush1.xpose.msra.mxu0 0.0
    %2195 = vmatprep.subr.mxu0 0.0
    %2196 = vmatpush1.xpose.msra.mxu0 0.0
    %2197 = vmatprep.subr.mxu0 0.0
    %2198 = vmatpush1.xpose.msra.mxu0 0.0
    %2199 = vmatprep.subr.mxu0 0.0
    %2200 = vmatpush1.xpose.msra.mxu0 0.0
    %2201 = vmatprep.subr.mxu0 0.0
    %2202 = vmatpush1.xpose.msra.mxu0 0.0
    %2203 = vmatprep.subr.mxu0 0.0
    %2204 = vmatpush1.xpose.msra.mxu0 0.0
    %2205 = vmatprep.subr.mxu0 0.0
    %2206 = vmatpush1.xpose.msra.mxu0 0.0
    %2207 = vmatprep.subr.mxu0 0.0
    %2208 = vmatpush1.xpose.msra.mxu0 0.0
    %2209 = vmatprep.subr.mxu0 0.0
    %2210 = vmatpush1.xpose.msra.mxu0 0.0
    %2211 = vmatprep.subr.mxu0 0.0
    %2212 = vmatpush1.xpose.msra.mxu0 0.0
    %2213 = vmatprep.subr.mxu0 0.0
    %2214 = vmatpush1.xpose.msra.mxu0 0.0
    %2215 = vmatprep.subr.mxu0 0.0
    %2216 = vmatpush1.xpose.msra.mxu0 0.0
    %2217 = vmatprep.subr.mxu0 0.0
    %2218 = vmatpush1.xpose.msra.mxu0 0.0
    %2219 = vmatprep.subr.mxu0 0.0
    %2220 = vmatpush1.xpose.msra.mxu0 0.0
    %2221 = vmatprep.subr.mxu0 0.0
    %2222 = vmatpush1.xpose.msra.mxu0 0.0
    %2223 = vmatprep.subr.mxu0 0.0
    %2224 = vmatpush1.xpose.msra.mxu0 0.0
    %2225 = vmatprep.subr.mxu0 0.0
    %2226 = vmatpush1.xpose.msra.mxu0 0.0
    %2227 = vmatprep.subr.mxu0 0.0
    %2228 = vmatpush1.xpose.msra.mxu0 0.0
    %2229 = vmatprep.subr.mxu0 0.0
    %2230 = vmatpush1.xpose.msra.mxu0 0.0
    %2231 = vmatprep.subr.mxu0 0.0
    %2232 = vmatpush1.xpose.msra.mxu0 0.0
    %2233 = vmatprep.subr.mxu0 0.0
    %2234 = vmatpush1.xpose.msra.mxu0 0.0
    %2235 = vmatprep.subr.mxu0 0.0
    %2236 = vmatpush1.xpose.msra.mxu0 0.0
    %2237 = vmatprep.subr.mxu0 0.0
    %2238 = vmatpush1.xpose.msra.mxu0 0.0
    %2239 = vmatprep.subr.mxu0 0.0
    %2240 = vmatpush1.xpose.msra.mxu0 0.0
    %2241 = vmatprep.subr.mxu0 0.0
    %2242 = vmatpush1.xpose.msra.mxu0 0.0
    %2243 = vmatprep.subr.mxu0 0.0
    %2244 = vmatpush1.xpose.msra.mxu0 0.0
    %2245 = vmatprep.subr.mxu0 0.0
    %2246 = vmatpush1.xpose.msra.mxu0 0.0
    %2247 = vmatprep.subr.mxu0 0.0
    %2248 = vmatpush1.xpose.msra.mxu0 0.0
    %2249 = vmatprep.mubr.f32.mxu0 0.0
    %v2250 = vand.u32 %v2100, 4294901760
    %2251 = vmatmul.mubr.f32.gmra.mrb[0].mxu0 %v2250
    %v2252 = vpop.f32.mrb[0].mxu0
    %v2253 = vadd.f32 %v2177, %v2252
    %v2254 = vpop.f32.mrb[0].mxu0
    %2255 = vdwg.mxu0
    %2256 = vmatprep.subr.mxu0 0.0
    %v2257 = vand.u32 %v2102, 4294901760
    %v2258 = vsub.f32 %v2102, %v2257
    %2259 = vmatpush1.xpose.msra.mxu0 %v2258
    %2260 = vmatprep.subr.mxu0 0.0
    %2261 = vmatpush1.xpose.msra.mxu0 0.0
    %2262 = vmatprep.subr.mxu0 0.0
    %2263 = vmatpush1.xpose.msra.mxu0 0.0
    %2264 = vmatprep.subr.mxu0 0.0
    %2265 = vmatpush1.xpose.msra.mxu0 0.0
    %2266 = vmatprep.subr.mxu0 0.0
    %2267 = vmatpush1.xpose.msra.mxu0 0.0
    %2268 = vmatprep.subr.mxu0 0.0
    %2269 = vmatpush1.xpose.msra.mxu0 0.0
    %2270 = vmatprep.subr.mxu0 0.0
    %2271 = vmatpush1.xpose.msra.mxu0 0.0
    %2272 = vmatprep.subr.mxu0 0.0
    %2273 = vmatpush1.xpose.msra.mxu0 0.0
    %2274 = vmatprep.subr.mxu0 0.0
    %2275 = vmatpush1.xpose.msra.mxu0 0.0
    %2276 = vmatprep.subr.mxu0 0.0
    %2277 = vmatpush1.xpose.msra.mxu0 0.0
    %2278 = vmatprep.subr.mxu0 0.0
    %2279 = vmatpush1.xpose.msra.mxu0 0.0
    %2280 = vmatprep.subr.mxu0 0.0
    %2281 = vmatpush1.xpose.msra.mxu0 0.0
    %2282 = vmatprep.subr.mxu0 0.0
    %2283 = vmatpush1.xpose.msra.mxu0 0.0
    %2284 = vmatprep.subr.mxu0 0.0
    %2285 = vmatpush1.xpose.msra.mxu0 0.0
    %2286 = vmatprep.subr.mxu0 0.0
    %2287 = vmatpush1.xpose.msra.mxu0 0.0
    %2288 = vmatprep.subr.mxu0 0.0
    %2289 = vmatpush1.xpose.msra.mxu0 0.0
    %2290 = vmatprep.subr.mxu0 0.0
    %2291 = vmatpush1.xpose.msra.mxu0 0.0
    %2292 = vmatprep.subr.mxu0 0.0
    %2293 = vmatpush1.xpose.msra.mxu0 0.0
    %2294 = vmatprep.subr.mxu0 0.0
    %2295 = vmatpush1.xpose.msra.mxu0 0.0
    %2296 = vmatprep.subr.mxu0 0.0
    %2297 = vmatpush1.xpose.msra.mxu0 0.0
    %2298 = vmatprep.subr.mxu0 0.0
    %2299 = vmatpush1.xpose.msra.mxu0 0.0
    %2300 = vmatprep.subr.mxu0 0.0
    %2301 = vmatpush1.xpose.msra.mxu0 0.0
    %2302 = vmatprep.subr.mxu0 0.0
    %2303 = vmatpush1.xpose.msra.mxu0 0.0
    %2304 = vmatprep.subr.mxu0 0.0
    %2305 = vmatpush1.xpose.msra.mxu0 0.0
    %2306 = vmatprep.subr.mxu0 0.0
    %2307 = vmatpush1.xpose.msra.mxu0 0.0
    %2308 = vmatprep.subr.mxu0 0.0
    %2309 = vmatpush1.xpose.msra.mxu0 0.0
    %2310 = vmatprep.subr.mxu0 0.0
    %2311 = vmatpush1.xpose.msra.mxu0 0.0
    %2312 = vmatprep.subr.mxu0 0.0
    %2313 = vmatpush1.xpose.msra.mxu0 0.0
    %2314 = vmatprep.subr.mxu0 0.0
    %2315 = vmatpush1.xpose.msra.mxu0 0.0
    %2316 = vmatprep.subr.mxu0 0.0
    %2317 = vmatpush1.xpose.msra.mxu0 0.0
    %2318 = vmatprep.subr.mxu0 0.0
    %2319 = vmatpush1.xpose.msra.mxu0 0.0
    %2320 = vmatprep.subr.mxu0 0.0
    %2321 = vmatpush1.xpose.msra.mxu0 0.0
    %2322 = vmatprep.mubr.f32.mxu0 0.0
    %v2323 = vand.u32 %v2100, 4294901760
    %v2324 = vsub.f32 %v2100, %v2323
    %2325 = vmatmul.mubr.f32.gmra.mrb[0].mxu0 %v2324
    %v2326 = vpop.f32.mrb[0].mxu0
    %v2327 = vadd.f32 %v2253, %v2326
    %v2328 = vpop.f32.mrb[0].mxu0
    %2329 = vdwg.mxu0
    %2330 = vmatprep.subr.mxu0 0.0
    %v2331 = vand.u32 %v2102, 4294901760
    %2332 = vmatpush1.xpose.msra.mxu0 %v2331
    %2333 = vmatprep.subr.mxu0 0.0
    %2334 = vmatpush1.xpose.msra.mxu0 0.0
    %2335 = vmatprep.subr.mxu0 0.0
    %2336 = vmatpush1.xpose.msra.mxu0 0.0
    %2337 = vmatprep.subr.mxu0 0.0
    %2338 = vmatpush1.xpose.msra.mxu0 0.0
    %2339 = vmatprep.subr.mxu0 0.0
    %2340 = vmatpush1.xpose.msra.mxu0 0.0
    %2341 = vmatprep.subr.mxu0 0.0
    %2342 = vmatpush1.xpose.msra.mxu0 0.0
    %2343 = vmatprep.subr.mxu0 0.0
    %2344 = vmatpush1.xpose.msra.mxu0 0.0
    %2345 = vmatprep.subr.mxu0 0.0
    %2346 = vmatpush1.xpose.msra.mxu0 0.0
    %2347 = vmatprep.subr.mxu0 0.0
    %2348 = vmatpush1.xpose.msra.mxu0 0.0
    %2349 = vmatprep.subr.mxu0 0.0
    %2350 = vmatpush1.xpose.msra.mxu0 0.0
    %2351 = vmatprep.subr.mxu0 0.0
    %2352 = vmatpush1.xpose.msra.mxu0 0.0
    %2353 = vmatprep.subr.mxu0 0.0
    %2354 = vmatpush1.xpose.msra.mxu0 0.0
    %2355 = vmatprep.subr.mxu0 0.0
    %2356 = vmatpush1.xpose.msra.mxu0 0.0
    %2357 = vmatprep.subr.mxu0 0.0
    %2358 = vmatpush1.xpose.msra.mxu0 0.0
    %2359 = vmatprep.subr.mxu0 0.0
    %2360 = vmatpush1.xpose.msra.mxu0 0.0
    %2361 = vmatprep.subr.mxu0 0.0
    %2362 = vmatpush1.xpose.msra.mxu0 0.0
    %2363 = vmatprep.subr.mxu0 0.0
    %2364 = vmatpush1.xpose.msra.mxu0 0.0
    %2365 = vmatprep.subr.mxu0 0.0
    %2366 = vmatpush1.xpose.msra.mxu0 0.0
    %2367 = vmatprep.subr.mxu0 0.0
    %2368 = vmatpush1.xpose.msra.mxu0 0.0
    %2369 = vmatprep.subr.mxu0 0.0
    %2370 = vmatpush1.xpose.msra.mxu0 0.0
    %2371 = vmatprep.subr.mxu0 0.0
    %2372 = vmatpush1.xpose.msra.mxu0 0.0
    %2373 = vmatprep.subr.mxu0 0.0
    %2374 = vmatpush1.xpose.msra.mxu0 0.0
    %2375 = vmatprep.subr.mxu0 0.0
    %2376 = vmatpush1.xpose.msra.mxu0 0.0
    %2377 = vmatprep.subr.mxu0 0.0
    %2378 = vmatpush1.xpose.msra.mxu0 0.0
    %2379 = vmatprep.subr.mxu0 0.0
    %2380 = vmatpush1.xpose.msra.mxu0 0.0
    %2381 = vmatprep.subr.mxu0 0.0
    %2382 = vmatpush1.xpose.msra.mxu0 0.0
    %2383 = vmatprep.subr.mxu0 0.0
    %2384 = vmatpush1.xpose.msra.mxu0 0.0
    %2385 = vmatprep.subr.mxu0 0.0
    %2386 = vmatpush1.xpose.msra.mxu0 0.0
    %2387 = vmatprep.subr.mxu0 0.0
    %2388 = vmatpush1.xpose.msra.mxu0 0.0
    %2389 = vmatprep.subr.mxu0 0.0
    %2390 = vmatpush1.xpose.msra.mxu0 0.0
    %2391 = vmatprep.subr.mxu0 0.0
    %2392 = vmatpush1.xpose.msra.mxu0 0.0
    %2393 = vmatprep.subr.mxu0 0.0
    %2394 = vmatpush1.xpose.msra.mxu0 0.0
    %2395 = vmatprep.mubr.f32.mxu0 0.0
    %v2396 = vand.u32 %v2100, 4294901760
    %v2397 = vsub.f32 %v2100, %v2396
    %v2398 = vand.u32 %v2397, 4294901760
    %2399 = vmatmul.mubr.f32.gmra.mrb[0].mxu0 %v2398
    %v2400 = vpop.f32.mrb[0].mxu0
    %v2401 = vadd.f32 %v2327, %v2400
    %v2402 = vpop.f32.mrb[0].mxu0
    %2403 = vdwg.mxu0
    %2404 = vmatprep.subr.mxu0 0.0
    %v2405 = vand.u32 %v2102, 4294901760
    %v2406 = vsub.f32 %v2102, %v2405
    %v2407 = vand.u32 %v2406, 4294901760
    %2408 = vmatpush1.xpose.msra.mxu0 %v2407
    %2409 = vmatprep.subr.mxu0 0.0
    %2410 = vmatpush1.xpose.msra.mxu0 0.0
    %2411 = vmatprep.subr.mxu0 0.0
    %2412 = vmatpush1.xpose.msra.mxu0 0.0
    %2413 = vmatprep.subr.mxu0 0.0
    %2414 = vmatpush1.xpose.msra.mxu0 0.0
    %2415 = vmatprep.subr.mxu0 0.0
    %2416 = vmatpush1.xpose.msra.mxu0 0.0
    %2417 = vmatprep.subr.mxu0 0.0
    %2418 = vmatpush1.xpose.msra.mxu0 0.0
    %2419 = vmatprep.subr.mxu0 0.0
    %2420 = vmatpush1.xpose.msra.mxu0 0.0
    %2421 = vmatprep.subr.mxu0 0.0
    %2422 = vmatpush1.xpose.msra.mxu0 0.0
    %2423 = vmatprep.subr.mxu0 0.0
    %2424 = vmatpush1.xpose.msra.mxu0 0.0
    %2425 = vmatprep.subr.mxu0 0.0
    %2426 = vmatpush1.xpose.msra.mxu0 0.0
    %2427 = vmatprep.subr.mxu0 0.0
    %2428 = vmatpush1.xpose.msra.mxu0 0.0
    %2429 = vmatprep.subr.mxu0 0.0
    %2430 = vmatpush1.xpose.msra.mxu0 0.0
    %2431 = vmatprep.subr.mxu0 0.0
    %2432 = vmatpush1.xpose.msra.mxu0 0.0
    %2433 = vmatprep.subr.mxu0 0.0
    %2434 = vmatpush1.xpose.msra.mxu0 0.0
    %2435 = vmatprep.subr.mxu0 0.0
    %2436 = vmatpush1.xpose.msra.mxu0 0.0
    %2437 = vmatprep.subr.mxu0 0.0
    %2438 = vmatpush1.xpose.msra.mxu0 0.0
    %2439 = vmatprep.subr.mxu0 0.0
    %2440 = vmatpush1.xpose.msra.mxu0 0.0
    %2441 = vmatprep.subr.mxu0 0.0
    %2442 = vmatpush1.xpose.msra.mxu0 0.0
    %2443 = vmatprep.subr.mxu0 0.0
    %2444 = vmatpush1.xpose.msra.mxu0 0.0
    %2445 = vmatprep.subr.mxu0 0.0
    %2446 = vmatpush1.xpose.msra.mxu0 0.0
    %2447 = vmatprep.subr.mxu0 0.0
    %2448 = vmatpush1.xpose.msra.mxu0 0.0
    %2449 = vmatprep.subr.mxu0 0.0
    %2450 = vmatpush1.xpose.msra.mxu0 0.0
    %2451 = vmatprep.subr.mxu0 0.0
    %2452 = vmatpush1.xpose.msra.mxu0 0.0
    %2453 = vmatprep.subr.mxu0 0.0
    %2454 = vmatpush1.xpose.msra.mxu0 0.0
    %2455 = vmatprep.subr.mxu0 0.0
    %2456 = vmatpush1.xpose.msra.mxu0 0.0
    %2457 = vmatprep.subr.mxu0 0.0
    %2458 = vmatpush1.xpose.msra.mxu0 0.0
    %2459 = vmatprep.subr.mxu0 0.0
    %2460 = vmatpush1.xpose.msra.mxu0 0.0
    %2461 = vmatprep.subr.mxu0 0.0
    %2462 = vmatpush1.xpose.msra.mxu0 0.0
    %2463 = vmatprep.subr.mxu0 0.0
    %2464 = vmatpush1.xpose.msra.mxu0 0.0
    %2465 = vmatprep.subr.mxu0 0.0
    %2466 = vmatpush1.xpose.msra.mxu0 0.0
    %2467 = vmatprep.subr.mxu0 0.0
    %2468 = vmatpush1.xpose.msra.mxu0 0.0
    %2469 = vmatprep.subr.mxu0 0.0
    %2470 = vmatpush1.xpose.msra.mxu0 0.0
    %2471 = vmatprep.mubr.f32.mxu0 0.0
    %v2472 = vand.u32 %v2100, 4294901760
    %2473 = vmatmul.mubr.f32.gmra.mrb[0].mxu0 %v2472
    %v2474 = vpop.f32.mrb[0].mxu0
    %v2475 = vadd.f32 %v2401, %v2474
    %v2476 = vpop.f32.mrb[0].mxu0
    %2477 = vdwg.mxu0
    %2478 = vmatprep.subr.mxu0 0.0
    %v2479 = vand.u32 %v2102, 4294901760
    %2480 = vmatpush1.xpose.msra.mxu0 %v2479
    %2481 = vmatprep.subr.mxu0 0.0
    %2482 = vmatpush1.xpose.msra.mxu0 0.0
    %2483 = vmatprep.subr.mxu0 0.0
    %2484 = vmatpush1.xpose.msra.mxu0 0.0
    %2485 = vmatprep.subr.mxu0 0.0
    %2486 = vmatpush1.xpose.msra.mxu0 0.0
    %2487 = vmatprep.subr.mxu0 0.0
    %2488 = vmatpush1.xpose.msra.mxu0 0.0
    %2489 = vmatprep.subr.mxu0 0.0
    %2490 = vmatpush1.xpose.msra.mxu0 0.0
    %2491 = vmatprep.subr.mxu0 0.0
    %2492 = vmatpush1.xpose.msra.mxu0 0.0
    %2493 = vmatprep.subr.mxu0 0.0
    %2494 = vmatpush1.xpose.msra.mxu0 0.0
    %2495 = vmatprep.subr.mxu0 0.0
    %2496 = vmatpush1.xpose.msra.mxu0 0.0
    %2497 = vmatprep.subr.mxu0 0.0
    %2498 = vmatpush1.xpose.msra.mxu0 0.0
    %2499 = vmatprep.subr.mxu0 0.0
    %2500 = vmatpush1.xpose.msra.mxu0 0.0
    %2501 = vmatprep.subr.mxu0 0.0
    %2502 = vmatpush1.xpose.msra.mxu0 0.0
    %2503 = vmatprep.subr.mxu0 0.0
    %2504 = vmatpush1.xpose.msra.mxu0 0.0
    %2505 = vmatprep.subr.mxu0 0.0
    %2506 = vmatpush1.xpose.msra.mxu0 0.0
    %2507 = vmatprep.subr.mxu0 0.0
    %2508 = vmatpush1.xpose.msra.mxu0 0.0
    %2509 = vmatprep.subr.mxu0 0.0
    %2510 = vmatpush1.xpose.msra.mxu0 0.0
    %2511 = vmatprep.subr.mxu0 0.0
    %2512 = vmatpush1.xpose.msra.mxu0 0.0
    %2513 = vmatprep.subr.mxu0 0.0
    %2514 = vmatpush1.xpose.msra.mxu0 0.0
    %2515 = vmatprep.subr.mxu0 0.0
    %2516 = vmatpush1.xpose.msra.mxu0 0.0
    %2517 = vmatprep.subr.mxu0 0.0
    %2518 = vmatpush1.xpose.msra.mxu0 0.0
    %2519 = vmatprep.subr.mxu0 0.0
    %2520 = vmatpush1.xpose.msra.mxu0 0.0
    %2521 = vmatprep.subr.mxu0 0.0
    %2522 = vmatpush1.xpose.msra.mxu0 0.0
    %2523 = vmatprep.subr.mxu0 0.0
    %2524 = vmatpush1.xpose.msra.mxu0 0.0
    %2525 = vmatprep.subr.mxu0 0.0
    %2526 = vmatpush1.xpose.msra.mxu0 0.0
    %2527 = vmatprep.subr.mxu0 0.0
    %2528 = vmatpush1.xpose.msra.mxu0 0.0
    %2529 = vmatprep.subr.mxu0 0.0
    %2530 = vmatpush1.xpose.msra.mxu0 0.0
    %2531 = vmatprep.subr.mxu0 0.0
    %2532 = vmatpush1.xpose.msra.mxu0 0.0
    %2533 = vmatprep.subr.mxu0 0.0
    %2534 = vmatpush1.xpose.msra.mxu0 0.0
    %2535 = vmatprep.subr.mxu0 0.0
    %2536 = vmatpush1.xpose.msra.mxu0 0.0
    %2537 = vmatprep.subr.mxu0 0.0
    %2538 = vmatpush1.xpose.msra.mxu0 0.0
    %2539 = vmatprep.subr.mxu0 0.0
    %2540 = vmatpush1.xpose.msra.mxu0 0.0
    %2541 = vmatprep.subr.mxu0 0.0
    %2542 = vmatpush1.xpose.msra.mxu0 0.0
    %2543 = vmatprep.mubr.f32.mxu0 0.0
    %v2544 = vand.u32 %v2100, 4294901760
    %2545 = vmatmul.mubr.f32.gmra.mrb[0].mxu0 %v2544
    %v2546 = vpop.f32.mrb[0].mxu0
    %v2547 = vadd.f32 %v2475, %v2546
    %v2548 = vpop.f32.mrb[0].mxu0
    %2549 = vdwg.mxu0
    %v2550 = vsel %vm1180, -1e+09, %v2547
    %v2551 = vsel %vm1634, %v2550, -inf
    %2552 = vmax.xlane.f32.xlu0 %v2551
    %v2553 = vpop.xlane.xlu0 %2552
    %v2554 = vsub.f32 %v2550, %v2553
    %v2555 = vmul.f32 %v2554, 1.442695
    %v2556 = vpow.pop %v2555
    %v2557 = vsel %vm1634, %v2556, 0.0
    %2558 = vadd.xlane.f32.xlu0 %v2557
    %v2559 = vpop.xlane.xlu0 %2558
    %v2560 = vrcp.pop %v2559
    %v2561 = vmul.f32 %v2556, %v2560
    %2563 = vrot.lane.b32.xlu0 %v1170, 96
    %v2564 = vpop.permute.xlu0 %2563
    %v2567 = vsel %vm1634, %v2561, 0
    %2569 = vmatprep.subr.mxu0 0.0
    %v2570 = vand.u32 %v2564, 4294901760
    %2571 = vmatpush1.msra.mxu0 %v2570
    %2572 = vmatprep.subr.mxu0 0.0
    %2573 = vmatpush1.msra.mxu0 0.0
    %2574 = vmatprep.subr.mxu0 0.0
    %2575 = vmatpush1.msra.mxu0 0.0
    %2576 = vmatprep.subr.mxu0 0.0
    %2577 = vmatpush1.msra.mxu0 0.0
    %2578 = vmatprep.subr.mxu0 0.0
    %2579 = vmatpush1.msra.mxu0 0.0
    %2580 = vmatprep.subr.mxu0 0.0
    %2581 = vmatpush1.msra.mxu0 0.0
    %2582 = vmatprep.subr.mxu0 0.0
    %2583 = vmatpush1.msra.mxu0 0.0
    %2584 = vmatprep.subr.mxu0 0.0
    %2585 = vmatpush1.msra.mxu0 0.0
    %2586 = vmatprep.subr.mxu0 0.0
    %2587 = vmatpush1.msra.mxu0 0.0
    %2588 = vmatprep.subr.mxu0 0.0
    %2589 = vmatpush1.msra.mxu0 0.0
    %2590 = vmatprep.subr.mxu0 0.0
    %2591 = vmatpush1.msra.mxu0 0.0
    %2592 = vmatprep.subr.mxu0 0.0
    %2593 = vmatpush1.msra.mxu0 0.0
    %2594 = vmatprep.subr.mxu0 0.0
    %2595 = vmatpush1.msra.mxu0 0.0
    %2596 = vmatprep.subr.mxu0 0.0
    %2597 = vmatpush1.msra.mxu0 0.0
    %2598 = vmatprep.subr.mxu0 0.0
    %2599 = vmatpush1.msra.mxu0 0.0
    %2600 = vmatprep.subr.mxu0 0.0
    %2601 = vmatpush1.msra.mxu0 0.0
    %2602 = vmatprep.subr.mxu0 0.0
    %2603 = vmatpush1.msra.mxu0 0.0
    %2604 = vmatprep.subr.mxu0 0.0
    %2605 = vmatpush1.msra.mxu0 0.0
    %2606 = vmatprep.subr.mxu0 0.0
    %2607 = vmatpush1.msra.mxu0 0.0
    %2608 = vmatprep.subr.mxu0 0.0
    %2609 = vmatpush1.msra.mxu0 0.0
    %2610 = vmatprep.subr.mxu0 0.0
    %2611 = vmatpush1.msra.mxu0 0.0
    %2612 = vmatprep.subr.mxu0 0.0
    %2613 = vmatpush1.msra.mxu0 0.0
    %2614 = vmatprep.subr.mxu0 0.0
    %2615 = vmatpush1.msra.mxu0 0.0
    %2616 = vmatprep.subr.mxu0 0.0
    %2617 = vmatpush1.msra.mxu0 0.0
    %2618 = vmatprep.subr.mxu0 0.0
    %2619 = vmatpush1.msra.mxu0 0.0
    %2620 = vmatprep.subr.mxu0 0.0
    %2621 = vmatpush1.msra.mxu0 0.0
    %2622 = vmatprep.subr.mxu0 0.0
    %2623 = vmatpush1.msra.mxu0 0.0
    %2624 = vmatprep.subr.mxu0 0.0
    %2625 = vmatpush1.msra.mxu0 0.0
    %2626 = vmatprep.subr.mxu0 0.0
    %2627 = vmatpush1.msra.mxu0 0.0
    %2628 = vmatprep.subr.mxu0 0.0
    %2629 = vmatpush1.msra.mxu0 0.0
    %2630 = vmatprep.subr.mxu0 0.0
    %2631 = vmatpush1.msra.mxu0 0.0
    %2632 = vmatprep.subr.mxu0 0.0
    %2633 = vmatpush1.msra.mxu0 0.0
    %2634 = vmatprep.mubr.f32.mxu0 0.0
    %v2635 = vand.u32 %v2567, 4294901760
    %v2636 = vsub.f32 %v2567, %v2635
    %v2637 = vand.u32 %v2636, 4294901760
    %v2638 = vsub.f32 %v2636, %v2637
    %v2639 = vand.u32 %v2638, 4294901760
    %2640 = vmatmul.mubr.f32.gmra.mrb[0].mxu0 %v2639
    %v2641 = vpop.f32.mrb[0].mxu0
    %v2642 = vadd.f32 0.0, %v2641
    %v2643 = vpop.f32.mrb[0].mxu0
    %2644 = vdwg.mxu0
    %2645 = vmatprep.subr.mxu0 0.0
    %v2646 = vand.u32 %v2564, 4294901760
    %v2647 = vsub.f32 %v2564, %v2646
    %v2648 = vand.u32 %v2647, 4294901760
    %v2649 = vsub.f32 %v2647, %v2648
    %v2650 = vand.u32 %v2649, 4294901760
    %2651 = vmatpush1.msra.mxu0 %v2650
    %2652 = vmatprep.subr.mxu0 0.0
    %2653 = vmatpush1.msra.mxu0 0.0
    %2654 = vmatprep.subr.mxu0 0.0
    %2655 = vmatpush1.msra.mxu0 0.0
    %2656 = vmatprep.subr.mxu0 0.0
    %2657 = vmatpush1.msra.mxu0 0.0
    %2658 = vmatprep.subr.mxu0 0.0
    %2659 = vmatpush1.msra.mxu0 0.0
    %2660 = vmatprep.subr.mxu0 0.0
    %2661 = vmatpush1.msra.mxu0 0.0
    %2662 = vmatprep.subr.mxu0 0.0
    %2663 = vmatpush1.msra.mxu0 0.0
    %2664 = vmatprep.subr.mxu0 0.0
    %2665 = vmatpush1.msra.mxu0 0.0
    %2666 = vmatprep.subr.mxu0 0.0
    %2667 = vmatpush1.msra.mxu0 0.0
    %2668 = vmatprep.subr.mxu0 0.0
    %2669 = vmatpush1.msra.mxu0 0.0
    %2670 = vmatprep.subr.mxu0 0.0
    %2671 = vmatpush1.msra.mxu0 0.0
    %2672 = vmatprep.subr.mxu0 0.0
    %2673 = vmatpush1.msra.mxu0 0.0
    %2674 = vmatprep.subr.mxu0 0.0
    %2675 = vmatpush1.msra.mxu0 0.0
    %2676 = vmatprep.subr.mxu0 0.0
    %2677 = vmatpush1.msra.mxu0 0.0
    %2678 = vmatprep.subr.mxu0 0.0
    %2679 = vmatpush1.msra.mxu0 0.0
    %2680 = vmatprep.subr.mxu0 0.0
    %2681 = vmatpush1.msra.mxu0 0.0
    %2682 = vmatprep.subr.mxu0 0.0
    %2683 = vmatpush1.msra.mxu0 0.0
    %2684 = vmatprep.subr.mxu0 0.0
    %2685 = vmatpush1.msra.mxu0 0.0
    %2686 = vmatprep.subr.mxu0 0.0
    %2687 = vmatpush1.msra.mxu0 0.0
    %2688 = vmatprep.subr.mxu0 0.0
    %2689 = vmatpush1.msra.mxu0 0.0
    %2690 = vmatprep.subr.mxu0 0.0
    %2691 = vmatpush1.msra.mxu0 0.0
    %2692 = vmatprep.subr.mxu0 0.0
    %2693 = vmatpush1.msra.mxu0 0.0
    %2694 = vmatprep.subr.mxu0 0.0
    %2695 = vmatpush1.msra.mxu0 0.0
    %2696 = vmatprep.subr.mxu0 0.0
    %2697 = vmatpush1.msra.mxu0 0.0
    %2698 = vmatprep.subr.mxu0 0.0
    %2699 = vmatpush1.msra.mxu0 0.0
    %2700 = vmatprep.subr.mxu0 0.0
    %2701 = vmatpush1.msra.mxu0 0.0
    %2702 = vmatprep.subr.mxu0 0.0
    %2703 = vmatpush1.msra.mxu0 0.0
    %2704 = vmatprep.subr.mxu0 0.0
    %2705 = vmatpush1.msra.mxu0 0.0
    %2706 = vmatprep.subr.mxu0 0.0
    %2707 = vmatpush1.msra.mxu0 0.0
    %2708 = vmatprep.subr.mxu0 0.0
    %2709 = vmatpush1.msra.mxu0 0.0
    %2710 = vmatprep.subr.mxu0 0.0
    %2711 = vmatpush1.msra.mxu0 0.0
    %2712 = vmatprep.subr.mxu0 0.0
    %2713 = vmatpush1.msra.mxu0 0.0
    %2714 = vmatprep.mubr.f32.mxu0 0.0
    %v2715 = vand.u32 %v2567, 4294901760
    %2716 = vmatmul.mubr.f32.gmra.mrb[0].mxu0 %v2715
    %v2717 = vpop.f32.mrb[0].mxu0
    %v2718 = vadd.f32 %v2642, %v2717
    %v2719 = vpop.f32.mrb[0].mxu0
    %2720 = vdwg.mxu0
    %2721 = vmatprep.subr.mxu0 0.0
    %v2722 = vand.u32 %v2564, 4294901760
    %v2723 = vsub.f32 %v2564, %v2722
    %2724 = vmatpush1.msra.mxu0 %v2723
    %2725 = vmatprep.subr.mxu0 0.0
    %2726 = vmatpush1.msra.mxu0 0.0
    %2727 = vmatprep.subr.mxu0 0.0
    %2728 = vmatpush1.msra.mxu0 0.0
    %2729 = vmatprep.subr.mxu0 0.0
    %2730 = vmatpush1.msra.mxu0 0.0
    %2731 = vmatprep.subr.mxu0 0.0
    %2732 = vmatpush1.msra.mxu0 0.0
    %2733 = vmatprep.subr.mxu0 0.0
    %2734 = vmatpush1.msra.mxu0 0.0
    %2735 = vmatprep.subr.mxu0 0.0
    %2736 = vmatpush1.msra.mxu0 0.0
    %2737 = vmatprep.subr.mxu0 0.0
    %2738 = vmatpush1.msra.mxu0 0.0
    %2739 = vmatprep.subr.mxu0 0.0
    %2740 = vmatpush1.msra.mxu0 0.0
    %2741 = vmatprep.subr.mxu0 0.0
    %2742 = vmatpush1.msra.mxu0 0.0
    %2743 = vmatprep.subr.mxu0 0.0
    %2744 = vmatpush1.msra.mxu0 0.0
    %2745 = vmatprep.subr.mxu0 0.0
    %2746 = vmatpush1.msra.mxu0 0.0
    %2747 = vmatprep.subr.mxu0 0.0
    %2748 = vmatpush1.msra.mxu0 0.0
    %2749 = vmatprep.subr.mxu0 0.0
    %2750 = vmatpush1.msra.mxu0 0.0
    %2751 = vmatprep.subr.mxu0 0.0
    %2752 = vmatpush1.msra.mxu0 0.0
    %2753 = vmatprep.subr.mxu0 0.0
    %2754 = vmatpush1.msra.mxu0 0.0
    %2755 = vmatprep.subr.mxu0 0.0
    %2756 = vmatpush1.msra.mxu0 0.0
    %2757 = vmatprep.subr.mxu0 0.0
    %2758 = vmatpush1.msra.mxu0 0.0
    %2759 = vmatprep.subr.mxu0 0.0
    %2760 = vmatpush1.msra.mxu0 0.0
    %2761 = vmatprep.subr.mxu0 0.0
    %2762 = vmatpush1.msra.mxu0 0.0
    %2763 = vmatprep.subr.mxu0 0.0
    %2764 = vmatpush1.msra.mxu0 0.0
    %2765 = vmatprep.subr.mxu0 0.0
    %2766 = vmatpush1.msra.mxu0 0.0
    %2767 = vmatprep.subr.mxu0 0.0
    %2768 = vmatpush1.msra.mxu0 0.0
    %2769 = vmatprep.subr.mxu0 0.0
    %2770 = vmatpush1.msra.mxu0 0.0
    %2771 = vmatprep.subr.mxu0 0.0
    %2772 = vmatpush1.msra.mxu0 0.0
    %2773 = vmatprep.subr.mxu0 0.0
    %2774 = vmatpush1.msra.mxu0 0.0
    %2775 = vmatprep.subr.mxu0 0.0
    %2776 = vmatpush1.msra.mxu0 0.0
    %2777 = vmatprep.subr.mxu0 0.0
    %2778 = vmatpush1.msra.mxu0 0.0
    %2779 = vmatprep.subr.mxu0 0.0
    %2780 = vmatpush1.msra.mxu0 0.0
    %2781 = vmatprep.subr.mxu0 0.0
    %2782 = vmatpush1.msra.mxu0 0.0
    %2783 = vmatprep.subr.mxu0 0.0
    %2784 = vmatpush1.msra.mxu0 0.0
    %2785 = vmatprep.subr.mxu0 0.0
    %2786 = vmatpush1.msra.mxu0 0.0
    %2787 = vmatprep.mubr.f32.mxu0 0.0
    %v2788 = vand.u32 %v2567, 4294901760
    %v2789 = vsub.f32 %v2567, %v2788
    %2790 = vmatmul.mubr.f32.gmra.mrb[0].mxu0 %v2789
    %v2791 = vpop.f32.mrb[0].mxu0
    %v2792 = vadd.f32 %v2718, %v2791
    %v2793 = vpop.f32.mrb[0].mxu0
    %2794 = vdwg.mxu0
    %2795 = vmatprep.subr.mxu0 0.0
    %v2796 = vand.u32 %v2564, 4294901760
    %2797 = vmatpush1.msra.mxu0 %v2796
    %2798 = vmatprep.subr.mxu0 0.0
    %2799 = vmatpush1.msra.mxu0 0.0
    %2800 = vmatprep.subr.mxu0 0.0
    %2801 = vmatpush1.msra.mxu0 0.0
    %2802 = vmatprep.subr.mxu0 0.0
    %2803 = vmatpush1.msra.mxu0 0.0
    %2804 = vmatprep.subr.mxu0 0.0
    %2805 = vmatpush1.msra.mxu0 0.0
    %2806 = vmatprep.subr.mxu0 0.0
    %2807 = vmatpush1.msra.mxu0 0.0
    %2808 = vmatprep.subr.mxu0 0.0
    %2809 = vmatpush1.msra.mxu0 0.0
    %2810 = vmatprep.subr.mxu0 0.0
    %2811 = vmatpush1.msra.mxu0 0.0
    %2812 = vmatprep.subr.mxu0 0.0
    %2813 = vmatpush1.msra.mxu0 0.0
    %2814 = vmatprep.subr.mxu0 0.0
    %2815 = vmatpush1.msra.mxu0 0.0
    %2816 = vmatprep.subr.mxu0 0.0
    %2817 = vmatpush1.msra.mxu0 0.0
    %2818 = vmatprep.subr.mxu0 0.0
    %2819 = vmatpush1.msra.mxu0 0.0
    %2820 = vmatprep.subr.mxu0 0.0
    %2821 = vmatpush1.msra.mxu0 0.0
    %2822 = vmatprep.subr.mxu0 0.0
    %2823 = vmatpush1.msra.mxu0 0.0
    %2824 = vmatprep.subr.mxu0 0.0
    %2825 = vmatpush1.msra.mxu0 0.0
    %2826 = vmatprep.subr.mxu0 0.0
    %2827 = vmatpush1.msra.mxu0 0.0
    %2828 = vmatprep.subr.mxu0 0.0
    %2829 = vmatpush1.msra.mxu0 0.0
    %2830 = vmatprep.subr.mxu0 0.0
    %2831 = vmatpush1.msra.mxu0 0.0
    %2832 = vmatprep.subr.mxu0 0.0
    %2833 = vmatpush1.msra.mxu0 0.0
    %2834 = vmatprep.subr.mxu0 0.0
    %2835 = vmatpush1.msra.mxu0 0.0
    %2836 = vmatprep.subr.mxu0 0.0
    %2837 = vmatpush1.msra.mxu0 0.0
    %2838 = vmatprep.subr.mxu0 0.0
    %2839 = vmatpush1.msra.mxu0 0.0
    %2840 = vmatprep.subr.mxu0 0.0
    %2841 = vmatpush1.msra.mxu0 0.0
    %2842 = vmatprep.subr.mxu0 0.0
    %2843 = vmatpush1.msra.mxu0 0.0
    %2844 = vmatprep.subr.mxu0 0.0
    %2845 = vmatpush1.msra.mxu0 0.0
    %2846 = vmatprep.subr.mxu0 0.0
    %2847 = vmatpush1.msra.mxu0 0.0
    %2848 = vmatprep.subr.mxu0 0.0
    %2849 = vmatpush1.msra.mxu0 0.0
    %2850 = vmatprep.subr.mxu0 0.0
    %2851 = vmatpush1.msra.mxu0 0.0
    %2852 = vmatprep.subr.mxu0 0.0
    %2853 = vmatpush1.msra.mxu0 0.0
    %2854 = vmatprep.subr.mxu0 0.0
    %2855 = vmatpush1.msra.mxu0 0.0
    %2856 = vmatprep.subr.mxu0 0.0
    %2857 = vmatpush1.msra.mxu0 0.0
    %2858 = vmatprep.subr.mxu0 0.0
    %2859 = vmatpush1.msra.mxu0 0.0
    %2860 = vmatprep.mubr.f32.mxu0 0.0
    %v2861 = vand.u32 %v2567, 4294901760
    %v2862 = vsub.f32 %v2567, %v2861
    %v2863 = vand.u32 %v2862, 4294901760
    %2864 = vmatmul.mubr.f32.gmra.mrb[0].mxu0 %v2863
    %v2865 = vpop.f32.mrb[0].mxu0
    %v2866 = vadd.f32 %v2792, %v2865
    %v2867 = vpop.f32.mrb[0].mxu0
    %2868 = vdwg.mxu0
    %2869 = vmatprep.subr.mxu0 0.0
    %v2870 = vand.u32 %v2564, 4294901760
    %v2871 = vsub.f32 %v2564, %v2870
    %v2872 = vand.u32 %v2871, 4294901760
    %2873 = vmatpush1.msra.mxu0 %v2872
    %2874 = vmatprep.subr.mxu0 0.0
    %2875 = vmatpush1.msra.mxu0 0.0
    %2876 = vmatprep.subr.mxu0 0.0
    %2877 = vmatpush1.msra.mxu0 0.0
    %2878 = vmatprep.subr.mxu0 0.0
    %2879 = vmatpush1.msra.mxu0 0.0
    %2880 = vmatprep.subr.mxu0 0.0
    %2881 = vmatpush1.msra.mxu0 0.0
    %2882 = vmatprep.subr.mxu0 0.0
    %2883 = vmatpush1.msra.mxu0 0.0
    %2884 = vmatprep.subr.mxu0 0.0
    %2885 = vmatpush1.msra.mxu0 0.0
    %2886 = vmatprep.subr.mxu0 0.0
    %2887 = vmatpush1.msra.mxu0 0.0
    %2888 = vmatprep.subr.mxu0 0.0
    %2889 = vmatpush1.msra.mxu0 0.0
    %2890 = vmatprep.subr.mxu0 0.0
    %2891 = vmatpush1.msra.mxu0 0.0
    %2892 = vmatprep.subr.mxu0 0.0
    %2893 = vmatpush1.msra.mxu0 0.0
    %2894 = vmatprep.subr.mxu0 0.0
    %2895 = vmatpush1.msra.mxu0 0.0
    %2896 = vmatprep.subr.mxu0 0.0
    %2897 = vmatpush1.msra.mxu0 0.0
    %2898 = vmatprep.subr.mxu0 0.0
    %2899 = vmatpush1.msra.mxu0 0.0
    %2900 = vmatprep.subr.mxu0 0.0
    %2901 = vmatpush1.msra.mxu0 0.0
    %2902 = vmatprep.subr.mxu0 0.0
    %2903 = vmatpush1.msra.mxu0 0.0
    %2904 = vmatprep.subr.mxu0 0.0
    %2905 = vmatpush1.msra.mxu0 0.0
    %2906 = vmatprep.subr.mxu0 0.0
    %2907 = vmatpush1.msra.mxu0 0.0
    %2908 = vmatprep.subr.mxu0 0.0
    %2909 = vmatpush1.msra.mxu0 0.0
    %2910 = vmatprep.subr.mxu0 0.0
    %2911 = vmatpush1.msra.mxu0 0.0
    %2912 = vmatprep.subr.mxu0 0.0
    %2913 = vmatpush1.msra.mxu0 0.0
    %2914 = vmatprep.subr.mxu0 0.0
    %2915 = vmatpush1.msra.mxu0 0.0
    %2916 = vmatprep.subr.mxu0 0.0
    %2917 = vmatpush1.msra.mxu0 0.0
    %2918 = vmatprep.subr.mxu0 0.0
    %2919 = vmatpush1.msra.mxu0 0.0
    %2920 = vmatprep.subr.mxu0 0.0
    %2921 = vmatpush1.msra.mxu0 0.0
    %2922 = vmatprep.subr.mxu0 0.0
    %2923 = vmatpush1.msra.mxu0 0.0
    %2924 = vmatprep.subr.mxu0 0.0
    %2925 = vmatpush1.msra.mxu0 0.0
    %2926 = vmatprep.subr.mxu0 0.0
    %2927 = vmatpush1.msra.mxu0 0.0
    %2928 = vmatprep.subr.mxu0 0.0
    %2929 = vmatpush1.msra.mxu0 0.0
    %2930 = vmatprep.subr.mxu0 0.0
    %2931 = vmatpush1.msra.mxu0 0.0
    %2932 = vmatprep.subr.mxu0 0.0
    %2933 = vmatpush1.msra.mxu0 0.0
    %2934 = vmatprep.subr.mxu0 0.0
    %2935 = vmatpush1.msra.mxu0 0.0
    %2936 = vmatprep.mubr.f32.mxu0 0.0
    %v2937 = vand.u32 %v2567, 4294901760
    %2938 = vmatmul.mubr.f32.gmra.mrb[0].mxu0 %v2937
    %v2939 = vpop.f32.mrb[0].mxu0
    %v2940 = vadd.f32 %v2866, %v2939
    %v2941 = vpop.f32.mrb[0].mxu0
    %2942 = vdwg.mxu0
    %2943 = vmatprep.subr.mxu0 0.0
    %v2944 = vand.u32 %v2564, 4294901760
    %2945 = vmatpush1.msra.mxu0 %v2944
    %2946 = vmatprep.subr.mxu0 0.0
    %2947 = vmatpush1.msra.mxu0 0.0
    %2948 = vmatprep.subr.mxu0 0.0
    %2949 = vmatpush1.msra.mxu0 0.0
    %2950 = vmatprep.subr.mxu0 0.0
    %2951 = vmatpush1.msra.mxu0 0.0
    %2952 = vmatprep.subr.mxu0 0.0
    %2953 = vmatpush1.msra.mxu0 0.0
    %2954 = vmatprep.subr.mxu0 0.0
    %2955 = vmatpush1.msra.mxu0 0.0
    %2956 = vmatprep.subr.mxu0 0.0
    %2957 = vmatpush1.msra.mxu0 0.0
    %2958 = vmatprep.subr.mxu0 0.0
    %2959 = vmatpush1.msra.mxu0 0.0
    %2960 = vmatprep.subr.mxu0 0.0
    %2961 = vmatpush1.msra.mxu0 0.0
    %2962 = vmatprep.subr.mxu0 0.0
    %2963 = vmatpush1.msra.mxu0 0.0
    %2964 = vmatprep.subr.mxu0 0.0
    %2965 = vmatpush1.msra.mxu0 0.0
    %2966 = vmatprep.subr.mxu0 0.0
    %2967 = vmatpush1.msra.mxu0 0.0
    %2968 = vmatprep.subr.mxu0 0.0
    %2969 = vmatpush1.msra.mxu0 0.0
    %2970 = vmatprep.subr.mxu0 0.0
    %2971 = vmatpush1.msra.mxu0 0.0
    %2972 = vmatprep.subr.mxu0 0.0
    %2973 = vmatpush1.msra.mxu0 0.0
    %2974 = vmatprep.subr.mxu0 0.0
    %2975 = vmatpush1.msra.mxu0 0.0
    %2976 = vmatprep.subr.mxu0 0.0
    %2977 = vmatpush1.msra.mxu0 0.0
    %2978 = vmatprep.subr.mxu0 0.0
    %2979 = vmatpush1.msra.mxu0 0.0
    %2980 = vmatprep.subr.mxu0 0.0
    %2981 = vmatpush1.msra.mxu0 0.0
    %2982 = vmatprep.subr.mxu0 0.0
    %2983 = vmatpush1.msra.mxu0 0.0
    %2984 = vmatprep.subr.mxu0 0.0
    %2985 = vmatpush1.msra.mxu0 0.0
    %2986 = vmatprep.subr.mxu0 0.0
    %2987 = vmatpush1.msra.mxu0 0.0
    %2988 = vmatprep.subr.mxu0 0.0
    %2989 = vmatpush1.msra.mxu0 0.0
    %2990 = vmatprep.subr.mxu0 0.0
    %2991 = vmatpush1.msra.mxu0 0.0
    %2992 = vmatprep.subr.mxu0 0.0
    %2993 = vmatpush1.msra.mxu0 0.0
    %2994 = vmatprep.subr.mxu0 0.0
    %2995 = vmatpush1.msra.mxu0 0.0
    %2996 = vmatprep.subr.mxu0 0.0
    %2997 = vmatpush1.msra.mxu0 0.0
    %2998 = vmatprep.subr.mxu0 0.0
    %2999 = vmatpush1.msra.mxu0 0.0
    %3000 = vmatprep.subr.mxu0 0.0
    %3001 = vmatpush1.msra.mxu0 0.0
    %3002 = vmatprep.subr.mxu0 0.0
    %3003 = vmatpush1.msra.mxu0 0.0
    %3004 = vmatprep.subr.mxu0 0.0
    %3005 = vmatpush1.msra.mxu0 0.0
    %3006 = vmatprep.subr.mxu0 0.0
    %3007 = vmatpush1.msra.mxu0 0.0
    %3008 = vmatprep.mubr.f32.mxu0 0.0
    %v3009 = vand.u32 %v2567, 4294901760
    %3010 = vmatmul.mubr.f32.gmra.mrb[0].mxu0 %v3009
    %v3011 = vpop.f32.mrb[0].mxu0
    %v3012 = vadd.f32 %v2940, %v3011
    %v3013 = vpop.f32.mrb[0].mxu0
    %3014 = vdwg.mxu0
    %3016 = vrot.lane.b32.xlu0 %v3012, 32
    %v3017 = vpop.permute.xlu0 %3016
    %vm3019 = vcmask 523520
    %3020 = vst.msk [vmem:[#allocation2] sm:$0xff] %vm3019, %v3017
    %3021 = vrot.lane.b32.xlu0 %v640, 64
    %v3022 = vpop.permute.xlu0 %3021
    %3023 = vrot.lane.b32.xlu0 %v642, 64
    %v3024 = vpop.permute.xlu0 %3023
    %v3025 = vsel %vm52, %v3022, 0
    %v3027 = vsel %vm52, %v3024, 0
    %3029 = vmatprep.subr.mxu0 0.0
    %v3030 = vand.u32 %v3027, 4294901760
    %3031 = vmatpush1.xpose.msra.mxu0 %v3030
    %3032 = vmatprep.subr.mxu0 0.0
    %3033 = vmatpush1.xpose.msra.mxu0 0.0
    %3034 = vmatprep.subr.mxu0 0.0
    %3035 = vmatpush1.xpose.msra.mxu0 0.0
    %3036 = vmatprep.subr.mxu0 0.0
    %3037 = vmatpush1.xpose.msra.mxu0 0.0
    %3038 = vmatprep.subr.mxu0 0.0
    %3039 = vmatpush1.xpose.msra.mxu0 0.0
    %3040 = vmatprep.subr.mxu0 0.0
    %3041 = vmatpush1.xpose.msra.mxu0 0.0
    %3042 = vmatprep.subr.mxu0 0.0
    %3043 = vmatpush1.xpose.msra.mxu0 0.0
    %3044 = vmatprep.subr.mxu0 0.0
    %3045 = vmatpush1.xpose.msra.mxu0 0.0
    %3046 = vmatprep.subr.mxu0 0.0
    %3047 = vmatpush1.xpose.msra.mxu0 0.0
    %3048 = vmatprep.subr.mxu0 0.0
    %3049 = vmatpush1.xpose.msra.mxu0 0.0
    %3050 = vmatprep.subr.mxu0 0.0
    %3051 = vmatpush1.xpose.msra.mxu0 0.0
    %3052 = vmatprep.subr.mxu0 0.0
    %3053 = vmatpush1.xpose.msra.mxu0 0.0
    %3054 = vmatprep.subr.mxu0 0.0
    %3055 = vmatpush1.xpose.msra.mxu0 0.0
    %3056 = vmatprep.subr.mxu0 0.0
    %3057 = vmatpush1.xpose.msra.mxu0 0.0
    %3058 = vmatprep.subr.mxu0 0.0
    %3059 = vmatpush1.xpose.msra.mxu0 0.0
    %3060 = vmatprep.subr.mxu0 0.0
    %3061 = vmatpush1.xpose.msra.mxu0 0.0
    %3062 = vmatprep.subr.mxu0 0.0
    %3063 = vmatpush1.xpose.msra.mxu0 0.0
    %3064 = vmatprep.subr.mxu0 0.0
    %3065 = vmatpush1.xpose.msra.mxu0 0.0
    %3066 = vmatprep.subr.mxu0 0.0
    %3067 = vmatpush1.xpose.msra.mxu0 0.0
    %3068 = vmatprep.subr.mxu0 0.0
    %3069 = vmatpush1.xpose.msra.mxu0 0.0
    %3070 = vmatprep.subr.mxu0 0.0
    %3071 = vmatpush1.xpose.msra.mxu0 0.0
    %3072 = vmatprep.subr.mxu0 0.0
    %3073 = vmatpush1.xpose.msra.mxu0 0.0
    %3074 = vmatprep.subr.mxu0 0.0
    %3075 = vmatpush1.xpose.msra.mxu0 0.0
    %3076 = vmatprep.subr.mxu0 0.0
    %3077 = vmatpush1.xpose.msra.mxu0 0.0
    %3078 = vmatprep.subr.mxu0 0.0
    %3079 = vmatpush1.xpose.msra.mxu0 0.0
    %3080 = vmatprep.subr.mxu0 0.0
    %3081 = vmatpush1.xpose.msra.mxu0 0.0
    %3082 = vmatprep.subr.mxu0 0.0
    %3083 = vmatpush1.xpose.msra.mxu0 0.0
    %3084 = vmatprep.subr.mxu0 0.0
    %3085 = vmatpush1.xpose.msra.mxu0 0.0
    %3086 = vmatprep.subr.mxu0 0.0
    %3087 = vmatpush1.xpose.msra.mxu0 0.0
    %3088 = vmatprep.subr.mxu0 0.0
    %3089 = vmatpush1.xpose.msra.mxu0 0.0
    %3090 = vmatprep.subr.mxu0 0.0
    %3091 = vmatpush1.xpose.msra.mxu0 0.0
    %3092 = vmatprep.subr.mxu0 0.0
    %3093 = vmatpush1.xpose.msra.mxu0 0.0
    %3094 = vmatprep.mubr.f32.mxu0 0.0
    %v3095 = vand.u32 %v3025, 4294901760
    %v3096 = vsub.f32 %v3025, %v3095
    %v3097 = vand.u32 %v3096, 4294901760
    %v3098 = vsub.f32 %v3096, %v3097
    %v3099 = vand.u32 %v3098, 4294901760
    %3100 = vmatmul.mubr.f32.gmra.mrb[0].mxu0 %v3099
    %v3101 = vpop.f32.mrb[0].mxu0
    %v3102 = vadd.f32 0.0, %v3101
    %v3103 = vpop.f32.mrb[0].mxu0
    %3104 = vdwg.mxu0
    %3105 = vmatprep.subr.mxu0 0.0
    %v3106 = vand.u32 %v3027, 4294901760
    %v3107 = vsub.f32 %v3027, %v3106
    %v3108 = vand.u32 %v3107, 4294901760
    %v3109 = vsub.f32 %v3107, %v3108
    %v3110 = vand.u32 %v3109, 4294901760
    %3111 = vmatpush1.xpose.msra.mxu0 %v3110
    %3112 = vmatprep.subr.mxu0 0.0
    %3113 = vmatpush1.xpose.msra.mxu0 0.0
    %3114 = vmatprep.subr.mxu0 0.0
    %3115 = vmatpush1.xpose.msra.mxu0 0.0
    %3116 = vmatprep.subr.mxu0 0.0
    %3117 = vmatpush1.xpose.msra.mxu0 0.0
    %3118 = vmatprep.subr.mxu0 0.0
    %3119 = vmatpush1.xpose.msra.mxu0 0.0
    %3120 = vmatprep.subr.mxu0 0.0
    %3121 = vmatpush1.xpose.msra.mxu0 0.0
    %3122 = vmatprep.subr.mxu0 0.0
    %3123 = vmatpush1.xpose.msra.mxu0 0.0
    %3124 = vmatprep.subr.mxu0 0.0
    %3125 = vmatpush1.xpose.msra.mxu0 0.0
    %3126 = vmatprep.subr.mxu0 0.0
    %3127 = vmatpush1.xpose.msra.mxu0 0.0
    %3128 = vmatprep.subr.mxu0 0.0
    %3129 = vmatpush1.xpose.msra.mxu0 0.0
    %3130 = vmatprep.subr.mxu0 0.0
    %3131 = vmatpush1.xpose.msra.mxu0 0.0
    %3132 = vmatprep.subr.mxu0 0.0
    %3133 = vmatpush1.xpose.msra.mxu0 0.0
    %3134 = vmatprep.subr.mxu0 0.0
    %3135 = vmatpush1.xpose.msra.mxu0 0.0
    %3136 = vmatprep.subr.mxu0 0.0
    %3137 = vmatpush1.xpose.msra.mxu0 0.0
    %3138 = vmatprep.subr.mxu0 0.0
    %3139 = vmatpush1.xpose.msra.mxu0 0.0
    %3140 = vmatprep.subr.mxu0 0.0
    %3141 = vmatpush1.xpose.msra.mxu0 0.0
    %3142 = vmatprep.subr.mxu0 0.0
    %3143 = vmatpush1.xpose.msra.mxu0 0.0
    %3144 = vmatprep.subr.mxu0 0.0
    %3145 = vmatpush1.xpose.msra.mxu0 0.0
    %3146 = vmatprep.subr.mxu0 0.0
    %3147 = vmatpush1.xpose.msra.mxu0 0.0
    %3148 = vmatprep.subr.mxu0 0.0
    %3149 = vmatpush1.xpose.msra.mxu0 0.0
    %3150 = vmatprep.subr.mxu0 0.0
    %3151 = vmatpush1.xpose.msra.mxu0 0.0
    %3152 = vmatprep.subr.mxu0 0.0
    %3153 = vmatpush1.xpose.msra.mxu0 0.0
    %3154 = vmatprep.subr.mxu0 0.0
    %3155 = vmatpush1.xpose.msra.mxu0 0.0
    %3156 = vmatprep.subr.mxu0 0.0
    %3157 = vmatpush1.xpose.msra.mxu0 0.0
    %3158 = vmatprep.subr.mxu0 0.0
    %3159 = vmatpush1.xpose.msra.mxu0 0.0
    %3160 = vmatprep.subr.mxu0 0.0
    %3161 = vmatpush1.xpose.msra.mxu0 0.0
    %3162 = vmatprep.subr.mxu0 0.0
    %3163 = vmatpush1.xpose.msra.mxu0 0.0
    %3164 = vmatprep.subr.mxu0 0.0
    %3165 = vmatpush1.xpose.msra.mxu0 0.0
    %3166 = vmatprep.subr.mxu0 0.0
    %3167 = vmatpush1.xpose.msra.mxu0 0.0
    %3168 = vmatprep.subr.mxu0 0.0
    %3169 = vmatpush1.xpose.msra.mxu0 0.0
    %3170 = vmatprep.subr.mxu0 0.0
    %3171 = vmatpush1.xpose.msra.mxu0 0.0
    %3172 = vmatprep.subr.mxu0 0.0
    %3173 = vmatpush1.xpose.msra.mxu0 0.0
    %3174 = vmatprep.mubr.f32.mxu0 0.0
    %v3175 = vand.u32 %v3025, 4294901760
    %3176 = vmatmul.mubr.f32.gmra.mrb[0].mxu0 %v3175
    %v3177 = vpop.f32.mrb[0].mxu0
    %v3178 = vadd.f32 %v3102, %v3177
    %v3179 = vpop.f32.mrb[0].mxu0
    %3180 = vdwg.mxu0
    %3181 = vmatprep.subr.mxu0 0.0
    %v3182 = vand.u32 %v3027, 4294901760
    %v3183 = vsub.f32 %v3027, %v3182
    %3184 = vmatpush1.xpose.msra.mxu0 %v3183
    %3185 = vmatprep.subr.mxu0 0.0
    %3186 = vmatpush1.xpose.msra.mxu0 0.0
    %3187 = vmatprep.subr.mxu0 0.0
    %3188 = vmatpush1.xpose.msra.mxu0 0.0
    %3189 = vmatprep.subr.mxu0 0.0
    %3190 = vmatpush1.xpose.msra.mxu0 0.0
    %3191 = vmatprep.subr.mxu0 0.0
    %3192 = vmatpush1.xpose.msra.mxu0 0.0
    %3193 = vmatprep.subr.mxu0 0.0
    %3194 = vmatpush1.xpose.msra.mxu0 0.0
    %3195 = vmatprep.subr.mxu0 0.0
    %3196 = vmatpush1.xpose.msra.mxu0 0.0
    %3197 = vmatprep.subr.mxu0 0.0
    %3198 = vmatpush1.xpose.msra.mxu0 0.0
    %3199 = vmatprep.subr.mxu0 0.0
    %3200 = vmatpush1.xpose.msra.mxu0 0.0
    %3201 = vmatprep.subr.mxu0 0.0
    %3202 = vmatpush1.xpose.msra.mxu0 0.0
    %3203 = vmatprep.subr.mxu0 0.0
    %3204 = vmatpush1.xpose.msra.mxu0 0.0
    %3205 = vmatprep.subr.mxu0 0.0
    %3206 = vmatpush1.xpose.msra.mxu0 0.0
    %3207 = vmatprep.subr.mxu0 0.0
    %3208 = vmatpush1.xpose.msra.mxu0 0.0
    %3209 = vmatprep.subr.mxu0 0.0
    %3210 = vmatpush1.xpose.msra.mxu0 0.0
    %3211 = vmatprep.subr.mxu0 0.0
    %3212 = vmatpush1.xpose.msra.mxu0 0.0
    %3213 = vmatprep.subr.mxu0 0.0
    %3214 = vmatpush1.xpose.msra.mxu0 0.0
    %3215 = vmatprep.subr.mxu0 0.0
    %3216 = vmatpush1.xpose.msra.mxu0 0.0
    %3217 = vmatprep.subr.mxu0 0.0
    %3218 = vmatpush1.xpose.msra.mxu0 0.0
    %3219 = vmatprep.subr.mxu0 0.0
    %3220 = vmatpush1.xpose.msra.mxu0 0.0
    %3221 = vmatprep.subr.mxu0 0.0
    %3222 = vmatpush1.xpose.msra.mxu0 0.0
    %3223 = vmatprep.subr.mxu0 0.0
    %3224 = vmatpush1.xpose.msra.mxu0 0.0
    %3225 = vmatprep.subr.mxu0 0.0
    %3226 = vmatpush1.xpose.msra.mxu0 0.0
    %3227 = vmatprep.subr.mxu0 0.0
    %3228 = vmatpush1.xpose.msra.mxu0 0.0
    %3229 = vmatprep.subr.mxu0 0.0
    %3230 = vmatpush1.xpose.msra.mxu0 0.0
    %3231 = vmatprep.subr.mxu0 0.0
    %3232 = vmatpush1.xpose.msra.mxu0 0.0
    %3233 = vmatprep.subr.mxu0 0.0
    %3234 = vmatpush1.xpose.msra.mxu0 0.0
    %3235 = vmatprep.subr.mxu0 0.0
    %3236 = vmatpush1.xpose.msra.mxu0 0.0
    %3237 = vmatprep.subr.mxu0 0.0
    %3238 = vmatpush1.xpose.msra.mxu0 0.0
    %3239 = vmatprep.subr.mxu0 0.0
    %3240 = vmatpush1.xpose.msra.mxu0 0.0
    %3241 = vmatprep.subr.mxu0 0.0
    %3242 = vmatpush1.xpose.msra.mxu0 0.0
    %3243 = vmatprep.subr.mxu0 0.0
    %3244 = vmatpush1.xpose.msra.mxu0 0.0
    %3245 = vmatprep.subr.mxu0 0.0
    %3246 = vmatpush1.xpose.msra.mxu0 0.0
    %3247 = vmatprep.mubr.f32.mxu0 0.0
    %v3248 = vand.u32 %v3025, 4294901760
    %v3249 = vsub.f32 %v3025, %v3248
    %3250 = vmatmul.mubr.f32.gmra.mrb[0].mxu0 %v3249
    %v3251 = vpop.f32.mrb[0].mxu0
    %v3252 = vadd.f32 %v3178, %v3251
    %v3253 = vpop.f32.mrb[0].mxu0
    %3254 = vdwg.mxu0
    %3255 = vmatprep.subr.mxu0 0.0
    %v3256 = vand.u32 %v3027, 4294901760
    %3257 = vmatpush1.xpose.msra.mxu0 %v3256
    %3258 = vmatprep.subr.mxu0 0.0
    %3259 = vmatpush1.xpose.msra.mxu0 0.0
    %3260 = vmatprep.subr.mxu0 0.0
    %3261 = vmatpush1.xpose.msra.mxu0 0.0
    %3262 = vmatprep.subr.mxu0 0.0
    %3263 = vmatpush1.xpose.msra.mxu0 0.0
    %3264 = vmatprep.subr.mxu0 0.0
    %3265 = vmatpush1.xpose.msra.mxu0 0.0
    %3266 = vmatprep.subr.mxu0 0.0
    %3267 = vmatpush1.xpose.msra.mxu0 0.0
    %3268 = vmatprep.subr.mxu0 0.0
    %3269 = vmatpush1.xpose.msra.mxu0 0.0
    %3270 = vmatprep.subr.mxu0 0.0
    %3271 = vmatpush1.xpose.msra.mxu0 0.0
    %3272 = vmatprep.subr.mxu0 0.0
    %3273 = vmatpush1.xpose.msra.mxu0 0.0
    %3274 = vmatprep.subr.mxu0 0.0
    %3275 = vmatpush1.xpose.msra.mxu0 0.0
    %3276 = vmatprep.subr.mxu0 0.0
    %3277 = vmatpush1.xpose.msra.mxu0 0.0
    %3278 = vmatprep.subr.mxu0 0.0
    %3279 = vmatpush1.xpose.msra.mxu0 0.0
    %3280 = vmatprep.subr.mxu0 0.0
    %3281 = vmatpush1.xpose.msra.mxu0 0.0
    %3282 = vmatprep.subr.mxu0 0.0
    %3283 = vmatpush1.xpose.msra.mxu0 0.0
    %3284 = vmatprep.subr.mxu0 0.0
    %3285 = vmatpush1.xpose.msra.mxu0 0.0
    %3286 = vmatprep.subr.mxu0 0.0
    %3287 = vmatpush1.xpose.msra.mxu0 0.0
    %3288 = vmatprep.subr.mxu0 0.0
    %3289 = vmatpush1.xpose.msra.mxu0 0.0
    %3290 = vmatprep.subr.mxu0 0.0
    %3291 = vmatpush1.xpose.msra.mxu0 0.0
    %3292 = vmatprep.subr.mxu0 0.0
    %3293 = vmatpush1.xpose.msra.mxu0 0.0
    %3294 = vmatprep.subr.mxu0 0.0
    %3295 = vmatpush1.xpose.msra.mxu0 0.0
    %3296 = vmatprep.subr.mxu0 0.0
    %3297 = vmatpush1.xpose.msra.mxu0 0.0
    %3298 = vmatprep.subr.mxu0 0.0
    %3299 = vmatpush1.xpose.msra.mxu0 0.0
    %3300 = vmatprep.subr.mxu0 0.0
    %3301 = vmatpush1.xpose.msra.mxu0 0.0
    %3302 = vmatprep.subr.mxu0 0.0
    %3303 = vmatpush1.xpose.msra.mxu0 0.0
    %3304 = vmatprep.subr.mxu0 0.0
    %3305 = vmatpush1.xpose.msra.mxu0 0.0
    %3306 = vmatprep.subr.mxu0 0.0
    %3307 = vmatpush1.xpose.msra.mxu0 0.0
    %3308 = vmatprep.subr.mxu0 0.0
    %3309 = vmatpush1.xpose.msra.mxu0 0.0
    %3310 = vmatprep.subr.mxu0 0.0
    %3311 = vmatpush1.xpose.msra.mxu0 0.0
    %3312 = vmatprep.subr.mxu0 0.0
    %3313 = vmatpush1.xpose.msra.mxu0 0.0
    %3314 = vmatprep.subr.mxu0 0.0
    %3315 = vmatpush1.xpose.msra.mxu0 0.0
    %3316 = vmatprep.subr.mxu0 0.0
    %3317 = vmatpush1.xpose.msra.mxu0 0.0
    %3318 = vmatprep.subr.mxu0 0.0
    %3319 = vmatpush1.xpose.msra.mxu0 0.0
    %3320 = vmatprep.mubr.f32.mxu0 0.0
    %v3321 = vand.u32 %v3025, 4294901760
    %v3322 = vsub.f32 %v3025, %v3321
    %v3323 = vand.u32 %v3322, 4294901760
    %3324 = vmatmul.mubr.f32.gmra.mrb[0].mxu0 %v3323
    %v3325 = vpop.f32.mrb[0].mxu0
    %v3326 = vadd.f32 %v3252, %v3325
    %v3327 = vpop.f32.mrb[0].mxu0
    %3328 = vdwg.mxu0
    %3329 = vmatprep.subr.mxu0 0.0
    %v3330 = vand.u32 %v3027, 4294901760
    %v3331 = vsub.f32 %v3027, %v3330
    %v3332 = vand.u32 %v3331, 4294901760
    %3333 = vmatpush1.xpose.msra.mxu0 %v3332
    %3334 = vmatprep.subr.mxu0 0.0
    %3335 = vmatpush1.xpose.msra.mxu0 0.0
    %3336 = vmatprep.subr.mxu0 0.0
    %3337 = vmatpush1.xpose.msra.mxu0 0.0
    %3338 = vmatprep.subr.mxu0 0.0
    %3339 = vmatpush1.xpose.msra.mxu0 0.0
    %3340 = vmatprep.subr.mxu0 0.0
    %3341 = vmatpush1.xpose.msra.mxu0 0.0
    %3342 = vmatprep.subr.mxu0 0.0
    %3343 = vmatpush1.xpose.msra.mxu0 0.0
    %3344 = vmatprep.subr.mxu0 0.0
    %3345 = vmatpush1.xpose.msra.mxu0 0.0
    %3346 = vmatprep.subr.mxu0 0.0
    %3347 = vmatpush1.xpose.msra.mxu0 0.0
    %3348 = vmatprep.subr.mxu0 0.0
    %3349 = vmatpush1.xpose.msra.mxu0 0.0
    %3350 = vmatprep.subr.mxu0 0.0
    %3351 = vmatpush1.xpose.msra.mxu0 0.0
    %3352 = vmatprep.subr.mxu0 0.0
    %3353 = vmatpush1.xpose.msra.mxu0 0.0
    %3354 = vmatprep.subr.mxu0 0.0
    %3355 = vmatpush1.xpose.msra.mxu0 0.0
    %3356 = vmatprep.subr.mxu0 0.0
    %3357 = vmatpush1.xpose.msra.mxu0 0.0
    %3358 = vmatprep.subr.mxu0 0.0
    %3359 = vmatpush1.xpose.msra.mxu0 0.0
    %3360 = vmatprep.subr.mxu0 0.0
    %3361 = vmatpush1.xpose.msra.mxu0 0.0
    %3362 = vmatprep.subr.mxu0 0.0
    %3363 = vmatpush1.xpose.msra.mxu0 0.0
    %3364 = vmatprep.subr.mxu0 0.0
    %3365 = vmatpush1.xpose.msra.mxu0 0.0
    %3366 = vmatprep.subr.mxu0 0.0
    %3367 = vmatpush1.xpose.msra.mxu0 0.0
    %3368 = vmatprep.subr.mxu0 0.0
    %3369 = vmatpush1.xpose.msra.mxu0 0.0
    %3370 = vmatprep.subr.mxu0 0.0
    %3371 = vmatpush1.xpose.msra.mxu0 0.0
    %3372 = vmatprep.subr.mxu0 0.0
    %3373 = vmatpush1.xpose.msra.mxu0 0.0
    %3374 = vmatprep.subr.mxu0 0.0
    %3375 = vmatpush1.xpose.msra.mxu0 0.0
    %3376 = vmatprep.subr.mxu0 0.0
    %3377 = vmatpush1.xpose.msra.mxu0 0.0
    %3378 = vmatprep.subr.mxu0 0.0
    %3379 = vmatpush1.xpose.msra.mxu0 0.0
    %3380 = vmatprep.subr.mxu0 0.0
    %3381 = vmatpush1.xpose.msra.mxu0 0.0
    %3382 = vmatprep.subr.mxu0 0.0
    %3383 = vmatpush1.xpose.msra.mxu0 0.0
    %3384 = vmatprep.subr.mxu0 0.0
    %3385 = vmatpush1.xpose.msra.mxu0 0.0
    %3386 = vmatprep.subr.mxu0 0.0
    %3387 = vmatpush1.xpose.msra.mxu0 0.0
    %3388 = vmatprep.subr.mxu0 0.0
    %3389 = vmatpush1.xpose.msra.mxu0 0.0
    %3390 = vmatprep.subr.mxu0 0.0
    %3391 = vmatpush1.xpose.msra.mxu0 0.0
    %3392 = vmatprep.subr.mxu0 0.0
    %3393 = vmatpush1.xpose.msra.mxu0 0.0
    %3394 = vmatprep.subr.mxu0 0.0
    %3395 = vmatpush1.xpose.msra.mxu0 0.0
    %3396 = vmatprep.mubr.f32.mxu0 0.0
    %v3397 = vand.u32 %v3025, 4294901760
    %3398 = vmatmul.mubr.f32.gmra.mrb[0].mxu0 %v3397
    %v3399 = vpop.f32.mrb[0].mxu0
    %v3400 = vadd.f32 %v3326, %v3399
    %v3401 = vpop.f32.mrb[0].mxu0
    %3402 = vdwg.mxu0
    %3403 = vmatprep.subr.mxu0 0.0
    %v3404 = vand.u32 %v3027, 4294901760
    %3405 = vmatpush1.xpose.msra.mxu0 %v3404
    %3406 = vmatprep.subr.mxu0 0.0
    %3407 = vmatpush1.xpose.msra.mxu0 0.0
    %3408 = vmatprep.subr.mxu0 0.0
    %3409 = vmatpush1.xpose.msra.mxu0 0.0
    %3410 = vmatprep.subr.mxu0 0.0
    %3411 = vmatpush1.xpose.msra.mxu0 0.0
    %3412 = vmatprep.subr.mxu0 0.0
    %3413 = vmatpush1.xpose.msra.mxu0 0.0
    %3414 = vmatprep.subr.mxu0 0.0
    %3415 = vmatpush1.xpose.msra.mxu0 0.0
    %3416 = vmatprep.subr.mxu0 0.0
    %3417 = vmatpush1.xpose.msra.mxu0 0.0
    %3418 = vmatprep.subr.mxu0 0.0
    %3419 = vmatpush1.xpose.msra.mxu0 0.0
    %3420 = vmatprep.subr.mxu0 0.0
    %3421 = vmatpush1.xpose.msra.mxu0 0.0
    %3422 = vmatprep.subr.mxu0 0.0
    %3423 = vmatpush1.xpose.msra.mxu0 0.0
    %3424 = vmatprep.subr.mxu0 0.0
    %3425 = vmatpush1.xpose.msra.mxu0 0.0
    %3426 = vmatprep.subr.mxu0 0.0
    %3427 = vmatpush1.xpose.msra.mxu0 0.0
    %3428 = vmatprep.subr.mxu0 0.0
    %3429 = vmatpush1.xpose.msra.mxu0 0.0
    %3430 = vmatprep.subr.mxu0 0.0
    %3431 = vmatpush1.xpose.msra.mxu0 0.0
    %3432 = vmatprep.subr.mxu0 0.0
    %3433 = vmatpush1.xpose.msra.mxu0 0.0
    %3434 = vmatprep.subr.mxu0 0.0
    %3435 = vmatpush1.xpose.msra.mxu0 0.0
    %3436 = vmatprep.subr.mxu0 0.0
    %3437 = vmatpush1.xpose.msra.mxu0 0.0
    %3438 = vmatprep.subr.mxu0 0.0
    %3439 = vmatpush1.xpose.msra.mxu0 0.0
    %3440 = vmatprep.subr.mxu0 0.0
    %3441 = vmatpush1.xpose.msra.mxu0 0.0
    %3442 = vmatprep.subr.mxu0 0.0
    %3443 = vmatpush1.xpose.msra.mxu0 0.0
    %3444 = vmatprep.subr.mxu0 0.0
    %3445 = vmatpush1.xpose.msra.mxu0 0.0
    %3446 = vmatprep.subr.mxu0 0.0
    %3447 = vmatpush1.xpose.msra.mxu0 0.0
    %3448 = vmatprep.subr.mxu0 0.0
    %3449 = vmatpush1.xpose.msra.mxu0 0.0
    %3450 = vmatprep.subr.mxu0 0.0
    %3451 = vmatpush1.xpose.msra.mxu0 0.0
    %3452 = vmatprep.subr.mxu0 0.0
    %3453 = vmatpush1.xpose.msra.mxu0 0.0
    %3454 = vmatprep.subr.mxu0 0.0
    %3455 = vmatpush1.xpose.msra.mxu0 0.0
    %3456 = vmatprep.subr.mxu0 0.0
    %3457 = vmatpush1.xpose.msra.mxu0 0.0
    %3458 = vmatprep.subr.mxu0 0.0
    %3459 = vmatpush1.xpose.msra.mxu0 0.0
    %3460 = vmatprep.subr.mxu0 0.0
    %3461 = vmatpush1.xpose.msra.mxu0 0.0
    %3462 = vmatprep.subr.mxu0 0.0
    %3463 = vmatpush1.xpose.msra.mxu0 0.0
    %3464 = vmatprep.subr.mxu0 0.0
    %3465 = vmatpush1.xpose.msra.mxu0 0.0
    %3466 = vmatprep.subr.mxu0 0.0
    %3467 = vmatpush1.xpose.msra.mxu0 0.0
    %3468 = vmatprep.mubr.f32.mxu0 0.0
    %v3469 = vand.u32 %v3025, 4294901760
    %3470 = vmatmul.mubr.f32.gmra.mrb[0].mxu0 %v3469
    %v3471 = vpop.f32.mrb[0].mxu0
    %v3472 = vadd.f32 %v3400, %v3471
    %v3473 = vpop.f32.mrb[0].mxu0
    %3474 = vdwg.mxu0
    %v3475 = vsel %vm1180, -1e+09, %v3472
    %v3476 = vsel %vm1634, %v3475, -inf
    %3477 = vmax.xlane.f32.xlu0 %v3476
    %v3478 = vpop.xlane.xlu0 %3477
    %v3479 = vsub.f32 %v3475, %v3478
    %v3480 = vmul.f32 %v3479, 1.442695
    %v3481 = vpow.pop %v3480
    %v3482 = vsel %vm1634, %v3481, 0.0
    %3483 = vadd.xlane.f32.xlu0 %v3482
    %v3484 = vpop.xlane.xlu0 %3483
    %v3485 = vrcp.pop %v3484
    %v3486 = vmul.f32 %v3481, %v3485
    %3487 = vrot.lane.b32.xlu0 %v1170, 64
    %v3488 = vpop.permute.xlu0 %3487
    %v3491 = vsel %vm1634, %v3486, 0
    %3493 = vmatprep.subr.mxu0 0.0
    %v3494 = vand.u32 %v3488, 4294901760
    %3495 = vmatpush1.msra.mxu0 %v3494
    %3496 = vmatprep.subr.mxu0 0.0
    %3497 = vmatpush1.msra.mxu0 0.0
    %3498 = vmatprep.subr.mxu0 0.0
    %3499 = vmatpush1.msra.mxu0 0.0
    %3500 = vmatprep.subr.mxu0 0.0
    %3501 = vmatpush1.msra.mxu0 0.0
    %3502 = vmatprep.subr.mxu0 0.0
    %3503 = vmatpush1.msra.mxu0 0.0
    %3504 = vmatprep.subr.mxu0 0.0
    %3505 = vmatpush1.msra.mxu0 0.0
    %3506 = vmatprep.subr.mxu0 0.0
    %3507 = vmatpush1.msra.mxu0 0.0
    %3508 = vmatprep.subr.mxu0 0.0
    %3509 = vmatpush1.msra.mxu0 0.0
    %3510 = vmatprep.subr.mxu0 0.0
    %3511 = vmatpush1.msra.mxu0 0.0
    %3512 = vmatprep.subr.mxu0 0.0
    %3513 = vmatpush1.msra.mxu0 0.0
    %3514 = vmatprep.subr.mxu0 0.0
    %3515 = vmatpush1.msra.mxu0 0.0
    %3516 = vmatprep.subr.mxu0 0.0
    %3517 = vmatpush1.msra.mxu0 0.0
    %3518 = vmatprep.subr.mxu0 0.0
    %3519 = vmatpush1.msra.mxu0 0.0
    %3520 = vmatprep.subr.mxu0 0.0
    %3521 = vmatpush1.msra.mxu0 0.0
    %3522 = vmatprep.subr.mxu0 0.0
    %3523 = vmatpush1.msra.mxu0 0.0
    %3524 = vmatprep.subr.mxu0 0.0
    %3525 = vmatpush1.msra.mxu0 0.0
    %3526 = vmatprep.subr.mxu0 0.0
    %3527 = vmatpush1.msra.mxu0 0.0
    %3528 = vmatprep.subr.mxu0 0.0
    %3529 = vmatpush1.msra.mxu0 0.0
    %3530 = vmatprep.subr.mxu0 0.0
    %3531 = vmatpush1.msra.mxu0 0.0
    %3532 = vmatprep.subr.mxu0 0.0
    %3533 = vmatpush1.msra.mxu0 0.0
    %3534 = vmatprep.subr.mxu0 0.0
    %3535 = vmatpush1.msra.mxu0 0.0
    %3536 = vmatprep.subr.mxu0 0.0
    %3537 = vmatpush1.msra.mxu0 0.0
    %3538 = vmatprep.subr.mxu0 0.0
    %3539 = vmatpush1.msra.mxu0 0.0
    %3540 = vmatprep.subr.mxu0 0.0
    %3541 = vmatpush1.msra.mxu0 0.0
    %3542 = vmatprep.subr.mxu0 0.0
    %3543 = vmatpush1.msra.mxu0 0.0
    %3544 = vmatprep.subr.mxu0 0.0
    %3545 = vmatpush1.msra.mxu0 0.0
    %3546 = vmatprep.subr.mxu0 0.0
    %3547 = vmatpush1.msra.mxu0 0.0
    %3548 = vmatprep.subr.mxu0 0.0
    %3549 = vmatpush1.msra.mxu0 0.0
    %3550 = vmatprep.subr.mxu0 0.0
    %3551 = vmatpush1.msra.mxu0 0.0
    %3552 = vmatprep.subr.mxu0 0.0
    %3553 = vmatpush1.msra.mxu0 0.0
    %3554 = vmatprep.subr.mxu0 0.0
    %3555 = vmatpush1.msra.mxu0 0.0
    %3556 = vmatprep.subr.mxu0 0.0
    %3557 = vmatpush1.msra.mxu0 0.0
    %3558 = vmatprep.mubr.f32.mxu0 0.0
    %v3559 = vand.u32 %v3491, 4294901760
    %v3560 = vsub.f32 %v3491, %v3559
    %v3561 = vand.u32 %v3560, 4294901760
    %v3562 = vsub.f32 %v3560, %v3561
    %v3563 = vand.u32 %v3562, 4294901760
    %3564 = vmatmul.mubr.f32.gmra.mrb[0].mxu0 %v3563
    %v3565 = vpop.f32.mrb[0].mxu0
    %v3566 = vadd.f32 0.0, %v3565
    %v3567 = vpop.f32.mrb[0].mxu0
    %3568 = vdwg.mxu0
    %3569 = vmatprep.subr.mxu0 0.0
    %v3570 = vand.u32 %v3488, 4294901760
    %v3571 = vsub.f32 %v3488, %v3570
    %v3572 = vand.u32 %v3571, 4294901760
    %v3573 = vsub.f32 %v3571, %v3572
    %v3574 = vand.u32 %v3573, 4294901760
    %3575 = vmatpush1.msra.mxu0 %v3574
    %3576 = vmatprep.subr.mxu0 0.0
    %3577 = vmatpush1.msra.mxu0 0.0
    %3578 = vmatprep.subr.mxu0 0.0
    %3579 = vmatpush1.msra.mxu0 0.0
    %3580 = vmatprep.subr.mxu0 0.0
    %3581 = vmatpush1.msra.mxu0 0.0
    %3582 = vmatprep.subr.mxu0 0.0
    %3583 = vmatpush1.msra.mxu0 0.0
    %3584 = vmatprep.subr.mxu0 0.0
    %3585 = vmatpush1.msra.mxu0 0.0
    %3586 = vmatprep.subr.mxu0 0.0
    %3587 = vmatpush1.msra.mxu0 0.0
    %3588 = vmatprep.subr.mxu0 0.0
    %3589 = vmatpush1.msra.mxu0 0.0
    %3590 = vmatprep.subr.mxu0 0.0
    %3591 = vmatpush1.msra.mxu0 0.0
    %3592 = vmatprep.subr.mxu0 0.0
    %3593 = vmatpush1.msra.mxu0 0.0
    %3594 = vmatprep.subr.mxu0 0.0
    %3595 = vmatpush1.msra.mxu0 0.0
    %3596 = vmatprep.subr.mxu0 0.0
    %3597 = vmatpush1.msra.mxu0 0.0
    %3598 = vmatprep.subr.mxu0 0.0
    %3599 = vmatpush1.msra.mxu0 0.0
    %3600 = vmatprep.subr.mxu0 0.0
    %3601 = vmatpush1.msra.mxu0 0.0
    %3602 = vmatprep.subr.mxu0 0.0
    %3603 = vmatpush1.msra.mxu0 0.0
    %3604 = vmatprep.subr.mxu0 0.0
    %3605 = vmatpush1.msra.mxu0 0.0
    %3606 = vmatprep.subr.mxu0 0.0
    %3607 = vmatpush1.msra.mxu0 0.0
    %3608 = vmatprep.subr.mxu0 0.0
    %3609 = vmatpush1.msra.mxu0 0.0
    %3610 = vmatprep.subr.mxu0 0.0
    %3611 = vmatpush1.msra.mxu0 0.0
    %3612 = vmatprep.subr.mxu0 0.0
    %3613 = vmatpush1.msra.mxu0 0.0
    %3614 = vmatprep.subr.mxu0 0.0
    %3615 = vmatpush1.msra.mxu0 0.0
    %3616 = vmatprep.subr.mxu0 0.0
    %3617 = vmatpush1.msra.mxu0 0.0
    %3618 = vmatprep.subr.mxu0 0.0
    %3619 = vmatpush1.msra.mxu0 0.0
    %3620 = vmatprep.subr.mxu0 0.0
    %3621 = vmatpush1.msra.mxu0 0.0
    %3622 = vmatprep.subr.mxu0 0.0
    %3623 = vmatpush1.msra.mxu0 0.0
    %3624 = vmatprep.subr.mxu0 0.0
    %3625 = vmatpush1.msra.mxu0 0.0
    %3626 = vmatprep.subr.mxu0 0.0
    %3627 = vmatpush1.msra.mxu0 0.0
    %3628 = vmatprep.subr.mxu0 0.0
    %3629 = vmatpush1.msra.mxu0 0.0
    %3630 = vmatprep.subr.mxu0 0.0
    %3631 = vmatpush1.msra.mxu0 0.0
    %3632 = vmatprep.subr.mxu0 0.0
    %3633 = vmatpush1.msra.mxu0 0.0
    %3634 = vmatprep.subr.mxu0 0.0
    %3635 = vmatpush1.msra.mxu0 0.0
    %3636 = vmatprep.subr.mxu0 0.0
    %3637 = vmatpush1.msra.mxu0 0.0
    %3638 = vmatprep.mubr.f32.mxu0 0.0
    %v3639 = vand.u32 %v3491, 4294901760
    %3640 = vmatmul.mubr.f32.gmra.mrb[0].mxu0 %v3639
    %v3641 = vpop.f32.mrb[0].mxu0
    %v3642 = vadd.f32 %v3566, %v3641
    %v3643 = vpop.f32.mrb[0].mxu0
    %3644 = vdwg.mxu0
    %3645 = vmatprep.subr.mxu0 0.0
    %v3646 = vand.u32 %v3488, 4294901760
    %v3647 = vsub.f32 %v3488, %v3646
    %3648 = vmatpush1.msra.mxu0 %v3647
    %3649 = vmatprep.subr.mxu0 0.0
    %3650 = vmatpush1.msra.mxu0 0.0
    %3651 = vmatprep.subr.mxu0 0.0
    %3652 = vmatpush1.msra.mxu0 0.0
    %3653 = vmatprep.subr.mxu0 0.0
    %3654 = vmatpush1.msra.mxu0 0.0
    %3655 = vmatprep.subr.mxu0 0.0
    %3656 = vmatpush1.msra.mxu0 0.0
    %3657 = vmatprep.subr.mxu0 0.0
    %3658 = vmatpush1.msra.mxu0 0.0
    %3659 = vmatprep.subr.mxu0 0.0
    %3660 = vmatpush1.msra.mxu0 0.0
    %3661 = vmatprep.subr.mxu0 0.0
    %3662 = vmatpush1.msra.mxu0 0.0
    %3663 = vmatprep.subr.mxu0 0.0
    %3664 = vmatpush1.msra.mxu0 0.0
    %3665 = vmatprep.subr.mxu0 0.0
    %3666 = vmatpush1.msra.mxu0 0.0
    %3667 = vmatprep.subr.mxu0 0.0
    %3668 = vmatpush1.msra.mxu0 0.0
    %3669 = vmatprep.subr.mxu0 0.0
    %3670 = vmatpush1.msra.mxu0 0.0
    %3671 = vmatprep.subr.mxu0 0.0
    %3672 = vmatpush1.msra.mxu0 0.0
    %3673 = vmatprep.subr.mxu0 0.0
    %3674 = vmatpush1.msra.mxu0 0.0
    %3675 = vmatprep.subr.mxu0 0.0
    %3676 = vmatpush1.msra.mxu0 0.0
    %3677 = vmatprep.subr.mxu0 0.0
    %3678 = vmatpush1.msra.mxu0 0.0
    %3679 = vmatprep.subr.mxu0 0.0
    %3680 = vmatpush1.msra.mxu0 0.0
    %3681 = vmatprep.subr.mxu0 0.0
    %3682 = vmatpush1.msra.mxu0 0.0
    %3683 = vmatprep.subr.mxu0 0.0
    %3684 = vmatpush1.msra.mxu0 0.0
    %3685 = vmatprep.subr.mxu0 0.0
    %3686 = vmatpush1.msra.mxu0 0.0
    %3687 = vmatprep.subr.mxu0 0.0
    %3688 = vmatpush1.msra.mxu0 0.0
    %3689 = vmatprep.subr.mxu0 0.0
    %3690 = vmatpush1.msra.mxu0 0.0
    %3691 = vmatprep.subr.mxu0 0.0
    %3692 = vmatpush1.msra.mxu0 0.0
    %3693 = vmatprep.subr.mxu0 0.0
    %3694 = vmatpush1.msra.mxu0 0.0
    %3695 = vmatprep.subr.mxu0 0.0
    %3696 = vmatpush1.msra.mxu0 0.0
    %3697 = vmatprep.subr.mxu0 0.0
    %3698 = vmatpush1.msra.mxu0 0.0
    %3699 = vmatprep.subr.mxu0 0.0
    %3700 = vmatpush1.msra.mxu0 0.0
    %3701 = vmatprep.subr.mxu0 0.0
    %3702 = vmatpush1.msra.mxu0 0.0
    %3703 = vmatprep.subr.mxu0 0.0
    %3704 = vmatpush1.msra.mxu0 0.0
    %3705 = vmatprep.subr.mxu0 0.0
    %3706 = vmatpush1.msra.mxu0 0.0
    %3707 = vmatprep.subr.mxu0 0.0
    %3708 = vmatpush1.msra.mxu0 0.0
    %3709 = vmatprep.subr.mxu0 0.0
    %3710 = vmatpush1.msra.mxu0 0.0
    %3711 = vmatprep.mubr.f32.mxu0 0.0
    %v3712 = vand.u32 %v3491, 4294901760
    %v3713 = vsub.f32 %v3491, %v3712
    %3714 = vmatmul.mubr.f32.gmra.mrb[0].mxu0 %v3713
    %v3715 = vpop.f32.mrb[0].mxu0
    %v3716 = vadd.f32 %v3642, %v3715
    %v3717 = vpop.f32.mrb[0].mxu0
    %3718 = vdwg.mxu0
    %3719 = vmatprep.subr.mxu0 0.0
    %v3720 = vand.u32 %v3488, 4294901760
    %3721 = vmatpush1.msra.mxu0 %v3720
    %3722 = vmatprep.subr.mxu0 0.0
    %3723 = vmatpush1.msra.mxu0 0.0
    %3724 = vmatprep.subr.mxu0 0.0
    %3725 = vmatpush1.msra.mxu0 0.0
    %3726 = vmatprep.subr.mxu0 0.0
    %3727 = vmatpush1.msra.mxu0 0.0
    %3728 = vmatprep.subr.mxu0 0.0
    %3729 = vmatpush1.msra.mxu0 0.0
    %3730 = vmatprep.subr.mxu0 0.0
    %3731 = vmatpush1.msra.mxu0 0.0
    %3732 = vmatprep.subr.mxu0 0.0
    %3733 = vmatpush1.msra.mxu0 0.0
    %3734 = vmatprep.subr.mxu0 0.0
    %3735 = vmatpush1.msra.mxu0 0.0
    %3736 = vmatprep.subr.mxu0 0.0
    %3737 = vmatpush1.msra.mxu0 0.0
    %3738 = vmatprep.subr.mxu0 0.0
    %3739 = vmatpush1.msra.mxu0 0.0
    %3740 = vmatprep.subr.mxu0 0.0
    %3741 = vmatpush1.msra.mxu0 0.0
    %3742 = vmatprep.subr.mxu0 0.0
    %3743 = vmatpush1.msra.mxu0 0.0
    %3744 = vmatprep.subr.mxu0 0.0
    %3745 = vmatpush1.msra.mxu0 0.0
    %3746 = vmatprep.subr.mxu0 0.0
    %3747 = vmatpush1.msra.mxu0 0.0
    %3748 = vmatprep.subr.mxu0 0.0
    %3749 = vmatpush1.msra.mxu0 0.0
    %3750 = vmatprep.subr.mxu0 0.0
    %3751 = vmatpush1.msra.mxu0 0.0
    %3752 = vmatprep.subr.mxu0 0.0
    %3753 = vmatpush1.msra.mxu0 0.0
    %3754 = vmatprep.subr.mxu0 0.0
    %3755 = vmatpush1.msra.mxu0 0.0
    %3756 = vmatprep.subr.mxu0 0.0
    %3757 = vmatpush1.msra.mxu0 0.0
    %3758 = vmatprep.subr.mxu0 0.0
    %3759 = vmatpush1.msra.mxu0 0.0
    %3760 = vmatprep.subr.mxu0 0.0
    %3761 = vmatpush1.msra.mxu0 0.0
    %3762 = vmatprep.subr.mxu0 0.0
    %3763 = vmatpush1.msra.mxu0 0.0
    %3764 = vmatprep.subr.mxu0 0.0
    %3765 = vmatpush1.msra.mxu0 0.0
    %3766 = vmatprep.subr.mxu0 0.0
    %3767 = vmatpush1.msra.mxu0 0.0
    %3768 = vmatprep.subr.mxu0 0.0
    %3769 = vmatpush1.msra.mxu0 0.0
    %3770 = vmatprep.subr.mxu0 0.0
    %3771 = vmatpush1.msra.mxu0 0.0
    %3772 = vmatprep.subr.mxu0 0.0
    %3773 = vmatpush1.msra.mxu0 0.0
    %3774 = vmatprep.subr.mxu0 0.0
    %3775 = vmatpush1.msra.mxu0 0.0
    %3776 = vmatprep.subr.mxu0 0.0
    %3777 = vmatpush1.msra.mxu0 0.0
    %3778 = vmatprep.subr.mxu0 0.0
    %3779 = vmatpush1.msra.mxu0 0.0
    %3780 = vmatprep.subr.mxu0 0.0
    %3781 = vmatpush1.msra.mxu0 0.0
    %3782 = vmatprep.subr.mxu0 0.0
    %3783 = vmatpush1.msra.mxu0 0.0
    %3784 = vmatprep.mubr.f32.mxu0 0.0
    %v3785 = vand.u32 %v3491, 4294901760
    %v3786 = vsub.f32 %v3491, %v3785
    %v3787 = vand.u32 %v3786, 4294901760
    %3788 = vmatmul.mubr.f32.gmra.mrb[0].mxu0 %v3787
    %v3789 = vpop.f32.mrb[0].mxu0
    %v3790 = vadd.f32 %v3716, %v3789
    %v3791 = vpop.f32.mrb[0].mxu0
    %3792 = vdwg.mxu0
    %3793 = vmatprep.subr.mxu0 0.0
    %v3794 = vand.u32 %v3488, 4294901760
    %v3795 = vsub.f32 %v3488, %v3794
    %v3796 = vand.u32 %v3795, 4294901760
    %3797 = vmatpush1.msra.mxu0 %v3796
    %3798 = vmatprep.subr.mxu0 0.0
    %3799 = vmatpush1.msra.mxu0 0.0
    %3800 = vmatprep.subr.mxu0 0.0
    %3801 = vmatpush1.msra.mxu0 0.0
    %3802 = vmatprep.subr.mxu0 0.0
    %3803 = vmatpush1.msra.mxu0 0.0
    %3804 = vmatprep.subr.mxu0 0.0
    %3805 = vmatpush1.msra.mxu0 0.0
    %3806 = vmatprep.subr.mxu0 0.0
    %3807 = vmatpush1.msra.mxu0 0.0
    %3808 = vmatprep.subr.mxu0 0.0
    %3809 = vmatpush1.msra.mxu0 0.0
    %3810 = vmatprep.subr.mxu0 0.0
    %3811 = vmatpush1.msra.mxu0 0.0
    %3812 = vmatprep.subr.mxu0 0.0
    %3813 = vmatpush1.msra.mxu0 0.0
    %3814 = vmatprep.subr.mxu0 0.0
    %3815 = vmatpush1.msra.mxu0 0.0
    %3816 = vmatprep.subr.mxu0 0.0
    %3817 = vmatpush1.msra.mxu0 0.0
    %3818 = vmatprep.subr.mxu0 0.0
    %3819 = vmatpush1.msra.mxu0 0.0
    %3820 = vmatprep.subr.mxu0 0.0
    %3821 = vmatpush1.msra.mxu0 0.0
    %3822 = vmatprep.subr.mxu0 0.0
    %3823 = vmatpush1.msra.mxu0 0.0
    %3824 = vmatprep.subr.mxu0 0.0
    %3825 = vmatpush1.msra.mxu0 0.0
    %3826 = vmatprep.subr.mxu0 0.0
    %3827 = vmatpush1.msra.mxu0 0.0
    %3828 = vmatprep.subr.mxu0 0.0
    %3829 = vmatpush1.msra.mxu0 0.0
    %3830 = vmatprep.subr.mxu0 0.0
    %3831 = vmatpush1.msra.mxu0 0.0
    %3832 = vmatprep.subr.mxu0 0.0
    %3833 = vmatpush1.msra.mxu0 0.0
    %3834 = vmatprep.subr.mxu0 0.0
    %3835 = vmatpush1.msra.mxu0 0.0
    %3836 = vmatprep.subr.mxu0 0.0
    %3837 = vmatpush1.msra.mxu0 0.0
    %3838 = vmatprep.subr.mxu0 0.0
    %3839 = vmatpush1.msra.mxu0 0.0
    %3840 = vmatprep.subr.mxu0 0.0
    %3841 = vmatpush1.msra.mxu0 0.0
    %3842 = vmatprep.subr.mxu0 0.0
    %3843 = vmatpush1.msra.mxu0 0.0
    %3844 = vmatprep.subr.mxu0 0.0
    %3845 = vmatpush1.msra.mxu0 0.0
    %3846 = vmatprep.subr.mxu0 0.0
    %3847 = vmatpush1.msra.mxu0 0.0
    %3848 = vmatprep.subr.mxu0 0.0
    %3849 = vmatpush1.msra.mxu0 0.0
    %3850 = vmatprep.subr.mxu0 0.0
    %3851 = vmatpush1.msra.mxu0 0.0
    %3852 = vmatprep.subr.mxu0 0.0
    %3853 = vmatpush1.msra.mxu0 0.0
    %3854 = vmatprep.subr.mxu0 0.0
    %3855 = vmatpush1.msra.mxu0 0.0
    %3856 = vmatprep.subr.mxu0 0.0
    %3857 = vmatpush1.msra.mxu0 0.0
    %3858 = vmatprep.subr.mxu0 0.0
    %3859 = vmatpush1.msra.mxu0 0.0
    %3860 = vmatprep.mubr.f32.mxu0 0.0
    %v3861 = vand.u32 %v3491, 4294901760
    %3862 = vmatmul.mubr.f32.gmra.mrb[0].mxu0 %v3861
    %v3863 = vpop.f32.mrb[0].mxu0
    %v3864 = vadd.f32 %v3790, %v3863
    %v3865 = vpop.f32.mrb[0].mxu0
    %3866 = vdwg.mxu0
    %3867 = vmatprep.subr.mxu0 0.0
    %v3868 = vand.u32 %v3488, 4294901760
    %3869 = vmatpush1.msra.mxu0 %v3868
    %3870 = vmatprep.subr.mxu0 0.0
    %3871 = vmatpush1.msra.mxu0 0.0
    %3872 = vmatprep.subr.mxu0 0.0
    %3873 = vmatpush1.msra.mxu0 0.0
    %3874 = vmatprep.subr.mxu0 0.0
    %3875 = vmatpush1.msra.mxu0 0.0
    %3876 = vmatprep.subr.mxu0 0.0
    %3877 = vmatpush1.msra.mxu0 0.0
    %3878 = vmatprep.subr.mxu0 0.0
    %3879 = vmatpush1.msra.mxu0 0.0
    %3880 = vmatprep.subr.mxu0 0.0
    %3881 = vmatpush1.msra.mxu0 0.0
    %3882 = vmatprep.subr.mxu0 0.0
    %3883 = vmatpush1.msra.mxu0 0.0
    %3884 = vmatprep.subr.mxu0 0.0
    %3885 = vmatpush1.msra.mxu0 0.0
    %3886 = vmatprep.subr.mxu0 0.0
    %3887 = vmatpush1.msra.mxu0 0.0
    %3888 = vmatprep.subr.mxu0 0.0
    %3889 = vmatpush1.msra.mxu0 0.0
    %3890 = vmatprep.subr.mxu0 0.0
    %3891 = vmatpush1.msra.mxu0 0.0
    %3892 = vmatprep.subr.mxu0 0.0
    %3893 = vmatpush1.msra.mxu0 0.0
    %3894 = vmatprep.subr.mxu0 0.0
    %3895 = vmatpush1.msra.mxu0 0.0
    %3896 = vmatprep.subr.mxu0 0.0
    %3897 = vmatpush1.msra.mxu0 0.0
    %3898 = vmatprep.subr.mxu0 0.0
    %3899 = vmatpush1.msra.mxu0 0.0
    %3900 = vmatprep.subr.mxu0 0.0
    %3901 = vmatpush1.msra.mxu0 0.0
    %3902 = vmatprep.subr.mxu0 0.0
    %3903 = vmatpush1.msra.mxu0 0.0
    %3904 = vmatprep.subr.mxu0 0.0
    %3905 = vmatpush1.msra.mxu0 0.0
    %3906 = vmatprep.subr.mxu0 0.0
    %3907 = vmatpush1.msra.mxu0 0.0
    %3908 = vmatprep.subr.mxu0 0.0
    %3909 = vmatpush1.msra.mxu0 0.0
    %3910 = vmatprep.subr.mxu0 0.0
    %3911 = vmatpush1.msra.mxu0 0.0
    %3912 = vmatprep.subr.mxu0 0.0
    %3913 = vmatpush1.msra.mxu0 0.0
    %3914 = vmatprep.subr.mxu0 0.0
    %3915 = vmatpush1.msra.mxu0 0.0
    %3916 = vmatprep.subr.mxu0 0.0
    %3917 = vmatpush1.msra.mxu0 0.0
    %3918 = vmatprep.subr.mxu0 0.0
    %3919 = vmatpush1.msra.mxu0 0.0
    %3920 = vmatprep.subr.mxu0 0.0
    %3921 = vmatpush1.msra.mxu0 0.0
    %3922 = vmatprep.subr.mxu0 0.0
    %3923 = vmatpush1.msra.mxu0 0.0
    %3924 = vmatprep.subr.mxu0 0.0
    %3925 = vmatpush1.msra.mxu0 0.0
    %3926 = vmatprep.subr.mxu0 0.0
    %3927 = vmatpush1.msra.mxu0 0.0
    %3928 = vmatprep.subr.mxu0 0.0
    %3929 = vmatpush1.msra.mxu0 0.0
    %3930 = vmatprep.subr.mxu0 0.0
    %3931 = vmatpush1.msra.mxu0 0.0
    %3932 = vmatprep.mubr.f32.mxu0 0.0
    %v3933 = vand.u32 %v3491, 4294901760
    %3934 = vmatmul.mubr.f32.gmra.mrb[0].mxu0 %v3933
    %v3935 = vpop.f32.mrb[0].mxu0
    %v3936 = vadd.f32 %v3864, %v3935
    %v3937 = vpop.f32.mrb[0].mxu0
    %3938 = vdwg.mxu0
    %3940 = vrot.lane.b32.xlu0 %v3936, 64
    %v3941 = vpop.permute.xlu0 %3940
    %vm3943 = vcmask 785920
    %3944 = vst.msk [vmem:[#allocation2] sm:$0xff] %vm3943, %v3941
    %3945 = vrot.lane.b32.xlu0 %v640, 32
    %v3946 = vpop.permute.xlu0 %3945
    %3947 = vrot.lane.b32.xlu0 %v642, 32
    %v3948 = vpop.permute.xlu0 %3947
    %v3949 = vsel %vm52, %v3946, 0
    %v3951 = vsel %vm52, %v3948, 0
    %3953 = vmatprep.subr.mxu0 0.0
    %v3954 = vand.u32 %v3951, 4294901760
    %3955 = vmatpush1.xpose.msra.mxu0 %v3954
    %3956 = vmatprep.subr.mxu0 0.0
    %3957 = vmatpush1.xpose.msra.mxu0 0.0
    %3958 = vmatprep.subr.mxu0 0.0
    %3959 = vmatpush1.xpose.msra.mxu0 0.0
    %3960 = vmatprep.subr.mxu0 0.0
    %3961 = vmatpush1.xpose.msra.mxu0 0.0
    %3962 = vmatprep.subr.mxu0 0.0
    %3963 = vmatpush1.xpose.msra.mxu0 0.0
    %3964 = vmatprep.subr.mxu0 0.0
    %3965 = vmatpush1.xpose.msra.mxu0 0.0
    %3966 = vmatprep.subr.mxu0 0.0
    %3967 = vmatpush1.xpose.msra.mxu0 0.0
    %3968 = vmatprep.subr.mxu0 0.0
    %3969 = vmatpush1.xpose.msra.mxu0 0.0
    %3970 = vmatprep.subr.mxu0 0.0
    %3971 = vmatpush1.xpose.msra.mxu0 0.0
    %3972 = vmatprep.subr.mxu0 0.0
    %3973 = vmatpush1.xpose.msra.mxu0 0.0
    %3974 = vmatprep.subr.mxu0 0.0
    %3975 = vmatpush1.xpose.msra.mxu0 0.0
    %3976 = vmatprep.subr.mxu0 0.0
    %3977 = vmatpush1.xpose.msra.mxu0 0.0
    %3978 = vmatprep.subr.mxu0 0.0
    %3979 = vmatpush1.xpose.msra.mxu0 0.0
    %3980 = vmatprep.subr.mxu0 0.0
    %3981 = vmatpush1.xpose.msra.mxu0 0.0
    %3982 = vmatprep.subr.mxu0 0.0
    %3983 = vmatpush1.xpose.msra.mxu0 0.0
    %3984 = vmatprep.subr.mxu0 0.0
    %3985 = vmatpush1.xpose.msra.mxu0 0.0
    %3986 = vmatprep.subr.mxu0 0.0
    %3987 = vmatpush1.xpose.msra.mxu0 0.0
    %3988 = vmatprep.subr.mxu0 0.0
    %3989 = vmatpush1.xpose.msra.mxu0 0.0
    %3990 = vmatprep.subr.mxu0 0.0
    %3991 = vmatpush1.xpose.msra.mxu0 0.0
    %3992 = vmatprep.subr.mxu0 0.0
    %3993 = vmatpush1.xpose.msra.mxu0 0.0
    %3994 = vmatprep.subr.mxu0 0.0
    %3995 = vmatpush1.xpose.msra.mxu0 0.0
    %3996 = vmatprep.subr.mxu0 0.0
    %3997 = vmatpush1.xpose.msra.mxu0 0.0
    %3998 = vmatprep.subr.mxu0 0.0
    %3999 = vmatpush1.xpose.msra.mxu0 0.0
    %4000 = vmatprep.subr.mxu0 0.0
    %4001 = vmatpush1.xpose.msra.mxu0 0.0
    %4002 = vmatprep.subr.mxu0 0.0
    %4003 = vmatpush1.xpose.msra.mxu0 0.0
    %4004 = vmatprep.subr.mxu0 0.0
    %4005 = vmatpush1.xpose.msra.mxu0 0.0
    %4006 = vmatprep.subr.mxu0 0.0
    %4007 = vmatpush1.xpose.msra.mxu0 0.0
    %4008 = vmatprep.subr.mxu0 0.0
    %4009 = vmatpush1.xpose.msra.mxu0 0.0
    %4010 = vmatprep.subr.mxu0 0.0
    %4011 = vmatpush1.xpose.msra.mxu0 0.0
    %4012 = vmatprep.subr.mxu0 0.0
    %4013 = vmatpush1.xpose.msra.mxu0 0.0
    %4014 = vmatprep.subr.mxu0 0.0
    %4015 = vmatpush1.xpose.msra.mxu0 0.0
    %4016 = vmatprep.subr.mxu0 0.0
    %4017 = vmatpush1.xpose.msra.mxu0 0.0
    %4018 = vmatprep.mubr.f32.mxu0 0.0
    %v4019 = vand.u32 %v3949, 4294901760
    %v4020 = vsub.f32 %v3949, %v4019
    %v4021 = vand.u32 %v4020, 4294901760
    %v4022 = vsub.f32 %v4020, %v4021
    %v4023 = vand.u32 %v4022, 4294901760
    %4024 = vmatmul.mubr.f32.gmra.mrb[0].mxu0 %v4023
    %v4025 = vpop.f32.mrb[0].mxu0
    %v4026 = vadd.f32 0.0, %v4025
    %v4027 = vpop.f32.mrb[0].mxu0
    %4028 = vdwg.mxu0
    %4029 = vmatprep.subr.mxu0 0.0
    %v4030 = vand.u32 %v3951, 4294901760
    %v4031 = vsub.f32 %v3951, %v4030
    %v4032 = vand.u32 %v4031, 4294901760
    %v4033 = vsub.f32 %v4031, %v4032
    %v4034 = vand.u32 %v4033, 4294901760
    %4035 = vmatpush1.xpose.msra.mxu0 %v4034
    %4036 = vmatprep.subr.mxu0 0.0
    %4037 = vmatpush1.xpose.msra.mxu0 0.0
    %4038 = vmatprep.subr.mxu0 0.0
    %4039 = vmatpush1.xpose.msra.mxu0 0.0
    %4040 = vmatprep.subr.mxu0 0.0
    %4041 = vmatpush1.xpose.msra.mxu0 0.0
    %4042 = vmatprep.subr.mxu0 0.0
    %4043 = vmatpush1.xpose.msra.mxu0 0.0
    %4044 = vmatprep.subr.mxu0 0.0
    %4045 = vmatpush1.xpose.msra.mxu0 0.0
    %4046 = vmatprep.subr.mxu0 0.0
    %4047 = vmatpush1.xpose.msra.mxu0 0.0
    %4048 = vmatprep.subr.mxu0 0.0
    %4049 = vmatpush1.xpose.msra.mxu0 0.0
    %4050 = vmatprep.subr.mxu0 0.0
    %4051 = vmatpush1.xpose.msra.mxu0 0.0
    %4052 = vmatprep.subr.mxu0 0.0
    %4053 = vmatpush1.xpose.msra.mxu0 0.0
    %4054 = vmatprep.subr.mxu0 0.0
    %4055 = vmatpush1.xpose.msra.mxu0 0.0
    %4056 = vmatprep.subr.mxu0 0.0
    %4057 = vmatpush1.xpose.msra.mxu0 0.0
    %4058 = vmatprep.subr.mxu0 0.0
    %4059 = vmatpush1.xpose.msra.mxu0 0.0
    %4060 = vmatprep.subr.mxu0 0.0
    %4061 = vmatpush1.xpose.msra.mxu0 0.0
    %4062 = vmatprep.subr.mxu0 0.0
    %4063 = vmatpush1.xpose.msra.mxu0 0.0
    %4064 = vmatprep.subr.mxu0 0.0
    %4065 = vmatpush1.xpose.msra.mxu0 0.0
    %4066 = vmatprep.subr.mxu0 0.0
    %4067 = vmatpush1.xpose.msra.mxu0 0.0
    %4068 = vmatprep.subr.mxu0 0.0
    %4069 = vmatpush1.xpose.msra.mxu0 0.0
    %4070 = vmatprep.subr.mxu0 0.0
    %4071 = vmatpush1.xpose.msra.mxu0 0.0
    %4072 = vmatprep.subr.mxu0 0.0
    %4073 = vmatpush1.xpose.msra.mxu0 0.0
    %4074 = vmatprep.subr.mxu0 0.0
    %4075 = vmatpush1.xpose.msra.mxu0 0.0
    %4076 = vmatprep.subr.mxu0 0.0
    %4077 = vmatpush1.xpose.msra.mxu0 0.0
    %4078 = vmatprep.subr.mxu0 0.0
    %4079 = vmatpush1.xpose.msra.mxu0 0.0
    %4080 = vmatprep.subr.mxu0 0.0
    %4081 = vmatpush1.xpose.msra.mxu0 0.0
    %4082 = vmatprep.subr.mxu0 0.0
    %4083 = vmatpush1.xpose.msra.mxu0 0.0
    %4084 = vmatprep.subr.mxu0 0.0
    %4085 = vmatpush1.xpose.msra.mxu0 0.0
    %4086 = vmatprep.subr.mxu0 0.0
    %4087 = vmatpush1.xpose.msra.mxu0 0.0
    %4088 = vmatprep.subr.mxu0 0.0
    %4089 = vmatpush1.xpose.msra.mxu0 0.0
    %4090 = vmatprep.subr.mxu0 0.0
    %4091 = vmatpush1.xpose.msra.mxu0 0.0
    %4092 = vmatprep.subr.mxu0 0.0
    %4093 = vmatpush1.xpose.msra.mxu0 0.0
    %4094 = vmatprep.subr.mxu0 0.0
    %4095 = vmatpush1.xpose.msra.mxu0 0.0
    %4096 = vmatprep.subr.mxu0 0.0
    %4097 = vmatpush1.xpose.msra.mxu0 0.0
    %4098 = vmatprep.mubr.f32.mxu0 0.0
    %v4099 = vand.u32 %v3949, 4294901760
    %4100 = vmatmul.mubr.f32.gmra.mrb[0].mxu0 %v4099
    %v4101 = vpop.f32.mrb[0].mxu0
    %v4102 = vadd.f32 %v4026, %v4101
    %v4103 = vpop.f32.mrb[0].mxu0
    %4104 = vdwg.mxu0
    %4105 = vmatprep.subr.mxu0 0.0
    %v4106 = vand.u32 %v3951, 4294901760
    %v4107 = vsub.f32 %v3951, %v4106
    %4108 = vmatpush1.xpose.msra.mxu0 %v4107
    %4109 = vmatprep.subr.mxu0 0.0
    %4110 = vmatpush1.xpose.msra.mxu0 0.0
    %4111 = vmatprep.subr.mxu0 0.0
    %4112 = vmatpush1.xpose.msra.mxu0 0.0
    %4113 = vmatprep.subr.mxu0 0.0
    %4114 = vmatpush1.xpose.msra.mxu0 0.0
    %4115 = vmatprep.subr.mxu0 0.0
    %4116 = vmatpush1.xpose.msra.mxu0 0.0
    %4117 = vmatprep.subr.mxu0 0.0
    %4118 = vmatpush1.xpose.msra.mxu0 0.0
    %4119 = vmatprep.subr.mxu0 0.0
    %4120 = vmatpush1.xpose.msra.mxu0 0.0
    %4121 = vmatprep.subr.mxu0 0.0
    %4122 = vmatpush1.xpose.msra.mxu0 0.0
    %4123 = vmatprep.subr.mxu0 0.0
    %4124 = vmatpush1.xpose.msra.mxu0 0.0
    %4125 = vmatprep.subr.mxu0 0.0
    %4126 = vmatpush1.xpose.msra.mxu0 0.0
    %4127 = vmatprep.subr.mxu0 0.0
    %4128 = vmatpush1.xpose.msra.mxu0 0.0
    %4129 = vmatprep.subr.mxu0 0.0
    %4130 = vmatpush1.xpose.msra.mxu0 0.0
    %4131 = vmatprep.subr.mxu0 0.0
    %4132 = vmatpush1.xpose.msra.mxu0 0.0
    %4133 = vmatprep.subr.mxu0 0.0
    %4134 = vmatpush1.xpose.msra.mxu0 0.0
    %4135 = vmatprep.subr.mxu0 0.0
    %4136 = vmatpush1.xpose.msra.mxu0 0.0
    %4137 = vmatprep.subr.mxu0 0.0
    %4138 = vmatpush1.xpose.msra.mxu0 0.0
    %4139 = vmatprep.subr.mxu0 0.0
    %4140 = vmatpush1.xpose.msra.mxu0 0.0
    %4141 = vmatprep.subr.mxu0 0.0
    %4142 = vmatpush1.xpose.msra.mxu0 0.0
    %4143 = vmatprep.subr.mxu0 0.0
    %4144 = vmatpush1.xpose.msra.mxu0 0.0
    %4145 = vmatprep.subr.mxu0 0.0
    %4146 = vmatpush1.xpose.msra.mxu0 0.0
    %4147 = vmatprep.subr.mxu0 0.0
    %4148 = vmatpush1.xpose.msra.mxu0 0.0
    %4149 = vmatprep.subr.mxu0 0.0
    %4150 = vmatpush1.xpose.msra.mxu0 0.0
    %4151 = vmatprep.subr.mxu0 0.0
    %4152 = vmatpush1.xpose.msra.mxu0 0.0
    %4153 = vmatprep.subr.mxu0 0.0
    %4154 = vmatpush1.xpose.msra.mxu0 0.0
    %4155 = vmatprep.subr.mxu0 0.0
    %4156 = vmatpush1.xpose.msra.mxu0 0.0
    %4157 = vmatprep.subr.mxu0 0.0
    %4158 = vmatpush1.xpose.msra.mxu0 0.0
    %4159 = vmatprep.subr.mxu0 0.0
    %4160 = vmatpush1.xpose.msra.mxu0 0.0
    %4161 = vmatprep.subr.mxu0 0.0
    %4162 = vmatpush1.xpose.msra.mxu0 0.0
    %4163 = vmatprep.subr.mxu0 0.0
    %4164 = vmatpush1.xpose.msra.mxu0 0.0
    %4165 = vmatprep.subr.mxu0 0.0
    %4166 = vmatpush1.xpose.msra.mxu0 0.0
    %4167 = vmatprep.subr.mxu0 0.0
    %4168 = vmatpush1.xpose.msra.mxu0 0.0
    %4169 = vmatprep.subr.mxu0 0.0
    %4170 = vmatpush1.xpose.msra.mxu0 0.0
    %4171 = vmatprep.mubr.f32.mxu0 0.0
    %v4172 = vand.u32 %v3949, 4294901760
    %v4173 = vsub.f32 %v3949, %v4172
    %4174 = vmatmul.mubr.f32.gmra.mrb[0].mxu0 %v4173
    %v4175 = vpop.f32.mrb[0].mxu0
    %v4176 = vadd.f32 %v4102, %v4175
    %v4177 = vpop.f32.mrb[0].mxu0
    %4178 = vdwg.mxu0
    %4179 = vmatprep.subr.mxu0 0.0
    %v4180 = vand.u32 %v3951, 4294901760
    %4181 = vmatpush1.xpose.msra.mxu0 %v4180
    %4182 = vmatprep.subr.mxu0 0.0
    %4183 = vmatpush1.xpose.msra.mxu0 0.0
    %4184 = vmatprep.subr.mxu0 0.0
    %4185 = vmatpush1.xpose.msra.mxu0 0.0
    %4186 = vmatprep.subr.mxu0 0.0
    %4187 = vmatpush1.xpose.msra.mxu0 0.0
    %4188 = vmatprep.subr.mxu0 0.0
    %4189 = vmatpush1.xpose.msra.mxu0 0.0
    %4190 = vmatprep.subr.mxu0 0.0
    %4191 = vmatpush1.xpose.msra.mxu0 0.0
    %4192 = vmatprep.subr.mxu0 0.0
    %4193 = vmatpush1.xpose.msra.mxu0 0.0
    %4194 = vmatprep.subr.mxu0 0.0
    %4195 = vmatpush1.xpose.msra.mxu0 0.0
    %4196 = vmatprep.subr.mxu0 0.0
    %4197 = vmatpush1.xpose.msra.mxu0 0.0
    %4198 = vmatprep.subr.mxu0 0.0
    %4199 = vmatpush1.xpose.msra.mxu0 0.0
    %4200 = vmatprep.subr.mxu0 0.0
    %4201 = vmatpush1.xpose.msra.mxu0 0.0
    %4202 = vmatprep.subr.mxu0 0.0
    %4203 = vmatpush1.xpose.msra.mxu0 0.0
    %4204 = vmatprep.subr.mxu0 0.0
    %4205 = vmatpush1.xpose.msra.mxu0 0.0
    %4206 = vmatprep.subr.mxu0 0.0
    %4207 = vmatpush1.xpose.msra.mxu0 0.0
    %4208 = vmatprep.subr.mxu0 0.0
    %4209 = vmatpush1.xpose.msra.mxu0 0.0
    %4210 = vmatprep.subr.mxu0 0.0
    %4211 = vmatpush1.xpose.msra.mxu0 0.0
    %4212 = vmatprep.subr.mxu0 0.0
    %4213 = vmatpush1.xpose.msra.mxu0 0.0
    %4214 = vmatprep.subr.mxu0 0.0
    %4215 = vmatpush1.xpose.msra.mxu0 0.0
    %4216 = vmatprep.subr.mxu0 0.0
    %4217 = vmatpush1.xpose.msra.mxu0 0.0
    %4218 = vmatprep.subr.mxu0 0.0
    %4219 = vmatpush1.xpose.msra.mxu0 0.0
    %4220 = vmatprep.subr.mxu0 0.0
    %4221 = vmatpush1.xpose.msra.mxu0 0.0
    %4222 = vmatprep.subr.mxu0 0.0
    %4223 = vmatpush1.xpose.msra.mxu0 0.0
    %4224 = vmatprep.subr.mxu0 0.0
    %4225 = vmatpush1.xpose.msra.mxu0 0.0
    %4226 = vmatprep.subr.mxu0 0.0
    %4227 = vmatpush1.xpose.msra.mxu0 0.0
    %4228 = vmatprep.subr.mxu0 0.0
    %4229 = vmatpush1.xpose.msra.mxu0 0.0
    %4230 = vmatprep.subr.mxu0 0.0
    %4231 = vmatpush1.xpose.msra.mxu0 0.0
    %4232 = vmatprep.subr.mxu0 0.0
    %4233 = vmatpush1.xpose.msra.mxu0 0.0
    %4234 = vmatprep.subr.mxu0 0.0
    %4235 = vmatpush1.xpose.msra.mxu0 0.0
    %4236 = vmatprep.subr.mxu0 0.0
    %4237 = vmatpush1.xpose.msra.mxu0 0.0
    %4238 = vmatprep.subr.mxu0 0.0
    %4239 = vmatpush1.xpose.msra.mxu0 0.0
    %4240 = vmatprep.subr.mxu0 0.0
    %4241 = vmatpush1.xpose.msra.mxu0 0.0
    %4242 = vmatprep.subr.mxu0 0.0
    %4243 = vmatpush1.xpose.msra.mxu0 0.0
    %4244 = vmatprep.mubr.f32.mxu0 0.0
    %v4245 = vand.u32 %v3949, 4294901760
    %v4246 = vsub.f32 %v3949, %v4245
    %v4247 = vand.u32 %v4246, 4294901760
    %4248 = vmatmul.mubr.f32.gmra.mrb[0].mxu0 %v4247
    %v4249 = vpop.f32.mrb[0].mxu0
    %v4250 = vadd.f32 %v4176, %v4249
    %v4251 = vpop.f32.mrb[0].mxu0
    %4252 = vdwg.mxu0
    %4253 = vmatprep.subr.mxu0 0.0
    %v4254 = vand.u32 %v3951, 4294901760
    %v4255 = vsub.f32 %v3951, %v4254
    %v4256 = vand.u32 %v4255, 4294901760
    %4257 = vmatpush1.xpose.msra.mxu0 %v4256
    %4258 = vmatprep.subr.mxu0 0.0
    %4259 = vmatpush1.xpose.msra.mxu0 0.0
    %4260 = vmatprep.subr.mxu0 0.0
    %4261 = vmatpush1.xpose.msra.mxu0 0.0
    %4262 = vmatprep.subr.mxu0 0.0
    %4263 = vmatpush1.xpose.msra.mxu0 0.0
    %4264 = vmatprep.subr.mxu0 0.0
    %4265 = vmatpush1.xpose.msra.mxu0 0.0
    %4266 = vmatprep.subr.mxu0 0.0
    %4267 = vmatpush1.xpose.msra.mxu0 0.0
    %4268 = vmatprep.subr.mxu0 0.0
    %4269 = vmatpush1.xpose.msra.mxu0 0.0
    %4270 = vmatprep.subr.mxu0 0.0
    %4271 = vmatpush1.xpose.msra.mxu0 0.0
    %4272 = vmatprep.subr.mxu0 0.0
    %4273 = vmatpush1.xpose.msra.mxu0 0.0
    %4274 = vmatprep.subr.mxu0 0.0
    %4275 = vmatpush1.xpose.msra.mxu0 0.0
    %4276 = vmatprep.subr.mxu0 0.0
    %4277 = vmatpush1.xpose.msra.mxu0 0.0
    %4278 = vmatprep.subr.mxu0 0.0
    %4279 = vmatpush1.xpose.msra.mxu0 0.0
    %4280 = vmatprep.subr.mxu0 0.0
    %4281 = vmatpush1.xpose.msra.mxu0 0.0
    %4282 = vmatprep.subr.mxu0 0.0
    %4283 = vmatpush1.xpose.msra.mxu0 0.0
    %4284 = vmatprep.subr.mxu0 0.0
    %4285 = vmatpush1.xpose.msra.mxu0 0.0
    %4286 = vmatprep.subr.mxu0 0.0
    %4287 = vmatpush1.xpose.msra.mxu0 0.0
    %4288 = vmatprep.subr.mxu0 0.0
    %4289 = vmatpush1.xpose.msra.mxu0 0.0
    %4290 = vmatprep.subr.mxu0 0.0
    %4291 = vmatpush1.xpose.msra.mxu0 0.0
    %4292 = vmatprep.subr.mxu0 0.0
    %4293 = vmatpush1.xpose.msra.mxu0 0.0
    %4294 = vmatprep.subr.mxu0 0.0
    %4295 = vmatpush1.xpose.msra.mxu0 0.0
    %4296 = vmatprep.subr.mxu0 0.0
    %4297 = vmatpush1.xpose.msra.mxu0 0.0
    %4298 = vmatprep.subr.mxu0 0.0
    %4299 = vmatpush1.xpose.msra.mxu0 0.0
    %4300 = vmatprep.subr.mxu0 0.0
    %4301 = vmatpush1.xpose.msra.mxu0 0.0
    %4302 = vmatprep.subr.mxu0 0.0
    %4303 = vmatpush1.xpose.msra.mxu0 0.0
    %4304 = vmatprep.subr.mxu0 0.0
    %4305 = vmatpush1.xpose.msra.mxu0 0.0
    %4306 = vmatprep.subr.mxu0 0.0
    %4307 = vmatpush1.xpose.msra.mxu0 0.0
    %4308 = vmatprep.subr.mxu0 0.0
    %4309 = vmatpush1.xpose.msra.mxu0 0.0
    %4310 = vmatprep.subr.mxu0 0.0
    %4311 = vmatpush1.xpose.msra.mxu0 0.0
    %4312 = vmatprep.subr.mxu0 0.0
    %4313 = vmatpush1.xpose.msra.mxu0 0.0
    %4314 = vmatprep.subr.mxu0 0.0
    %4315 = vmatpush1.xpose.msra.mxu0 0.0
    %4316 = vmatprep.subr.mxu0 0.0
    %4317 = vmatpush1.xpose.msra.mxu0 0.0
    %4318 = vmatprep.subr.mxu0 0.0
    %4319 = vmatpush1.xpose.msra.mxu0 0.0
    %4320 = vmatprep.mubr.f32.mxu0 0.0
    %v4321 = vand.u32 %v3949, 4294901760
    %4322 = vmatmul.mubr.f32.gmra.mrb[0].mxu0 %v4321
    %v4323 = vpop.f32.mrb[0].mxu0
    %v4324 = vadd.f32 %v4250, %v4323
    %v4325 = vpop.f32.mrb[0].mxu0
    %4326 = vdwg.mxu0
    %4327 = vmatprep.subr.mxu0 0.0
    %v4328 = vand.u32 %v3951, 4294901760
    %4329 = vmatpush1.xpose.msra.mxu0 %v4328
    %4330 = vmatprep.subr.mxu0 0.0
    %4331 = vmatpush1.xpose.msra.mxu0 0.0
    %4332 = vmatprep.subr.mxu0 0.0
    %4333 = vmatpush1.xpose.msra.mxu0 0.0
    %4334 = vmatprep.subr.mxu0 0.0
    %4335 = vmatpush1.xpose.msra.mxu0 0.0
    %4336 = vmatprep.subr.mxu0 0.0
    %4337 = vmatpush1.xpose.msra.mxu0 0.0
    %4338 = vmatprep.subr.mxu0 0.0
    %4339 = vmatpush1.xpose.msra.mxu0 0.0
    %4340 = vmatprep.subr.mxu0 0.0
    %4341 = vmatpush1.xpose.msra.mxu0 0.0
    %4342 = vmatprep.subr.mxu0 0.0
    %4343 = vmatpush1.xpose.msra.mxu0 0.0
    %4344 = vmatprep.subr.mxu0 0.0
    %4345 = vmatpush1.xpose.msra.mxu0 0.0
    %4346 = vmatprep.subr.mxu0 0.0
    %4347 = vmatpush1.xpose.msra.mxu0 0.0
    %4348 = vmatprep.subr.mxu0 0.0
    %4349 = vmatpush1.xpose.msra.mxu0 0.0
    %4350 = vmatprep.subr.mxu0 0.0
    %4351 = vmatpush1.xpose.msra.mxu0 0.0
    %4352 = vmatprep.subr.mxu0 0.0
    %4353 = vmatpush1.xpose.msra.mxu0 0.0
    %4354 = vmatprep.subr.mxu0 0.0
    %4355 = vmatpush1.xpose.msra.mxu0 0.0
    %4356 = vmatprep.subr.mxu0 0.0
    %4357 = vmatpush1.xpose.msra.mxu0 0.0
    %4358 = vmatprep.subr.mxu0 0.0
    %4359 = vmatpush1.xpose.msra.mxu0 0.0
    %4360 = vmatprep.subr.mxu0 0.0
    %4361 = vmatpush1.xpose.msra.mxu0 0.0
    %4362 = vmatprep.subr.mxu0 0.0
    %4363 = vmatpush1.xpose.msra.mxu0 0.0
    %4364 = vmatprep.subr.mxu0 0.0
    %4365 = vmatpush1.xpose.msra.mxu0 0.0
    %4366 = vmatprep.subr.mxu0 0.0
    %4367 = vmatpush1.xpose.msra.mxu0 0.0
    %4368 = vmatprep.subr.mxu0 0.0
    %4369 = vmatpush1.xpose.msra.mxu0 0.0
    %4370 = vmatprep.subr.mxu0 0.0
    %4371 = vmatpush1.xpose.msra.mxu0 0.0
    %4372 = vmatprep.subr.mxu0 0.0
    %4373 = vmatpush1.xpose.msra.mxu0 0.0
    %4374 = vmatprep.subr.mxu0 0.0
    %4375 = vmatpush1.xpose.msra.mxu0 0.0
    %4376 = vmatprep.subr.mxu0 0.0
    %4377 = vmatpush1.xpose.msra.mxu0 0.0
    %4378 = vmatprep.subr.mxu0 0.0
    %4379 = vmatpush1.xpose.msra.mxu0 0.0
    %4380 = vmatprep.subr.mxu0 0.0
    %4381 = vmatpush1.xpose.msra.mxu0 0.0
    %4382 = vmatprep.subr.mxu0 0.0
    %4383 = vmatpush1.xpose.msra.mxu0 0.0
    %4384 = vmatprep.subr.mxu0 0.0
    %4385 = vmatpush1.xpose.msra.mxu0 0.0
    %4386 = vmatprep.subr.mxu0 0.0
    %4387 = vmatpush1.xpose.msra.mxu0 0.0
    %4388 = vmatprep.subr.mxu0 0.0
    %4389 = vmatpush1.xpose.msra.mxu0 0.0
    %4390 = vmatprep.subr.mxu0 0.0
    %4391 = vmatpush1.xpose.msra.mxu0 0.0
    %4392 = vmatprep.mubr.f32.mxu0 0.0
    %v4393 = vand.u32 %v3949, 4294901760
    %4394 = vmatmul.mubr.f32.gmra.mrb[0].mxu0 %v4393
    %v4395 = vpop.f32.mrb[0].mxu0
    %v4396 = vadd.f32 %v4324, %v4395
    %v4397 = vpop.f32.mrb[0].mxu0
    %4398 = vdwg.mxu0
    %v4399 = vsel %vm1180, -1e+09, %v4396
    %v4400 = vsel %vm1634, %v4399, -inf
    %4401 = vmax.xlane.f32.xlu0 %v4400
    %v4402 = vpop.xlane.xlu0 %4401
    %v4403 = vsub.f32 %v4399, %v4402
    %v4404 = vmul.f32 %v4403, 1.442695
    %v4405 = vpow.pop %v4404
    %v4406 = vsel %vm1634, %v4405, 0.0
    %4407 = vadd.xlane.f32.xlu0 %v4406
    %v4408 = vpop.xlane.xlu0 %4407
    %v4409 = vrcp.pop %v4408
    %v4410 = vmul.f32 %v4405, %v4409
    %4411 = vrot.lane.b32.xlu0 %v1170, 32
    %v4412 = vpop.permute.xlu0 %4411
    %v4415 = vsel %vm1634, %v4410, 0
    %4417 = vmatprep.subr.mxu0 0.0
    %v4418 = vand.u32 %v4412, 4294901760
    %4419 = vmatpush1.msra.mxu0 %v4418
    %4420 = vmatprep.subr.mxu0 0.0
    %4421 = vmatpush1.msra.mxu0 0.0
    %4422 = vmatprep.subr.mxu0 0.0
    %4423 = vmatpush1.msra.mxu0 0.0
    %4424 = vmatprep.subr.mxu0 0.0
    %4425 = vmatpush1.msra.mxu0 0.0
    %4426 = vmatprep.subr.mxu0 0.0
    %4427 = vmatpush1.msra.mxu0 0.0
    %4428 = vmatprep.subr.mxu0 0.0
    %4429 = vmatpush1.msra.mxu0 0.0
    %4430 = vmatprep.subr.mxu0 0.0
    %4431 = vmatpush1.msra.mxu0 0.0
    %4432 = vmatprep.subr.mxu0 0.0
    %4433 = vmatpush1.msra.mxu0 0.0
    %4434 = vmatprep.subr.mxu0 0.0
    %4435 = vmatpush1.msra.mxu0 0.0
    %4436 = vmatprep.subr.mxu0 0.0
    %4437 = vmatpush1.msra.mxu0 0.0
    %4438 = vmatprep.subr.mxu0 0.0
    %4439 = vmatpush1.msra.mxu0 0.0
    %4440 = vmatprep.subr.mxu0 0.0
    %4441 = vmatpush1.msra.mxu0 0.0
    %4442 = vmatprep.subr.mxu0 0.0
    %4443 = vmatpush1.msra.mxu0 0.0
    %4444 = vmatprep.subr.mxu0 0.0
    %4445 = vmatpush1.msra.mxu0 0.0
    %4446 = vmatprep.subr.mxu0 0.0
    %4447 = vmatpush1.msra.mxu0 0.0
    %4448 = vmatprep.subr.mxu0 0.0
    %4449 = vmatpush1.msra.mxu0 0.0
    %4450 = vmatprep.subr.mxu0 0.0
    %4451 = vmatpush1.msra.mxu0 0.0
    %4452 = vmatprep.subr.mxu0 0.0
    %4453 = vmatpush1.msra.mxu0 0.0
    %4454 = vmatprep.subr.mxu0 0.0
    %4455 = vmatpush1.msra.mxu0 0.0
    %4456 = vmatprep.subr.mxu0 0.0
    %4457 = vmatpush1.msra.mxu0 0.0
    %4458 = vmatprep.subr.mxu0 0.0
    %4459 = vmatpush1.msra.mxu0 0.0
    %4460 = vmatprep.subr.mxu0 0.0
    %4461 = vmatpush1.msra.mxu0 0.0
    %4462 = vmatprep.subr.mxu0 0.0
    %4463 = vmatpush1.msra.mxu0 0.0
    %4464 = vmatprep.subr.mxu0 0.0
    %4465 = vmatpush1.msra.mxu0 0.0
    %4466 = vmatprep.subr.mxu0 0.0
    %4467 = vmatpush1.msra.mxu0 0.0
    %4468 = vmatprep.subr.mxu0 0.0
    %4469 = vmatpush1.msra.mxu0 0.0
    %4470 = vmatprep.subr.mxu0 0.0
    %4471 = vmatpush1.msra.mxu0 0.0
    %4472 = vmatprep.subr.mxu0 0.0
    %4473 = vmatpush1.msra.mxu0 0.0
    %4474 = vmatprep.subr.mxu0 0.0
    %4475 = vmatpush1.msra.mxu0 0.0
    %4476 = vmatprep.subr.mxu0 0.0
    %4477 = vmatpush1.msra.mxu0 0.0
    %4478 = vmatprep.subr.mxu0 0.0
    %4479 = vmatpush1.msra.mxu0 0.0
    %4480 = vmatprep.subr.mxu0 0.0
    %4481 = vmatpush1.msra.mxu0 0.0
    %4482 = vmatprep.mubr.f32.mxu0 0.0
    %v4483 = vand.u32 %v4415, 4294901760
    %v4484 = vsub.f32 %v4415, %v4483
    %v4485 = vand.u32 %v4484, 4294901760
    %v4486 = vsub.f32 %v4484, %v4485
    %v4487 = vand.u32 %v4486, 4294901760
    %4488 = vmatmul.mubr.f32.gmra.mrb[0].mxu0 %v4487
    %v4489 = vpop.f32.mrb[0].mxu0
    %v4490 = vadd.f32 0.0, %v4489
    %v4491 = vpop.f32.mrb[0].mxu0
    %4492 = vdwg.mxu0
    %4493 = vmatprep.subr.mxu0 0.0
    %v4494 = vand.u32 %v4412, 4294901760
    %v4495 = vsub.f32 %v4412, %v4494
    %v4496 = vand.u32 %v4495, 4294901760
    %v4497 = vsub.f32 %v4495, %v4496
    %v4498 = vand.u32 %v4497, 4294901760
    %4499 = vmatpush1.msra.mxu0 %v4498
    %4500 = vmatprep.subr.mxu0 0.0
    %4501 = vmatpush1.msra.mxu0 0.0
    %4502 = vmatprep.subr.mxu0 0.0
    %4503 = vmatpush1.msra.mxu0 0.0
    %4504 = vmatprep.subr.mxu0 0.0
    %4505 = vmatpush1.msra.mxu0 0.0
    %4506 = vmatprep.subr.mxu0 0.0
    %4507 = vmatpush1.msra.mxu0 0.0
    %4508 = vmatprep.subr.mxu0 0.0
    %4509 = vmatpush1.msra.mxu0 0.0
    %4510 = vmatprep.subr.mxu0 0.0
    %4511 = vmatpush1.msra.mxu0 0.0
    %4512 = vmatprep.subr.mxu0 0.0
    %4513 = vmatpush1.msra.mxu0 0.0
    %4514 = vmatprep.subr.mxu0 0.0
    %4515 = vmatpush1.msra.mxu0 0.0
    %4516 = vmatprep.subr.mxu0 0.0
    %4517 = vmatpush1.msra.mxu0 0.0
    %4518 = vmatprep.subr.mxu0 0.0
    %4519 = vmatpush1.msra.mxu0 0.0
    %4520 = vmatprep.subr.mxu0 0.0
    %4521 = vmatpush1.msra.mxu0 0.0
    %4522 = vmatprep.subr.mxu0 0.0
    %4523 = vmatpush1.msra.mxu0 0.0
    %4524 = vmatprep.subr.mxu0 0.0
    %4525 = vmatpush1.msra.mxu0 0.0
    %4526 = vmatprep.subr.mxu0 0.0
    %4527 = vmatpush1.msra.mxu0 0.0
    %4528 = vmatprep.subr.mxu0 0.0
    %4529 = vmatpush1.msra.mxu0 0.0
    %4530 = vmatprep.subr.mxu0 0.0
    %4531 = vmatpush1.msra.mxu0 0.0
    %4532 = vmatprep.subr.mxu0 0.0
    %4533 = vmatpush1.msra.mxu0 0.0
    %4534 = vmatprep.subr.mxu0 0.0
    %4535 = vmatpush1.msra.mxu0 0.0
    %4536 = vmatprep.subr.mxu0 0.0
    %4537 = vmatpush1.msra.mxu0 0.0
    %4538 = vmatprep.subr.mxu0 0.0
    %4539 = vmatpush1.msra.mxu0 0.0
    %4540 = vmatprep.subr.mxu0 0.0
    %4541 = vmatpush1.msra.mxu0 0.0
    %4542 = vmatprep.subr.mxu0 0.0
    %4543 = vmatpush1.msra.mxu0 0.0
    %4544 = vmatprep.subr.mxu0 0.0
    %4545 = vmatpush1.msra.mxu0 0.0
    %4546 = vmatprep.subr.mxu0 0.0
    %4547 = vmatpush1.msra.mxu0 0.0
    %4548 = vmatprep.subr.mxu0 0.0
    %4549 = vmatpush1.msra.mxu0 0.0
    %4550 = vmatprep.subr.mxu0 0.0
    %4551 = vmatpush1.msra.mxu0 0.0
    %4552 = vmatprep.subr.mxu0 0.0
    %4553 = vmatpush1.msra.mxu0 0.0
    %4554 = vmatprep.subr.mxu0 0.0
    %4555 = vmatpush1.msra.mxu0 0.0
    %4556 = vmatprep.subr.mxu0 0.0
    %4557 = vmatpush1.msra.mxu0 0.0
    %4558 = vmatprep.subr.mxu0 0.0
    %4559 = vmatpush1.msra.mxu0 0.0
    %4560 = vmatprep.subr.mxu0 0.0
    %4561 = vmatpush1.msra.mxu0 0.0
    %4562 = vmatprep.mubr.f32.mxu0 0.0
    %v4563 = vand.u32 %v4415, 4294901760
    %4564 = vmatmul.mubr.f32.gmra.mrb[0].mxu0 %v4563
    %v4565 = vpop.f32.mrb[0].mxu0
    %v4566 = vadd.f32 %v4490, %v4565
    %v4567 = vpop.f32.mrb[0].mxu0
    %4568 = vdwg.mxu0
    %4569 = vmatprep.subr.mxu0 0.0
    %v4570 = vand.u32 %v4412, 4294901760
    %v4571 = vsub.f32 %v4412, %v4570
    %4572 = vmatpush1.msra.mxu0 %v4571
    %4573 = vmatprep.subr.mxu0 0.0
    %4574 = vmatpush1.msra.mxu0 0.0
    %4575 = vmatprep.subr.mxu0 0.0
    %4576 = vmatpush1.msra.mxu0 0.0
    %4577 = vmatprep.subr.mxu0 0.0
    %4578 = vmatpush1.msra.mxu0 0.0
    %4579 = vmatprep.subr.mxu0 0.0
    %4580 = vmatpush1.msra.mxu0 0.0
    %4581 = vmatprep.subr.mxu0 0.0
    %4582 = vmatpush1.msra.mxu0 0.0
    %4583 = vmatprep.subr.mxu0 0.0
    %4584 = vmatpush1.msra.mxu0 0.0
    %4585 = vmatprep.subr.mxu0 0.0
    %4586 = vmatpush1.msra.mxu0 0.0
    %4587 = vmatprep.subr.mxu0 0.0
    %4588 = vmatpush1.msra.mxu0 0.0
    %4589 = vmatprep.subr.mxu0 0.0
    %4590 = vmatpush1.msra.mxu0 0.0
    %4591 = vmatprep.subr.mxu0 0.0
    %4592 = vmatpush1.msra.mxu0 0.0
    %4593 = vmatprep.subr.mxu0 0.0
    %4594 = vmatpush1.msra.mxu0 0.0
    %4595 = vmatprep.subr.mxu0 0.0
    %4596 = vmatpush1.msra.mxu0 0.0
    %4597 = vmatprep.subr.mxu0 0.0
    %4598 = vmatpush1.msra.mxu0 0.0
    %4599 = vmatprep.subr.mxu0 0.0
    %4600 = vmatpush1.msra.mxu0 0.0
    %4601 = vmatprep.subr.mxu0 0.0
    %4602 = vmatpush1.msra.mxu0 0.0
    %4603 = vmatprep.subr.mxu0 0.0
    %4604 = vmatpush1.msra.mxu0 0.0
    %4605 = vmatprep.subr.mxu0 0.0
    %4606 = vmatpush1.msra.mxu0 0.0
    %4607 = vmatprep.subr.mxu0 0.0
    %4608 = vmatpush1.msra.mxu0 0.0
    %4609 = vmatprep.subr.mxu0 0.0
    %4610 = vmatpush1.msra.mxu0 0.0
    %4611 = vmatprep.subr.mxu0 0.0
    %4612 = vmatpush1.msra.mxu0 0.0
    %4613 = vmatprep.subr.mxu0 0.0
    %4614 = vmatpush1.msra.mxu0 0.0
    %4615 = vmatprep.subr.mxu0 0.0
    %4616 = vmatpush1.msra.mxu0 0.0
    %4617 = vmatprep.subr.mxu0 0.0
    %4618 = vmatpush1.msra.mxu0 0.0
    %4619 = vmatprep.subr.mxu0 0.0
    %4620 = vmatpush1.msra.mxu0 0.0
    %4621 = vmatprep.subr.mxu0 0.0
    %4622 = vmatpush1.msra.mxu0 0.0
    %4623 = vmatprep.subr.mxu0 0.0
    %4624 = vmatpush1.msra.mxu0 0.0
    %4625 = vmatprep.subr.mxu0 0.0
    %4626 = vmatpush1.msra.mxu0 0.0
    %4627 = vmatprep.subr.mxu0 0.0
    %4628 = vmatpush1.msra.mxu0 0.0
    %4629 = vmatprep.subr.mxu0 0.0
    %4630 = vmatpush1.msra.mxu0 0.0
    %4631 = vmatprep.subr.mxu0 0.0
    %4632 = vmatpush1.msra.mxu0 0.0
    %4633 = vmatprep.subr.mxu0 0.0
    %4634 = vmatpush1.msra.mxu0 0.0
    %4635 = vmatprep.mubr.f32.mxu0 0.0
    %v4636 = vand.u32 %v4415, 4294901760
    %v4637 = vsub.f32 %v4415, %v4636
    %4638 = vmatmul.mubr.f32.gmra.mrb[0].mxu0 %v4637
    %v4639 = vpop.f32.mrb[0].mxu0
    %v4640 = vadd.f32 %v4566, %v4639
    %v4641 = vpop.f32.mrb[0].mxu0
    %4642 = vdwg.mxu0
    %4643 = vmatprep.subr.mxu0 0.0
    %v4644 = vand.u32 %v4412, 4294901760
    %4645 = vmatpush1.msra.mxu0 %v4644
    %4646 = vmatprep.subr.mxu0 0.0
    %4647 = vmatpush1.msra.mxu0 0.0
    %4648 = vmatprep.subr.mxu0 0.0
    %4649 = vmatpush1.msra.mxu0 0.0
    %4650 = vmatprep.subr.mxu0 0.0
    %4651 = vmatpush1.msra.mxu0 0.0
    %4652 = vmatprep.subr.mxu0 0.0
    %4653 = vmatpush1.msra.mxu0 0.0
    %4654 = vmatprep.subr.mxu0 0.0
    %4655 = vmatpush1.msra.mxu0 0.0
    %4656 = vmatprep.subr.mxu0 0.0
    %4657 = vmatpush1.msra.mxu0 0.0
    %4658 = vmatprep.subr.mxu0 0.0
    %4659 = vmatpush1.msra.mxu0 0.0
    %4660 = vmatprep.subr.mxu0 0.0
    %4661 = vmatpush1.msra.mxu0 0.0
    %4662 = vmatprep.subr.mxu0 0.0
    %4663 = vmatpush1.msra.mxu0 0.0
    %4664 = vmatprep.subr.mxu0 0.0
    %4665 = vmatpush1.msra.mxu0 0.0
    %4666 = vmatprep.subr.mxu0 0.0
    %4667 = vmatpush1.msra.mxu0 0.0
    %4668 = vmatprep.subr.mxu0 0.0
    %4669 = vmatpush1.msra.mxu0 0.0
    %4670 = vmatprep.subr.mxu0 0.0
    %4671 = vmatpush1.msra.mxu0 0.0
    %4672 = vmatprep.subr.mxu0 0.0
    %4673 = vmatpush1.msra.mxu0 0.0
    %4674 = vmatprep.subr.mxu0 0.0
    %4675 = vmatpush1.msra.mxu0 0.0
    %4676 = vmatprep.subr.mxu0 0.0
    %4677 = vmatpush1.msra.mxu0 0.0
    %4678 = vmatprep.subr.mxu0 0.0
    %4679 = vmatpush1.msra.mxu0 0.0
    %4680 = vmatprep.subr.mxu0 0.0
    %4681 = vmatpush1.msra.mxu0 0.0
    %4682 = vmatprep.subr.mxu0 0.0
    %4683 = vmatpush1.msra.mxu0 0.0
    %4684 = vmatprep.subr.mxu0 0.0
    %4685 = vmatpush1.msra.mxu0 0.0
    %4686 = vmatprep.subr.mxu0 0.0
    %4687 = vmatpush1.msra.mxu0 0.0
    %4688 = vmatprep.subr.mxu0 0.0
    %4689 = vmatpush1.msra.mxu0 0.0
    %4690 = vmatprep.subr.mxu0 0.0
    %4691 = vmatpush1.msra.mxu0 0.0
    %4692 = vmatprep.subr.mxu0 0.0
    %4693 = vmatpush1.msra.mxu0 0.0
    %4694 = vmatprep.subr.mxu0 0.0
    %4695 = vmatpush1.msra.mxu0 0.0
    %4696 = vmatprep.subr.mxu0 0.0
    %4697 = vmatpush1.msra.mxu0 0.0
    %4698 = vmatprep.subr.mxu0 0.0
    %4699 = vmatpush1.msra.mxu0 0.0
    %4700 = vmatprep.subr.mxu0 0.0
    %4701 = vmatpush1.msra.mxu0 0.0
    %4702 = vmatprep.subr.mxu0 0.0
    %4703 = vmatpush1.msra.mxu0 0.0
    %4704 = vmatprep.subr.mxu0 0.0
    %4705 = vmatpush1.msra.mxu0 0.0
    %4706 = vmatprep.subr.mxu0 0.0
    %4707 = vmatpush1.msra.mxu0 0.0
    %4708 = vmatprep.mubr.f32.mxu0 0.0
    %v4709 = vand.u32 %v4415, 4294901760
    %v4710 = vsub.f32 %v4415, %v4709
    %v4711 = vand.u32 %v4710, 4294901760
    %4712 = vmatmul.mubr.f32.gmra.mrb[0].mxu0 %v4711
    %v4713 = vpop.f32.mrb[0].mxu0
    %v4714 = vadd.f32 %v4640, %v4713
    %v4715 = vpop.f32.mrb[0].mxu0
    %4716 = vdwg.mxu0
    %4717 = vmatprep.subr.mxu0 0.0
    %v4718 = vand.u32 %v4412, 4294901760
    %v4719 = vsub.f32 %v4412, %v4718
    %v4720 = vand.u32 %v4719, 4294901760
    %4721 = vmatpush1.msra.mxu0 %v4720
    %4722 = vmatprep.subr.mxu0 0.0
    %4723 = vmatpush1.msra.mxu0 0.0
    %4724 = vmatprep.subr.mxu0 0.0
    %4725 = vmatpush1.msra.mxu0 0.0
    %4726 = vmatprep.subr.mxu0 0.0
    %4727 = vmatpush1.msra.mxu0 0.0
    %4728 = vmatprep.subr.mxu0 0.0
    %4729 = vmatpush1.msra.mxu0 0.0
    %4730 = vmatprep.subr.mxu0 0.0
    %4731 = vmatpush1.msra.mxu0 0.0
    %4732 = vmatprep.subr.mxu0 0.0
    %4733 = vmatpush1.msra.mxu0 0.0
    %4734 = vmatprep.subr.mxu0 0.0
    %4735 = vmatpush1.msra.mxu0 0.0
    %4736 = vmatprep.subr.mxu0 0.0
    %4737 = vmatpush1.msra.mxu0 0.0
    %4738 = vmatprep.subr.mxu0 0.0
    %4739 = vmatpush1.msra.mxu0 0.0
    %4740 = vmatprep.subr.mxu0 0.0
    %4741 = vmatpush1.msra.mxu0 0.0
    %4742 = vmatprep.subr.mxu0 0.0
    %4743 = vmatpush1.msra.mxu0 0.0
    %4744 = vmatprep.subr.mxu0 0.0
    %4745 = vmatpush1.msra.mxu0 0.0
    %4746 = vmatprep.subr.mxu0 0.0
    %4747 = vmatpush1.msra.mxu0 0.0
    %4748 = vmatprep.subr.mxu0 0.0
    %4749 = vmatpush1.msra.mxu0 0.0
    %4750 = vmatprep.subr.mxu0 0.0
    %4751 = vmatpush1.msra.mxu0 0.0
    %4752 = vmatprep.subr.mxu0 0.0
    %4753 = vmatpush1.msra.mxu0 0.0
    %4754 = vmatprep.subr.mxu0 0.0
    %4755 = vmatpush1.msra.mxu0 0.0
    %4756 = vmatprep.subr.mxu0 0.0
    %4757 = vmatpush1.msra.mxu0 0.0
    %4758 = vmatprep.subr.mxu0 0.0
    %4759 = vmatpush1.msra.mxu0 0.0
    %4760 = vmatprep.subr.mxu0 0.0
    %4761 = vmatpush1.msra.mxu0 0.0
    %4762 = vmatprep.subr.mxu0 0.0
    %4763 = vmatpush1.msra.mxu0 0.0
    %4764 = vmatprep.subr.mxu0 0.0
    %4765 = vmatpush1.msra.mxu0 0.0
    %4766 = vmatprep.subr.mxu0 0.0
    %4767 = vmatpush1.msra.mxu0 0.0
    %4768 = vmatprep.subr.mxu0 0.0
    %4769 = vmatpush1.msra.mxu0 0.0
    %4770 = vmatprep.subr.mxu0 0.0
    %4771 = vmatpush1.msra.mxu0 0.0
    %4772 = vmatprep.subr.mxu0 0.0
    %4773 = vmatpush1.msra.mxu0 0.0
    %4774 = vmatprep.subr.mxu0 0.0
    %4775 = vmatpush1.msra.mxu0 0.0
    %4776 = vmatprep.subr.mxu0 0.0
    %4777 = vmatpush1.msra.mxu0 0.0
    %4778 = vmatprep.subr.mxu0 0.0
    %4779 = vmatpush1.msra.mxu0 0.0
    %4780 = vmatprep.subr.mxu0 0.0
    %4781 = vmatpush1.msra.mxu0 0.0
    %4782 = vmatprep.subr.mxu0 0.0
    %4783 = vmatpush1.msra.mxu0 0.0
    %4784 = vmatprep.mubr.f32.mxu0 0.0
    %v4785 = vand.u32 %v4415, 4294901760
    %4786 = vmatmul.mubr.f32.gmra.mrb[0].mxu0 %v4785
    %v4787 = vpop.f32.mrb[0].mxu0
    %v4788 = vadd.f32 %v4714, %v4787
    %v4789 = vpop.f32.mrb[0].mxu0
    %4790 = vdwg.mxu0
    %4791 = vmatprep.subr.mxu0 0.0
    %v4792 = vand.u32 %v4412, 4294901760
    %4793 = vmatpush1.msra.mxu0 %v4792
    %4794 = vmatprep.subr.mxu0 0.0
    %4795 = vmatpush1.msra.mxu0 0.0
    %4796 = vmatprep.subr.mxu0 0.0
    %4797 = vmatpush1.msra.mxu0 0.0
    %4798 = vmatprep.subr.mxu0 0.0
    %4799 = vmatpush1.msra.mxu0 0.0
    %4800 = vmatprep.subr.mxu0 0.0
    %4801 = vmatpush1.msra.mxu0 0.0
    %4802 = vmatprep.subr.mxu0 0.0
    %4803 = vmatpush1.msra.mxu0 0.0
    %4804 = vmatprep.subr.mxu0 0.0
    %4805 = vmatpush1.msra.mxu0 0.0
    %4806 = vmatprep.subr.mxu0 0.0
    %4807 = vmatpush1.msra.mxu0 0.0
    %4808 = vmatprep.subr.mxu0 0.0
    %4809 = vmatpush1.msra.mxu0 0.0
    %4810 = vmatprep.subr.mxu0 0.0
    %4811 = vmatpush1.msra.mxu0 0.0
    %4812 = vmatprep.subr.mxu0 0.0
    %4813 = vmatpush1.msra.mxu0 0.0
    %4814 = vmatprep.subr.mxu0 0.0
    %4815 = vmatpush1.msra.mxu0 0.0
    %4816 = vmatprep.subr.mxu0 0.0
    %4817 = vmatpush1.msra.mxu0 0.0
    %4818 = vmatprep.subr.mxu0 0.0
    %4819 = vmatpush1.msra.mxu0 0.0
    %4820 = vmatprep.subr.mxu0 0.0
    %4821 = vmatpush1.msra.mxu0 0.0
    %4822 = vmatprep.subr.mxu0 0.0
    %4823 = vmatpush1.msra.mxu0 0.0
    %4824 = vmatprep.subr.mxu0 0.0
    %4825 = vmatpush1.msra.mxu0 0.0
    %4826 = vmatprep.subr.mxu0 0.0
    %4827 = vmatpush1.msra.mxu0 0.0
    %4828 = vmatprep.subr.mxu0 0.0
    %4829 = vmatpush1.msra.mxu0 0.0
    %4830 = vmatprep.subr.mxu0 0.0
    %4831 = vmatpush1.msra.mxu0 0.0
    %4832 = vmatprep.subr.mxu0 0.0
    %4833 = vmatpush1.msra.mxu0 0.0
    %4834 = vmatprep.subr.mxu0 0.0
    %4835 = vmatpush1.msra.mxu0 0.0
    %4836 = vmatprep.subr.mxu0 0.0
    %4837 = vmatpush1.msra.mxu0 0.0
    %4838 = vmatprep.subr.mxu0 0.0
    %4839 = vmatpush1.msra.mxu0 0.0
    %4840 = vmatprep.subr.mxu0 0.0
    %4841 = vmatpush1.msra.mxu0 0.0
    %4842 = vmatprep.subr.mxu0 0.0
    %4843 = vmatpush1.msra.mxu0 0.0
    %4844 = vmatprep.subr.mxu0 0.0
    %4845 = vmatpush1.msra.mxu0 0.0
    %4846 = vmatprep.subr.mxu0 0.0
    %4847 = vmatpush1.msra.mxu0 0.0
    %4848 = vmatprep.subr.mxu0 0.0
    %4849 = vmatpush1.msra.mxu0 0.0
    %4850 = vmatprep.subr.mxu0 0.0
    %4851 = vmatpush1.msra.mxu0 0.0
    %4852 = vmatprep.subr.mxu0 0.0
    %4853 = vmatpush1.msra.mxu0 0.0
    %4854 = vmatprep.subr.mxu0 0.0
    %4855 = vmatpush1.msra.mxu0 0.0
    %4856 = vmatprep.mubr.f32.mxu0 0.0
    %v4857 = vand.u32 %v4415, 4294901760
    %4858 = vmatmul.mubr.f32.gmra.mrb[0].mxu0 %v4857
    %v4859 = vpop.f32.mrb[0].mxu0
    %v4860 = vadd.f32 %v4788, %v4859
    %v4861 = vpop.f32.mrb[0].mxu0
    %4862 = vdwg.mxu0
    %4864 = vrot.lane.b32.xlu0 %v4860, 96
    %v4865 = vpop.permute.xlu0 %4864
    %vm4867 = vcmask 1048320
    %4868 = vst.msk [vmem:[#allocation2] sm:$0xff] %vm4867, %v4865
    %s4869 = scalar_lea.vmem %s1, 8
    %v4870 = vld [vmem:[%s4869] sm:$0xff]
    %vm4871 = vcmp.eq.f32.partialorder %v4870, 0.0
    %v4873 = vsel %vm52, %v647, 0
    %v4876 = vsel %vm52, %v649, 0
    %4878 = vmatprep.subr.mxu0 0.0
    %v4879 = vand.u32 %v4876, 4294901760
    %4880 = vmatpush1.xpose.msra.mxu0 %v4879
    %4881 = vmatprep.subr.mxu0 0.0
    %4882 = vmatpush1.xpose.msra.mxu0 0.0
    %4883 = vmatprep.subr.mxu0 0.0
    %4884 = vmatpush1.xpose.msra.mxu0 0.0
    %4885 = vmatprep.subr.mxu0 0.0
    %4886 = vmatpush1.xpose.msra.mxu0 0.0
    %4887 = vmatprep.subr.mxu0 0.0
    %4888 = vmatpush1.xpose.msra.mxu0 0.0
    %4889 = vmatprep.subr.mxu0 0.0
    %4890 = vmatpush1.xpose.msra.mxu0 0.0
    %4891 = vmatprep.subr.mxu0 0.0
    %4892 = vmatpush1.xpose.msra.mxu0 0.0
    %4893 = vmatprep.subr.mxu0 0.0
    %4894 = vmatpush1.xpose.msra.mxu0 0.0
    %4895 = vmatprep.subr.mxu0 0.0
    %4896 = vmatpush1.xpose.msra.mxu0 0.0
    %4897 = vmatprep.subr.mxu0 0.0
    %4898 = vmatpush1.xpose.msra.mxu0 0.0
    %4899 = vmatprep.subr.mxu0 0.0
    %4900 = vmatpush1.xpose.msra.mxu0 0.0
    %4901 = vmatprep.subr.mxu0 0.0
    %4902 = vmatpush1.xpose.msra.mxu0 0.0
    %4903 = vmatprep.subr.mxu0 0.0
    %4904 = vmatpush1.xpose.msra.mxu0 0.0
    %4905 = vmatprep.subr.mxu0 0.0
    %4906 = vmatpush1.xpose.msra.mxu0 0.0
    %4907 = vmatprep.subr.mxu0 0.0
    %4908 = vmatpush1.xpose.msra.mxu0 0.0
    %4909 = vmatprep.subr.mxu0 0.0
    %4910 = vmatpush1.xpose.msra.mxu0 0.0
    %4911 = vmatprep.subr.mxu0 0.0
    %4912 = vmatpush1.xpose.msra.mxu0 0.0
    %4913 = vmatprep.subr.mxu0 0.0
    %4914 = vmatpush1.xpose.msra.mxu0 0.0
    %4915 = vmatprep.subr.mxu0 0.0
    %4916 = vmatpush1.xpose.msra.mxu0 0.0
    %4917 = vmatprep.subr.mxu0 0.0
    %4918 = vmatpush1.xpose.msra.mxu0 0.0
    %4919 = vmatprep.subr.mxu0 0.0
    %4920 = vmatpush1.xpose.msra.mxu0 0.0
    %4921 = vmatprep.subr.mxu0 0.0
    %4922 = vmatpush1.xpose.msra.mxu0 0.0
    %4923 = vmatprep.subr.mxu0 0.0
    %4924 = vmatpush1.xpose.msra.mxu0 0.0
    %4925 = vmatprep.subr.mxu0 0.0
    %4926 = vmatpush1.xpose.msra.mxu0 0.0
    %4927 = vmatprep.subr.mxu0 0.0
    %4928 = vmatpush1.xpose.msra.mxu0 0.0
    %4929 = vmatprep.subr.mxu0 0.0
    %4930 = vmatpush1.xpose.msra.mxu0 0.0
    %4931 = vmatprep.subr.mxu0 0.0
    %4932 = vmatpush1.xpose.msra.mxu0 0.0
    %4933 = vmatprep.subr.mxu0 0.0
    %4934 = vmatpush1.xpose.msra.mxu0 0.0
    %4935 = vmatprep.subr.mxu0 0.0
    %4936 = vmatpush1.xpose.msra.mxu0 0.0
    %4937 = vmatprep.subr.mxu0 0.0
    %4938 = vmatpush1.xpose.msra.mxu0 0.0
    %4939 = vmatprep.subr.mxu0 0.0
    %4940 = vmatpush1.xpose.msra.mxu0 0.0
    %4941 = vmatprep.subr.mxu0 0.0
    %4942 = vmatpush1.xpose.msra.mxu0 0.0
    %4943 = vmatprep.mubr.f32.mxu0 0.0
    %v4944 = vand.u32 %v4873, 4294901760
    %v4945 = vsub.f32 %v4873, %v4944
    %v4946 = vand.u32 %v4945, 4294901760
    %v4947 = vsub.f32 %v4945, %v4946
    %v4948 = vand.u32 %v4947, 4294901760
    %4949 = vmatmul.mubr.f32.gmra.mrb[0].mxu0 %v4948
    %v4950 = vpop.f32.mrb[0].mxu0
    %v4951 = vadd.f32 0.0, %v4950
    %v4952 = vpop.f32.mrb[0].mxu0
    %4953 = vdwg.mxu0
    %4954 = vmatprep.subr.mxu0 0.0
    %v4955 = vand.u32 %v4876, 4294901760
    %v4956 = vsub.f32 %v4876, %v4955
    %v4957 = vand.u32 %v4956, 4294901760
    %v4958 = vsub.f32 %v4956, %v4957
    %v4959 = vand.u32 %v4958, 4294901760
    %4960 = vmatpush1.xpose.msra.mxu0 %v4959
    %4961 = vmatprep.subr.mxu0 0.0
    %4962 = vmatpush1.xpose.msra.mxu0 0.0
    %4963 = vmatprep.subr.mxu0 0.0
    %4964 = vmatpush1.xpose.msra.mxu0 0.0
    %4965 = vmatprep.subr.mxu0 0.0
    %4966 = vmatpush1.xpose.msra.mxu0 0.0
    %4967 = vmatprep.subr.mxu0 0.0
    %4968 = vmatpush1.xpose.msra.mxu0 0.0
    %4969 = vmatprep.subr.mxu0 0.0
    %4970 = vmatpush1.xpose.msra.mxu0 0.0
    %4971 = vmatprep.subr.mxu0 0.0
    %4972 = vmatpush1.xpose.msra.mxu0 0.0
    %4973 = vmatprep.subr.mxu0 0.0
    %4974 = vmatpush1.xpose.msra.mxu0 0.0
    %4975 = vmatprep.subr.mxu0 0.0
    %4976 = vmatpush1.xpose.msra.mxu0 0.0
    %4977 = vmatprep.subr.mxu0 0.0
    %4978 = vmatpush1.xpose.msra.mxu0 0.0
    %4979 = vmatprep.subr.mxu0 0.0
    %4980 = vmatpush1.xpose.msra.mxu0 0.0
    %4981 = vmatprep.subr.mxu0 0.0
    %4982 = vmatpush1.xpose.msra.mxu0 0.0
    %4983 = vmatprep.subr.mxu0 0.0
    %4984 = vmatpush1.xpose.msra.mxu0 0.0
    %4985 = vmatprep.subr.mxu0 0.0
    %4986 = vmatpush1.xpose.msra.mxu0 0.0
    %4987 = vmatprep.subr.mxu0 0.0
    %4988 = vmatpush1.xpose.msra.mxu0 0.0
    %4989 = vmatprep.subr.mxu0 0.0
    %4990 = vmatpush1.xpose.msra.mxu0 0.0
    %4991 = vmatprep.subr.mxu0 0.0
    %4992 = vmatpush1.xpose.msra.mxu0 0.0
    %4993 = vmatprep.subr.mxu0 0.0
    %4994 = vmatpush1.xpose.msra.mxu0 0.0
    %4995 = vmatprep.subr.mxu0 0.0
    %4996 = vmatpush1.xpose.msra.mxu0 0.0
    %4997 = vmatprep.subr.mxu0 0.0
    %4998 = vmatpush1.xpose.msra.mxu0 0.0
    %4999 = vmatprep.subr.mxu0 0.0
    %5000 = vmatpush1.xpose.msra.mxu0 0.0
    %5001 = vmatprep.subr.mxu0 0.0
    %5002 = vmatpush1.xpose.msra.mxu0 0.0
    %5003 = vmatprep.subr.mxu0 0.0
    %5004 = vmatpush1.xpose.msra.mxu0 0.0
    %5005 = vmatprep.subr.mxu0 0.0
    %5006 = vmatpush1.xpose.msra.mxu0 0.0
    %5007 = vmatprep.subr.mxu0 0.0
    %5008 = vmatpush1.xpose.msra.mxu0 0.0
    %5009 = vmatprep.subr.mxu0 0.0
    %5010 = vmatpush1.xpose.msra.mxu0 0.0
    %5011 = vmatprep.subr.mxu0 0.0
    %5012 = vmatpush1.xpose.msra.mxu0 0.0
    %5013 = vmatprep.subr.mxu0 0.0
    %5014 = vmatpush1.xpose.msra.mxu0 0.0
    %5015 = vmatprep.subr.mxu0 0.0
    %5016 = vmatpush1.xpose.msra.mxu0 0.0
    %5017 = vmatprep.subr.mxu0 0.0
    %5018 = vmatpush1.xpose.msra.mxu0 0.0
    %5019 = vmatprep.subr.mxu0 0.0
    %5020 = vmatpush1.xpose.msra.mxu0 0.0
    %5021 = vmatprep.subr.mxu0 0.0
    %5022 = vmatpush1.xpose.msra.mxu0 0.0
    %5023 = vmatprep.mubr.f32.mxu0 0.0
    %v5024 = vand.u32 %v4873, 4294901760
    %5025 = vmatmul.mubr.f32.gmra.mrb[0].mxu0 %v5024
    %v5026 = vpop.f32.mrb[0].mxu0
    %v5027 = vadd.f32 %v4951, %v5026
    %v5028 = vpop.f32.mrb[0].mxu0
    %5029 = vdwg.mxu0
    %5030 = vmatprep.subr.mxu0 0.0
    %v5031 = vand.u32 %v4876, 4294901760
    %v5032 = vsub.f32 %v4876, %v5031
    %5033 = vmatpush1.xpose.msra.mxu0 %v5032
    %5034 = vmatprep.subr.mxu0 0.0
    %5035 = vmatpush1.xpose.msra.mxu0 0.0
    %5036 = vmatprep.subr.mxu0 0.0
    %5037 = vmatpush1.xpose.msra.mxu0 0.0
    %5038 = vmatprep.subr.mxu0 0.0
    %5039 = vmatpush1.xpose.msra.mxu0 0.0
    %5040 = vmatprep.subr.mxu0 0.0
    %5041 = vmatpush1.xpose.msra.mxu0 0.0
    %5042 = vmatprep.subr.mxu0 0.0
    %5043 = vmatpush1.xpose.msra.mxu0 0.0
    %5044 = vmatprep.subr.mxu0 0.0
    %5045 = vmatpush1.xpose.msra.mxu0 0.0
    %5046 = vmatprep.subr.mxu0 0.0
    %5047 = vmatpush1.xpose.msra.mxu0 0.0
    %5048 = vmatprep.subr.mxu0 0.0
    %5049 = vmatpush1.xpose.msra.mxu0 0.0
    %5050 = vmatprep.subr.mxu0 0.0
    %5051 = vmatpush1.xpose.msra.mxu0 0.0
    %5052 = vmatprep.subr.mxu0 0.0
    %5053 = vmatpush1.xpose.msra.mxu0 0.0
    %5054 = vmatprep.subr.mxu0 0.0
    %5055 = vmatpush1.xpose.msra.mxu0 0.0
    %5056 = vmatprep.subr.mxu0 0.0
    %5057 = vmatpush1.xpose.msra.mxu0 0.0
    %5058 = vmatprep.subr.mxu0 0.0
    %5059 = vmatpush1.xpose.msra.mxu0 0.0
    %5060 = vmatprep.subr.mxu0 0.0
    %5061 = vmatpush1.xpose.msra.mxu0 0.0
    %5062 = vmatprep.subr.mxu0 0.0
    %5063 = vmatpush1.xpose.msra.mxu0 0.0
    %5064 = vmatprep.subr.mxu0 0.0
    %5065 = vmatpush1.xpose.msra.mxu0 0.0
    %5066 = vmatprep.subr.mxu0 0.0
    %5067 = vmatpush1.xpose.msra.mxu0 0.0
    %5068 = vmatprep.subr.mxu0 0.0
    %5069 = vmatpush1.xpose.msra.mxu0 0.0
    %5070 = vmatprep.subr.mxu0 0.0
    %5071 = vmatpush1.xpose.msra.mxu0 0.0
    %5072 = vmatprep.subr.mxu0 0.0
    %5073 = vmatpush1.xpose.msra.mxu0 0.0
    %5074 = vmatprep.subr.mxu0 0.0
    %5075 = vmatpush1.xpose.msra.mxu0 0.0
    %5076 = vmatprep.subr.mxu0 0.0
    %5077 = vmatpush1.xpose.msra.mxu0 0.0
    %5078 = vmatprep.subr.mxu0 0.0
    %5079 = vmatpush1.xpose.msra.mxu0 0.0
    %5080 = vmatprep.subr.mxu0 0.0
    %5081 = vmatpush1.xpose.msra.mxu0 0.0
    %5082 = vmatprep.subr.mxu0 0.0
    %5083 = vmatpush1.xpose.msra.mxu0 0.0
    %5084 = vmatprep.subr.mxu0 0.0
    %5085 = vmatpush1.xpose.msra.mxu0 0.0
    %5086 = vmatprep.subr.mxu0 0.0
    %5087 = vmatpush1.xpose.msra.mxu0 0.0
    %5088 = vmatprep.subr.mxu0 0.0
    %5089 = vmatpush1.xpose.msra.mxu0 0.0
    %5090 = vmatprep.subr.mxu0 0.0
    %5091 = vmatpush1.xpose.msra.mxu0 0.0
    %5092 = vmatprep.subr.mxu0 0.0
    %5093 = vmatpush1.xpose.msra.mxu0 0.0
    %5094 = vmatprep.subr.mxu0 0.0
    %5095 = vmatpush1.xpose.msra.mxu0 0.0
    %5096 = vmatprep.mubr.f32.mxu0 0.0
    %v5097 = vand.u32 %v4873, 4294901760
    %v5098 = vsub.f32 %v4873, %v5097
    %5099 = vmatmul.mubr.f32.gmra.mrb[0].mxu0 %v5098
    %v5100 = vpop.f32.mrb[0].mxu0
    %v5101 = vadd.f32 %v5027, %v5100
    %v5102 = vpop.f32.mrb[0].mxu0
    %5103 = vdwg.mxu0
    %5104 = vmatprep.subr.mxu0 0.0
    %v5105 = vand.u32 %v4876, 4294901760
    %5106 = vmatpush1.xpose.msra.mxu0 %v5105
    %5107 = vmatprep.subr.mxu0 0.0
    %5108 = vmatpush1.xpose.msra.mxu0 0.0
    %5109 = vmatprep.subr.mxu0 0.0
    %5110 = vmatpush1.xpose.msra.mxu0 0.0
    %5111 = vmatprep.subr.mxu0 0.0
    %5112 = vmatpush1.xpose.msra.mxu0 0.0
    %5113 = vmatprep.subr.mxu0 0.0
    %5114 = vmatpush1.xpose.msra.mxu0 0.0
    %5115 = vmatprep.subr.mxu0 0.0
    %5116 = vmatpush1.xpose.msra.mxu0 0.0
    %5117 = vmatprep.subr.mxu0 0.0
    %5118 = vmatpush1.xpose.msra.mxu0 0.0
    %5119 = vmatprep.subr.mxu0 0.0
    %5120 = vmatpush1.xpose.msra.mxu0 0.0
    %5121 = vmatprep.subr.mxu0 0.0
    %5122 = vmatpush1.xpose.msra.mxu0 0.0
    %5123 = vmatprep.subr.mxu0 0.0
    %5124 = vmatpush1.xpose.msra.mxu0 0.0
    %5125 = vmatprep.subr.mxu0 0.0
    %5126 = vmatpush1.xpose.msra.mxu0 0.0
    %5127 = vmatprep.subr.mxu0 0.0
    %5128 = vmatpush1.xpose.msra.mxu0 0.0
    %5129 = vmatprep.subr.mxu0 0.0
    %5130 = vmatpush1.xpose.msra.mxu0 0.0
    %5131 = vmatprep.subr.mxu0 0.0
    %5132 = vmatpush1.xpose.msra.mxu0 0.0
    %5133 = vmatprep.subr.mxu0 0.0
    %5134 = vmatpush1.xpose.msra.mxu0 0.0
    %5135 = vmatprep.subr.mxu0 0.0
    %5136 = vmatpush1.xpose.msra.mxu0 0.0
    %5137 = vmatprep.subr.mxu0 0.0
    %5138 = vmatpush1.xpose.msra.mxu0 0.0
    %5139 = vmatprep.subr.mxu0 0.0
    %5140 = vmatpush1.xpose.msra.mxu0 0.0
    %5141 = vmatprep.subr.mxu0 0.0
    %5142 = vmatpush1.xpose.msra.mxu0 0.0
    %5143 = vmatprep.subr.mxu0 0.0
    %5144 = vmatpush1.xpose.msra.mxu0 0.0
    %5145 = vmatprep.subr.mxu0 0.0
    %5146 = vmatpush1.xpose.msra.mxu0 0.0
    %5147 = vmatprep.subr.mxu0 0.0
    %5148 = vmatpush1.xpose.msra.mxu0 0.0
    %5149 = vmatprep.subr.mxu0 0.0
    %5150 = vmatpush1.xpose.msra.mxu0 0.0
    %5151 = vmatprep.subr.mxu0 0.0
    %5152 = vmatpush1.xpose.msra.mxu0 0.0
    %5153 = vmatprep.subr.mxu0 0.0
    %5154 = vmatpush1.xpose.msra.mxu0 0.0
    %5155 = vmatprep.subr.mxu0 0.0
    %5156 = vmatpush1.xpose.msra.mxu0 0.0
    %5157 = vmatprep.subr.mxu0 0.0
    %5158 = vmatpush1.xpose.msra.mxu0 0.0
    %5159 = vmatprep.subr.mxu0 0.0
    %5160 = vmatpush1.xpose.msra.mxu0 0.0
    %5161 = vmatprep.subr.mxu0 0.0
    %5162 = vmatpush1.xpose.msra.mxu0 0.0
    %5163 = vmatprep.subr.mxu0 0.0
    %5164 = vmatpush1.xpose.msra.mxu0 0.0
    %5165 = vmatprep.subr.mxu0 0.0
    %5166 = vmatpush1.xpose.msra.mxu0 0.0
    %5167 = vmatprep.subr.mxu0 0.0
    %5168 = vmatpush1.xpose.msra.mxu0 0.0
    %5169 = vmatprep.mubr.f32.mxu0 0.0
    %v5170 = vand.u32 %v4873, 4294901760
    %v5171 = vsub.f32 %v4873, %v5170
    %v5172 = vand.u32 %v5171, 4294901760
    %5173 = vmatmul.mubr.f32.gmra.mrb[0].mxu0 %v5172
    %v5174 = vpop.f32.mrb[0].mxu0
    %v5175 = vadd.f32 %v5101, %v5174
    %v5176 = vpop.f32.mrb[0].mxu0
    %5177 = vdwg.mxu0
    %5178 = vmatprep.subr.mxu0 0.0
    %v5179 = vand.u32 %v4876, 4294901760
    %v5180 = vsub.f32 %v4876, %v5179
    %v5181 = vand.u32 %v5180, 4294901760
    %5182 = vmatpush1.xpose.msra.mxu0 %v5181
    %5183 = vmatprep.subr.mxu0 0.0
    %5184 = vmatpush1.xpose.msra.mxu0 0.0
    %5185 = vmatprep.subr.mxu0 0.0
    %5186 = vmatpush1.xpose.msra.mxu0 0.0
    %5187 = vmatprep.subr.mxu0 0.0
    %5188 = vmatpush1.xpose.msra.mxu0 0.0
    %5189 = vmatprep.subr.mxu0 0.0
    %5190 = vmatpush1.xpose.msra.mxu0 0.0
    %5191 = vmatprep.subr.mxu0 0.0
    %5192 = vmatpush1.xpose.msra.mxu0 0.0
    %5193 = vmatprep.subr.mxu0 0.0
    %5194 = vmatpush1.xpose.msra.mxu0 0.0
    %5195 = vmatprep.subr.mxu0 0.0
    %5196 = vmatpush1.xpose.msra.mxu0 0.0
    %5197 = vmatprep.subr.mxu0 0.0
    %5198 = vmatpush1.xpose.msra.mxu0 0.0
    %5199 = vmatprep.subr.mxu0 0.0
    %5200 = vmatpush1.xpose.msra.mxu0 0.0
    %5201 = vmatprep.subr.mxu0 0.0
    %5202 = vmatpush1.xpose.msra.mxu0 0.0
    %5203 = vmatprep.subr.mxu0 0.0
    %5204 = vmatpush1.xpose.msra.mxu0 0.0
    %5205 = vmatprep.subr.mxu0 0.0
    %5206 = vmatpush1.xpose.msra.mxu0 0.0
    %5207 = vmatprep.subr.mxu0 0.0
    %5208 = vmatpush1.xpose.msra.mxu0 0.0
    %5209 = vmatprep.subr.mxu0 0.0
    %5210 = vmatpush1.xpose.msra.mxu0 0.0
    %5211 = vmatprep.subr.mxu0 0.0
    %5212 = vmatpush1.xpose.msra.mxu0 0.0
    %5213 = vmatprep.subr.mxu0 0.0
    %5214 = vmatpush1.xpose.msra.mxu0 0.0
    %5215 = vmatprep.subr.mxu0 0.0
    %5216 = vmatpush1.xpose.msra.mxu0 0.0
    %5217 = vmatprep.subr.mxu0 0.0
    %5218 = vmatpush1.xpose.msra.mxu0 0.0
    %5219 = vmatprep.subr.mxu0 0.0
    %5220 = vmatpush1.xpose.msra.mxu0 0.0
    %5221 = vmatprep.subr.mxu0 0.0
    %5222 = vmatpush1.xpose.msra.mxu0 0.0
    %5223 = vmatprep.subr.mxu0 0.0
    %5224 = vmatpush1.xpose.msra.mxu0 0.0
    %5225 = vmatprep.subr.mxu0 0.0
    %5226 = vmatpush1.xpose.msra.mxu0 0.0
    %5227 = vmatprep.subr.mxu0 0.0
    %5228 = vmatpush1.xpose.msra.mxu0 0.0
    %5229 = vmatprep.subr.mxu0 0.0
    %5230 = vmatpush1.xpose.msra.mxu0 0.0
    %5231 = vmatprep.subr.mxu0 0.0
    %5232 = vmatpush1.xpose.msra.mxu0 0.0
    %5233 = vmatprep.subr.mxu0 0.0
    %5234 = vmatpush1.xpose.msra.mxu0 0.0
    %5235 = vmatprep.subr.mxu0 0.0
    %5236 = vmatpush1.xpose.msra.mxu0 0.0
    %5237 = vmatprep.subr.mxu0 0.0
    %5238 = vmatpush1.xpose.msra.mxu0 0.0
    %5239 = vmatprep.subr.mxu0 0.0
    %5240 = vmatpush1.xpose.msra.mxu0 0.0
    %5241 = vmatprep.subr.mxu0 0.0
    %5242 = vmatpush1.xpose.msra.mxu0 0.0
    %5243 = vmatprep.subr.mxu0 0.0
    %5244 = vmatpush1.xpose.msra.mxu0 0.0
    %5245 = vmatprep.mubr.f32.mxu0 0.0
    %v5246 = vand.u32 %v4873, 4294901760
    %5247 = vmatmul.mubr.f32.gmra.mrb[0].mxu0 %v5246
    %v5248 = vpop.f32.mrb[0].mxu0
    %v5249 = vadd.f32 %v5175, %v5248
    %v5250 = vpop.f32.mrb[0].mxu0
    %5251 = vdwg.mxu0
    %5252 = vmatprep.subr.mxu0 0.0
    %v5253 = vand.u32 %v4876, 4294901760
    %5254 = vmatpush1.xpose.msra.mxu0 %v5253
    %5255 = vmatprep.subr.mxu0 0.0
    %5256 = vmatpush1.xpose.msra.mxu0 0.0
    %5257 = vmatprep.subr.mxu0 0.0
    %5258 = vmatpush1.xpose.msra.mxu0 0.0
    %5259 = vmatprep.subr.mxu0 0.0
    %5260 = vmatpush1.xpose.msra.mxu0 0.0
    %5261 = vmatprep.subr.mxu0 0.0
    %5262 = vmatpush1.xpose.msra.mxu0 0.0
    %5263 = vmatprep.subr.mxu0 0.0
    %5264 = vmatpush1.xpose.msra.mxu0 0.0
    %5265 = vmatprep.subr.mxu0 0.0
    %5266 = vmatpush1.xpose.msra.mxu0 0.0
    %5267 = vmatprep.subr.mxu0 0.0
    %5268 = vmatpush1.xpose.msra.mxu0 0.0
    %5269 = vmatprep.subr.mxu0 0.0
    %5270 = vmatpush1.xpose.msra.mxu0 0.0
    %5271 = vmatprep.subr.mxu0 0.0
    %5272 = vmatpush1.xpose.msra.mxu0 0.0
    %5273 = vmatprep.subr.mxu0 0.0
    %5274 = vmatpush1.xpose.msra.mxu0 0.0
    %5275 = vmatprep.subr.mxu0 0.0
    %5276 = vmatpush1.xpose.msra.mxu0 0.0
    %5277 = vmatprep.subr.mxu0 0.0
    %5278 = vmatpush1.xpose.msra.mxu0 0.0
    %5279 = vmatprep.subr.mxu0 0.0
    %5280 = vmatpush1.xpose.msra.mxu0 0.0
    %5281 = vmatprep.subr.mxu0 0.0
    %5282 = vmatpush1.xpose.msra.mxu0 0.0
    %5283 = vmatprep.subr.mxu0 0.0
    %5284 = vmatpush1.xpose.msra.mxu0 0.0
    %5285 = vmatprep.subr.mxu0 0.0
    %5286 = vmatpush1.xpose.msra.mxu0 0.0
    %5287 = vmatprep.subr.mxu0 0.0
    %5288 = vmatpush1.xpose.msra.mxu0 0.0
    %5289 = vmatprep.subr.mxu0 0.0
    %5290 = vmatpush1.xpose.msra.mxu0 0.0
    %5291 = vmatprep.subr.mxu0 0.0
    %5292 = vmatpush1.xpose.msra.mxu0 0.0
    %5293 = vmatprep.subr.mxu0 0.0
    %5294 = vmatpush1.xpose.msra.mxu0 0.0
    %5295 = vmatprep.subr.mxu0 0.0
    %5296 = vmatpush1.xpose.msra.mxu0 0.0
    %5297 = vmatprep.subr.mxu0 0.0
    %5298 = vmatpush1.xpose.msra.mxu0 0.0
    %5299 = vmatprep.subr.mxu0 0.0
    %5300 = vmatpush1.xpose.msra.mxu0 0.0
    %5301 = vmatprep.subr.mxu0 0.0
    %5302 = vmatpush1.xpose.msra.mxu0 0.0
    %5303 = vmatprep.subr.mxu0 0.0
    %5304 = vmatpush1.xpose.msra.mxu0 0.0
    %5305 = vmatprep.subr.mxu0 0.0
    %5306 = vmatpush1.xpose.msra.mxu0 0.0
    %5307 = vmatprep.subr.mxu0 0.0
    %5308 = vmatpush1.xpose.msra.mxu0 0.0
    %5309 = vmatprep.subr.mxu0 0.0
    %5310 = vmatpush1.xpose.msra.mxu0 0.0
    %5311 = vmatprep.subr.mxu0 0.0
    %5312 = vmatpush1.xpose.msra.mxu0 0.0
    %5313 = vmatprep.subr.mxu0 0.0
    %5314 = vmatpush1.xpose.msra.mxu0 0.0
    %5315 = vmatprep.subr.mxu0 0.0
    %5316 = vmatpush1.xpose.msra.mxu0 0.0
    %5317 = vmatprep.mubr.f32.mxu0 0.0
    %v5318 = vand.u32 %v4873, 4294901760
    %5319 = vmatmul.mubr.f32.gmra.mrb[0].mxu0 %v5318
    %v5320 = vpop.f32.mrb[0].mxu0
    %v5321 = vadd.f32 %v5249, %v5320
    %v5322 = vpop.f32.mrb[0].mxu0
    %5323 = vdwg.mxu0
    %v5324 = vsel %vm4871, -1e+09, %v5321
    %v5325 = vsel %vm1634, %v5324, -inf
    %5326 = vmax.xlane.f32.xlu0 %v5325
    %v5327 = vpop.xlane.xlu0 %5326
    %v5328 = vsub.f32 %v5324, %v5327
    %v5329 = vmul.f32 %v5328, 1.442695
    %v5330 = vpow.pop %v5329
    %v5331 = vsel %vm1634, %v5330, 0.0
    %5332 = vadd.xlane.f32.xlu0 %v5331
    %v5333 = vpop.xlane.xlu0 %5332
    %v5334 = vrcp.pop %v5333
    %v5335 = vmul.f32 %v5330, %v5334
    %v5337 = vsel %vm1634, %v5335, 0
    %5339 = vmatprep.subr.mxu0 0.0
    %v5340 = vand.u32 %v1176, 4294901760
    %5341 = vmatpush1.msra.mxu0 %v5340
    %5342 = vmatprep.subr.mxu0 0.0
    %5343 = vmatpush1.msra.mxu0 0.0
    %5344 = vmatprep.subr.mxu0 0.0
    %5345 = vmatpush1.msra.mxu0 0.0
    %5346 = vmatprep.subr.mxu0 0.0
    %5347 = vmatpush1.msra.mxu0 0.0
    %5348 = vmatprep.subr.mxu0 0.0
    %5349 = vmatpush1.msra.mxu0 0.0
    %5350 = vmatprep.subr.mxu0 0.0
    %5351 = vmatpush1.msra.mxu0 0.0
    %5352 = vmatprep.subr.mxu0 0.0
    %5353 = vmatpush1.msra.mxu0 0.0
    %5354 = vmatprep.subr.mxu0 0.0
    %5355 = vmatpush1.msra.mxu0 0.0
    %5356 = vmatprep.subr.mxu0 0.0
    %5357 = vmatpush1.msra.mxu0 0.0
    %5358 = vmatprep.subr.mxu0 0.0
    %5359 = vmatpush1.msra.mxu0 0.0
    %5360 = vmatprep.subr.mxu0 0.0
    %5361 = vmatpush1.msra.mxu0 0.0
    %5362 = vmatprep.subr.mxu0 0.0
    %5363 = vmatpush1.msra.mxu0 0.0
    %5364 = vmatprep.subr.mxu0 0.0
    %5365 = vmatpush1.msra.mxu0 0.0
    %5366 = vmatprep.subr.mxu0 0.0
    %5367 = vmatpush1.msra.mxu0 0.0
    %5368 = vmatprep.subr.mxu0 0.0
    %5369 = vmatpush1.msra.mxu0 0.0
    %5370 = vmatprep.subr.mxu0 0.0
    %5371 = vmatpush1.msra.mxu0 0.0
    %5372 = vmatprep.subr.mxu0 0.0
    %5373 = vmatpush1.msra.mxu0 0.0
    %5374 = vmatprep.subr.mxu0 0.0
    %5375 = vmatpush1.msra.mxu0 0.0
    %5376 = vmatprep.subr.mxu0 0.0
    %5377 = vmatpush1.msra.mxu0 0.0
    %5378 = vmatprep.subr.mxu0 0.0
    %5379 = vmatpush1.msra.mxu0 0.0
    %5380 = vmatprep.subr.mxu0 0.0
    %5381 = vmatpush1.msra.mxu0 0.0
    %5382 = vmatprep.subr.mxu0 0.0
    %5383 = vmatpush1.msra.mxu0 0.0
    %5384 = vmatprep.subr.mxu0 0.0
    %5385 = vmatpush1.msra.mxu0 0.0
    %5386 = vmatprep.subr.mxu0 0.0
    %5387 = vmatpush1.msra.mxu0 0.0
    %5388 = vmatprep.subr.mxu0 0.0
    %5389 = vmatpush1.msra.mxu0 0.0
    %5390 = vmatprep.subr.mxu0 0.0
    %5391 = vmatpush1.msra.mxu0 0.0
    %5392 = vmatprep.subr.mxu0 0.0
    %5393 = vmatpush1.msra.mxu0 0.0
    %5394 = vmatprep.subr.mxu0 0.0
    %5395 = vmatpush1.msra.mxu0 0.0
    %5396 = vmatprep.subr.mxu0 0.0
    %5397 = vmatpush1.msra.mxu0 0.0
    %5398 = vmatprep.subr.mxu0 0.0
    %5399 = vmatpush1.msra.mxu0 0.0
    %5400 = vmatprep.subr.mxu0 0.0
    %5401 = vmatpush1.msra.mxu0 0.0
    %5402 = vmatprep.subr.mxu0 0.0
    %5403 = vmatpush1.msra.mxu0 0.0
    %5404 = vmatprep.mubr.f32.mxu0 0.0
    %v5405 = vand.u32 %v5337, 4294901760
    %v5406 = vsub.f32 %v5337, %v5405
    %v5407 = vand.u32 %v5406, 4294901760
    %v5408 = vsub.f32 %v5406, %v5407
    %v5409 = vand.u32 %v5408, 4294901760
    %5410 = vmatmul.mubr.f32.gmra.mrb[0].mxu0 %v5409
    %v5411 = vpop.f32.mrb[0].mxu0
    %v5412 = vadd.f32 0.0, %v5411
    %v5413 = vpop.f32.mrb[0].mxu0
    %5414 = vdwg.mxu0
    %5415 = vmatprep.subr.mxu0 0.0
    %v5416 = vand.u32 %v1176, 4294901760
    %v5417 = vsub.f32 %v1176, %v5416
    %v5418 = vand.u32 %v5417, 4294901760
    %v5419 = vsub.f32 %v5417, %v5418
    %v5420 = vand.u32 %v5419, 4294901760
    %5421 = vmatpush1.msra.mxu0 %v5420
    %5422 = vmatprep.subr.mxu0 0.0
    %5423 = vmatpush1.msra.mxu0 0.0
    %5424 = vmatprep.subr.mxu0 0.0
    %5425 = vmatpush1.msra.mxu0 0.0
    %5426 = vmatprep.subr.mxu0 0.0
    %5427 = vmatpush1.msra.mxu0 0.0
    %5428 = vmatprep.subr.mxu0 0.0
    %5429 = vmatpush1.msra.mxu0 0.0
    %5430 = vmatprep.subr.mxu0 0.0
    %5431 = vmatpush1.msra.mxu0 0.0
    %5432 = vmatprep.subr.mxu0 0.0
    %5433 = vmatpush1.msra.mxu0 0.0
    %5434 = vmatprep.subr.mxu0 0.0
    %5435 = vmatpush1.msra.mxu0 0.0
    %5436 = vmatprep.subr.mxu0 0.0
    %5437 = vmatpush1.msra.mxu0 0.0
    %5438 = vmatprep.subr.mxu0 0.0
    %5439 = vmatpush1.msra.mxu0 0.0
    %5440 = vmatprep.subr.mxu0 0.0
    %5441 = vmatpush1.msra.mxu0 0.0
    %5442 = vmatprep.subr.mxu0 0.0
    %5443 = vmatpush1.msra.mxu0 0.0
    %5444 = vmatprep.subr.mxu0 0.0
    %5445 = vmatpush1.msra.mxu0 0.0
    %5446 = vmatprep.subr.mxu0 0.0
    %5447 = vmatpush1.msra.mxu0 0.0
    %5448 = vmatprep.subr.mxu0 0.0
    %5449 = vmatpush1.msra.mxu0 0.0
    %5450 = vmatprep.subr.mxu0 0.0
    %5451 = vmatpush1.msra.mxu0 0.0
    %5452 = vmatprep.subr.mxu0 0.0
    %5453 = vmatpush1.msra.mxu0 0.0
    %5454 = vmatprep.subr.mxu0 0.0
    %5455 = vmatpush1.msra.mxu0 0.0
    %5456 = vmatprep.subr.mxu0 0.0
    %5457 = vmatpush1.msra.mxu0 0.0
    %5458 = vmatprep.subr.mxu0 0.0
    %5459 = vmatpush1.msra.mxu0 0.0
    %5460 = vmatprep.subr.mxu0 0.0
    %5461 = vmatpush1.msra.mxu0 0.0
    %5462 = vmatprep.subr.mxu0 0.0
    %5463 = vmatpush1.msra.mxu0 0.0
    %5464 = vmatprep.subr.mxu0 0.0
    %5465 = vmatpush1.msra.mxu0 0.0
    %5466 = vmatprep.subr.mxu0 0.0
    %5467 = vmatpush1.msra.mxu0 0.0
    %5468 = vmatprep.subr.mxu0 0.0
    %5469 = vmatpush1.msra.mxu0 0.0
    %5470 = vmatprep.subr.mxu0 0.0
    %5471 = vmatpush1.msra.mxu0 0.0
    %5472 = vmatprep.subr.mxu0 0.0
    %5473 = vmatpush1.msra.mxu0 0.0
    %5474 = vmatprep.subr.mxu0 0.0
    %5475 = vmatpush1.msra.mxu0 0.0
    %5476 = vmatprep.subr.mxu0 0.0
    %5477 = vmatpush1.msra.mxu0 0.0
    %5478 = vmatprep.subr.mxu0 0.0
    %5479 = vmatpush1.msra.mxu0 0.0
    %5480 = vmatprep.subr.mxu0 0.0
    %5481 = vmatpush1.msra.mxu0 0.0
    %5482 = vmatprep.subr.mxu0 0.0
    %5483 = vmatpush1.msra.mxu0 0.0
    %5484 = vmatprep.mubr.f32.mxu0 0.0
    %v5485 = vand.u32 %v5337, 4294901760
    %5486 = vmatmul.mubr.f32.gmra.mrb[0].mxu0 %v5485
    %v5487 = vpop.f32.mrb[0].mxu0
    %v5488 = vadd.f32 %v5412, %v5487
    %v5489 = vpop.f32.mrb[0].mxu0
    %5490 = vdwg.mxu0
    %5491 = vmatprep.subr.mxu0 0.0
    %v5492 = vand.u32 %v1176, 4294901760
    %v5493 = vsub.f32 %v1176, %v5492
    %5494 = vmatpush1.msra.mxu0 %v5493
    %5495 = vmatprep.subr.mxu0 0.0
    %5496 = vmatpush1.msra.mxu0 0.0
    %5497 = vmatprep.subr.mxu0 0.0
    %5498 = vmatpush1.msra.mxu0 0.0
    %5499 = vmatprep.subr.mxu0 0.0
    %5500 = vmatpush1.msra.mxu0 0.0
    %5501 = vmatprep.subr.mxu0 0.0
    %5502 = vmatpush1.msra.mxu0 0.0
    %5503 = vmatprep.subr.mxu0 0.0
    %5504 = vmatpush1.msra.mxu0 0.0
    %5505 = vmatprep.subr.mxu0 0.0
    %5506 = vmatpush1.msra.mxu0 0.0
    %5507 = vmatprep.subr.mxu0 0.0
    %5508 = vmatpush1.msra.mxu0 0.0
    %5509 = vmatprep.subr.mxu0 0.0
    %5510 = vmatpush1.msra.mxu0 0.0
    %5511 = vmatprep.subr.mxu0 0.0
    %5512 = vmatpush1.msra.mxu0 0.0
    %5513 = vmatprep.subr.mxu0 0.0
    %5514 = vmatpush1.msra.mxu0 0.0
    %5515 = vmatprep.subr.mxu0 0.0
    %5516 = vmatpush1.msra.mxu0 0.0
    %5517 = vmatprep.subr.mxu0 0.0
    %5518 = vmatpush1.msra.mxu0 0.0
    %5519 = vmatprep.subr.mxu0 0.0
    %5520 = vmatpush1.msra.mxu0 0.0
    %5521 = vmatprep.subr.mxu0 0.0
    %5522 = vmatpush1.msra.mxu0 0.0
    %5523 = vmatprep.subr.mxu0 0.0
    %5524 = vmatpush1.msra.mxu0 0.0
    %5525 = vmatprep.subr.mxu0 0.0
    %5526 = vmatpush1.msra.mxu0 0.0
    %5527 = vmatprep.subr.mxu0 0.0
    %5528 = vmatpush1.msra.mxu0 0.0
    %5529 = vmatprep.subr.mxu0 0.0
    %5530 = vmatpush1.msra.mxu0 0.0
    %5531 = vmatprep.subr.mxu0 0.0
    %5532 = vmatpush1.msra.mxu0 0.0
    %5533 = vmatprep.subr.mxu0 0.0
    %5534 = vmatpush1.msra.mxu0 0.0
    %5535 = vmatprep.subr.mxu0 0.0
    %5536 = vmatpush1.msra.mxu0 0.0
    %5537 = vmatprep.subr.mxu0 0.0
    %5538 = vmatpush1.msra.mxu0 0.0
    %5539 = vmatprep.subr.mxu0 0.0
    %5540 = vmatpush1.msra.mxu0 0.0
    %5541 = vmatprep.subr.mxu0 0.0
    %5542 = vmatpush1.msra.mxu0 0.0
    %5543 = vmatprep.subr.mxu0 0.0
    %5544 = vmatpush1.msra.mxu0 0.0
    %5545 = vmatprep.subr.mxu0 0.0
    %5546 = vmatpush1.msra.mxu0 0.0
    %5547 = vmatprep.subr.mxu0 0.0
    %5548 = vmatpush1.msra.mxu0 0.0
    %5549 = vmatprep.subr.mxu0 0.0
    %5550 = vmatpush1.msra.mxu0 0.0
    %5551 = vmatprep.subr.mxu0 0.0
    %5552 = vmatpush1.msra.mxu0 0.0
    %5553 = vmatprep.subr.mxu0 0.0
    %5554 = vmatpush1.msra.mxu0 0.0
    %5555 = vmatprep.subr.mxu0 0.0
    %5556 = vmatpush1.msra.mxu0 0.0
    %5557 = vmatprep.mubr.f32.mxu0 0.0
    %v5558 = vand.u32 %v5337, 4294901760
    %v5559 = vsub.f32 %v5337, %v5558
    %5560 = vmatmul.mubr.f32.gmra.mrb[0].mxu0 %v5559
    %v5561 = vpop.f32.mrb[0].mxu0
    %v5562 = vadd.f32 %v5488, %v5561
    %v5563 = vpop.f32.mrb[0].mxu0
    %5564 = vdwg.mxu0
    %5565 = vmatprep.subr.mxu0 0.0
    %v5566 = vand.u32 %v1176, 4294901760
    %5567 = vmatpush1.msra.mxu0 %v5566
    %5568 = vmatprep.subr.mxu0 0.0
    %5569 = vmatpush1.msra.mxu0 0.0
    %5570 = vmatprep.subr.mxu0 0.0
    %5571 = vmatpush1.msra.mxu0 0.0
    %5572 = vmatprep.subr.mxu0 0.0
    %5573 = vmatpush1.msra.mxu0 0.0
    %5574 = vmatprep.subr.mxu0 0.0
    %5575 = vmatpush1.msra.mxu0 0.0
    %5576 = vmatprep.subr.mxu0 0.0
    %5577 = vmatpush1.msra.mxu0 0.0
    %5578 = vmatprep.subr.mxu0 0.0
    %5579 = vmatpush1.msra.mxu0 0.0
    %5580 = vmatprep.subr.mxu0 0.0
    %5581 = vmatpush1.msra.mxu0 0.0
    %5582 = vmatprep.subr.mxu0 0.0
    %5583 = vmatpush1.msra.mxu0 0.0
    %5584 = vmatprep.subr.mxu0 0.0
    %5585 = vmatpush1.msra.mxu0 0.0
    %5586 = vmatprep.subr.mxu0 0.0
    %5587 = vmatpush1.msra.mxu0 0.0
    %5588 = vmatprep.subr.mxu0 0.0
    %5589 = vmatpush1.msra.mxu0 0.0
    %5590 = vmatprep.subr.mxu0 0.0
    %5591 = vmatpush1.msra.mxu0 0.0
    %5592 = vmatprep.subr.mxu0 0.0
    %5593 = vmatpush1.msra.mxu0 0.0
    %5594 = vmatprep.subr.mxu0 0.0
    %5595 = vmatpush1.msra.mxu0 0.0
    %5596 = vmatprep.subr.mxu0 0.0
    %5597 = vmatpush1.msra.mxu0 0.0
    %5598 = vmatprep.subr.mxu0 0.0
    %5599 = vmatpush1.msra.mxu0 0.0
    %5600 = vmatprep.subr.mxu0 0.0
    %5601 = vmatpush1.msra.mxu0 0.0
    %5602 = vmatprep.subr.mxu0 0.0
    %5603 = vmatpush1.msra.mxu0 0.0
    %5604 = vmatprep.subr.mxu0 0.0
    %5605 = vmatpush1.msra.mxu0 0.0
    %5606 = vmatprep.subr.mxu0 0.0
    %5607 = vmatpush1.msra.mxu0 0.0
    %5608 = vmatprep.subr.mxu0 0.0
    %5609 = vmatpush1.msra.mxu0 0.0
    %5610 = vmatprep.subr.mxu0 0.0
    %5611 = vmatpush1.msra.mxu0 0.0
    %5612 = vmatprep.subr.mxu0 0.0
    %5613 = vmatpush1.msra.mxu0 0.0
    %5614 = vmatprep.subr.mxu0 0.0
    %5615 = vmatpush1.msra.mxu0 0.0
    %5616 = vmatprep.subr.mxu0 0.0
    %5617 = vmatpush1.msra.mxu0 0.0
    %5618 = vmatprep.subr.mxu0 0.0
    %5619 = vmatpush1.msra.mxu0 0.0
    %5620 = vmatprep.subr.mxu0 0.0
    %5621 = vmatpush1.msra.mxu0 0.0
    %5622 = vmatprep.subr.mxu0 0.0
    %5623 = vmatpush1.msra.mxu0 0.0
    %5624 = vmatprep.subr.mxu0 0.0
    %5625 = vmatpush1.msra.mxu0 0.0
    %5626 = vmatprep.subr.mxu0 0.0
    %5627 = vmatpush1.msra.mxu0 0.0
    %5628 = vmatprep.subr.mxu0 0.0
    %5629 = vmatpush1.msra.mxu0 0.0
    %5630 = vmatprep.mubr.f32.mxu0 0.0
    %v5631 = vand.u32 %v5337, 4294901760
    %v5632 = vsub.f32 %v5337, %v5631
    %v5633 = vand.u32 %v5632, 4294901760
    %5634 = vmatmul.mubr.f32.gmra.mrb[0].mxu0 %v5633
    %v5635 = vpop.f32.mrb[0].mxu0
    %v5636 = vadd.f32 %v5562, %v5635
    %v5637 = vpop.f32.mrb[0].mxu0
    %5638 = vdwg.mxu0
    %5639 = vmatprep.subr.mxu0 0.0
    %v5640 = vand.u32 %v1176, 4294901760
    %v5641 = vsub.f32 %v1176, %v5640
    %v5642 = vand.u32 %v5641, 4294901760
    %5643 = vmatpush1.msra.mxu0 %v5642
    %5644 = vmatprep.subr.mxu0 0.0
    %5645 = vmatpush1.msra.mxu0 0.0
    %5646 = vmatprep.subr.mxu0 0.0
    %5647 = vmatpush1.msra.mxu0 0.0
    %5648 = vmatprep.subr.mxu0 0.0
    %5649 = vmatpush1.msra.mxu0 0.0
    %5650 = vmatprep.subr.mxu0 0.0
    %5651 = vmatpush1.msra.mxu0 0.0
    %5652 = vmatprep.subr.mxu0 0.0
    %5653 = vmatpush1.msra.mxu0 0.0
    %5654 = vmatprep.subr.mxu0 0.0
    %5655 = vmatpush1.msra.mxu0 0.0
    %5656 = vmatprep.subr.mxu0 0.0
    %5657 = vmatpush1.msra.mxu0 0.0
    %5658 = vmatprep.subr.mxu0 0.0
    %5659 = vmatpush1.msra.mxu0 0.0
    %5660 = vmatprep.subr.mxu0 0.0
    %5661 = vmatpush1.msra.mxu0 0.0
    %5662 = vmatprep.subr.mxu0 0.0
    %5663 = vmatpush1.msra.mxu0 0.0
    %5664 = vmatprep.subr.mxu0 0.0
    %5665 = vmatpush1.msra.mxu0 0.0
    %5666 = vmatprep.subr.mxu0 0.0
    %5667 = vmatpush1.msra.mxu0 0.0
    %5668 = vmatprep.subr.mxu0 0.0
    %5669 = vmatpush1.msra.mxu0 0.0
    %5670 = vmatprep.subr.mxu0 0.0
    %5671 = vmatpush1.msra.mxu0 0.0
    %5672 = vmatprep.subr.mxu0 0.0
    %5673 = vmatpush1.msra.mxu0 0.0
    %5674 = vmatprep.subr.mxu0 0.0
    %5675 = vmatpush1.msra.mxu0 0.0
    %5676 = vmatprep.subr.mxu0 0.0
    %5677 = vmatpush1.msra.mxu0 0.0
    %5678 = vmatprep.subr.mxu0 0.0
    %5679 = vmatpush1.msra.mxu0 0.0
    %5680 = vmatprep.subr.mxu0 0.0
    %5681 = vmatpush1.msra.mxu0 0.0
    %5682 = vmatprep.subr.mxu0 0.0
    %5683 = vmatpush1.msra.mxu0 0.0
    %5684 = vmatprep.subr.mxu0 0.0
    %5685 = vmatpush1.msra.mxu0 0.0
    %5686 = vmatprep.subr.mxu0 0.0
    %5687 = vmatpush1.msra.mxu0 0.0
    %5688 = vmatprep.subr.mxu0 0.0
    %5689 = vmatpush1.msra.mxu0 0.0
    %5690 = vmatprep.subr.mxu0 0.0
    %5691 = vmatpush1.msra.mxu0 0.0
    %5692 = vmatprep.subr.mxu0 0.0
    %5693 = vmatpush1.msra.mxu0 0.0
    %5694 = vmatprep.subr.mxu0 0.0
    %5695 = vmatpush1.msra.mxu0 0.0
    %5696 = vmatprep.subr.mxu0 0.0
    %5697 = vmatpush1.msra.mxu0 0.0
    %5698 = vmatprep.subr.mxu0 0.0
    %5699 = vmatpush1.msra.mxu0 0.0
    %5700 = vmatprep.subr.mxu0 0.0
    %5701 = vmatpush1.msra.mxu0 0.0
    %5702 = vmatprep.subr.mxu0 0.0
    %5703 = vmatpush1.msra.mxu0 0.0
    %5704 = vmatprep.subr.mxu0 0.0
    %5705 = vmatpush1.msra.mxu0 0.0
    %5706 = vmatprep.mubr.f32.mxu0 0.0
    %v5707 = vand.u32 %v5337, 4294901760
    %5708 = vmatmul.mubr.f32.gmra.mrb[0].mxu0 %v5707
    %v5709 = vpop.f32.mrb[0].mxu0
    %v5710 = vadd.f32 %v5636, %v5709
    %v5711 = vpop.f32.mrb[0].mxu0
    %5712 = vdwg.mxu0
    %5713 = vmatprep.subr.mxu0 0.0
    %v5714 = vand.u32 %v1176, 4294901760
    %5715 = vmatpush1.msra.mxu0 %v5714
    %5716 = vmatprep.subr.mxu0 0.0
    %5717 = vmatpush1.msra.mxu0 0.0
    %5718 = vmatprep.subr.mxu0 0.0
    %5719 = vmatpush1.msra.mxu0 0.0
    %5720 = vmatprep.subr.mxu0 0.0
    %5721 = vmatpush1.msra.mxu0 0.0
    %5722 = vmatprep.subr.mxu0 0.0
    %5723 = vmatpush1.msra.mxu0 0.0
    %5724 = vmatprep.subr.mxu0 0.0
    %5725 = vmatpush1.msra.mxu0 0.0
    %5726 = vmatprep.subr.mxu0 0.0
    %5727 = vmatpush1.msra.mxu0 0.0
    %5728 = vmatprep.subr.mxu0 0.0
    %5729 = vmatpush1.msra.mxu0 0.0
    %5730 = vmatprep.subr.mxu0 0.0
    %5731 = vmatpush1.msra.mxu0 0.0
    %5732 = vmatprep.subr.mxu0 0.0
    %5733 = vmatpush1.msra.mxu0 0.0
    %5734 = vmatprep.subr.mxu0 0.0
    %5735 = vmatpush1.msra.mxu0 0.0
    %5736 = vmatprep.subr.mxu0 0.0
    %5737 = vmatpush1.msra.mxu0 0.0
    %5738 = vmatprep.subr.mxu0 0.0
    %5739 = vmatpush1.msra.mxu0 0.0
    %5740 = vmatprep.subr.mxu0 0.0
    %5741 = vmatpush1.msra.mxu0 0.0
    %5742 = vmatprep.subr.mxu0 0.0
    %5743 = vmatpush1.msra.mxu0 0.0
    %5744 = vmatprep.subr.mxu0 0.0
    %5745 = vmatpush1.msra.mxu0 0.0
    %5746 = vmatprep.subr.mxu0 0.0
    %5747 = vmatpush1.msra.mxu0 0.0
    %5748 = vmatprep.subr.mxu0 0.0
    %5749 = vmatpush1.msra.mxu0 0.0
    %5750 = vmatprep.subr.mxu0 0.0
    %5751 = vmatpush1.msra.mxu0 0.0
    %5752 = vmatprep.subr.mxu0 0.0
    %5753 = vmatpush1.msra.mxu0 0.0
    %5754 = vmatprep.subr.mxu0 0.0
    %5755 = vmatpush1.msra.mxu0 0.0
    %5756 = vmatprep.subr.mxu0 0.0
    %5757 = vmatpush1.msra.mxu0 0.0
    %5758 = vmatprep.subr.mxu0 0.0
    %5759 = vmatpush1.msra.mxu0 0.0
    %5760 = vmatprep.subr.mxu0 0.0
    %5761 = vmatpush1.msra.mxu0 0.0
    %5762 = vmatprep.subr.mxu0 0.0
    %5763 = vmatpush1.msra.mxu0 0.0
    %5764 = vmatprep.subr.mxu0 0.0
    %5765 = vmatpush1.msra.mxu0 0.0
    %5766 = vmatprep.subr.mxu0 0.0
    %5767 = vmatpush1.msra.mxu0 0.0
    %5768 = vmatprep.subr.mxu0 0.0
    %5769 = vmatpush1.msra.mxu0 0.0
    %5770 = vmatprep.subr.mxu0 0.0
    %5771 = vmatpush1.msra.mxu0 0.0
    %5772 = vmatprep.subr.mxu0 0.0
    %5773 = vmatpush1.msra.mxu0 0.0
    %5774 = vmatprep.subr.mxu0 0.0
    %5775 = vmatpush1.msra.mxu0 0.0
    %5776 = vmatprep.subr.mxu0 0.0
    %5777 = vmatpush1.msra.mxu0 0.0
    %5778 = vmatprep.mubr.f32.mxu0 0.0
    %v5779 = vand.u32 %v5337, 4294901760
    %5780 = vmatmul.mubr.f32.gmra.mrb[0].mxu0 %v5779
    %v5781 = vpop.f32.mrb[0].mxu0
    %v5782 = vadd.f32 %v5710, %v5781
    %v5783 = vpop.f32.mrb[0].mxu0
    %5784 = vdwg.mxu0
    %5785 = vst.msk [vmem:[#allocation2 + $0x8] sm:$0xff] %vm52, %v5782
    %5786 = vrot.lane.b32.xlu0 %v647, 96
    %v5787 = vpop.permute.xlu0 %5786
    %5788 = vrot.lane.b32.xlu0 %v649, 96
    %v5789 = vpop.permute.xlu0 %5788
    %v5790 = vsel %vm52, %v5787, 0
    %v5792 = vsel %vm52, %v5789, 0
    %5794 = vmatprep.subr.mxu0 0.0
    %v5795 = vand.u32 %v5792, 4294901760
    %5796 = vmatpush1.xpose.msra.mxu0 %v5795
    %5797 = vmatprep.subr.mxu0 0.0
    %5798 = vmatpush1.xpose.msra.mxu0 0.0
    %5799 = vmatprep.subr.mxu0 0.0
    %5800 = vmatpush1.xpose.msra.mxu0 0.0
    %5801 = vmatprep.subr.mxu0 0.0
    %5802 = vmatpush1.xpose.msra.mxu0 0.0
    %5803 = vmatprep.subr.mxu0 0.0
    %5804 = vmatpush1.xpose.msra.mxu0 0.0
    %5805 = vmatprep.subr.mxu0 0.0
    %5806 = vmatpush1.xpose.msra.mxu0 0.0
    %5807 = vmatprep.subr.mxu0 0.0
    %5808 = vmatpush1.xpose.msra.mxu0 0.0
    %5809 = vmatprep.subr.mxu0 0.0
    %5810 = vmatpush1.xpose.msra.mxu0 0.0
    %5811 = vmatprep.subr.mxu0 0.0
    %5812 = vmatpush1.xpose.msra.mxu0 0.0
    %5813 = vmatprep.subr.mxu0 0.0
    %5814 = vmatpush1.xpose.msra.mxu0 0.0
    %5815 = vmatprep.subr.mxu0 0.0
    %5816 = vmatpush1.xpose.msra.mxu0 0.0
    %5817 = vmatprep.subr.mxu0 0.0
    %5818 = vmatpush1.xpose.msra.mxu0 0.0
    %5819 = vmatprep.subr.mxu0 0.0
    %5820 = vmatpush1.xpose.msra.mxu0 0.0
    %5821 = vmatprep.subr.mxu0 0.0
    %5822 = vmatpush1.xpose.msra.mxu0 0.0
    %5823 = vmatprep.subr.mxu0 0.0
    %5824 = vmatpush1.xpose.msra.mxu0 0.0
    %5825 = vmatprep.subr.mxu0 0.0
    %5826 = vmatpush1.xpose.msra.mxu0 0.0
    %5827 = vmatprep.subr.mxu0 0.0
    %5828 = vmatpush1.xpose.msra.mxu0 0.0
    %5829 = vmatprep.subr.mxu0 0.0
    %5830 = vmatpush1.xpose.msra.mxu0 0.0
    %5831 = vmatprep.subr.mxu0 0.0
    %5832 = vmatpush1.xpose.msra.mxu0 0.0
    %5833 = vmatprep.subr.mxu0 0.0
    %5834 = vmatpush1.xpose.msra.mxu0 0.0
    %5835 = vmatprep.subr.mxu0 0.0
    %5836 = vmatpush1.xpose.msra.mxu0 0.0
    %5837 = vmatprep.subr.mxu0 0.0
    %5838 = vmatpush1.xpose.msra.mxu0 0.0
    %5839 = vmatprep.subr.mxu0 0.0
    %5840 = vmatpush1.xpose.msra.mxu0 0.0
    %5841 = vmatprep.subr.mxu0 0.0
    %5842 = vmatpush1.xpose.msra.mxu0 0.0
    %5843 = vmatprep.subr.mxu0 0.0
    %5844 = vmatpush1.xpose.msra.mxu0 0.0
    %5845 = vmatprep.subr.mxu0 0.0
    %5846 = vmatpush1.xpose.msra.mxu0 0.0
    %5847 = vmatprep.subr.mxu0 0.0
    %5848 = vmatpush1.xpose.msra.mxu0 0.0
    %5849 = vmatprep.subr.mxu0 0.0
    %5850 = vmatpush1.xpose.msra.mxu0 0.0
    %5851 = vmatprep.subr.mxu0 0.0
    %5852 = vmatpush1.xpose.msra.mxu0 0.0
    %5853 = vmatprep.subr.mxu0 0.0
    %5854 = vmatpush1.xpose.msra.mxu0 0.0
    %5855 = vmatprep.subr.mxu0 0.0
    %5856 = vmatpush1.xpose.msra.mxu0 0.0
    %5857 = vmatprep.subr.mxu0 0.0
    %5858 = vmatpush1.xpose.msra.mxu0 0.0
    %5859 = vmatprep.mubr.f32.mxu0 0.0
    %v5860 = vand.u32 %v5790, 4294901760
    %v5861 = vsub.f32 %v5790, %v5860
    %v5862 = vand.u32 %v5861, 4294901760
    %v5863 = vsub.f32 %v5861, %v5862
    %v5864 = vand.u32 %v5863, 4294901760
    %5865 = vmatmul.mubr.f32.gmra.mrb[0].mxu0 %v5864
    %v5866 = vpop.f32.mrb[0].mxu0
    %v5867 = vadd.f32 0.0, %v5866
    %v5868 = vpop.f32.mrb[0].mxu0
    %5869 = vdwg.mxu0
    %5870 = vmatprep.subr.mxu0 0.0
    %v5871 = vand.u32 %v5792, 4294901760
    %v5872 = vsub.f32 %v5792, %v5871
    %v5873 = vand.u32 %v5872, 4294901760
    %v5874 = vsub.f32 %v5872, %v5873
    %v5875 = vand.u32 %v5874, 4294901760
    %5876 = vmatpush1.xpose.msra.mxu0 %v5875
    %5877 = vmatprep.subr.mxu0 0.0
    %5878 = vmatpush1.xpose.msra.mxu0 0.0
    %5879 = vmatprep.subr.mxu0 0.0
    %5880 = vmatpush1.xpose.msra.mxu0 0.0
    %5881 = vmatprep.subr.mxu0 0.0
    %5882 = vmatpush1.xpose.msra.mxu0 0.0
    %5883 = vmatprep.subr.mxu0 0.0
    %5884 = vmatpush1.xpose.msra.mxu0 0.0
    %5885 = vmatprep.subr.mxu0 0.0
    %5886 = vmatpush1.xpose.msra.mxu0 0.0
    %5887 = vmatprep.subr.mxu0 0.0
    %5888 = vmatpush1.xpose.msra.mxu0 0.0
    %5889 = vmatprep.subr.mxu0 0.0
    %5890 = vmatpush1.xpose.msra.mxu0 0.0
    %5891 = vmatprep.subr.mxu0 0.0
    %5892 = vmatpush1.xpose.msra.mxu0 0.0
    %5893 = vmatprep.subr.mxu0 0.0
    %5894 = vmatpush1.xpose.msra.mxu0 0.0
    %5895 = vmatprep.subr.mxu0 0.0
    %5896 = vmatpush1.xpose.msra.mxu0 0.0
    %5897 = vmatprep.subr.mxu0 0.0
    %5898 = vmatpush1.xpose.msra.mxu0 0.0
    %5899 = vmatprep.subr.mxu0 0.0
    %5900 = vmatpush1.xpose.msra.mxu0 0.0
    %5901 = vmatprep.subr.mxu0 0.0
    %5902 = vmatpush1.xpose.msra.mxu0 0.0
    %5903 = vmatprep.subr.mxu0 0.0
    %5904 = vmatpush1.xpose.msra.mxu0 0.0
    %5905 = vmatprep.subr.mxu0 0.0
    %5906 = vmatpush1.xpose.msra.mxu0 0.0
    %5907 = vmatprep.subr.mxu0 0.0
    %5908 = vmatpush1.xpose.msra.mxu0 0.0
    %5909 = vmatprep.subr.mxu0 0.0
    %5910 = vmatpush1.xpose.msra.mxu0 0.0
    %5911 = vmatprep.subr.mxu0 0.0
    %5912 = vmatpush1.xpose.msra.mxu0 0.0
    %5913 = vmatprep.subr.mxu0 0.0
    %5914 = vmatpush1.xpose.msra.mxu0 0.0
    %5915 = vmatprep.subr.mxu0 0.0
    %5916 = vmatpush1.xpose.msra.mxu0 0.0
    %5917 = vmatprep.subr.mxu0 0.0
    %5918 = vmatpush1.xpose.msra.mxu0 0.0
    %5919 = vmatprep.subr.mxu0 0.0
    %5920 = vmatpush1.xpose.msra.mxu0 0.0
    %5921 = vmatprep.subr.mxu0 0.0
    %5922 = vmatpush1.xpose.msra.mxu0 0.0
    %5923 = vmatprep.subr.mxu0 0.0
    %5924 = vmatpush1.xpose.msra.mxu0 0.0
    %5925 = vmatprep.subr.mxu0 0.0
    %5926 = vmatpush1.xpose.msra.mxu0 0.0
    %5927 = vmatprep.subr.mxu0 0.0
    %5928 = vmatpush1.xpose.msra.mxu0 0.0
    %5929 = vmatprep.subr.mxu0 0.0
    %5930 = vmatpush1.xpose.msra.mxu0 0.0
    %5931 = vmatprep.subr.mxu0 0.0
    %5932 = vmatpush1.xpose.msra.mxu0 0.0
    %5933 = vmatprep.subr.mxu0 0.0
    %5934 = vmatpush1.xpose.msra.mxu0 0.0
    %5935 = vmatprep.subr.mxu0 0.0
    %5936 = vmatpush1.xpose.msra.mxu0 0.0
    %5937 = vmatprep.subr.mxu0 0.0
    %5938 = vmatpush1.xpose.msra.mxu0 0.0
    %5939 = vmatprep.mubr.f32.mxu0 0.0
    %v5940 = vand.u32 %v5790, 4294901760
    %5941 = vmatmul.mubr.f32.gmra.mrb[0].mxu0 %v5940
    %v5942 = vpop.f32.mrb[0].mxu0
    %v5943 = vadd.f32 %v5867, %v5942
    %v5944 = vpop.f32.mrb[0].mxu0
    %5945 = vdwg.mxu0
    %5946 = vmatprep.subr.mxu0 0.0
    %v5947 = vand.u32 %v5792, 4294901760
    %v5948 = vsub.f32 %v5792, %v5947
    %5949 = vmatpush1.xpose.msra.mxu0 %v5948
    %5950 = vmatprep.subr.mxu0 0.0
    %5951 = vmatpush1.xpose.msra.mxu0 0.0
    %5952 = vmatprep.subr.mxu0 0.0
    %5953 = vmatpush1.xpose.msra.mxu0 0.0
    %5954 = vmatprep.subr.mxu0 0.0
    %5955 = vmatpush1.xpose.msra.mxu0 0.0
    %5956 = vmatprep.subr.mxu0 0.0
    %5957 = vmatpush1.xpose.msra.mxu0 0.0
    %5958 = vmatprep.subr.mxu0 0.0
    %5959 = vmatpush1.xpose.msra.mxu0 0.0
    %5960 = vmatprep.subr.mxu0 0.0
    %5961 = vmatpush1.xpose.msra.mxu0 0.0
    %5962 = vmatprep.subr.mxu0 0.0
    %5963 = vmatpush1.xpose.msra.mxu0 0.0
    %5964 = vmatprep.subr.mxu0 0.0
    %5965 = vmatpush1.xpose.msra.mxu0 0.0
    %5966 = vmatprep.subr.mxu0 0.0
    %5967 = vmatpush1.xpose.msra.mxu0 0.0
    %5968 = vmatprep.subr.mxu0 0.0
    %5969 = vmatpush1.xpose.msra.mxu0 0.0
    %5970 = vmatprep.subr.mxu0 0.0
    %5971 = vmatpush1.xpose.msra.mxu0 0.0
    %5972 = vmatprep.subr.mxu0 0.0
    %5973 = vmatpush1.xpose.msra.mxu0 0.0
    %5974 = vmatprep.subr.mxu0 0.0
    %5975 = vmatpush1.xpose.msra.mxu0 0.0
    %5976 = vmatprep.subr.mxu0 0.0
    %5977 = vmatpush1.xpose.msra.mxu0 0.0
    %5978 = vmatprep.subr.mxu0 0.0
    %5979 = vmatpush1.xpose.msra.mxu0 0.0
    %5980 = vmatprep.subr.mxu0 0.0
    %5981 = vmatpush1.xpose.msra.mxu0 0.0
    %5982 = vmatprep.subr.mxu0 0.0
    %5983 = vmatpush1.xpose.msra.mxu0 0.0
    %5984 = vmatprep.subr.mxu0 0.0
    %5985 = vmatpush1.xpose.msra.mxu0 0.0
    %5986 = vmatprep.subr.mxu0 0.0
    %5987 = vmatpush1.xpose.msra.mxu0 0.0
    %5988 = vmatprep.subr.mxu0 0.0
    %5989 = vmatpush1.xpose.msra.mxu0 0.0
    %5990 = vmatprep.subr.mxu0 0.0
    %5991 = vmatpush1.xpose.msra.mxu0 0.0
    %5992 = vmatprep.subr.mxu0 0.0
    %5993 = vmatpush1.xpose.msra.mxu0 0.0
    %5994 = vmatprep.subr.mxu0 0.0
    %5995 = vmatpush1.xpose.msra.mxu0 0.0
    %5996 = vmatprep.subr.mxu0 0.0
    %5997 = vmatpush1.xpose.msra.mxu0 0.0
    %5998 = vmatprep.subr.mxu0 0.0
    %5999 = vmatpush1.xpose.msra.mxu0 0.0
    %6000 = vmatprep.subr.mxu0 0.0
    %6001 = vmatpush1.xpose.msra.mxu0 0.0
    %6002 = vmatprep.subr.mxu0 0.0
    %6003 = vmatpush1.xpose.msra.mxu0 0.0
    %6004 = vmatprep.subr.mxu0 0.0
    %6005 = vmatpush1.xpose.msra.mxu0 0.0
    %6006 = vmatprep.subr.mxu0 0.0
    %6007 = vmatpush1.xpose.msra.mxu0 0.0
    %6008 = vmatprep.subr.mxu0 0.0
    %6009 = vmatpush1.xpose.msra.mxu0 0.0
    %6010 = vmatprep.subr.mxu0 0.0
    %6011 = vmatpush1.xpose.msra.mxu0 0.0
    %6012 = vmatprep.mubr.f32.mxu0 0.0
    %v6013 = vand.u32 %v5790, 4294901760
    %v6014 = vsub.f32 %v5790, %v6013
    %6015 = vmatmul.mubr.f32.gmra.mrb[0].mxu0 %v6014
    %v6016 = vpop.f32.mrb[0].mxu0
    %v6017 = vadd.f32 %v5943, %v6016
    %v6018 = vpop.f32.mrb[0].mxu0
    %6019 = vdwg.mxu0
    %6020 = vmatprep.subr.mxu0 0.0
    %v6021 = vand.u32 %v5792, 4294901760
    %6022 = vmatpush1.xpose.msra.mxu0 %v6021
    %6023 = vmatprep.subr.mxu0 0.0
    %6024 = vmatpush1.xpose.msra.mxu0 0.0
    %6025 = vmatprep.subr.mxu0 0.0
    %6026 = vmatpush1.xpose.msra.mxu0 0.0
    %6027 = vmatprep.subr.mxu0 0.0
    %6028 = vmatpush1.xpose.msra.mxu0 0.0
    %6029 = vmatprep.subr.mxu0 0.0
    %6030 = vmatpush1.xpose.msra.mxu0 0.0
    %6031 = vmatprep.subr.mxu0 0.0
    %6032 = vmatpush1.xpose.msra.mxu0 0.0
    %6033 = vmatprep.subr.mxu0 0.0
    %6034 = vmatpush1.xpose.msra.mxu0 0.0
    %6035 = vmatprep.subr.mxu0 0.0
    %6036 = vmatpush1.xpose.msra.mxu0 0.0
    %6037 = vmatprep.subr.mxu0 0.0
    %6038 = vmatpush1.xpose.msra.mxu0 0.0
    %6039 = vmatprep.subr.mxu0 0.0
    %6040 = vmatpush1.xpose.msra.mxu0 0.0
    %6041 = vmatprep.subr.mxu0 0.0
    %6042 = vmatpush1.xpose.msra.mxu0 0.0
    %6043 = vmatprep.subr.mxu0 0.0
    %6044 = vmatpush1.xpose.msra.mxu0 0.0
    %6045 = vmatprep.subr.mxu0 0.0
    %6046 = vmatpush1.xpose.msra.mxu0 0.0
    %6047 = vmatprep.subr.mxu0 0.0
    %6048 = vmatpush1.xpose.msra.mxu0 0.0
    %6049 = vmatprep.subr.mxu0 0.0
    %6050 = vmatpush1.xpose.msra.mxu0 0.0
    %6051 = vmatprep.subr.mxu0 0.0
    %6052 = vmatpush1.xpose.msra.mxu0 0.0
    %6053 = vmatprep.subr.mxu0 0.0
    %6054 = vmatpush1.xpose.msra.mxu0 0.0
    %6055 = vmatprep.subr.mxu0 0.0
    %6056 = vmatpush1.xpose.msra.mxu0 0.0
    %6057 = vmatprep.subr.mxu0 0.0
    %6058 = vmatpush1.xpose.msra.mxu0 0.0
    %6059 = vmatprep.subr.mxu0 0.0
    %6060 = vmatpush1.xpose.msra.mxu0 0.0
    %6061 = vmatprep.subr.mxu0 0.0
    %6062 = vmatpush1.xpose.msra.mxu0 0.0
    %6063 = vmatprep.subr.mxu0 0.0
    %6064 = vmatpush1.xpose.msra.mxu0 0.0
    %6065 = vmatprep.subr.mxu0 0.0
    %6066 = vmatpush1.xpose.msra.mxu0 0.0
    %6067 = vmatprep.subr.mxu0 0.0
    %6068 = vmatpush1.xpose.msra.mxu0 0.0
    %6069 = vmatprep.subr.mxu0 0.0
    %6070 = vmatpush1.xpose.msra.mxu0 0.0
    %6071 = vmatprep.subr.mxu0 0.0
    %6072 = vmatpush1.xpose.msra.mxu0 0.0
    %6073 = vmatprep.subr.mxu0 0.0
    %6074 = vmatpush1.xpose.msra.mxu0 0.0
    %6075 = vmatprep.subr.mxu0 0.0
    %6076 = vmatpush1.xpose.msra.mxu0 0.0
    %6077 = vmatprep.subr.mxu0 0.0
    %6078 = vmatpush1.xpose.msra.mxu0 0.0
    %6079 = vmatprep.subr.mxu0 0.0
    %6080 = vmatpush1.xpose.msra.mxu0 0.0
    %6081 = vmatprep.subr.mxu0 0.0
    %6082 = vmatpush1.xpose.msra.mxu0 0.0
    %6083 = vmatprep.subr.mxu0 0.0
    %6084 = vmatpush1.xpose.msra.mxu0 0.0
    %6085 = vmatprep.mubr.f32.mxu0 0.0
    %v6086 = vand.u32 %v5790, 4294901760
    %v6087 = vsub.f32 %v5790, %v6086
    %v6088 = vand.u32 %v6087, 4294901760
    %6089 = vmatmul.mubr.f32.gmra.mrb[0].mxu0 %v6088
    %v6090 = vpop.f32.mrb[0].mxu0
    %v6091 = vadd.f32 %v6017, %v6090
    %v6092 = vpop.f32.mrb[0].mxu0
    %6093 = vdwg.mxu0
    %6094 = vmatprep.subr.mxu0 0.0
    %v6095 = vand.u32 %v5792, 4294901760
    %v6096 = vsub.f32 %v5792, %v6095
    %v6097 = vand.u32 %v6096, 4294901760
    %6098 = vmatpush1.xpose.msra.mxu0 %v6097
    %6099 = vmatprep.subr.mxu0 0.0
    %6100 = vmatpush1.xpose.msra.mxu0 0.0
    %6101 = vmatprep.subr.mxu0 0.0
    %6102 = vmatpush1.xpose.msra.mxu0 0.0
    %6103 = vmatprep.subr.mxu0 0.0
    %6104 = vmatpush1.xpose.msra.mxu0 0.0
    %6105 = vmatprep.subr.mxu0 0.0
    %6106 = vmatpush1.xpose.msra.mxu0 0.0
    %6107 = vmatprep.subr.mxu0 0.0
    %6108 = vmatpush1.xpose.msra.mxu0 0.0
    %6109 = vmatprep.subr.mxu0 0.0
    %6110 = vmatpush1.xpose.msra.mxu0 0.0
    %6111 = vmatprep.subr.mxu0 0.0
    %6112 = vmatpush1.xpose.msra.mxu0 0.0
    %6113 = vmatprep.subr.mxu0 0.0
    %6114 = vmatpush1.xpose.msra.mxu0 0.0
    %6115 = vmatprep.subr.mxu0 0.0
    %6116 = vmatpush1.xpose.msra.mxu0 0.0
    %6117 = vmatprep.subr.mxu0 0.0
    %6118 = vmatpush1.xpose.msra.mxu0 0.0
    %6119 = vmatprep.subr.mxu0 0.0
    %6120 = vmatpush1.xpose.msra.mxu0 0.0
    %6121 = vmatprep.subr.mxu0 0.0
    %6122 = vmatpush1.xpose.msra.mxu0 0.0
    %6123 = vmatprep.subr.mxu0 0.0
    %6124 = vmatpush1.xpose.msra.mxu0 0.0
    %6125 = vmatprep.subr.mxu0 0.0
    %6126 = vmatpush1.xpose.msra.mxu0 0.0
    %6127 = vmatprep.subr.mxu0 0.0
    %6128 = vmatpush1.xpose.msra.mxu0 0.0
    %6129 = vmatprep.subr.mxu0 0.0
    %6130 = vmatpush1.xpose.msra.mxu0 0.0
    %6131 = vmatprep.subr.mxu0 0.0
    %6132 = vmatpush1.xpose.msra.mxu0 0.0
    %6133 = vmatprep.subr.mxu0 0.0
    %6134 = vmatpush1.xpose.msra.mxu0 0.0
    %6135 = vmatprep.subr.mxu0 0.0
    %6136 = vmatpush1.xpose.msra.mxu0 0.0
    %6137 = vmatprep.subr.mxu0 0.0
    %6138 = vmatpush1.xpose.msra.mxu0 0.0
    %6139 = vmatprep.subr.mxu0 0.0
    %6140 = vmatpush1.xpose.msra.mxu0 0.0
    %6141 = vmatprep.subr.mxu0 0.0
    %6142 = vmatpush1.xpose.msra.mxu0 0.0
    %6143 = vmatprep.subr.mxu0 0.0
    %6144 = vmatpush1.xpose.msra.mxu0 0.0
    %6145 = vmatprep.subr.mxu0 0.0
    %6146 = vmatpush1.xpose.msra.mxu0 0.0
    %6147 = vmatprep.subr.mxu0 0.0
    %6148 = vmatpush1.xpose.msra.mxu0 0.0
    %6149 = vmatprep.subr.mxu0 0.0
    %6150 = vmatpush1.xpose.msra.mxu0 0.0
    %6151 = vmatprep.subr.mxu0 0.0
    %6152 = vmatpush1.xpose.msra.mxu0 0.0
    %6153 = vmatprep.subr.mxu0 0.0
    %6154 = vmatpush1.xpose.msra.mxu0 0.0
    %6155 = vmatprep.subr.mxu0 0.0
    %6156 = vmatpush1.xpose.msra.mxu0 0.0
    %6157 = vmatprep.subr.mxu0 0.0
    %6158 = vmatpush1.xpose.msra.mxu0 0.0
    %6159 = vmatprep.subr.mxu0 0.0
    %6160 = vmatpush1.xpose.msra.mxu0 0.0
    %6161 = vmatprep.mubr.f32.mxu0 0.0
    %v6162 = vand.u32 %v5790, 4294901760
    %6163 = vmatmul.mubr.f32.gmra.mrb[0].mxu0 %v6162
    %v6164 = vpop.f32.mrb[0].mxu0
    %v6165 = vadd.f32 %v6091, %v6164
    %v6166 = vpop.f32.mrb[0].mxu0
    %6167 = vdwg.mxu0
    %6168 = vmatprep.subr.mxu0 0.0
    %v6169 = vand.u32 %v5792, 4294901760
    %6170 = vmatpush1.xpose.msra.mxu0 %v6169
    %6171 = vmatprep.subr.mxu0 0.0
    %6172 = vmatpush1.xpose.msra.mxu0 0.0
    %6173 = vmatprep.subr.mxu0 0.0
    %6174 = vmatpush1.xpose.msra.mxu0 0.0
    %6175 = vmatprep.subr.mxu0 0.0
    %6176 = vmatpush1.xpose.msra.mxu0 0.0
    %6177 = vmatprep.subr.mxu0 0.0
    %6178 = vmatpush1.xpose.msra.mxu0 0.0
    %6179 = vmatprep.subr.mxu0 0.0
    %6180 = vmatpush1.xpose.msra.mxu0 0.0
    %6181 = vmatprep.subr.mxu0 0.0
    %6182 = vmatpush1.xpose.msra.mxu0 0.0
    %6183 = vmatprep.subr.mxu0 0.0
    %6184 = vmatpush1.xpose.msra.mxu0 0.0
    %6185 = vmatprep.subr.mxu0 0.0
    %6186 = vmatpush1.xpose.msra.mxu0 0.0
    %6187 = vmatprep.subr.mxu0 0.0
    %6188 = vmatpush1.xpose.msra.mxu0 0.0
    %6189 = vmatprep.subr.mxu0 0.0
    %6190 = vmatpush1.xpose.msra.mxu0 0.0
    %6191 = vmatprep.subr.mxu0 0.0
    %6192 = vmatpush1.xpose.msra.mxu0 0.0
    %6193 = vmatprep.subr.mxu0 0.0
    %6194 = vmatpush1.xpose.msra.mxu0 0.0
    %6195 = vmatprep.subr.mxu0 0.0
    %6196 = vmatpush1.xpose.msra.mxu0 0.0
    %6197 = vmatprep.subr.mxu0 0.0
    %6198 = vmatpush1.xpose.msra.mxu0 0.0
    %6199 = vmatprep.subr.mxu0 0.0
    %6200 = vmatpush1.xpose.msra.mxu0 0.0
    %6201 = vmatprep.subr.mxu0 0.0
    %6202 = vmatpush1.xpose.msra.mxu0 0.0
    %6203 = vmatprep.subr.mxu0 0.0
    %6204 = vmatpush1.xpose.msra.mxu0 0.0
    %6205 = vmatprep.subr.mxu0 0.0
    %6206 = vmatpush1.xpose.msra.mxu0 0.0
    %6207 = vmatprep.subr.mxu0 0.0
    %6208 = vmatpush1.xpose.msra.mxu0 0.0
    %6209 = vmatprep.subr.mxu0 0.0
    %6210 = vmatpush1.xpose.msra.mxu0 0.0
    %6211 = vmatprep.subr.mxu0 0.0
    %6212 = vmatpush1.xpose.msra.mxu0 0.0
    %6213 = vmatprep.subr.mxu0 0.0
    %6214 = vmatpush1.xpose.msra.mxu0 0.0
    %6215 = vmatprep.subr.mxu0 0.0
    %6216 = vmatpush1.xpose.msra.mxu0 0.0
    %6217 = vmatprep.subr.mxu0 0.0
    %6218 = vmatpush1.xpose.msra.mxu0 0.0
    %6219 = vmatprep.subr.mxu0 0.0
    %6220 = vmatpush1.xpose.msra.mxu0 0.0
    %6221 = vmatprep.subr.mxu0 0.0
    %6222 = vmatpush1.xpose.msra.mxu0 0.0
    %6223 = vmatprep.subr.mxu0 0.0
    %6224 = vmatpush1.xpose.msra.mxu0 0.0
    %6225 = vmatprep.subr.mxu0 0.0
    %6226 = vmatpush1.xpose.msra.mxu0 0.0
    %6227 = vmatprep.subr.mxu0 0.0
    %6228 = vmatpush1.xpose.msra.mxu0 0.0
    %6229 = vmatprep.subr.mxu0 0.0
    %6230 = vmatpush1.xpose.msra.mxu0 0.0
    %6231 = vmatprep.subr.mxu0 0.0
    %6232 = vmatpush1.xpose.msra.mxu0 0.0
    %6233 = vmatprep.mubr.f32.mxu0 0.0
    %v6234 = vand.u32 %v5790, 4294901760
    %6235 = vmatmul.mubr.f32.gmra.mrb[0].mxu0 %v6234
    %v6236 = vpop.f32.mrb[0].mxu0
    %v6237 = vadd.f32 %v6165, %v6236
    %v6238 = vpop.f32.mrb[0].mxu0
    %6239 = vdwg.mxu0
    %v6240 = vsel %vm4871, -1e+09, %v6237
    %v6241 = vsel %vm1634, %v6240, -inf
    %6242 = vmax.xlane.f32.xlu0 %v6241
    %v6243 = vpop.xlane.xlu0 %6242
    %v6244 = vsub.f32 %v6240, %v6243
    %v6245 = vmul.f32 %v6244, 1.442695
    %v6246 = vpow.pop %v6245
    %v6247 = vsel %vm1634, %v6246, 0.0
    %6248 = vadd.xlane.f32.xlu0 %v6247
    %v6249 = vpop.xlane.xlu0 %6248
    %v6250 = vrcp.pop %v6249
    %v6251 = vmul.f32 %v6246, %v6250
    %6253 = vrot.lane.b32.xlu0 %v1176, 96
    %v6254 = vpop.permute.xlu0 %6253
    %v6257 = vsel %vm1634, %v6251, 0
    %6259 = vmatprep.subr.mxu0 0.0
    %v6260 = vand.u32 %v6254, 4294901760
    %6261 = vmatpush1.msra.mxu0 %v6260
    %6262 = vmatprep.subr.mxu0 0.0
    %6263 = vmatpush1.msra.mxu0 0.0
    %6264 = vmatprep.subr.mxu0 0.0
    %6265 = vmatpush1.msra.mxu0 0.0
    %6266 = vmatprep.subr.mxu0 0.0
    %6267 = vmatpush1.msra.mxu0 0.0
    %6268 = vmatprep.subr.mxu0 0.0
    %6269 = vmatpush1.msra.mxu0 0.0
    %6270 = vmatprep.subr.mxu0 0.0
    %6271 = vmatpush1.msra.mxu0 0.0
    %6272 = vmatprep.subr.mxu0 0.0
    %6273 = vmatpush1.msra.mxu0 0.0
    %6274 = vmatprep.subr.mxu0 0.0
    %6275 = vmatpush1.msra.mxu0 0.0
    %6276 = vmatprep.subr.mxu0 0.0
    %6277 = vmatpush1.msra.mxu0 0.0
    %6278 = vmatprep.subr.mxu0 0.0
    %6279 = vmatpush1.msra.mxu0 0.0
    %6280 = vmatprep.subr.mxu0 0.0
    %6281 = vmatpush1.msra.mxu0 0.0
    %6282 = vmatprep.subr.mxu0 0.0
    %6283 = vmatpush1.msra.mxu0 0.0
    %6284 = vmatprep.subr.mxu0 0.0
    %6285 = vmatpush1.msra.mxu0 0.0
    %6286 = vmatprep.subr.mxu0 0.0
    %6287 = vmatpush1.msra.mxu0 0.0
    %6288 = vmatprep.subr.mxu0 0.0
    %6289 = vmatpush1.msra.mxu0 0.0
    %6290 = vmatprep.subr.mxu0 0.0
    %6291 = vmatpush1.msra.mxu0 0.0
    %6292 = vmatprep.subr.mxu0 0.0
    %6293 = vmatpush1.msra.mxu0 0.0
    %6294 = vmatprep.subr.mxu0 0.0
    %6295 = vmatpush1.msra.mxu0 0.0
    %6296 = vmatprep.subr.mxu0 0.0
    %6297 = vmatpush1.msra.mxu0 0.0
    %6298 = vmatprep.subr.mxu0 0.0
    %6299 = vmatpush1.msra.mxu0 0.0
    %6300 = vmatprep.subr.mxu0 0.0
    %6301 = vmatpush1.msra.mxu0 0.0
    %6302 = vmatprep.subr.mxu0 0.0
    %6303 = vmatpush1.msra.mxu0 0.0
    %6304 = vmatprep.subr.mxu0 0.0
    %6305 = vmatpush1.msra.mxu0 0.0
    %6306 = vmatprep.subr.mxu0 0.0
    %6307 = vmatpush1.msra.mxu0 0.0
    %6308 = vmatprep.subr.mxu0 0.0
    %6309 = vmatpush1.msra.mxu0 0.0
    %6310 = vmatprep.subr.mxu0 0.0
    %6311 = vmatpush1.msra.mxu0 0.0
    %6312 = vmatprep.subr.mxu0 0.0
    %6313 = vmatpush1.msra.mxu0 0.0
    %6314 = vmatprep.subr.mxu0 0.0
    %6315 = vmatpush1.msra.mxu0 0.0
    %6316 = vmatprep.subr.mxu0 0.0
    %6317 = vmatpush1.msra.mxu0 0.0
    %6318 = vmatprep.subr.mxu0 0.0
    %6319 = vmatpush1.msra.mxu0 0.0
    %6320 = vmatprep.subr.mxu0 0.0
    %6321 = vmatpush1.msra.mxu0 0.0
    %6322 = vmatprep.subr.mxu0 0.0
    %6323 = vmatpush1.msra.mxu0 0.0
    %6324 = vmatprep.mubr.f32.mxu0 0.0
    %v6325 = vand.u32 %v6257, 4294901760
    %v6326 = vsub.f32 %v6257, %v6325
    %v6327 = vand.u32 %v6326, 4294901760
    %v6328 = vsub.f32 %v6326, %v6327
    %v6329 = vand.u32 %v6328, 4294901760
    %6330 = vmatmul.mubr.f32.gmra.mrb[0].mxu0 %v6329
    %v6331 = vpop.f32.mrb[0].mxu0
    %v6332 = vadd.f32 0.0, %v6331
    %v6333 = vpop.f32.mrb[0].mxu0
    %6334 = vdwg.mxu0
    %6335 = vmatprep.subr.mxu0 0.0
    %v6336 = vand.u32 %v6254, 4294901760
    %v6337 = vsub.f32 %v6254, %v6336
    %v6338 = vand.u32 %v6337, 4294901760
    %v6339 = vsub.f32 %v6337, %v6338
    %v6340 = vand.u32 %v6339, 4294901760
    %6341 = vmatpush1.msra.mxu0 %v6340
    %6342 = vmatprep.subr.mxu0 0.0
    %6343 = vmatpush1.msra.mxu0 0.0
    %6344 = vmatprep.subr.mxu0 0.0
    %6345 = vmatpush1.msra.mxu0 0.0
    %6346 = vmatprep.subr.mxu0 0.0
    %6347 = vmatpush1.msra.mxu0 0.0
    %6348 = vmatprep.subr.mxu0 0.0
    %6349 = vmatpush1.msra.mxu0 0.0
    %6350 = vmatprep.subr.mxu0 0.0
    %6351 = vmatpush1.msra.mxu0 0.0
    %6352 = vmatprep.subr.mxu0 0.0
    %6353 = vmatpush1.msra.mxu0 0.0
    %6354 = vmatprep.subr.mxu0 0.0
    %6355 = vmatpush1.msra.mxu0 0.0
    %6356 = vmatprep.subr.mxu0 0.0
    %6357 = vmatpush1.msra.mxu0 0.0
    %6358 = vmatprep.subr.mxu0 0.0
    %6359 = vmatpush1.msra.mxu0 0.0
    %6360 = vmatprep.subr.mxu0 0.0
    %6361 = vmatpush1.msra.mxu0 0.0
    %6362 = vmatprep.subr.mxu0 0.0
    %6363 = vmatpush1.msra.mxu0 0.0
    %6364 = vmatprep.subr.mxu0 0.0
    %6365 = vmatpush1.msra.mxu0 0.0
    %6366 = vmatprep.subr.mxu0 0.0
    %6367 = vmatpush1.msra.mxu0 0.0
    %6368 = vmatprep.subr.mxu0 0.0
    %6369 = vmatpush1.msra.mxu0 0.0
    %6370 = vmatprep.subr.mxu0 0.0
    %6371 = vmatpush1.msra.mxu0 0.0
    %6372 = vmatprep.subr.mxu0 0.0
    %6373 = vmatpush1.msra.mxu0 0.0
    %6374 = vmatprep.subr.mxu0 0.0
    %6375 = vmatpush1.msra.mxu0 0.0
    %6376 = vmatprep.subr.mxu0 0.0
    %6377 = vmatpush1.msra.mxu0 0.0
    %6378 = vmatprep.subr.mxu0 0.0
    %6379 = vmatpush1.msra.mxu0 0.0
    %6380 = vmatprep.subr.mxu0 0.0
    %6381 = vmatpush1.msra.mxu0 0.0
    %6382 = vmatprep.subr.mxu0 0.0
    %6383 = vmatpush1.msra.mxu0 0.0
    %6384 = vmatprep.subr.mxu0 0.0
    %6385 = vmatpush1.msra.mxu0 0.0
    %6386 = vmatprep.subr.mxu0 0.0
    %6387 = vmatpush1.msra.mxu0 0.0
    %6388 = vmatprep.subr.mxu0 0.0
    %6389 = vmatpush1.msra.mxu0 0.0
    %6390 = vmatprep.subr.mxu0 0.0
    %6391 = vmatpush1.msra.mxu0 0.0
    %6392 = vmatprep.subr.mxu0 0.0
    %6393 = vmatpush1.msra.mxu0 0.0
    %6394 = vmatprep.subr.mxu0 0.0
    %6395 = vmatpush1.msra.mxu0 0.0
    %6396 = vmatprep.subr.mxu0 0.0
    %6397 = vmatpush1.msra.mxu0 0.0
    %6398 = vmatprep.subr.mxu0 0.0
    %6399 = vmatpush1.msra.mxu0 0.0
    %6400 = vmatprep.subr.mxu0 0.0
    %6401 = vmatpush1.msra.mxu0 0.0
    %6402 = vmatprep.subr.mxu0 0.0
    %6403 = vmatpush1.msra.mxu0 0.0
    %6404 = vmatprep.mubr.f32.mxu0 0.0
    %v6405 = vand.u32 %v6257, 4294901760
    %6406 = vmatmul.mubr.f32.gmra.mrb[0].mxu0 %v6405
    %v6407 = vpop.f32.mrb[0].mxu0
    %v6408 = vadd.f32 %v6332, %v6407
    %v6409 = vpop.f32.mrb[0].mxu0
    %6410 = vdwg.mxu0
    %6411 = vmatprep.subr.mxu0 0.0
    %v6412 = vand.u32 %v6254, 4294901760
    %v6413 = vsub.f32 %v6254, %v6412
    %6414 = vmatpush1.msra.mxu0 %v6413
    %6415 = vmatprep.subr.mxu0 0.0
    %6416 = vmatpush1.msra.mxu0 0.0
    %6417 = vmatprep.subr.mxu0 0.0
    %6418 = vmatpush1.msra.mxu0 0.0
    %6419 = vmatprep.subr.mxu0 0.0
    %6420 = vmatpush1.msra.mxu0 0.0
    %6421 = vmatprep.subr.mxu0 0.0
    %6422 = vmatpush1.msra.mxu0 0.0
    %6423 = vmatprep.subr.mxu0 0.0
    %6424 = vmatpush1.msra.mxu0 0.0
    %6425 = vmatprep.subr.mxu0 0.0
    %6426 = vmatpush1.msra.mxu0 0.0
    %6427 = vmatprep.subr.mxu0 0.0
    %6428 = vmatpush1.msra.mxu0 0.0
    %6429 = vmatprep.subr.mxu0 0.0
    %6430 = vmatpush1.msra.mxu0 0.0
    %6431 = vmatprep.subr.mxu0 0.0
    %6432 = vmatpush1.msra.mxu0 0.0
    %6433 = vmatprep.subr.mxu0 0.0
    %6434 = vmatpush1.msra.mxu0 0.0
    %6435 = vmatprep.subr.mxu0 0.0
    %6436 = vmatpush1.msra.mxu0 0.0
    %6437 = vmatprep.subr.mxu0 0.0
    %6438 = vmatpush1.msra.mxu0 0.0
    %6439 = vmatprep.subr.mxu0 0.0
    %6440 = vmatpush1.msra.mxu0 0.0
    %6441 = vmatprep.subr.mxu0 0.0
    %6442 = vmatpush1.msra.mxu0 0.0
    %6443 = vmatprep.subr.mxu0 0.0
    %6444 = vmatpush1.msra.mxu0 0.0
    %6445 = vmatprep.subr.mxu0 0.0
    %6446 = vmatpush1.msra.mxu0 0.0
    %6447 = vmatprep.subr.mxu0 0.0
    %6448 = vmatpush1.msra.mxu0 0.0
    %6449 = vmatprep.subr.mxu0 0.0
    %6450 = vmatpush1.msra.mxu0 0.0
    %6451 = vmatprep.subr.mxu0 0.0
    %6452 = vmatpush1.msra.mxu0 0.0
    %6453 = vmatprep.subr.mxu0 0.0
    %6454 = vmatpush1.msra.mxu0 0.0
    %6455 = vmatprep.subr.mxu0 0.0
    %6456 = vmatpush1.msra.mxu0 0.0
    %6457 = vmatprep.subr.mxu0 0.0
    %6458 = vmatpush1.msra.mxu0 0.0
    %6459 = vmatprep.subr.mxu0 0.0
    %6460 = vmatpush1.msra.mxu0 0.0
    %6461 = vmatprep.subr.mxu0 0.0
    %6462 = vmatpush1.msra.mxu0 0.0
    %6463 = vmatprep.subr.mxu0 0.0
    %6464 = vmatpush1.msra.mxu0 0.0
    %6465 = vmatprep.subr.mxu0 0.0
    %6466 = vmatpush1.msra.mxu0 0.0
    %6467 = vmatprep.subr.mxu0 0.0
    %6468 = vmatpush1.msra.mxu0 0.0
    %6469 = vmatprep.subr.mxu0 0.0
    %6470 = vmatpush1.msra.mxu0 0.0
    %6471 = vmatprep.subr.mxu0 0.0
    %6472 = vmatpush1.msra.mxu0 0.0
    %6473 = vmatprep.subr.mxu0 0.0
    %6474 = vmatpush1.msra.mxu0 0.0
    %6475 = vmatprep.subr.mxu0 0.0
    %6476 = vmatpush1.msra.mxu0 0.0
    %6477 = vmatprep.mubr.f32.mxu0 0.0
    %v6478 = vand.u32 %v6257, 4294901760
    %v6479 = vsub.f32 %v6257, %v6478
    %6480 = vmatmul.mubr.f32.gmra.mrb[0].mxu0 %v6479
    %v6481 = vpop.f32.mrb[0].mxu0
    %v6482 = vadd.f32 %v6408, %v6481
    %v6483 = vpop.f32.mrb[0].mxu0
    %6484 = vdwg.mxu0
    %6485 = vmatprep.subr.mxu0 0.0
    %v6486 = vand.u32 %v6254, 4294901760
    %6487 = vmatpush1.msra.mxu0 %v6486
    %6488 = vmatprep.subr.mxu0 0.0
    %6489 = vmatpush1.msra.mxu0 0.0
    %6490 = vmatprep.subr.mxu0 0.0
    %6491 = vmatpush1.msra.mxu0 0.0
    %6492 = vmatprep.subr.mxu0 0.0
    %6493 = vmatpush1.msra.mxu0 0.0
    %6494 = vmatprep.subr.mxu0 0.0
    %6495 = vmatpush1.msra.mxu0 0.0
    %6496 = vmatprep.subr.mxu0 0.0
    %6497 = vmatpush1.msra.mxu0 0.0
    %6498 = vmatprep.subr.mxu0 0.0
    %6499 = vmatpush1.msra.mxu0 0.0
    %6500 = vmatprep.subr.mxu0 0.0
    %6501 = vmatpush1.msra.mxu0 0.0
    %6502 = vmatprep.subr.mxu0 0.0
    %6503 = vmatpush1.msra.mxu0 0.0
    %6504 = vmatprep.subr.mxu0 0.0
    %6505 = vmatpush1.msra.mxu0 0.0
    %6506 = vmatprep.subr.mxu0 0.0
    %6507 = vmatpush1.msra.mxu0 0.0
    %6508 = vmatprep.subr.mxu0 0.0
    %6509 = vmatpush1.msra.mxu0 0.0
    %6510 = vmatprep.subr.mxu0 0.0
    %6511 = vmatpush1.msra.mxu0 0.0
    %6512 = vmatprep.subr.mxu0 0.0
    %6513 = vmatpush1.msra.mxu0 0.0
    %6514 = vmatprep.subr.mxu0 0.0
    %6515 = vmatpush1.msra.mxu0 0.0
    %6516 = vmatprep.subr.mxu0 0.0
    %6517 = vmatpush1.msra.mxu0 0.0
    %6518 = vmatprep.subr.mxu0 0.0
    %6519 = vmatpush1.msra.mxu0 0.0
    %6520 = vmatprep.subr.mxu0 0.0
    %6521 = vmatpush1.msra.mxu0 0.0
    %6522 = vmatprep.subr.mxu0 0.0
    %6523 = vmatpush1.msra.mxu0 0.0
    %6524 = vmatprep.subr.mxu0 0.0
    %6525 = vmatpush1.msra.mxu0 0.0
    %6526 = vmatprep.subr.mxu0 0.0
    %6527 = vmatpush1.msra.mxu0 0.0
    %6528 = vmatprep.subr.mxu0 0.0
    %6529 = vmatpush1.msra.mxu0 0.0
    %6530 = vmatprep.subr.mxu0 0.0
    %6531 = vmatpush1.msra.mxu0 0.0
    %6532 = vmatprep.subr.mxu0 0.0
    %6533 = vmatpush1.msra.mxu0 0.0
    %6534 = vmatprep.subr.mxu0 0.0
    %6535 = vmatpush1.msra.mxu0 0.0
    %6536 = vmatprep.subr.mxu0 0.0
    %6537 = vmatpush1.msra.mxu0 0.0
    %6538 = vmatprep.subr.mxu0 0.0
    %6539 = vmatpush1.msra.mxu0 0.0
    %6540 = vmatprep.subr.mxu0 0.0
    %6541 = vmatpush1.msra.mxu0 0.0
    %6542 = vmatprep.subr.mxu0 0.0
    %6543 = vmatpush1.msra.mxu0 0.0
    %6544 = vmatprep.subr.mxu0 0.0
    %6545 = vmatpush1.msra.mxu0 0.0
    %6546 = vmatprep.subr.mxu0 0.0
    %6547 = vmatpush1.msra.mxu0 0.0
    %6548 = vmatprep.subr.mxu0 0.0
    %6549 = vmatpush1.msra.mxu0 0.0
    %6550 = vmatprep.mubr.f32.mxu0 0.0
    %v6551 = vand.u32 %v6257, 4294901760
    %v6552 = vsub.f32 %v6257, %v6551
    %v6553 = vand.u32 %v6552, 4294901760
    %6554 = vmatmul.mubr.f32.gmra.mrb[0].mxu0 %v6553
    %v6555 = vpop.f32.mrb[0].mxu0
    %v6556 = vadd.f32 %v6482, %v6555
    %v6557 = vpop.f32.mrb[0].mxu0
    %6558 = vdwg.mxu0
    %6559 = vmatprep.subr.mxu0 0.0
    %v6560 = vand.u32 %v6254, 4294901760
    %v6561 = vsub.f32 %v6254, %v6560
    %v6562 = vand.u32 %v6561, 4294901760
    %6563 = vmatpush1.msra.mxu0 %v6562
    %6564 = vmatprep.subr.mxu0 0.0
    %6565 = vmatpush1.msra.mxu0 0.0
    %6566 = vmatprep.subr.mxu0 0.0
    %6567 = vmatpush1.msra.mxu0 0.0
    %6568 = vmatprep.subr.mxu0 0.0
    %6569 = vmatpush1.msra.mxu0 0.0
    %6570 = vmatprep.subr.mxu0 0.0
    %6571 = vmatpush1.msra.mxu0 0.0
    %6572 = vmatprep.subr.mxu0 0.0
    %6573 = vmatpush1.msra.mxu0 0.0
    %6574 = vmatprep.subr.mxu0 0.0
    %6575 = vmatpush1.msra.mxu0 0.0
    %6576 = vmatprep.subr.mxu0 0.0
    %6577 = vmatpush1.msra.mxu0 0.0
    %6578 = vmatprep.subr.mxu0 0.0
    %6579 = vmatpush1.msra.mxu0 0.0
    %6580 = vmatprep.subr.mxu0 0.0
    %6581 = vmatpush1.msra.mxu0 0.0
    %6582 = vmatprep.subr.mxu0 0.0
    %6583 = vmatpush1.msra.mxu0 0.0
    %6584 = vmatprep.subr.mxu0 0.0
    %6585 = vmatpush1.msra.mxu0 0.0
    %6586 = vmatprep.subr.mxu0 0.0
    %6587 = vmatpush1.msra.mxu0 0.0
    %6588 = vmatprep.subr.mxu0 0.0
    %6589 = vmatpush1.msra.mxu0 0.0
    %6590 = vmatprep.subr.mxu0 0.0
    %6591 = vmatpush1.msra.mxu0 0.0
    %6592 = vmatprep.subr.mxu0 0.0
    %6593 = vmatpush1.msra.mxu0 0.0
    %6594 = vmatprep.subr.mxu0 0.0
    %6595 = vmatpush1.msra.mxu0 0.0
    %6596 = vmatprep.subr.mxu0 0.0
    %6597 = vmatpush1.msra.mxu0 0.0
    %6598 = vmatprep.subr.mxu0 0.0
    %6599 = vmatpush1.msra.mxu0 0.0
    %6600 = vmatprep.subr.mxu0 0.0
    %6601 = vmatpush1.msra.mxu0 0.0
    %6602 = vmatprep.subr.mxu0 0.0
    %6603 = vmatpush1.msra.mxu0 0.0
    %6604 = vmatprep.subr.mxu0 0.0
    %6605 = vmatpush1.msra.mxu0 0.0
    %6606 = vmatprep.subr.mxu0 0.0
    %6607 = vmatpush1.msra.mxu0 0.0
    %6608 = vmatprep.subr.mxu0 0.0
    %6609 = vmatpush1.msra.mxu0 0.0
    %6610 = vmatprep.subr.mxu0 0.0
    %6611 = vmatpush1.msra.mxu0 0.0
    %6612 = vmatprep.subr.mxu0 0.0
    %6613 = vmatpush1.msra.mxu0 0.0
    %6614 = vmatprep.subr.mxu0 0.0
    %6615 = vmatpush1.msra.mxu0 0.0
    %6616 = vmatprep.subr.mxu0 0.0
    %6617 = vmatpush1.msra.mxu0 0.0
    %6618 = vmatprep.subr.mxu0 0.0
    %6619 = vmatpush1.msra.mxu0 0.0
    %6620 = vmatprep.subr.mxu0 0.0
    %6621 = vmatpush1.msra.mxu0 0.0
    %6622 = vmatprep.subr.mxu0 0.0
    %6623 = vmatpush1.msra.mxu0 0.0
    %6624 = vmatprep.subr.mxu0 0.0
    %6625 = vmatpush1.msra.mxu0 0.0
    %6626 = vmatprep.mubr.f32.mxu0 0.0
    %v6627 = vand.u32 %v6257, 4294901760
    %6628 = vmatmul.mubr.f32.gmra.mrb[0].mxu0 %v6627
    %v6629 = vpop.f32.mrb[0].mxu0
    %v6630 = vadd.f32 %v6556, %v6629
    %v6631 = vpop.f32.mrb[0].mxu0
    %6632 = vdwg.mxu0
    %6633 = vmatprep.subr.mxu0 0.0
    %v6634 = vand.u32 %v6254, 4294901760
    %6635 = vmatpush1.msra.mxu0 %v6634
    %6636 = vmatprep.subr.mxu0 0.0
    %6637 = vmatpush1.msra.mxu0 0.0
    %6638 = vmatprep.subr.mxu0 0.0
    %6639 = vmatpush1.msra.mxu0 0.0
    %6640 = vmatprep.subr.mxu0 0.0
    %6641 = vmatpush1.msra.mxu0 0.0
    %6642 = vmatprep.subr.mxu0 0.0
    %6643 = vmatpush1.msra.mxu0 0.0
    %6644 = vmatprep.subr.mxu0 0.0
    %6645 = vmatpush1.msra.mxu0 0.0
    %6646 = vmatprep.subr.mxu0 0.0
    %6647 = vmatpush1.msra.mxu0 0.0
    %6648 = vmatprep.subr.mxu0 0.0
    %6649 = vmatpush1.msra.mxu0 0.0
    %6650 = vmatprep.subr.mxu0 0.0
    %6651 = vmatpush1.msra.mxu0 0.0
    %6652 = vmatprep.subr.mxu0 0.0
    %6653 = vmatpush1.msra.mxu0 0.0
    %6654 = vmatprep.subr.mxu0 0.0
    %6655 = vmatpush1.msra.mxu0 0.0
    %6656 = vmatprep.subr.mxu0 0.0
    %6657 = vmatpush1.msra.mxu0 0.0
    %6658 = vmatprep.subr.mxu0 0.0
    %6659 = vmatpush1.msra.mxu0 0.0
    %6660 = vmatprep.subr.mxu0 0.0
    %6661 = vmatpush1.msra.mxu0 0.0
    %6662 = vmatprep.subr.mxu0 0.0
    %6663 = vmatpush1.msra.mxu0 0.0
    %6664 = vmatprep.subr.mxu0 0.0
    %6665 = vmatpush1.msra.mxu0 0.0
    %6666 = vmatprep.subr.mxu0 0.0
    %6667 = vmatpush1.msra.mxu0 0.0
    %6668 = vmatprep.subr.mxu0 0.0
    %6669 = vmatpush1.msra.mxu0 0.0
    %6670 = vmatprep.subr.mxu0 0.0
    %6671 = vmatpush1.msra.mxu0 0.0
    %6672 = vmatprep.subr.mxu0 0.0
    %6673 = vmatpush1.msra.mxu0 0.0
    %6674 = vmatprep.subr.mxu0 0.0
    %6675 = vmatpush1.msra.mxu0 0.0
    %6676 = vmatprep.subr.mxu0 0.0
    %6677 = vmatpush1.msra.mxu0 0.0
    %6678 = vmatprep.subr.mxu0 0.0
    %6679 = vmatpush1.msra.mxu0 0.0
    %6680 = vmatprep.subr.mxu0 0.0
    %6681 = vmatpush1.msra.mxu0 0.0
    %6682 = vmatprep.subr.mxu0 0.0
    %6683 = vmatpush1.msra.mxu0 0.0
    %6684 = vmatprep.subr.mxu0 0.0
    %6685 = vmatpush1.msra.mxu0 0.0
    %6686 = vmatprep.subr.mxu0 0.0
    %6687 = vmatpush1.msra.mxu0 0.0
    %6688 = vmatprep.subr.mxu0 0.0
    %6689 = vmatpush1.msra.mxu0 0.0
    %6690 = vmatprep.subr.mxu0 0.0
    %6691 = vmatpush1.msra.mxu0 0.0
    %6692 = vmatprep.subr.mxu0 0.0
    %6693 = vmatpush1.msra.mxu0 0.0
    %6694 = vmatprep.subr.mxu0 0.0
    %6695 = vmatpush1.msra.mxu0 0.0
    %6696 = vmatprep.subr.mxu0 0.0
    %6697 = vmatpush1.msra.mxu0 0.0
    %6698 = vmatprep.mubr.f32.mxu0 0.0
    %v6699 = vand.u32 %v6257, 4294901760
    %6700 = vmatmul.mubr.f32.gmra.mrb[0].mxu0 %v6699
    %v6701 = vpop.f32.mrb[0].mxu0
    %v6702 = vadd.f32 %v6630, %v6701
    %v6703 = vpop.f32.mrb[0].mxu0
    %6704 = vdwg.mxu0
    %6706 = vrot.lane.b32.xlu0 %v6702, 32
    %v6707 = vpop.permute.xlu0 %6706
    %6709 = vst.msk [vmem:[#allocation2 + $0x8] sm:$0xff] %vm3019, %v6707
    %6710 = vrot.lane.b32.xlu0 %v647, 64
    %v6711 = vpop.permute.xlu0 %6710
    %6712 = vrot.lane.b32.xlu0 %v649, 64
    %v6713 = vpop.permute.xlu0 %6712
    %v6714 = vsel %vm52, %v6711, 0
    %v6716 = vsel %vm52, %v6713, 0
    %6718 = vmatprep.subr.mxu0 0.0
    %v6719 = vand.u32 %v6716, 4294901760
    %6720 = vmatpush1.xpose.msra.mxu0 %v6719
    %6721 = vmatprep.subr.mxu0 0.0
    %6722 = vmatpush1.xpose.msra.mxu0 0.0
    %6723 = vmatprep.subr.mxu0 0.0
    %6724 = vmatpush1.xpose.msra.mxu0 0.0
    %6725 = vmatprep.subr.mxu0 0.0
    %6726 = vmatpush1.xpose.msra.mxu0 0.0
    %6727 = vmatprep.subr.mxu0 0.0
    %6728 = vmatpush1.xpose.msra.mxu0 0.0
    %6729 = vmatprep.subr.mxu0 0.0
    %6730 = vmatpush1.xpose.msra.mxu0 0.0
    %6731 = vmatprep.subr.mxu0 0.0
    %6732 = vmatpush1.xpose.msra.mxu0 0.0
    %6733 = vmatprep.subr.mxu0 0.0
    %6734 = vmatpush1.xpose.msra.mxu0 0.0
    %6735 = vmatprep.subr.mxu0 0.0
    %6736 = vmatpush1.xpose.msra.mxu0 0.0
    %6737 = vmatprep.subr.mxu0 0.0
    %6738 = vmatpush1.xpose.msra.mxu0 0.0
    %6739 = vmatprep.subr.mxu0 0.0
    %6740 = vmatpush1.xpose.msra.mxu0 0.0
    %6741 = vmatprep.subr.mxu0 0.0
    %6742 = vmatpush1.xpose.msra.mxu0 0.0
    %6743 = vmatprep.subr.mxu0 0.0
    %6744 = vmatpush1.xpose.msra.mxu0 0.0
    %6745 = vmatprep.subr.mxu0 0.0
    %6746 = vmatpush1.xpose.msra.mxu0 0.0
    %6747 = vmatprep.subr.mxu0 0.0
    %6748 = vmatpush1.xpose.msra.mxu0 0.0
    %6749 = vmatprep.subr.mxu0 0.0
    %6750 = vmatpush1.xpose.msra.mxu0 0.0
    %6751 = vmatprep.subr.mxu0 0.0
    %6752 = vmatpush1.xpose.msra.mxu0 0.0
    %6753 = vmatprep.subr.mxu0 0.0
    %6754 = vmatpush1.xpose.msra.mxu0 0.0
    %6755 = vmatprep.subr.mxu0 0.0
    %6756 = vmatpush1.xpose.msra.mxu0 0.0
    %6757 = vmatprep.subr.mxu0 0.0
    %6758 = vmatpush1.xpose.msra.mxu0 0.0
    %6759 = vmatprep.subr.mxu0 0.0
    %6760 = vmatpush1.xpose.msra.mxu0 0.0
    %6761 = vmatprep.subr.mxu0 0.0
    %6762 = vmatpush1.xpose.msra.mxu0 0.0
    %6763 = vmatprep.subr.mxu0 0.0
    %6764 = vmatpush1.xpose.msra.mxu0 0.0
    %6765 = vmatprep.subr.mxu0 0.0
    %6766 = vmatpush1.xpose.msra.mxu0 0.0
    %6767 = vmatprep.subr.mxu0 0.0
    %6768 = vmatpush1.xpose.msra.mxu0 0.0
    %6769 = vmatprep.subr.mxu0 0.0
    %6770 = vmatpush1.xpose.msra.mxu0 0.0
    %6771 = vmatprep.subr.mxu0 0.0
    %6772 = vmatpush1.xpose.msra.mxu0 0.0
    %6773 = vmatprep.subr.mxu0 0.0
    %6774 = vmatpush1.xpose.msra.mxu0 0.0
    %6775 = vmatprep.subr.mxu0 0.0
    %6776 = vmatpush1.xpose.msra.mxu0 0.0
    %6777 = vmatprep.subr.mxu0 0.0
    %6778 = vmatpush1.xpose.msra.mxu0 0.0
    %6779 = vmatprep.subr.mxu0 0.0
    %6780 = vmatpush1.xpose.msra.mxu0 0.0
    %6781 = vmatprep.subr.mxu0 0.0
    %6782 = vmatpush1.xpose.msra.mxu0 0.0
    %6783 = vmatprep.mubr.f32.mxu0 0.0
    %v6784 = vand.u32 %v6714, 4294901760
    %v6785 = vsub.f32 %v6714, %v6784
    %v6786 = vand.u32 %v6785, 4294901760
    %v6787 = vsub.f32 %v6785, %v6786
    %v6788 = vand.u32 %v6787, 4294901760
    %6789 = vmatmul.mubr.f32.gmra.mrb[0].mxu0 %v6788
    %v6790 = vpop.f32.mrb[0].mxu0
    %v6791 = vadd.f32 0.0, %v6790
    %v6792 = vpop.f32.mrb[0].mxu0
    %6793 = vdwg.mxu0
    %6794 = vmatprep.subr.mxu0 0.0
    %v6795 = vand.u32 %v6716, 4294901760
    %v6796 = vsub.f32 %v6716, %v6795
    %v6797 = vand.u32 %v6796, 4294901760
    %v6798 = vsub.f32 %v6796, %v6797
    %v6799 = vand.u32 %v6798, 4294901760
    %6800 = vmatpush1.xpose.msra.mxu0 %v6799
    %6801 = vmatprep.subr.mxu0 0.0
    %6802 = vmatpush1.xpose.msra.mxu0 0.0
    %6803 = vmatprep.subr.mxu0 0.0
    %6804 = vmatpush1.xpose.msra.mxu0 0.0
    %6805 = vmatprep.subr.mxu0 0.0
    %6806 = vmatpush1.xpose.msra.mxu0 0.0
    %6807 = vmatprep.subr.mxu0 0.0
    %6808 = vmatpush1.xpose.msra.mxu0 0.0
    %6809 = vmatprep.subr.mxu0 0.0
    %6810 = vmatpush1.xpose.msra.mxu0 0.0
    %6811 = vmatprep.subr.mxu0 0.0
    %6812 = vmatpush1.xpose.msra.mxu0 0.0
    %6813 = vmatprep.subr.mxu0 0.0
    %6814 = vmatpush1.xpose.msra.mxu0 0.0
    %6815 = vmatprep.subr.mxu0 0.0
    %6816 = vmatpush1.xpose.msra.mxu0 0.0
    %6817 = vmatprep.subr.mxu0 0.0
    %6818 = vmatpush1.xpose.msra.mxu0 0.0
    %6819 = vmatprep.subr.mxu0 0.0
    %6820 = vmatpush1.xpose.msra.mxu0 0.0
    %6821 = vmatprep.subr.mxu0 0.0
    %6822 = vmatpush1.xpose.msra.mxu0 0.0
    %6823 = vmatprep.subr.mxu0 0.0
    %6824 = vmatpush1.xpose.msra.mxu0 0.0
    %6825 = vmatprep.subr.mxu0 0.0
    %6826 = vmatpush1.xpose.msra.mxu0 0.0
    %6827 = vmatprep.subr.mxu0 0.0
    %6828 = vmatpush1.xpose.msra.mxu0 0.0
    %6829 = vmatprep.subr.mxu0 0.0
    %6830 = vmatpush1.xpose.msra.mxu0 0.0
    %6831 = vmatprep.subr.mxu0 0.0
    %6832 = vmatpush1.xpose.msra.mxu0 0.0
    %6833 = vmatprep.subr.mxu0 0.0
    %6834 = vmatpush1.xpose.msra.mxu0 0.0
    %6835 = vmatprep.subr.mxu0 0.0
    %6836 = vmatpush1.xpose.msra.mxu0 0.0
    %6837 = vmatprep.subr.mxu0 0.0
    %6838 = vmatpush1.xpose.msra.mxu0 0.0
    %6839 = vmatprep.subr.mxu0 0.0
    %6840 = vmatpush1.xpose.msra.mxu0 0.0
    %6841 = vmatprep.subr.mxu0 0.0
    %6842 = vmatpush1.xpose.msra.mxu0 0.0
    %6843 = vmatprep.subr.mxu0 0.0
    %6844 = vmatpush1.xpose.msra.mxu0 0.0
    %6845 = vmatprep.subr.mxu0 0.0
    %6846 = vmatpush1.xpose.msra.mxu0 0.0
    %6847 = vmatprep.subr.mxu0 0.0
    %6848 = vmatpush1.xpose.msra.mxu0 0.0
    %6849 = vmatprep.subr.mxu0 0.0
    %6850 = vmatpush1.xpose.msra.mxu0 0.0
    %6851 = vmatprep.subr.mxu0 0.0
    %6852 = vmatpush1.xpose.msra.mxu0 0.0
    %6853 = vmatprep.subr.mxu0 0.0
    %6854 = vmatpush1.xpose.msra.mxu0 0.0
    %6855 = vmatprep.subr.mxu0 0.0
    %6856 = vmatpush1.xpose.msra.mxu0 0.0
    %6857 = vmatprep.subr.mxu0 0.0
    %6858 = vmatpush1.xpose.msra.mxu0 0.0
    %6859 = vmatprep.subr.mxu0 0.0
    %6860 = vmatpush1.xpose.msra.mxu0 0.0
    %6861 = vmatprep.subr.mxu0 0.0
    %6862 = vmatpush1.xpose.msra.mxu0 0.0
    %6863 = vmatprep.mubr.f32.mxu0 0.0
    %v6864 = vand.u32 %v6714, 4294901760
    %6865 = vmatmul.mubr.f32.gmra.mrb[0].mxu0 %v6864
    %v6866 = vpop.f32.mrb[0].mxu0
    %v6867 = vadd.f32 %v6791, %v6866
    %v6868 = vpop.f32.mrb[0].mxu0
    %6869 = vdwg.mxu0
    %6870 = vmatprep.subr.mxu0 0.0
    %v6871 = vand.u32 %v6716, 4294901760
    %v6872 = vsub.f32 %v6716, %v6871
    %6873 = vmatpush1.xpose.msra.mxu0 %v6872
    %6874 = vmatprep.subr.mxu0 0.0
    %6875 = vmatpush1.xpose.msra.mxu0 0.0
    %6876 = vmatprep.subr.mxu0 0.0
    %6877 = vmatpush1.xpose.msra.mxu0 0.0
    %6878 = vmatprep.subr.mxu0 0.0
    %6879 = vmatpush1.xpose.msra.mxu0 0.0
    %6880 = vmatprep.subr.mxu0 0.0
    %6881 = vmatpush1.xpose.msra.mxu0 0.0
    %6882 = vmatprep.subr.mxu0 0.0
    %6883 = vmatpush1.xpose.msra.mxu0 0.0
    %6884 = vmatprep.subr.mxu0 0.0
    %6885 = vmatpush1.xpose.msra.mxu0 0.0
    %6886 = vmatprep.subr.mxu0 0.0
    %6887 = vmatpush1.xpose.msra.mxu0 0.0
    %6888 = vmatprep.subr.mxu0 0.0
    %6889 = vmatpush1.xpose.msra.mxu0 0.0
    %6890 = vmatprep.subr.mxu0 0.0
    %6891 = vmatpush1.xpose.msra.mxu0 0.0
    %6892 = vmatprep.subr.mxu0 0.0
    %6893 = vmatpush1.xpose.msra.mxu0 0.0
    %6894 = vmatprep.subr.mxu0 0.0
    %6895 = vmatpush1.xpose.msra.mxu0 0.0
    %6896 = vmatprep.subr.mxu0 0.0
    %6897 = vmatpush1.xpose.msra.mxu0 0.0
    %6898 = vmatprep.subr.mxu0 0.0
    %6899 = vmatpush1.xpose.msra.mxu0 0.0
    %6900 = vmatprep.subr.mxu0 0.0
    %6901 = vmatpush1.xpose.msra.mxu0 0.0
    %6902 = vmatprep.subr.mxu0 0.0
    %6903 = vmatpush1.xpose.msra.mxu0 0.0
    %6904 = vmatprep.subr.mxu0 0.0
    %6905 = vmatpush1.xpose.msra.mxu0 0.0
    %6906 = vmatprep.subr.mxu0 0.0
    %6907 = vmatpush1.xpose.msra.mxu0 0.0
    %6908 = vmatprep.subr.mxu0 0.0
    %6909 = vmatpush1.xpose.msra.mxu0 0.0
    %6910 = vmatprep.subr.mxu0 0.0
    %6911 = vmatpush1.xpose.msra.mxu0 0.0
    %6912 = vmatprep.subr.mxu0 0.0
    %6913 = vmatpush1.xpose.msra.mxu0 0.0
    %6914 = vmatprep.subr.mxu0 0.0
    %6915 = vmatpush1.xpose.msra.mxu0 0.0
    %6916 = vmatprep.subr.mxu0 0.0
    %6917 = vmatpush1.xpose.msra.mxu0 0.0
    %6918 = vmatprep.subr.mxu0 0.0
    %6919 = vmatpush1.xpose.msra.mxu0 0.0
    %6920 = vmatprep.subr.mxu0 0.0
    %6921 = vmatpush1.xpose.msra.mxu0 0.0
    %6922 = vmatprep.subr.mxu0 0.0
    %6923 = vmatpush1.xpose.msra.mxu0 0.0
    %6924 = vmatprep.subr.mxu0 0.0
    %6925 = vmatpush1.xpose.msra.mxu0 0.0
    %6926 = vmatprep.subr.mxu0 0.0
    %6927 = vmatpush1.xpose.msra.mxu0 0.0
    %6928 = vmatprep.subr.mxu0 0.0
    %6929 = vmatpush1.xpose.msra.mxu0 0.0
    %6930 = vmatprep.subr.mxu0 0.0
    %6931 = vmatpush1.xpose.msra.mxu0 0.0
    %6932 = vmatprep.subr.mxu0 0.0
    %6933 = vmatpush1.xpose.msra.mxu0 0.0
    %6934 = vmatprep.subr.mxu0 0.0
    %6935 = vmatpush1.xpose.msra.mxu0 0.0
    %6936 = vmatprep.mubr.f32.mxu0 0.0
    %v6937 = vand.u32 %v6714, 4294901760
    %v6938 = vsub.f32 %v6714, %v6937
    %6939 = vmatmul.mubr.f32.gmra.mrb[0].mxu0 %v6938
    %v6940 = vpop.f32.mrb[0].mxu0
    %v6941 = vadd.f32 %v6867, %v6940
    %v6942 = vpop.f32.mrb[0].mxu0
    %6943 = vdwg.mxu0
    %6944 = vmatprep.subr.mxu0 0.0
    %v6945 = vand.u32 %v6716, 4294901760
    %6946 = vmatpush1.xpose.msra.mxu0 %v6945
    %6947 = vmatprep.subr.mxu0 0.0
    %6948 = vmatpush1.xpose.msra.mxu0 0.0
    %6949 = vmatprep.subr.mxu0 0.0
    %6950 = vmatpush1.xpose.msra.mxu0 0.0
    %6951 = vmatprep.subr.mxu0 0.0
    %6952 = vmatpush1.xpose.msra.mxu0 0.0
    %6953 = vmatprep.subr.mxu0 0.0
    %6954 = vmatpush1.xpose.msra.mxu0 0.0
    %6955 = vmatprep.subr.mxu0 0.0
    %6956 = vmatpush1.xpose.msra.mxu0 0.0
    %6957 = vmatprep.subr.mxu0 0.0
    %6958 = vmatpush1.xpose.msra.mxu0 0.0
    %6959 = vmatprep.subr.mxu0 0.0
    %6960 = vmatpush1.xpose.msra.mxu0 0.0
    %6961 = vmatprep.subr.mxu0 0.0
    %6962 = vmatpush1.xpose.msra.mxu0 0.0
    %6963 = vmatprep.subr.mxu0 0.0
    %6964 = vmatpush1.xpose.msra.mxu0 0.0
    %6965 = vmatprep.subr.mxu0 0.0
    %6966 = vmatpush1.xpose.msra.mxu0 0.0
    %6967 = vmatprep.subr.mxu0 0.0
    %6968 = vmatpush1.xpose.msra.mxu0 0.0
    %6969 = vmatprep.subr.mxu0 0.0
    %6970 = vmatpush1.xpose.msra.mxu0 0.0
    %6971 = vmatprep.subr.mxu0 0.0
    %6972 = vmatpush1.xpose.msra.mxu0 0.0
    %6973 = vmatprep.subr.mxu0 0.0
    %6974 = vmatpush1.xpose.msra.mxu0 0.0
    %6975 = vmatprep.subr.mxu0 0.0
    %6976 = vmatpush1.xpose.msra.mxu0 0.0
    %6977 = vmatprep.subr.mxu0 0.0
    %6978 = vmatpush1.xpose.msra.mxu0 0.0
    %6979 = vmatprep.subr.mxu0 0.0
    %6980 = vmatpush1.xpose.msra.mxu0 0.0
    %6981 = vmatprep.subr.mxu0 0.0
    %6982 = vmatpush1.xpose.msra.mxu0 0.0
    %6983 = vmatprep.subr.mxu0 0.0
    %6984 = vmatpush1.xpose.msra.mxu0 0.0
    %6985 = vmatprep.subr.mxu0 0.0
    %6986 = vmatpush1.xpose.msra.mxu0 0.0
    %6987 = vmatprep.subr.mxu0 0.0
    %6988 = vmatpush1.xpose.msra.mxu0 0.0
    %6989 = vmatprep.subr.mxu0 0.0
    %6990 = vmatpush1.xpose.msra.mxu0 0.0
    %6991 = vmatprep.subr.mxu0 0.0
    %6992 = vmatpush1.xpose.msra.mxu0 0.0
    %6993 = vmatprep.subr.mxu0 0.0
    %6994 = vmatpush1.xpose.msra.mxu0 0.0
    %6995 = vmatprep.subr.mxu0 0.0
    %6996 = vmatpush1.xpose.msra.mxu0 0.0
    %6997 = vmatprep.subr.mxu0 0.0
    %6998 = vmatpush1.xpose.msra.mxu0 0.0
    %6999 = vmatprep.subr.mxu0 0.0
    %7000 = vmatpush1.xpose.msra.mxu0 0.0
    %7001 = vmatprep.subr.mxu0 0.0
    %7002 = vmatpush1.xpose.msra.mxu0 0.0
    %7003 = vmatprep.subr.mxu0 0.0
    %7004 = vmatpush1.xpose.msra.mxu0 0.0
    %7005 = vmatprep.subr.mxu0 0.0
    %7006 = vmatpush1.xpose.msra.mxu0 0.0
    %7007 = vmatprep.subr.mxu0 0.0
    %7008 = vmatpush1.xpose.msra.mxu0 0.0
    %7009 = vmatprep.mubr.f32.mxu0 0.0
    %v7010 = vand.u32 %v6714, 4294901760
    %v7011 = vsub.f32 %v6714, %v7010
    %v7012 = vand.u32 %v7011, 4294901760
    %7013 = vmatmul.mubr.f32.gmra.mrb[0].mxu0 %v7012
    %v7014 = vpop.f32.mrb[0].mxu0
    %v7015 = vadd.f32 %v6941, %v7014
    %v7016 = vpop.f32.mrb[0].mxu0
    %7017 = vdwg.mxu0
    %7018 = vmatprep.subr.mxu0 0.0
    %v7019 = vand.u32 %v6716, 4294901760
    %v7020 = vsub.f32 %v6716, %v7019
    %v7021 = vand.u32 %v7020, 4294901760
    %7022 = vmatpush1.xpose.msra.mxu0 %v7021
    %7023 = vmatprep.subr.mxu0 0.0
    %7024 = vmatpush1.xpose.msra.mxu0 0.0
    %7025 = vmatprep.subr.mxu0 0.0
    %7026 = vmatpush1.xpose.msra.mxu0 0.0
    %7027 = vmatprep.subr.mxu0 0.0
    %7028 = vmatpush1.xpose.msra.mxu0 0.0
    %7029 = vmatprep.subr.mxu0 0.0
    %7030 = vmatpush1.xpose.msra.mxu0 0.0
    %7031 = vmatprep.subr.mxu0 0.0
    %7032 = vmatpush1.xpose.msra.mxu0 0.0
    %7033 = vmatprep.subr.mxu0 0.0
    %7034 = vmatpush1.xpose.msra.mxu0 0.0
    %7035 = vmatprep.subr.mxu0 0.0
    %7036 = vmatpush1.xpose.msra.mxu0 0.0
    %7037 = vmatprep.subr.mxu0 0.0
    %7038 = vmatpush1.xpose.msra.mxu0 0.0
    %7039 = vmatprep.subr.mxu0 0.0
    %7040 = vmatpush1.xpose.msra.mxu0 0.0
    %7041 = vmatprep.subr.mxu0 0.0
    %7042 = vmatpush1.xpose.msra.mxu0 0.0
    %7043 = vmatprep.subr.mxu0 0.0
    %7044 = vmatpush1.xpose.msra.mxu0 0.0
    %7045 = vmatprep.subr.mxu0 0.0
    %7046 = vmatpush1.xpose.msra.mxu0 0.0
    %7047 = vmatprep.subr.mxu0 0.0
    %7048 = vmatpush1.xpose.msra.mxu0 0.0
    %7049 = vmatprep.subr.mxu0 0.0
    %7050 = vmatpush1.xpose.msra.mxu0 0.0
    %7051 = vmatprep.subr.mxu0 0.0
    %7052 = vmatpush1.xpose.msra.mxu0 0.0
    %7053 = vmatprep.subr.mxu0 0.0
    %7054 = vmatpush1.xpose.msra.mxu0 0.0
    %7055 = vmatprep.subr.mxu0 0.0
    %7056 = vmatpush1.xpose.msra.mxu0 0.0
    %7057 = vmatprep.subr.mxu0 0.0
    %7058 = vmatpush1.xpose.msra.mxu0 0.0
    %7059 = vmatprep.subr.mxu0 0.0
    %7060 = vmatpush1.xpose.msra.mxu0 0.0
    %7061 = vmatprep.subr.mxu0 0.0
    %7062 = vmatpush1.xpose.msra.mxu0 0.0
    %7063 = vmatprep.subr.mxu0 0.0
    %7064 = vmatpush1.xpose.msra.mxu0 0.0
    %7065 = vmatprep.subr.mxu0 0.0
    %7066 = vmatpush1.xpose.msra.mxu0 0.0
    %7067 = vmatprep.subr.mxu0 0.0
    %7068 = vmatpush1.xpose.msra.mxu0 0.0
    %7069 = vmatprep.subr.mxu0 0.0
    %7070 = vmatpush1.xpose.msra.mxu0 0.0
    %7071 = vmatprep.subr.mxu0 0.0
    %7072 = vmatpush1.xpose.msra.mxu0 0.0
    %7073 = vmatprep.subr.mxu0 0.0
    %7074 = vmatpush1.xpose.msra.mxu0 0.0
    %7075 = vmatprep.subr.mxu0 0.0
    %7076 = vmatpush1.xpose.msra.mxu0 0.0
    %7077 = vmatprep.subr.mxu0 0.0
    %7078 = vmatpush1.xpose.msra.mxu0 0.0
    %7079 = vmatprep.subr.mxu0 0.0
    %7080 = vmatpush1.xpose.msra.mxu0 0.0
    %7081 = vmatprep.subr.mxu0 0.0
    %7082 = vmatpush1.xpose.msra.mxu0 0.0
    %7083 = vmatprep.subr.mxu0 0.0
    %7084 = vmatpush1.xpose.msra.mxu0 0.0
    %7085 = vmatprep.mubr.f32.mxu0 0.0
    %v7086 = vand.u32 %v6714, 4294901760
    %7087 = vmatmul.mubr.f32.gmra.mrb[0].mxu0 %v7086
    %v7088 = vpop.f32.mrb[0].mxu0
    %v7089 = vadd.f32 %v7015, %v7088
    %v7090 = vpop.f32.mrb[0].mxu0
    %7091 = vdwg.mxu0
    %7092 = vmatprep.subr.mxu0 0.0
    %v7093 = vand.u32 %v6716, 4294901760
    %7094 = vmatpush1.xpose.msra.mxu0 %v7093
    %7095 = vmatprep.subr.mxu0 0.0
    %7096 = vmatpush1.xpose.msra.mxu0 0.0
    %7097 = vmatprep.subr.mxu0 0.0
    %7098 = vmatpush1.xpose.msra.mxu0 0.0
    %7099 = vmatprep.subr.mxu0 0.0
    %7100 = vmatpush1.xpose.msra.mxu0 0.0
    %7101 = vmatprep.subr.mxu0 0.0
    %7102 = vmatpush1.xpose.msra.mxu0 0.0
    %7103 = vmatprep.subr.mxu0 0.0
    %7104 = vmatpush1.xpose.msra.mxu0 0.0
    %7105 = vmatprep.subr.mxu0 0.0
    %7106 = vmatpush1.xpose.msra.mxu0 0.0
    %7107 = vmatprep.subr.mxu0 0.0
    %7108 = vmatpush1.xpose.msra.mxu0 0.0
    %7109 = vmatprep.subr.mxu0 0.0
    %7110 = vmatpush1.xpose.msra.mxu0 0.0
    %7111 = vmatprep.subr.mxu0 0.0
    %7112 = vmatpush1.xpose.msra.mxu0 0.0
    %7113 = vmatprep.subr.mxu0 0.0
    %7114 = vmatpush1.xpose.msra.mxu0 0.0
    %7115 = vmatprep.subr.mxu0 0.0
    %7116 = vmatpush1.xpose.msra.mxu0 0.0
    %7117 = vmatprep.subr.mxu0 0.0
    %7118 = vmatpush1.xpose.msra.mxu0 0.0
    %7119 = vmatprep.subr.mxu0 0.0
    %7120 = vmatpush1.xpose.msra.mxu0 0.0
    %7121 = vmatprep.subr.mxu0 0.0
    %7122 = vmatpush1.xpose.msra.mxu0 0.0
    %7123 = vmatprep.subr.mxu0 0.0
    %7124 = vmatpush1.xpose.msra.mxu0 0.0
    %7125 = vmatprep.subr.mxu0 0.0
    %7126 = vmatpush1.xpose.msra.mxu0 0.0
    %7127 = vmatprep.subr.mxu0 0.0
    %7128 = vmatpush1.xpose.msra.mxu0 0.0
    %7129 = vmatprep.subr.mxu0 0.0
    %7130 = vmatpush1.xpose.msra.mxu0 0.0
    %7131 = vmatprep.subr.mxu0 0.0
    %7132 = vmatpush1.xpose.msra.mxu0 0.0
    %7133 = vmatprep.subr.mxu0 0.0
    %7134 = vmatpush1.xpose.msra.mxu0 0.0
    %7135 = vmatprep.subr.mxu0 0.0
    %7136 = vmatpush1.xpose.msra.mxu0 0.0
    %7137 = vmatprep.subr.mxu0 0.0
    %7138 = vmatpush1.xpose.msra.mxu0 0.0
    %7139 = vmatprep.subr.mxu0 0.0
    %7140 = vmatpush1.xpose.msra.mxu0 0.0
    %7141 = vmatprep.subr.mxu0 0.0
    %7142 = vmatpush1.xpose.msra.mxu0 0.0
    %7143 = vmatprep.subr.mxu0 0.0
    %7144 = vmatpush1.xpose.msra.mxu0 0.0
    %7145 = vmatprep.subr.mxu0 0.0
    %7146 = vmatpush1.xpose.msra.mxu0 0.0
    %7147 = vmatprep.subr.mxu0 0.0
    %7148 = vmatpush1.xpose.msra.mxu0 0.0
    %7149 = vmatprep.subr.mxu0 0.0
    %7150 = vmatpush1.xpose.msra.mxu0 0.0
    %7151 = vmatprep.subr.mxu0 0.0
    %7152 = vmatpush1.xpose.msra.mxu0 0.0
    %7153 = vmatprep.subr.mxu0 0.0
    %7154 = vmatpush1.xpose.msra.mxu0 0.0
    %7155 = vmatprep.subr.mxu0 0.0
    %7156 = vmatpush1.xpose.msra.mxu0 0.0
    %7157 = vmatprep.mubr.f32.mxu0 0.0
    %v7158 = vand.u32 %v6714, 4294901760
    %7159 = vmatmul.mubr.f32.gmra.mrb[0].mxu0 %v7158
    %v7160 = vpop.f32.mrb[0].mxu0
    %v7161 = vadd.f32 %v7089, %v7160
    %v7162 = vpop.f32.mrb[0].mxu0
    %7163 = vdwg.mxu0
    %v7164 = vsel %vm4871, -1e+09, %v7161
    %v7165 = vsel %vm1634, %v7164, -inf
    %7166 = vmax.xlane.f32.xlu0 %v7165
    %v7167 = vpop.xlane.xlu0 %7166
    %v7168 = vsub.f32 %v7164, %v7167
    %v7169 = vmul.f32 %v7168, 1.442695
    %v7170 = vpow.pop %v7169
    %v7171 = vsel %vm1634, %v7170, 0.0
    %7172 = vadd.xlane.f32.xlu0 %v7171
    %v7173 = vpop.xlane.xlu0 %7172
    %v7174 = vrcp.pop %v7173
    %v7175 = vmul.f32 %v7170, %v7174
    %7176 = vrot.lane.b32.xlu0 %v1176, 64
    %v7177 = vpop.permute.xlu0 %7176
    %v7180 = vsel %vm1634, %v7175, 0
    %7182 = vmatprep.subr.mxu0 0.0
    %v7183 = vand.u32 %v7177, 4294901760
    %7184 = vmatpush1.msra.mxu0 %v7183
    %7185 = vmatprep.subr.mxu0 0.0
    %7186 = vmatpush1.msra.mxu0 0.0
    %7187 = vmatprep.subr.mxu0 0.0
    %7188 = vmatpush1.msra.mxu0 0.0
    %7189 = vmatprep.subr.mxu0 0.0
    %7190 = vmatpush1.msra.mxu0 0.0
    %7191 = vmatprep.subr.mxu0 0.0
    %7192 = vmatpush1.msra.mxu0 0.0
    %7193 = vmatprep.subr.mxu0 0.0
    %7194 = vmatpush1.msra.mxu0 0.0
    %7195 = vmatprep.subr.mxu0 0.0
    %7196 = vmatpush1.msra.mxu0 0.0
    %7197 = vmatprep.subr.mxu0 0.0
    %7198 = vmatpush1.msra.mxu0 0.0
    %7199 = vmatprep.subr.mxu0 0.0
    %7200 = vmatpush1.msra.mxu0 0.0
    %7201 = vmatprep.subr.mxu0 0.0
    %7202 = vmatpush1.msra.mxu0 0.0
    %7203 = vmatprep.subr.mxu0 0.0
    %7204 = vmatpush1.msra.mxu0 0.0
    %7205 = vmatprep.subr.mxu0 0.0
    %7206 = vmatpush1.msra.mxu0 0.0
    %7207 = vmatprep.subr.mxu0 0.0
    %7208 = vmatpush1.msra.mxu0 0.0
    %7209 = vmatprep.subr.mxu0 0.0
    %7210 = vmatpush1.msra.mxu0 0.0
    %7211 = vmatprep.subr.mxu0 0.0
    %7212 = vmatpush1.msra.mxu0 0.0
    %7213 = vmatprep.subr.mxu0 0.0
    %7214 = vmatpush1.msra.mxu0 0.0
    %7215 = vmatprep.subr.mxu0 0.0
    %7216 = vmatpush1.msra.mxu0 0.0
    %7217 = vmatprep.subr.mxu0 0.0
    %7218 = vmatpush1.msra.mxu0 0.0
    %7219 = vmatprep.subr.mxu0 0.0
    %7220 = vmatpush1.msra.mxu0 0.0
    %7221 = vmatprep.subr.mxu0 0.0
    %7222 = vmatpush1.msra.mxu0 0.0
    %7223 = vmatprep.subr.mxu0 0.0
    %7224 = vmatpush1.msra.mxu0 0.0
    %7225 = vmatprep.subr.mxu0 0.0
    %7226 = vmatpush1.msra.mxu0 0.0
    %7227 = vmatprep.subr.mxu0 0.0
    %7228 = vmatpush1.msra.mxu0 0.0
    %7229 = vmatprep.subr.mxu0 0.0
    %7230 = vmatpush1.msra.mxu0 0.0
    %7231 = vmatprep.subr.mxu0 0.0
    %7232 = vmatpush1.msra.mxu0 0.0
    %7233 = vmatprep.subr.mxu0 0.0
    %7234 = vmatpush1.msra.mxu0 0.0
    %7235 = vmatprep.subr.mxu0 0.0
    %7236 = vmatpush1.msra.mxu0 0.0
    %7237 = vmatprep.subr.mxu0 0.0
    %7238 = vmatpush1.msra.mxu0 0.0
    %7239 = vmatprep.subr.mxu0 0.0
    %7240 = vmatpush1.msra.mxu0 0.0
    %7241 = vmatprep.subr.mxu0 0.0
    %7242 = vmatpush1.msra.mxu0 0.0
    %7243 = vmatprep.subr.mxu0 0.0
    %7244 = vmatpush1.msra.mxu0 0.0
    %7245 = vmatprep.subr.mxu0 0.0
    %7246 = vmatpush1.msra.mxu0 0.0
    %7247 = vmatprep.mubr.f32.mxu0 0.0
    %v7248 = vand.u32 %v7180, 4294901760
    %v7249 = vsub.f32 %v7180, %v7248
    %v7250 = vand.u32 %v7249, 4294901760
    %v7251 = vsub.f32 %v7249, %v7250
    %v7252 = vand.u32 %v7251, 4294901760
    %7253 = vmatmul.mubr.f32.gmra.mrb[0].mxu0 %v7252
    %v7254 = vpop.f32.mrb[0].mxu0
    %v7255 = vadd.f32 0.0, %v7254
    %v7256 = vpop.f32.mrb[0].mxu0
    %7257 = vdwg.mxu0
    %7258 = vmatprep.subr.mxu0 0.0
    %v7259 = vand.u32 %v7177, 4294901760
    %v7260 = vsub.f32 %v7177, %v7259
    %v7261 = vand.u32 %v7260, 4294901760
    %v7262 = vsub.f32 %v7260, %v7261
    %v7263 = vand.u32 %v7262, 4294901760
    %7264 = vmatpush1.msra.mxu0 %v7263
    %7265 = vmatprep.subr.mxu0 0.0
    %7266 = vmatpush1.msra.mxu0 0.0
    %7267 = vmatprep.subr.mxu0 0.0
    %7268 = vmatpush1.msra.mxu0 0.0
    %7269 = vmatprep.subr.mxu0 0.0
    %7270 = vmatpush1.msra.mxu0 0.0
    %7271 = vmatprep.subr.mxu0 0.0
    %7272 = vmatpush1.msra.mxu0 0.0
    %7273 = vmatprep.subr.mxu0 0.0
    %7274 = vmatpush1.msra.mxu0 0.0
    %7275 = vmatprep.subr.mxu0 0.0
    %7276 = vmatpush1.msra.mxu0 0.0
    %7277 = vmatprep.subr.mxu0 0.0
    %7278 = vmatpush1.msra.mxu0 0.0
    %7279 = vmatprep.subr.mxu0 0.0
    %7280 = vmatpush1.msra.mxu0 0.0
    %7281 = vmatprep.subr.mxu0 0.0
    %7282 = vmatpush1.msra.mxu0 0.0
    %7283 = vmatprep.subr.mxu0 0.0
    %7284 = vmatpush1.msra.mxu0 0.0
    %7285 = vmatprep.subr.mxu0 0.0
    %7286 = vmatpush1.msra.mxu0 0.0
    %7287 = vmatprep.subr.mxu0 0.0
    %7288 = vmatpush1.msra.mxu0 0.0
    %7289 = vmatprep.subr.mxu0 0.0
    %7290 = vmatpush1.msra.mxu0 0.0
    %7291 = vmatprep.subr.mxu0 0.0
    %7292 = vmatpush1.msra.mxu0 0.0
    %7293 = vmatprep.subr.mxu0 0.0
    %7294 = vmatpush1.msra.mxu0 0.0
    %7295 = vmatprep.subr.mxu0 0.0
    %7296 = vmatpush1.msra.mxu0 0.0
    %7297 = vmatprep.subr.mxu0 0.0
    %7298 = vmatpush1.msra.mxu0 0.0
    %7299 = vmatprep.subr.mxu0 0.0
    %7300 = vmatpush1.msra.mxu0 0.0
    %7301 = vmatprep.subr.mxu0 0.0
    %7302 = vmatpush1.msra.mxu0 0.0
    %7303 = vmatprep.subr.mxu0 0.0
    %7304 = vmatpush1.msra.mxu0 0.0
    %7305 = vmatprep.subr.mxu0 0.0
    %7306 = vmatpush1.msra.mxu0 0.0
    %7307 = vmatprep.subr.mxu0 0.0
    %7308 = vmatpush1.msra.mxu0 0.0
    %7309 = vmatprep.subr.mxu0 0.0
    %7310 = vmatpush1.msra.mxu0 0.0
    %7311 = vmatprep.subr.mxu0 0.0
    %7312 = vmatpush1.msra.mxu0 0.0
    %7313 = vmatprep.subr.mxu0 0.0
    %7314 = vmatpush1.msra.mxu0 0.0
    %7315 = vmatprep.subr.mxu0 0.0
    %7316 = vmatpush1.msra.mxu0 0.0
    %7317 = vmatprep.subr.mxu0 0.0
    %7318 = vmatpush1.msra.mxu0 0.0
    %7319 = vmatprep.subr.mxu0 0.0
    %7320 = vmatpush1.msra.mxu0 0.0
    %7321 = vmatprep.subr.mxu0 0.0
    %7322 = vmatpush1.msra.mxu0 0.0
    %7323 = vmatprep.subr.mxu0 0.0
    %7324 = vmatpush1.msra.mxu0 0.0
    %7325 = vmatprep.subr.mxu0 0.0
    %7326 = vmatpush1.msra.mxu0 0.0
    %7327 = vmatprep.mubr.f32.mxu0 0.0
    %v7328 = vand.u32 %v7180, 4294901760
    %7329 = vmatmul.mubr.f32.gmra.mrb[0].mxu0 %v7328
    %v7330 = vpop.f32.mrb[0].mxu0
    %v7331 = vadd.f32 %v7255, %v7330
    %v7332 = vpop.f32.mrb[0].mxu0
    %7333 = vdwg.mxu0
    %7334 = vmatprep.subr.mxu0 0.0
    %v7335 = vand.u32 %v7177, 4294901760
    %v7336 = vsub.f32 %v7177, %v7335
    %7337 = vmatpush1.msra.mxu0 %v7336
    %7338 = vmatprep.subr.mxu0 0.0
    %7339 = vmatpush1.msra.mxu0 0.0
    %7340 = vmatprep.subr.mxu0 0.0
    %7341 = vmatpush1.msra.mxu0 0.0
    %7342 = vmatprep.subr.mxu0 0.0
    %7343 = vmatpush1.msra.mxu0 0.0
    %7344 = vmatprep.subr.mxu0 0.0
    %7345 = vmatpush1.msra.mxu0 0.0
    %7346 = vmatprep.subr.mxu0 0.0
    %7347 = vmatpush1.msra.mxu0 0.0
    %7348 = vmatprep.subr.mxu0 0.0
    %7349 = vmatpush1.msra.mxu0 0.0
    %7350 = vmatprep.subr.mxu0 0.0
    %7351 = vmatpush1.msra.mxu0 0.0
    %7352 = vmatprep.subr.mxu0 0.0
    %7353 = vmatpush1.msra.mxu0 0.0
    %7354 = vmatprep.subr.mxu0 0.0
    %7355 = vmatpush1.msra.mxu0 0.0
    %7356 = vmatprep.subr.mxu0 0.0
    %7357 = vmatpush1.msra.mxu0 0.0
    %7358 = vmatprep.subr.mxu0 0.0
    %7359 = vmatpush1.msra.mxu0 0.0
    %7360 = vmatprep.subr.mxu0 0.0
    %7361 = vmatpush1.msra.mxu0 0.0
    %7362 = vmatprep.subr.mxu0 0.0
    %7363 = vmatpush1.msra.mxu0 0.0
    %7364 = vmatprep.subr.mxu0 0.0
    %7365 = vmatpush1.msra.mxu0 0.0
    %7366 = vmatprep.subr.mxu0 0.0
    %7367 = vmatpush1.msra.mxu0 0.0
    %7368 = vmatprep.subr.mxu0 0.0
    %7369 = vmatpush1.msra.mxu0 0.0
    %7370 = vmatprep.subr.mxu0 0.0
    %7371 = vmatpush1.msra.mxu0 0.0
    %7372 = vmatprep.subr.mxu0 0.0
    %7373 = vmatpush1.msra.mxu0 0.0
    %7374 = vmatprep.subr.mxu0 0.0
    %7375 = vmatpush1.msra.mxu0 0.0
    %7376 = vmatprep.subr.mxu0 0.0
    %7377 = vmatpush1.msra.mxu0 0.0
    %7378 = vmatprep.subr.mxu0 0.0
    %7379 = vmatpush1.msra.mxu0 0.0
    %7380 = vmatprep.subr.mxu0 0.0
    %7381 = vmatpush1.msra.mxu0 0.0
    %7382 = vmatprep.subr.mxu0 0.0
    %7383 = vmatpush1.msra.mxu0 0.0
    %7384 = vmatprep.subr.mxu0 0.0
    %7385 = vmatpush1.msra.mxu0 0.0
    %7386 = vmatprep.subr.mxu0 0.0
    %7387 = vmatpush1.msra.mxu0 0.0
    %7388 = vmatprep.subr.mxu0 0.0
    %7389 = vmatpush1.msra.mxu0 0.0
    %7390 = vmatprep.subr.mxu0 0.0
    %7391 = vmatpush1.msra.mxu0 0.0
    %7392 = vmatprep.subr.mxu0 0.0
    %7393 = vmatpush1.msra.mxu0 0.0
    %7394 = vmatprep.subr.mxu0 0.0
    %7395 = vmatpush1.msra.mxu0 0.0
    %7396 = vmatprep.subr.mxu0 0.0
    %7397 = vmatpush1.msra.mxu0 0.0
    %7398 = vmatprep.subr.mxu0 0.0
    %7399 = vmatpush1.msra.mxu0 0.0
    %7400 = vmatprep.mubr.f32.mxu0 0.0
    %v7401 = vand.u32 %v7180, 4294901760
    %v7402 = vsub.f32 %v7180, %v7401
    %7403 = vmatmul.mubr.f32.gmra.mrb[0].mxu0 %v7402
    %v7404 = vpop.f32.mrb[0].mxu0
    %v7405 = vadd.f32 %v7331, %v7404
    %v7406 = vpop.f32.mrb[0].mxu0
    %7407 = vdwg.mxu0
    %7408 = vmatprep.subr.mxu0 0.0
    %v7409 = vand.u32 %v7177, 4294901760
    %7410 = vmatpush1.msra.mxu0 %v7409
    %7411 = vmatprep.subr.mxu0 0.0
    %7412 = vmatpush1.msra.mxu0 0.0
    %7413 = vmatprep.subr.mxu0 0.0
    %7414 = vmatpush1.msra.mxu0 0.0
    %7415 = vmatprep.subr.mxu0 0.0
    %7416 = vmatpush1.msra.mxu0 0.0
    %7417 = vmatprep.subr.mxu0 0.0
    %7418 = vmatpush1.msra.mxu0 0.0
    %7419 = vmatprep.subr.mxu0 0.0
    %7420 = vmatpush1.msra.mxu0 0.0
    %7421 = vmatprep.subr.mxu0 0.0
    %7422 = vmatpush1.msra.mxu0 0.0
    %7423 = vmatprep.subr.mxu0 0.0
    %7424 = vmatpush1.msra.mxu0 0.0
    %7425 = vmatprep.subr.mxu0 0.0
    %7426 = vmatpush1.msra.mxu0 0.0
    %7427 = vmatprep.subr.mxu0 0.0
    %7428 = vmatpush1.msra.mxu0 0.0
    %7429 = vmatprep.subr.mxu0 0.0
    %7430 = vmatpush1.msra.mxu0 0.0
    %7431 = vmatprep.subr.mxu0 0.0
    %7432 = vmatpush1.msra.mxu0 0.0
    %7433 = vmatprep.subr.mxu0 0.0
    %7434 = vmatpush1.msra.mxu0 0.0
    %7435 = vmatprep.subr.mxu0 0.0
    %7436 = vmatpush1.msra.mxu0 0.0
    %7437 = vmatprep.subr.mxu0 0.0
    %7438 = vmatpush1.msra.mxu0 0.0
    %7439 = vmatprep.subr.mxu0 0.0
    %7440 = vmatpush1.msra.mxu0 0.0
    %7441 = vmatprep.subr.mxu0 0.0
    %7442 = vmatpush1.msra.mxu0 0.0
    %7443 = vmatprep.subr.mxu0 0.0
    %7444 = vmatpush1.msra.mxu0 0.0
    %7445 = vmatprep.subr.mxu0 0.0
    %7446 = vmatpush1.msra.mxu0 0.0
    %7447 = vmatprep.subr.mxu0 0.0
    %7448 = vmatpush1.msra.mxu0 0.0
    %7449 = vmatprep.subr.mxu0 0.0
    %7450 = vmatpush1.msra.mxu0 0.0
    %7451 = vmatprep.subr.mxu0 0.0
    %7452 = vmatpush1.msra.mxu0 0.0
    %7453 = vmatprep.subr.mxu0 0.0
    %7454 = vmatpush1.msra.mxu0 0.0
    %7455 = vmatprep.subr.mxu0 0.0
    %7456 = vmatpush1.msra.mxu0 0.0
    %7457 = vmatprep.subr.mxu0 0.0
    %7458 = vmatpush1.msra.mxu0 0.0
    %7459 = vmatprep.subr.mxu0 0.0
    %7460 = vmatpush1.msra.mxu0 0.0
    %7461 = vmatprep.subr.mxu0 0.0
    %7462 = vmatpush1.msra.mxu0 0.0
    %7463 = vmatprep.subr.mxu0 0.0
    %7464 = vmatpush1.msra.mxu0 0.0
    %7465 = vmatprep.subr.mxu0 0.0
    %7466 = vmatpush1.msra.mxu0 0.0
    %7467 = vmatprep.subr.mxu0 0.0
    %7468 = vmatpush1.msra.mxu0 0.0
    %7469 = vmatprep.subr.mxu0 0.0
    %7470 = vmatpush1.msra.mxu0 0.0
    %7471 = vmatprep.subr.mxu0 0.0
    %7472 = vmatpush1.msra.mxu0 0.0
    %7473 = vmatprep.mubr.f32.mxu0 0.0
    %v7474 = vand.u32 %v7180, 4294901760
    %v7475 = vsub.f32 %v7180, %v7474
    %v7476 = vand.u32 %v7475, 4294901760
    %7477 = vmatmul.mubr.f32.gmra.mrb[0].mxu0 %v7476
    %v7478 = vpop.f32.mrb[0].mxu0
    %v7479 = vadd.f32 %v7405, %v7478
    %v7480 = vpop.f32.mrb[0].mxu0
    %7481 = vdwg.mxu0
    %7482 = vmatprep.subr.mxu0 0.0
    %v7483 = vand.u32 %v7177, 4294901760
    %v7484 = vsub.f32 %v7177, %v7483
    %v7485 = vand.u32 %v7484, 4294901760
    %7486 = vmatpush1.msra.mxu0 %v7485
    %7487 = vmatprep.subr.mxu0 0.0
    %7488 = vmatpush1.msra.mxu0 0.0
    %7489 = vmatprep.subr.mxu0 0.0
    %7490 = vmatpush1.msra.mxu0 0.0
    %7491 = vmatprep.subr.mxu0 0.0
    %7492 = vmatpush1.msra.mxu0 0.0
    %7493 = vmatprep.subr.mxu0 0.0
    %7494 = vmatpush1.msra.mxu0 0.0
    %7495 = vmatprep.subr.mxu0 0.0
    %7496 = vmatpush1.msra.mxu0 0.0
    %7497 = vmatprep.subr.mxu0 0.0
    %7498 = vmatpush1.msra.mxu0 0.0
    %7499 = vmatprep.subr.mxu0 0.0
    %7500 = vmatpush1.msra.mxu0 0.0
    %7501 = vmatprep.subr.mxu0 0.0
    %7502 = vmatpush1.msra.mxu0 0.0
    %7503 = vmatprep.subr.mxu0 0.0
    %7504 = vmatpush1.msra.mxu0 0.0
    %7505 = vmatprep.subr.mxu0 0.0
    %7506 = vmatpush1.msra.mxu0 0.0
    %7507 = vmatprep.subr.mxu0 0.0
    %7508 = vmatpush1.msra.mxu0 0.0
    %7509 = vmatprep.subr.mxu0 0.0
    %7510 = vmatpush1.msra.mxu0 0.0
    %7511 = vmatprep.subr.mxu0 0.0
    %7512 = vmatpush1.msra.mxu0 0.0
    %7513 = vmatprep.subr.mxu0 0.0
    %7514 = vmatpush1.msra.mxu0 0.0
    %7515 = vmatprep.subr.mxu0 0.0
    %7516 = vmatpush1.msra.mxu0 0.0
    %7517 = vmatprep.subr.mxu0 0.0
    %7518 = vmatpush1.msra.mxu0 0.0
    %7519 = vmatprep.subr.mxu0 0.0
    %7520 = vmatpush1.msra.mxu0 0.0
    %7521 = vmatprep.subr.mxu0 0.0
    %7522 = vmatpush1.msra.mxu0 0.0
    %7523 = vmatprep.subr.mxu0 0.0
    %7524 = vmatpush1.msra.mxu0 0.0
    %7525 = vmatprep.subr.mxu0 0.0
    %7526 = vmatpush1.msra.mxu0 0.0
    %7527 = vmatprep.subr.mxu0 0.0
    %7528 = vmatpush1.msra.mxu0 0.0
    %7529 = vmatprep.subr.mxu0 0.0
    %7530 = vmatpush1.msra.mxu0 0.0
    %7531 = vmatprep.subr.mxu0 0.0
    %7532 = vmatpush1.msra.mxu0 0.0
    %7533 = vmatprep.subr.mxu0 0.0
    %7534 = vmatpush1.msra.mxu0 0.0
    %7535 = vmatprep.subr.mxu0 0.0
    %7536 = vmatpush1.msra.mxu0 0.0
    %7537 = vmatprep.subr.mxu0 0.0
    %7538 = vmatpush1.msra.mxu0 0.0
    %7539 = vmatprep.subr.mxu0 0.0
    %7540 = vmatpush1.msra.mxu0 0.0
    %7541 = vmatprep.subr.mxu0 0.0
    %7542 = vmatpush1.msra.mxu0 0.0
    %7543 = vmatprep.subr.mxu0 0.0
    %7544 = vmatpush1.msra.mxu0 0.0
    %7545 = vmatprep.subr.mxu0 0.0
    %7546 = vmatpush1.msra.mxu0 0.0
    %7547 = vmatprep.subr.mxu0 0.0
    %7548 = vmatpush1.msra.mxu0 0.0
    %7549 = vmatprep.mubr.f32.mxu0 0.0
    %v7550 = vand.u32 %v7180, 4294901760
    %7551 = vmatmul.mubr.f32.gmra.mrb[0].mxu0 %v7550
    %v7552 = vpop.f32.mrb[0].mxu0
    %v7553 = vadd.f32 %v7479, %v7552
    %v7554 = vpop.f32.mrb[0].mxu0
    %7555 = vdwg.mxu0
    %7556 = vmatprep.subr.mxu0 0.0
    %v7557 = vand.u32 %v7177, 4294901760
    %7558 = vmatpush1.msra.mxu0 %v7557
    %7559 = vmatprep.subr.mxu0 0.0
    %7560 = vmatpush1.msra.mxu0 0.0
    %7561 = vmatprep.subr.mxu0 0.0
    %7562 = vmatpush1.msra.mxu0 0.0
    %7563 = vmatprep.subr.mxu0 0.0
    %7564 = vmatpush1.msra.mxu0 0.0
    %7565 = vmatprep.subr.mxu0 0.0
    %7566 = vmatpush1.msra.mxu0 0.0
    %7567 = vmatprep.subr.mxu0 0.0
    %7568 = vmatpush1.msra.mxu0 0.0
    %7569 = vmatprep.subr.mxu0 0.0
    %7570 = vmatpush1.msra.mxu0 0.0
    %7571 = vmatprep.subr.mxu0 0.0
    %7572 = vmatpush1.msra.mxu0 0.0
    %7573 = vmatprep.subr.mxu0 0.0
    %7574 = vmatpush1.msra.mxu0 0.0
    %7575 = vmatprep.subr.mxu0 0.0
    %7576 = vmatpush1.msra.mxu0 0.0
    %7577 = vmatprep.subr.mxu0 0.0
    %7578 = vmatpush1.msra.mxu0 0.0
    %7579 = vmatprep.subr.mxu0 0.0
    %7580 = vmatpush1.msra.mxu0 0.0
    %7581 = vmatprep.subr.mxu0 0.0
    %7582 = vmatpush1.msra.mxu0 0.0
    %7583 = vmatprep.subr.mxu0 0.0
    %7584 = vmatpush1.msra.mxu0 0.0
    %7585 = vmatprep.subr.mxu0 0.0
    %7586 = vmatpush1.msra.mxu0 0.0
    %7587 = vmatprep.subr.mxu0 0.0
    %7588 = vmatpush1.msra.mxu0 0.0
    %7589 = vmatprep.subr.mxu0 0.0
    %7590 = vmatpush1.msra.mxu0 0.0
    %7591 = vmatprep.subr.mxu0 0.0
    %7592 = vmatpush1.msra.mxu0 0.0
    %7593 = vmatprep.subr.mxu0 0.0
    %7594 = vmatpush1.msra.mxu0 0.0
    %7595 = vmatprep.subr.mxu0 0.0
    %7596 = vmatpush1.msra.mxu0 0.0
    %7597 = vmatprep.subr.mxu0 0.0
    %7598 = vmatpush1.msra.mxu0 0.0
    %7599 = vmatprep.subr.mxu0 0.0
    %7600 = vmatpush1.msra.mxu0 0.0
    %7601 = vmatprep.subr.mxu0 0.0
    %7602 = vmatpush1.msra.mxu0 0.0
    %7603 = vmatprep.subr.mxu0 0.0
    %7604 = vmatpush1.msra.mxu0 0.0
    %7605 = vmatprep.subr.mxu0 0.0
    %7606 = vmatpush1.msra.mxu0 0.0
    %7607 = vmatprep.subr.mxu0 0.0
    %7608 = vmatpush1.msra.mxu0 0.0
    %7609 = vmatprep.subr.mxu0 0.0
    %7610 = vmatpush1.msra.mxu0 0.0
    %7611 = vmatprep.subr.mxu0 0.0
    %7612 = vmatpush1.msra.mxu0 0.0
    %7613 = vmatprep.subr.mxu0 0.0
    %7614 = vmatpush1.msra.mxu0 0.0
    %7615 = vmatprep.subr.mxu0 0.0
    %7616 = vmatpush1.msra.mxu0 0.0
    %7617 = vmatprep.subr.mxu0 0.0
    %7618 = vmatpush1.msra.mxu0 0.0
    %7619 = vmatprep.subr.mxu0 0.0
    %7620 = vmatpush1.msra.mxu0 0.0
    %7621 = vmatprep.mubr.f32.mxu0 0.0
    %v7622 = vand.u32 %v7180, 4294901760
    %7623 = vmatmul.mubr.f32.gmra.mrb[0].mxu0 %v7622
    %v7624 = vpop.f32.mrb[0].mxu0
    %v7625 = vadd.f32 %v7553, %v7624
    %v7626 = vpop.f32.mrb[0].mxu0
    %7627 = vdwg.mxu0
    %7629 = vrot.lane.b32.xlu0 %v7625, 64
    %v7630 = vpop.permute.xlu0 %7629
    %7632 = vst.msk [vmem:[#allocation2 + $0x8] sm:$0xff] %vm3943, %v7630
    %7633 = vrot.lane.b32.xlu0 %v647, 32
    %v7634 = vpop.permute.xlu0 %7633
    %7635 = vrot.lane.b32.xlu0 %v649, 32
    %v7636 = vpop.permute.xlu0 %7635
    %v7637 = vsel %vm52, %v7634, 0
    %v7639 = vsel %vm52, %v7636, 0
    %7641 = vmatprep.subr.mxu0 0.0
    %v7642 = vand.u32 %v7639, 4294901760
    %7643 = vmatpush1.xpose.msra.mxu0 %v7642
    %7644 = vmatprep.subr.mxu0 0.0
    %7645 = vmatpush1.xpose.msra.mxu0 0.0
    %7646 = vmatprep.subr.mxu0 0.0
    %7647 = vmatpush1.xpose.msra.mxu0 0.0
    %7648 = vmatprep.subr.mxu0 0.0
    %7649 = vmatpush1.xpose.msra.mxu0 0.0
    %7650 = vmatprep.subr.mxu0 0.0
    %7651 = vmatpush1.xpose.msra.mxu0 0.0
    %7652 = vmatprep.subr.mxu0 0.0
    %7653 = vmatpush1.xpose.msra.mxu0 0.0
    %7654 = vmatprep.subr.mxu0 0.0
    %7655 = vmatpush1.xpose.msra.mxu0 0.0
    %7656 = vmatprep.subr.mxu0 0.0
    %7657 = vmatpush1.xpose.msra.mxu0 0.0
    %7658 = vmatprep.subr.mxu0 0.0
    %7659 = vmatpush1.xpose.msra.mxu0 0.0
    %7660 = vmatprep.subr.mxu0 0.0
    %7661 = vmatpush1.xpose.msra.mxu0 0.0
    %7662 = vmatprep.subr.mxu0 0.0
    %7663 = vmatpush1.xpose.msra.mxu0 0.0
    %7664 = vmatprep.subr.mxu0 0.0
    %7665 = vmatpush1.xpose.msra.mxu0 0.0
    %7666 = vmatprep.subr.mxu0 0.0
    %7667 = vmatpush1.xpose.msra.mxu0 0.0
    %7668 = vmatprep.subr.mxu0 0.0
    %7669 = vmatpush1.xpose.msra.mxu0 0.0
    %7670 = vmatprep.subr.mxu0 0.0
    %7671 = vmatpush1.xpose.msra.mxu0 0.0
    %7672 = vmatprep.subr.mxu0 0.0
    %7673 = vmatpush1.xpose.msra.mxu0 0.0
    %7674 = vmatprep.subr.mxu0 0.0
    %7675 = vmatpush1.xpose.msra.mxu0 0.0
    %7676 = vmatprep.subr.mxu0 0.0
    %7677 = vmatpush1.xpose.msra.mxu0 0.0
    %7678 = vmatprep.subr.mxu0 0.0
    %7679 = vmatpush1.xpose.msra.mxu0 0.0
    %7680 = vmatprep.subr.mxu0 0.0
    %7681 = vmatpush1.xpose.msra.mxu0 0.0
    %7682 = vmatprep.subr.mxu0 0.0
    %7683 = vmatpush1.xpose.msra.mxu0 0.0
    %7684 = vmatprep.subr.mxu0 0.0
    %7685 = vmatpush1.xpose.msra.mxu0 0.0
    %7686 = vmatprep.subr.mxu0 0.0
    %7687 = vmatpush1.xpose.msra.mxu0 0.0
    %7688 = vmatprep.subr.mxu0 0.0
    %7689 = vmatpush1.xpose.msra.mxu0 0.0
    %7690 = vmatprep.subr.mxu0 0.0
    %7691 = vmatpush1.xpose.msra.mxu0 0.0
    %7692 = vmatprep.subr.mxu0 0.0
    %7693 = vmatpush1.xpose.msra.mxu0 0.0
    %7694 = vmatprep.subr.mxu0 0.0
    %7695 = vmatpush1.xpose.msra.mxu0 0.0
    %7696 = vmatprep.subr.mxu0 0.0
    %7697 = vmatpush1.xpose.msra.mxu0 0.0
    %7698 = vmatprep.subr.mxu0 0.0
    %7699 = vmatpush1.xpose.msra.mxu0 0.0
    %7700 = vmatprep.subr.mxu0 0.0
    %7701 = vmatpush1.xpose.msra.mxu0 0.0
    %7702 = vmatprep.subr.mxu0 0.0
    %7703 = vmatpush1.xpose.msra.mxu0 0.0
    %7704 = vmatprep.subr.mxu0 0.0
    %7705 = vmatpush1.xpose.msra.mxu0 0.0
    %7706 = vmatprep.mubr.f32.mxu0 0.0
    %v7707 = vand.u32 %v7637, 4294901760
    %v7708 = vsub.f32 %v7637, %v7707
    %v7709 = vand.u32 %v7708, 4294901760
    %v7710 = vsub.f32 %v7708, %v7709
    %v7711 = vand.u32 %v7710, 4294901760
    %7712 = vmatmul.mubr.f32.gmra.mrb[0].mxu0 %v7711
    %v7713 = vpop.f32.mrb[0].mxu0
    %v7714 = vadd.f32 0.0, %v7713
    %v7715 = vpop.f32.mrb[0].mxu0
    %7716 = vdwg.mxu0
    %7717 = vmatprep.subr.mxu0 0.0
    %v7718 = vand.u32 %v7639, 4294901760
    %v7719 = vsub.f32 %v7639, %v7718
    %v7720 = vand.u32 %v7719, 4294901760
    %v7721 = vsub.f32 %v7719, %v7720
    %v7722 = vand.u32 %v7721, 4294901760
    %7723 = vmatpush1.xpose.msra.mxu0 %v7722
    %7724 = vmatprep.subr.mxu0 0.0
    %7725 = vmatpush1.xpose.msra.mxu0 0.0
    %7726 = vmatprep.subr.mxu0 0.0
    %7727 = vmatpush1.xpose.msra.mxu0 0.0
    %7728 = vmatprep.subr.mxu0 0.0
    %7729 = vmatpush1.xpose.msra.mxu0 0.0
    %7730 = vmatprep.subr.mxu0 0.0
    %7731 = vmatpush1.xpose.msra.mxu0 0.0
    %7732 = vmatprep.subr.mxu0 0.0
    %7733 = vmatpush1.xpose.msra.mxu0 0.0
    %7734 = vmatprep.subr.mxu0 0.0
    %7735 = vmatpush1.xpose.msra.mxu0 0.0
    %7736 = vmatprep.subr.mxu0 0.0
    %7737 = vmatpush1.xpose.msra.mxu0 0.0
    %7738 = vmatprep.subr.mxu0 0.0
    %7739 = vmatpush1.xpose.msra.mxu0 0.0
    %7740 = vmatprep.subr.mxu0 0.0
    %7741 = vmatpush1.xpose.msra.mxu0 0.0
    %7742 = vmatprep.subr.mxu0 0.0
    %7743 = vmatpush1.xpose.msra.mxu0 0.0
    %7744 = vmatprep.subr.mxu0 0.0
    %7745 = vmatpush1.xpose.msra.mxu0 0.0
    %7746 = vmatprep.subr.mxu0 0.0
    %7747 = vmatpush1.xpose.msra.mxu0 0.0
    %7748 = vmatprep.subr.mxu0 0.0
    %7749 = vmatpush1.xpose.msra.mxu0 0.0
    %7750 = vmatprep.subr.mxu0 0.0
    %7751 = vmatpush1.xpose.msra.mxu0 0.0
    %7752 = vmatprep.subr.mxu0 0.0
    %7753 = vmatpush1.xpose.msra.mxu0 0.0
    %7754 = vmatprep.subr.mxu0 0.0
    %7755 = vmatpush1.xpose.msra.mxu0 0.0
    %7756 = vmatprep.subr.mxu0 0.0
    %7757 = vmatpush1.xpose.msra.mxu0 0.0
    %7758 = vmatprep.subr.mxu0 0.0
    %7759 = vmatpush1.xpose.msra.mxu0 0.0
    %7760 = vmatprep.subr.mxu0 0.0
    %7761 = vmatpush1.xpose.msra.mxu0 0.0
    %7762 = vmatprep.subr.mxu0 0.0
    %7763 = vmatpush1.xpose.msra.mxu0 0.0
    %7764 = vmatprep.subr.mxu0 0.0
    %7765 = vmatpush1.xpose.msra.mxu0 0.0
    %7766 = vmatprep.subr.mxu0 0.0
    %7767 = vmatpush1.xpose.msra.mxu0 0.0
    %7768 = vmatprep.subr.mxu0 0.0
    %7769 = vmatpush1.xpose.msra.mxu0 0.0
    %7770 = vmatprep.subr.mxu0 0.0
    %7771 = vmatpush1.xpose.msra.mxu0 0.0
    %7772 = vmatprep.subr.mxu0 0.0
    %7773 = vmatpush1.xpose.msra.mxu0 0.0
    %7774 = vmatprep.subr.mxu0 0.0
    %7775 = vmatpush1.xpose.msra.mxu0 0.0
    %7776 = vmatprep.subr.mxu0 0.0
    %7777 = vmatpush1.xpose.msra.mxu0 0.0
    %7778 = vmatprep.subr.mxu0 0.0
    %7779 = vmatpush1.xpose.msra.mxu0 0.0
    %7780 = vmatprep.subr.mxu0 0.0
    %7781 = vmatpush1.xpose.msra.mxu0 0.0
    %7782 = vmatprep.subr.mxu0 0.0
    %7783 = vmatpush1.xpose.msra.mxu0 0.0
    %7784 = vmatprep.subr.mxu0 0.0
    %7785 = vmatpush1.xpose.msra.mxu0 0.0
    %7786 = vmatprep.mubr.f32.mxu0 0.0
    %v7787 = vand.u32 %v7637, 4294901760
    %7788 = vmatmul.mubr.f32.gmra.mrb[0].mxu0 %v7787
    %v7789 = vpop.f32.mrb[0].mxu0
    %v7790 = vadd.f32 %v7714, %v7789
    %v7791 = vpop.f32.mrb[0].mxu0
    %7792 = vdwg.mxu0
    %7793 = vmatprep.subr.mxu0 0.0
    %v7794 = vand.u32 %v7639, 4294901760
    %v7795 = vsub.f32 %v7639, %v7794
    %7796 = vmatpush1.xpose.msra.mxu0 %v7795
    %7797 = vmatprep.subr.mxu0 0.0
    %7798 = vmatpush1.xpose.msra.mxu0 0.0
    %7799 = vmatprep.subr.mxu0 0.0
    %7800 = vmatpush1.xpose.msra.mxu0 0.0
    %7801 = vmatprep.subr.mxu0 0.0
    %7802 = vmatpush1.xpose.msra.mxu0 0.0
    %7803 = vmatprep.subr.mxu0 0.0
    %7804 = vmatpush1.xpose.msra.mxu0 0.0
    %7805 = vmatprep.subr.mxu0 0.0
    %7806 = vmatpush1.xpose.msra.mxu0 0.0
    %7807 = vmatprep.subr.mxu0 0.0
    %7808 = vmatpush1.xpose.msra.mxu0 0.0
    %7809 = vmatprep.subr.mxu0 0.0
    %7810 = vmatpush1.xpose.msra.mxu0 0.0
    %7811 = vmatprep.subr.mxu0 0.0
    %7812 = vmatpush1.xpose.msra.mxu0 0.0
    %7813 = vmatprep.subr.mxu0 0.0
    %7814 = vmatpush1.xpose.msra.mxu0 0.0
    %7815 = vmatprep.subr.mxu0 0.0
    %7816 = vmatpush1.xpose.msra.mxu0 0.0
    %7817 = vmatprep.subr.mxu0 0.0
    %7818 = vmatpush1.xpose.msra.mxu0 0.0
    %7819 = vmatprep.subr.mxu0 0.0
    %7820 = vmatpush1.xpose.msra.mxu0 0.0
    %7821 = vmatprep.subr.mxu0 0.0
    %7822 = vmatpush1.xpose.msra.mxu0 0.0
    %7823 = vmatprep.subr.mxu0 0.0
    %7824 = vmatpush1.xpose.msra.mxu0 0.0
    %7825 = vmatprep.subr.mxu0 0.0
    %7826 = vmatpush1.xpose.msra.mxu0 0.0
    %7827 = vmatprep.subr.mxu0 0.0
    %7828 = vmatpush1.xpose.msra.mxu0 0.0
    %7829 = vmatprep.subr.mxu0 0.0
    %7830 = vmatpush1.xpose.msra.mxu0 0.0
    %7831 = vmatprep.subr.mxu0 0.0
    %7832 = vmatpush1.xpose.msra.mxu0 0.0
    %7833 = vmatprep.subr.mxu0 0.0
    %7834 = vmatpush1.xpose.msra.mxu0 0.0
    %7835 = vmatprep.subr.mxu0 0.0
    %7836 = vmatpush1.xpose.msra.mxu0 0.0
    %7837 = vmatprep.subr.mxu0 0.0
    %7838 = vmatpush1.xpose.msra.mxu0 0.0
    %7839 = vmatprep.subr.mxu0 0.0
    %7840 = vmatpush1.xpose.msra.mxu0 0.0
    %7841 = vmatprep.subr.mxu0 0.0
    %7842 = vmatpush1.xpose.msra.mxu0 0.0
    %7843 = vmatprep.subr.mxu0 0.0
    %7844 = vmatpush1.xpose.msra.mxu0 0.0
    %7845 = vmatprep.subr.mxu0 0.0
    %7846 = vmatpush1.xpose.msra.mxu0 0.0
    %7847 = vmatprep.subr.mxu0 0.0
    %7848 = vmatpush1.xpose.msra.mxu0 0.0
    %7849 = vmatprep.subr.mxu0 0.0
    %7850 = vmatpush1.xpose.msra.mxu0 0.0
    %7851 = vmatprep.subr.mxu0 0.0
    %7852 = vmatpush1.xpose.msra.mxu0 0.0
    %7853 = vmatprep.subr.mxu0 0.0
    %7854 = vmatpush1.xpose.msra.mxu0 0.0
    %7855 = vmatprep.subr.mxu0 0.0
    %7856 = vmatpush1.xpose.msra.mxu0 0.0
    %7857 = vmatprep.subr.mxu0 0.0
    %7858 = vmatpush1.xpose.msra.mxu0 0.0
    %7859 = vmatprep.mubr.f32.mxu0 0.0
    %v7860 = vand.u32 %v7637, 4294901760
    %v7861 = vsub.f32 %v7637, %v7860
    %7862 = vmatmul.mubr.f32.gmra.mrb[0].mxu0 %v7861
    %v7863 = vpop.f32.mrb[0].mxu0
    %v7864 = vadd.f32 %v7790, %v7863
    %v7865 = vpop.f32.mrb[0].mxu0
    %7866 = vdwg.mxu0
    %7867 = vmatprep.subr.mxu0 0.0
    %v7868 = vand.u32 %v7639, 4294901760
    %7869 = vmatpush1.xpose.msra.mxu0 %v7868
    %7870 = vmatprep.subr.mxu0 0.0
    %7871 = vmatpush1.xpose.msra.mxu0 0.0
    %7872 = vmatprep.subr.mxu0 0.0
    %7873 = vmatpush1.xpose.msra.mxu0 0.0
    %7874 = vmatprep.subr.mxu0 0.0
    %7875 = vmatpush1.xpose.msra.mxu0 0.0
    %7876 = vmatprep.subr.mxu0 0.0
    %7877 = vmatpush1.xpose.msra.mxu0 0.0
    %7878 = vmatprep.subr.mxu0 0.0
    %7879 = vmatpush1.xpose.msra.mxu0 0.0
    %7880 = vmatprep.subr.mxu0 0.0
    %7881 = vmatpush1.xpose.msra.mxu0 0.0
    %7882 = vmatprep.subr.mxu0 0.0
    %7883 = vmatpush1.xpose.msra.mxu0 0.0
    %7884 = vmatprep.subr.mxu0 0.0
    %7885 = vmatpush1.xpose.msra.mxu0 0.0
    %7886 = vmatprep.subr.mxu0 0.0
    %7887 = vmatpush1.xpose.msra.mxu0 0.0
    %7888 = vmatprep.subr.mxu0 0.0
    %7889 = vmatpush1.xpose.msra.mxu0 0.0
    %7890 = vmatprep.subr.mxu0 0.0
    %7891 = vmatpush1.xpose.msra.mxu0 0.0
    %7892 = vmatprep.subr.mxu0 0.0
    %7893 = vmatpush1.xpose.msra.mxu0 0.0
    %7894 = vmatprep.subr.mxu0 0.0
    %7895 = vmatpush1.xpose.msra.mxu0 0.0
    %7896 = vmatprep.subr.mxu0 0.0
    %7897 = vmatpush1.xpose.msra.mxu0 0.0
    %7898 = vmatprep.subr.mxu0 0.0
    %7899 = vmatpush1.xpose.msra.mxu0 0.0
    %7900 = vmatprep.subr.mxu0 0.0
    %7901 = vmatpush1.xpose.msra.mxu0 0.0
    %7902 = vmatprep.subr.mxu0 0.0
    %7903 = vmatpush1.xpose.msra.mxu0 0.0
    %7904 = vmatprep.subr.mxu0 0.0
    %7905 = vmatpush1.xpose.msra.mxu0 0.0
    %7906 = vmatprep.subr.mxu0 0.0
    %7907 = vmatpush1.xpose.msra.mxu0 0.0
    %7908 = vmatprep.subr.mxu0 0.0
    %7909 = vmatpush1.xpose.msra.mxu0 0.0
    %7910 = vmatprep.subr.mxu0 0.0
    %7911 = vmatpush1.xpose.msra.mxu0 0.0
    %7912 = vmatprep.subr.mxu0 0.0
    %7913 = vmatpush1.xpose.msra.mxu0 0.0
    %7914 = vmatprep.subr.mxu0 0.0
    %7915 = vmatpush1.xpose.msra.mxu0 0.0
    %7916 = vmatprep.subr.mxu0 0.0
    %7917 = vmatpush1.xpose.msra.mxu0 0.0
    %7918 = vmatprep.subr.mxu0 0.0
    %7919 = vmatpush1.xpose.msra.mxu0 0.0
    %7920 = vmatprep.subr.mxu0 0.0
    %7921 = vmatpush1.xpose.msra.mxu0 0.0
    %7922 = vmatprep.subr.mxu0 0.0
    %7923 = vmatpush1.xpose.msra.mxu0 0.0
    %7924 = vmatprep.subr.mxu0 0.0
    %7925 = vmatpush1.xpose.msra.mxu0 0.0
    %7926 = vmatprep.subr.mxu0 0.0
    %7927 = vmatpush1.xpose.msra.mxu0 0.0
    %7928 = vmatprep.subr.mxu0 0.0
    %7929 = vmatpush1.xpose.msra.mxu0 0.0
    %7930 = vmatprep.subr.mxu0 0.0
    %7931 = vmatpush1.xpose.msra.mxu0 0.0
    %7932 = vmatprep.mubr.f32.mxu0 0.0
    %v7933 = vand.u32 %v7637, 4294901760
    %v7934 = vsub.f32 %v7637, %v7933
    %v7935 = vand.u32 %v7934, 4294901760
    %7936 = vmatmul.mubr.f32.gmra.mrb[0].mxu0 %v7935
    %v7937 = vpop.f32.mrb[0].mxu0
    %v7938 = vadd.f32 %v7864, %v7937
    %v7939 = vpop.f32.mrb[0].mxu0
    %7940 = vdwg.mxu0
    %7941 = vmatprep.subr.mxu0 0.0
    %v7942 = vand.u32 %v7639, 4294901760
    %v7943 = vsub.f32 %v7639, %v7942
    %v7944 = vand.u32 %v7943, 4294901760
    %7945 = vmatpush1.xpose.msra.mxu0 %v7944
    %7946 = vmatprep.subr.mxu0 0.0
    %7947 = vmatpush1.xpose.msra.mxu0 0.0
    %7948 = vmatprep.subr.mxu0 0.0
    %7949 = vmatpush1.xpose.msra.mxu0 0.0
    %7950 = vmatprep.subr.mxu0 0.0
    %7951 = vmatpush1.xpose.msra.mxu0 0.0
    %7952 = vmatprep.subr.mxu0 0.0
    %7953 = vmatpush1.xpose.msra.mxu0 0.0
    %7954 = vmatprep.subr.mxu0 0.0
    %7955 = vmatpush1.xpose.msra.mxu0 0.0
    %7956 = vmatprep.subr.mxu0 0.0
    %7957 = vmatpush1.xpose.msra.mxu0 0.0
    %7958 = vmatprep.subr.mxu0 0.0
    %7959 = vmatpush1.xpose.msra.mxu0 0.0
    %7960 = vmatprep.subr.mxu0 0.0
    %7961 = vmatpush1.xpose.msra.mxu0 0.0
    %7962 = vmatprep.subr.mxu0 0.0
    %7963 = vmatpush1.xpose.msra.mxu0 0.0
    %7964 = vmatprep.subr.mxu0 0.0
    %7965 = vmatpush1.xpose.msra.mxu0 0.0
    %7966 = vmatprep.subr.mxu0 0.0
    %7967 = vmatpush1.xpose.msra.mxu0 0.0
    %7968 = vmatprep.subr.mxu0 0.0
    %7969 = vmatpush1.xpose.msra.mxu0 0.0
    %7970 = vmatprep.subr.mxu0 0.0
    %7971 = vmatpush1.xpose.msra.mxu0 0.0
    %7972 = vmatprep.subr.mxu0 0.0
    %7973 = vmatpush1.xpose.msra.mxu0 0.0
    %7974 = vmatprep.subr.mxu0 0.0
    %7975 = vmatpush1.xpose.msra.mxu0 0.0
    %7976 = vmatprep.subr.mxu0 0.0
    %7977 = vmatpush1.xpose.msra.mxu0 0.0
    %7978 = vmatprep.subr.mxu0 0.0
    %7979 = vmatpush1.xpose.msra.mxu0 0.0
    %7980 = vmatprep.subr.mxu0 0.0
    %7981 = vmatpush1.xpose.msra.mxu0 0.0
    %7982 = vmatprep.subr.mxu0 0.0
    %7983 = vmatpush1.xpose.msra.mxu0 0.0
    %7984 = vmatprep.subr.mxu0 0.0
    %7985 = vmatpush1.xpose.msra.mxu0 0.0
    %7986 = vmatprep.subr.mxu0 0.0
    %7987 = vmatpush1.xpose.msra.mxu0 0.0
    %7988 = vmatprep.subr.mxu0 0.0
    %7989 = vmatpush1.xpose.msra.mxu0 0.0
    %7990 = vmatprep.subr.mxu0 0.0
    %7991 = vmatpush1.xpose.msra.mxu0 0.0
    %7992 = vmatprep.subr.mxu0 0.0
    %7993 = vmatpush1.xpose.msra.mxu0 0.0
    %7994 = vmatprep.subr.mxu0 0.0
    %7995 = vmatpush1.xpose.msra.mxu0 0.0
    %7996 = vmatprep.subr.mxu0 0.0
    %7997 = vmatpush1.xpose.msra.mxu0 0.0
    %7998 = vmatprep.subr.mxu0 0.0
    %7999 = vmatpush1.xpose.msra.mxu0 0.0
    %8000 = vmatprep.subr.mxu0 0.0
    %8001 = vmatpush1.xpose.msra.mxu0 0.0
    %8002 = vmatprep.subr.mxu0 0.0
    %8003 = vmatpush1.xpose.msra.mxu0 0.0
    %8004 = vmatprep.subr.mxu0 0.0
    %8005 = vmatpush1.xpose.msra.mxu0 0.0
    %8006 = vmatprep.subr.mxu0 0.0
    %8007 = vmatpush1.xpose.msra.mxu0 0.0
    %8008 = vmatprep.mubr.f32.mxu0 0.0
    %v8009 = vand.u32 %v7637, 4294901760
    %8010 = vmatmul.mubr.f32.gmra.mrb[0].mxu0 %v8009
    %v8011 = vpop.f32.mrb[0].mxu0
    %v8012 = vadd.f32 %v7938, %v8011
    %v8013 = vpop.f32.mrb[0].mxu0
    %8014 = vdwg.mxu0
    %8015 = vmatprep.subr.mxu0 0.0
    %v8016 = vand.u32 %v7639, 4294901760
    %8017 = vmatpush1.xpose.msra.mxu0 %v8016
    %8018 = vmatprep.subr.mxu0 0.0
    %8019 = vmatpush1.xpose.msra.mxu0 0.0
    %8020 = vmatprep.subr.mxu0 0.0
    %8021 = vmatpush1.xpose.msra.mxu0 0.0
    %8022 = vmatprep.subr.mxu0 0.0
    %8023 = vmatpush1.xpose.msra.mxu0 0.0
    %8024 = vmatprep.subr.mxu0 0.0
    %8025 = vmatpush1.xpose.msra.mxu0 0.0
    %8026 = vmatprep.subr.mxu0 0.0
    %8027 = vmatpush1.xpose.msra.mxu0 0.0
    %8028 = vmatprep.subr.mxu0 0.0
    %8029 = vmatpush1.xpose.msra.mxu0 0.0
    %8030 = vmatprep.subr.mxu0 0.0
    %8031 = vmatpush1.xpose.msra.mxu0 0.0
    %8032 = vmatprep.subr.mxu0 0.0
    %8033 = vmatpush1.xpose.msra.mxu0 0.0
    %8034 = vmatprep.subr.mxu0 0.0
    %8035 = vmatpush1.xpose.msra.mxu0 0.0
    %8036 = vmatprep.subr.mxu0 0.0
    %8037 = vmatpush1.xpose.msra.mxu0 0.0
    %8038 = vmatprep.subr.mxu0 0.0
    %8039 = vmatpush1.xpose.msra.mxu0 0.0
    %8040 = vmatprep.subr.mxu0 0.0
    %8041 = vmatpush1.xpose.msra.mxu0 0.0
    %8042 = vmatprep.subr.mxu0 0.0
    %8043 = vmatpush1.xpose.msra.mxu0 0.0
    %8044 = vmatprep.subr.mxu0 0.0
    %8045 = vmatpush1.xpose.msra.mxu0 0.0
    %8046 = vmatprep.subr.mxu0 0.0
    %8047 = vmatpush1.xpose.msra.mxu0 0.0
    %8048 = vmatprep.subr.mxu0 0.0
    %8049 = vmatpush1.xpose.msra.mxu0 0.0
    %8050 = vmatprep.subr.mxu0 0.0
    %8051 = vmatpush1.xpose.msra.mxu0 0.0
    %8052 = vmatprep.subr.mxu0 0.0
    %8053 = vmatpush1.xpose.msra.mxu0 0.0
    %8054 = vmatprep.subr.mxu0 0.0
    %8055 = vmatpush1.xpose.msra.mxu0 0.0
    %8056 = vmatprep.subr.mxu0 0.0
    %8057 = vmatpush1.xpose.msra.mxu0 0.0
    %8058 = vmatprep.subr.mxu0 0.0
    %8059 = vmatpush1.xpose.msra.mxu0 0.0
    %8060 = vmatprep.subr.mxu0 0.0
    %8061 = vmatpush1.xpose.msra.mxu0 0.0
    %8062 = vmatprep.subr.mxu0 0.0
    %8063 = vmatpush1.xpose.msra.mxu0 0.0
    %8064 = vmatprep.subr.mxu0 0.0
    %8065 = vmatpush1.xpose.msra.mxu0 0.0
    %8066 = vmatprep.subr.mxu0 0.0
    %8067 = vmatpush1.xpose.msra.mxu0 0.0
    %8068 = vmatprep.subr.mxu0 0.0
    %8069 = vmatpush1.xpose.msra.mxu0 0.0
    %8070 = vmatprep.subr.mxu0 0.0
    %8071 = vmatpush1.xpose.msra.mxu0 0.0
    %8072 = vmatprep.subr.mxu0 0.0
    %8073 = vmatpush1.xpose.msra.mxu0 0.0
    %8074 = vmatprep.subr.mxu0 0.0
    %8075 = vmatpush1.xpose.msra.mxu0 0.0
    %8076 = vmatprep.subr.mxu0 0.0
    %8077 = vmatpush1.xpose.msra.mxu0 0.0
    %8078 = vmatprep.subr.mxu0 0.0
    %8079 = vmatpush1.xpose.msra.mxu0 0.0
    %8080 = vmatprep.mubr.f32.mxu0 0.0
    %v8081 = vand.u32 %v7637, 4294901760
    %8082 = vmatmul.mubr.f32.gmra.mrb[0].mxu0 %v8081
    %v8083 = vpop.f32.mrb[0].mxu0
    %v8084 = vadd.f32 %v8012, %v8083
    %v8085 = vpop.f32.mrb[0].mxu0
    %8086 = vdwg.mxu0
    %v8087 = vsel %vm4871, -1e+09, %v8084
    %v8088 = vsel %vm1634, %v8087, -inf
    %8089 = vmax.xlane.f32.xlu0 %v8088
    %v8090 = vpop.xlane.xlu0 %8089
    %v8091 = vsub.f32 %v8087, %v8090
    %v8092 = vmul.f32 %v8091, 1.442695
    %v8093 = vpow.pop %v8092
    %v8094 = vsel %vm1634, %v8093, 0.0
    %8095 = vadd.xlane.f32.xlu0 %v8094
    %v8096 = vpop.xlane.xlu0 %8095
    %v8097 = vrcp.pop %v8096
    %v8098 = vmul.f32 %v8093, %v8097
    %8099 = vrot.lane.b32.xlu0 %v1176, 32
    %v8100 = vpop.permute.xlu0 %8099
    %v8103 = vsel %vm1634, %v8098, 0
    %8105 = vmatprep.subr.mxu0 0.0
    %v8106 = vand.u32 %v8100, 4294901760
    %8107 = vmatpush1.msra.mxu0 %v8106
    %8108 = vmatprep.subr.mxu0 0.0
    %8109 = vmatpush1.msra.mxu0 0.0
    %8110 = vmatprep.subr.mxu0 0.0
    %8111 = vmatpush1.msra.mxu0 0.0
    %8112 = vmatprep.subr.mxu0 0.0
    %8113 = vmatpush1.msra.mxu0 0.0
    %8114 = vmatprep.subr.mxu0 0.0
    %8115 = vmatpush1.msra.mxu0 0.0
    %8116 = vmatprep.subr.mxu0 0.0
    %8117 = vmatpush1.msra.mxu0 0.0
    %8118 = vmatprep.subr.mxu0 0.0
    %8119 = vmatpush1.msra.mxu0 0.0
    %8120 = vmatprep.subr.mxu0 0.0
    %8121 = vmatpush1.msra.mxu0 0.0
    %8122 = vmatprep.subr.mxu0 0.0
    %8123 = vmatpush1.msra.mxu0 0.0
    %8124 = vmatprep.subr.mxu0 0.0
    %8125 = vmatpush1.msra.mxu0 0.0
    %8126 = vmatprep.subr.mxu0 0.0
    %8127 = vmatpush1.msra.mxu0 0.0
    %8128 = vmatprep.subr.mxu0 0.0
    %8129 = vmatpush1.msra.mxu0 0.0
    %8130 = vmatprep.subr.mxu0 0.0
    %8131 = vmatpush1.msra.mxu0 0.0
    %8132 = vmatprep.subr.mxu0 0.0
    %8133 = vmatpush1.msra.mxu0 0.0
    %8134 = vmatprep.subr.mxu0 0.0
    %8135 = vmatpush1.msra.mxu0 0.0
    %8136 = vmatprep.subr.mxu0 0.0
    %8137 = vmatpush1.msra.mxu0 0.0
    %8138 = vmatprep.subr.mxu0 0.0
    %8139 = vmatpush1.msra.mxu0 0.0
    %8140 = vmatprep.subr.mxu0 0.0
    %8141 = vmatpush1.msra.mxu0 0.0
    %8142 = vmatprep.subr.mxu0 0.0
    %8143 = vmatpush1.msra.mxu0 0.0
    %8144 = vmatprep.subr.mxu0 0.0
    %8145 = vmatpush1.msra.mxu0 0.0
    %8146 = vmatprep.subr.mxu0 0.0
    %8147 = vmatpush1.msra.mxu0 0.0
    %8148 = vmatprep.subr.mxu0 0.0
    %8149 = vmatpush1.msra.mxu0 0.0
    %8150 = vmatprep.subr.mxu0 0.0
    %8151 = vmatpush1.msra.mxu0 0.0
    %8152 = vmatprep.subr.mxu0 0.0
    %8153 = vmatpush1.msra.mxu0 0.0
    %8154 = vmatprep.subr.mxu0 0.0
    %8155 = vmatpush1.msra.mxu0 0.0
    %8156 = vmatprep.subr.mxu0 0.0
    %8157 = vmatpush1.msra.mxu0 0.0
    %8158 = vmatprep.subr.mxu0 0.0
    %8159 = vmatpush1.msra.mxu0 0.0
    %8160 = vmatprep.subr.mxu0 0.0
    %8161 = vmatpush1.msra.mxu0 0.0
    %8162 = vmatprep.subr.mxu0 0.0
    %8163 = vmatpush1.msra.mxu0 0.0
    %8164 = vmatprep.subr.mxu0 0.0
    %8165 = vmatpush1.msra.mxu0 0.0
    %8166 = vmatprep.subr.mxu0 0.0
    %8167 = vmatpush1.msra.mxu0 0.0
    %8168 = vmatprep.subr.mxu0 0.0
    %8169 = vmatpush1.msra.mxu0 0.0
    %8170 = vmatprep.mubr.f32.mxu0 0.0
    %v8171 = vand.u32 %v8103, 4294901760
    %v8172 = vsub.f32 %v8103, %v8171
    %v8173 = vand.u32 %v8172, 4294901760
    %v8174 = vsub.f32 %v8172, %v8173
    %v8175 = vand.u32 %v8174, 4294901760
    %8176 = vmatmul.mubr.f32.gmra.mrb[0].mxu0 %v8175
    %v8177 = vpop.f32.mrb[0].mxu0
    %v8178 = vadd.f32 0.0, %v8177
    %v8179 = vpop.f32.mrb[0].mxu0
    %8180 = vdwg.mxu0
    %8181 = vmatprep.subr.mxu0 0.0
    %v8182 = vand.u32 %v8100, 4294901760
    %v8183 = vsub.f32 %v8100, %v8182
    %v8184 = vand.u32 %v8183, 4294901760
    %v8185 = vsub.f32 %v8183, %v8184
    %v8186 = vand.u32 %v8185, 4294901760
    %8187 = vmatpush1.msra.mxu0 %v8186
    %8188 = vmatprep.subr.mxu0 0.0
    %8189 = vmatpush1.msra.mxu0 0.0
    %8190 = vmatprep.subr.mxu0 0.0
    %8191 = vmatpush1.msra.mxu0 0.0
    %8192 = vmatprep.subr.mxu0 0.0
    %8193 = vmatpush1.msra.mxu0 0.0
    %8194 = vmatprep.subr.mxu0 0.0
    %8195 = vmatpush1.msra.mxu0 0.0
    %8196 = vmatprep.subr.mxu0 0.0
    %8197 = vmatpush1.msra.mxu0 0.0
    %8198 = vmatprep.subr.mxu0 0.0
    %8199 = vmatpush1.msra.mxu0 0.0
    %8200 = vmatprep.subr.mxu0 0.0
    %8201 = vmatpush1.msra.mxu0 0.0
    %8202 = vmatprep.subr.mxu0 0.0
    %8203 = vmatpush1.msra.mxu0 0.0
    %8204 = vmatprep.subr.mxu0 0.0
    %8205 = vmatpush1.msra.mxu0 0.0
    %8206 = vmatprep.subr.mxu0 0.0
    %8207 = vmatpush1.msra.mxu0 0.0
    %8208 = vmatprep.subr.mxu0 0.0
    %8209 = vmatpush1.msra.mxu0 0.0
    %8210 = vmatprep.subr.mxu0 0.0
    %8211 = vmatpush1.msra.mxu0 0.0
    %8212 = vmatprep.subr.mxu0 0.0
    %8213 = vmatpush1.msra.mxu0 0.0
    %8214 = vmatprep.subr.mxu0 0.0
    %8215 = vmatpush1.msra.mxu0 0.0
    %8216 = vmatprep.subr.mxu0 0.0
    %8217 = vmatpush1.msra.mxu0 0.0
    %8218 = vmatprep.subr.mxu0 0.0
    %8219 = vmatpush1.msra.mxu0 0.0
    %8220 = vmatprep.subr.mxu0 0.0
    %8221 = vmatpush1.msra.mxu0 0.0
    %8222 = vmatprep.subr.mxu0 0.0
    %8223 = vmatpush1.msra.mxu0 0.0
    %8224 = vmatprep.subr.mxu0 0.0
    %8225 = vmatpush1.msra.mxu0 0.0
    %8226 = vmatprep.subr.mxu0 0.0
    %8227 = vmatpush1.msra.mxu0 0.0
    %8228 = vmatprep.subr.mxu0 0.0
    %8229 = vmatpush1.msra.mxu0 0.0
    %8230 = vmatprep.subr.mxu0 0.0
    %8231 = vmatpush1.msra.mxu0 0.0
    %8232 = vmatprep.subr.mxu0 0.0
    %8233 = vmatpush1.msra.mxu0 0.0
    %8234 = vmatprep.subr.mxu0 0.0
    %8235 = vmatpush1.msra.mxu0 0.0
    %8236 = vmatprep.subr.mxu0 0.0
    %8237 = vmatpush1.msra.mxu0 0.0
    %8238 = vmatprep.subr.mxu0 0.0
    %8239 = vmatpush1.msra.mxu0 0.0
    %8240 = vmatprep.subr.mxu0 0.0
    %8241 = vmatpush1.msra.mxu0 0.0
    %8242 = vmatprep.subr.mxu0 0.0
    %8243 = vmatpush1.msra.mxu0 0.0
    %8244 = vmatprep.subr.mxu0 0.0
    %8245 = vmatpush1.msra.mxu0 0.0
    %8246 = vmatprep.subr.mxu0 0.0
    %8247 = vmatpush1.msra.mxu0 0.0
    %8248 = vmatprep.subr.mxu0 0.0
    %8249 = vmatpush1.msra.mxu0 0.0
    %8250 = vmatprep.mubr.f32.mxu0 0.0
    %v8251 = vand.u32 %v8103, 4294901760
    %8252 = vmatmul.mubr.f32.gmra.mrb[0].mxu0 %v8251
    %v8253 = vpop.f32.mrb[0].mxu0
    %v8254 = vadd.f32 %v8178, %v8253
    %v8255 = vpop.f32.mrb[0].mxu0
    %8256 = vdwg.mxu0
    %8257 = vmatprep.subr.mxu0 0.0
    %v8258 = vand.u32 %v8100, 4294901760
    %v8259 = vsub.f32 %v8100, %v8258
    %8260 = vmatpush1.msra.mxu0 %v8259
    %8261 = vmatprep.subr.mxu0 0.0
    %8262 = vmatpush1.msra.mxu0 0.0
    %8263 = vmatprep.subr.mxu0 0.0
    %8264 = vmatpush1.msra.mxu0 0.0
    %8265 = vmatprep.subr.mxu0 0.0
    %8266 = vmatpush1.msra.mxu0 0.0
    %8267 = vmatprep.subr.mxu0 0.0
    %8268 = vmatpush1.msra.mxu0 0.0
    %8269 = vmatprep.subr.mxu0 0.0
    %8270 = vmatpush1.msra.mxu0 0.0
    %8271 = vmatprep.subr.mxu0 0.0
    %8272 = vmatpush1.msra.mxu0 0.0
    %8273 = vmatprep.subr.mxu0 0.0
    %8274 = vmatpush1.msra.mxu0 0.0
    %8275 = vmatprep.subr.mxu0 0.0
    %8276 = vmatpush1.msra.mxu0 0.0
    %8277 = vmatprep.subr.mxu0 0.0
    %8278 = vmatpush1.msra.mxu0 0.0
    %8279 = vmatprep.subr.mxu0 0.0
    %8280 = vmatpush1.msra.mxu0 0.0
    %8281 = vmatprep.subr.mxu0 0.0
    %8282 = vmatpush1.msra.mxu0 0.0
    %8283 = vmatprep.subr.mxu0 0.0
    %8284 = vmatpush1.msra.mxu0 0.0
    %8285 = vmatprep.subr.mxu0 0.0
    %8286 = vmatpush1.msra.mxu0 0.0
    %8287 = vmatprep.subr.mxu0 0.0
    %8288 = vmatpush1.msra.mxu0 0.0
    %8289 = vmatprep.subr.mxu0 0.0
    %8290 = vmatpush1.msra.mxu0 0.0
    %8291 = vmatprep.subr.mxu0 0.0
    %8292 = vmatpush1.msra.mxu0 0.0
    %8293 = vmatprep.subr.mxu0 0.0
    %8294 = vmatpush1.msra.mxu0 0.0
    %8295 = vmatprep.subr.mxu0 0.0
    %8296 = vmatpush1.msra.mxu0 0.0
    %8297 = vmatprep.subr.mxu0 0.0
    %8298 = vmatpush1.msra.mxu0 0.0
    %8299 = vmatprep.subr.mxu0 0.0
    %8300 = vmatpush1.msra.mxu0 0.0
    %8301 = vmatprep.subr.mxu0 0.0
    %8302 = vmatpush1.msra.mxu0 0.0
    %8303 = vmatprep.subr.mxu0 0.0
    %8304 = vmatpush1.msra.mxu0 0.0
    %8305 = vmatprep.subr.mxu0 0.0
    %8306 = vmatpush1.msra.mxu0 0.0
    %8307 = vmatprep.subr.mxu0 0.0
    %8308 = vmatpush1.msra.mxu0 0.0
    %8309 = vmatprep.subr.mxu0 0.0
    %8310 = vmatpush1.msra.mxu0 0.0
    %8311 = vmatprep.subr.mxu0 0.0
    %8312 = vmatpush1.msra.mxu0 0.0
    %8313 = vmatprep.subr.mxu0 0.0
    %8314 = vmatpush1.msra.mxu0 0.0
    %8315 = vmatprep.subr.mxu0 0.0
    %8316 = vmatpush1.msra.mxu0 0.0
    %8317 = vmatprep.subr.mxu0 0.0
    %8318 = vmatpush1.msra.mxu0 0.0
    %8319 = vmatprep.subr.mxu0 0.0
    %8320 = vmatpush1.msra.mxu0 0.0
    %8321 = vmatprep.subr.mxu0 0.0
    %8322 = vmatpush1.msra.mxu0 0.0
    %8323 = vmatprep.mubr.f32.mxu0 0.0
    %v8324 = vand.u32 %v8103, 4294901760
    %v8325 = vsub.f32 %v8103, %v8324
    %8326 = vmatmul.mubr.f32.gmra.mrb[0].mxu0 %v8325
    %v8327 = vpop.f32.mrb[0].mxu0
    %v8328 = vadd.f32 %v8254, %v8327
    %v8329 = vpop.f32.mrb[0].mxu0
    %8330 = vdwg.mxu0
    %8331 = vmatprep.subr.mxu0 0.0
    %v8332 = vand.u32 %v8100, 4294901760
    %8333 = vmatpush1.msra.mxu0 %v8332
    %8334 = vmatprep.subr.mxu0 0.0
    %8335 = vmatpush1.msra.mxu0 0.0
    %8336 = vmatprep.subr.mxu0 0.0
    %8337 = vmatpush1.msra.mxu0 0.0
    %8338 = vmatprep.subr.mxu0 0.0
    %8339 = vmatpush1.msra.mxu0 0.0
    %8340 = vmatprep.subr.mxu0 0.0
    %8341 = vmatpush1.msra.mxu0 0.0
    %8342 = vmatprep.subr.mxu0 0.0
    %8343 = vmatpush1.msra.mxu0 0.0
    %8344 = vmatprep.subr.mxu0 0.0
    %8345 = vmatpush1.msra.mxu0 0.0
    %8346 = vmatprep.subr.mxu0 0.0
    %8347 = vmatpush1.msra.mxu0 0.0
    %8348 = vmatprep.subr.mxu0 0.0
    %8349 = vmatpush1.msra.mxu0 0.0
    %8350 = vmatprep.subr.mxu0 0.0
    %8351 = vmatpush1.msra.mxu0 0.0
    %8352 = vmatprep.subr.mxu0 0.0
    %8353 = vmatpush1.msra.mxu0 0.0
    %8354 = vmatprep.subr.mxu0 0.0
    %8355 = vmatpush1.msra.mxu0 0.0
    %8356 = vmatprep.subr.mxu0 0.0
    %8357 = vmatpush1.msra.mxu0 0.0
    %8358 = vmatprep.subr.mxu0 0.0
    %8359 = vmatpush1.msra.mxu0 0.0
    %8360 = vmatprep.subr.mxu0 0.0
    %8361 = vmatpush1.msra.mxu0 0.0
    %8362 = vmatprep.subr.mxu0 0.0
    %8363 = vmatpush1.msra.mxu0 0.0
    %8364 = vmatprep.subr.mxu0 0.0
    %8365 = vmatpush1.msra.mxu0 0.0
    %8366 = vmatprep.subr.mxu0 0.0
    %8367 = vmatpush1.msra.mxu0 0.0
    %8368 = vmatprep.subr.mxu0 0.0
    %8369 = vmatpush1.msra.mxu0 0.0
    %8370 = vmatprep.subr.mxu0 0.0
    %8371 = vmatpush1.msra.mxu0 0.0
    %8372 = vmatprep.subr.mxu0 0.0
    %8373 = vmatpush1.msra.mxu0 0.0
    %8374 = vmatprep.subr.mxu0 0.0
    %8375 = vmatpush1.msra.mxu0 0.0
    %8376 = vmatprep.subr.mxu0 0.0
    %8377 = vmatpush1.msra.mxu0 0.0
    %8378 = vmatprep.subr.mxu0 0.0
    %8379 = vmatpush1.msra.mxu0 0.0
    %8380 = vmatprep.subr.mxu0 0.0
    %8381 = vmatpush1.msra.mxu0 0.0
    %8382 = vmatprep.subr.mxu0 0.0
    %8383 = vmatpush1.msra.mxu0 0.0
    %8384 = vmatprep.subr.mxu0 0.0
    %8385 = vmatpush1.msra.mxu0 0.0
    %8386 = vmatprep.subr.mxu0 0.0
    %8387 = vmatpush1.msra.mxu0 0.0
    %8388 = vmatprep.subr.mxu0 0.0
    %8389 = vmatpush1.msra.mxu0 0.0
    %8390 = vmatprep.subr.mxu0 0.0
    %8391 = vmatpush1.msra.mxu0 0.0
    %8392 = vmatprep.subr.mxu0 0.0
    %8393 = vmatpush1.msra.mxu0 0.0
    %8394 = vmatprep.subr.mxu0 0.0
    %8395 = vmatpush1.msra.mxu0 0.0
    %8396 = vmatprep.mubr.f32.mxu0 0.0
    %v8397 = vand.u32 %v8103, 4294901760
    %v8398 = vsub.f32 %v8103, %v8397
    %v8399 = vand.u32 %v8398, 4294901760
    %8400 = vmatmul.mubr.f32.gmra.mrb[0].mxu0 %v8399
    %v8401 = vpop.f32.mrb[0].mxu0
    %v8402 = vadd.f32 %v8328, %v8401
    %v8403 = vpop.f32.mrb[0].mxu0
    %8404 = vdwg.mxu0
    %8405 = vmatprep.subr.mxu0 0.0
    %v8406 = vand.u32 %v8100, 4294901760
    %v8407 = vsub.f32 %v8100, %v8406
    %v8408 = vand.u32 %v8407, 4294901760
    %8409 = vmatpush1.msra.mxu0 %v8408
    %8410 = vmatprep.subr.mxu0 0.0
    %8411 = vmatpush1.msra.mxu0 0.0
    %8412 = vmatprep.subr.mxu0 0.0
    %8413 = vmatpush1.msra.mxu0 0.0
    %8414 = vmatprep.subr.mxu0 0.0
    %8415 = vmatpush1.msra.mxu0 0.0
    %8416 = vmatprep.subr.mxu0 0.0
    %8417 = vmatpush1.msra.mxu0 0.0
    %8418 = vmatprep.subr.mxu0 0.0
    %8419 = vmatpush1.msra.mxu0 0.0
    %8420 = vmatprep.subr.mxu0 0.0
    %8421 = vmatpush1.msra.mxu0 0.0
    %8422 = vmatprep.subr.mxu0 0.0
    %8423 = vmatpush1.msra.mxu0 0.0
    %8424 = vmatprep.subr.mxu0 0.0
    %8425 = vmatpush1.msra.mxu0 0.0
    %8426 = vmatprep.subr.mxu0 0.0
    %8427 = vmatpush1.msra.mxu0 0.0
    %8428 = vmatprep.subr.mxu0 0.0
    %8429 = vmatpush1.msra.mxu0 0.0
    %8430 = vmatprep.subr.mxu0 0.0
    %8431 = vmatpush1.msra.mxu0 0.0
    %8432 = vmatprep.subr.mxu0 0.0
    %8433 = vmatpush1.msra.mxu0 0.0
    %8434 = vmatprep.subr.mxu0 0.0
    %8435 = vmatpush1.msra.mxu0 0.0
    %8436 = vmatprep.subr.mxu0 0.0
    %8437 = vmatpush1.msra.mxu0 0.0
    %8438 = vmatprep.subr.mxu0 0.0
    %8439 = vmatpush1.msra.mxu0 0.0
    %8440 = vmatprep.subr.mxu0 0.0
    %8441 = vmatpush1.msra.mxu0 0.0
    %8442 = vmatprep.subr.mxu0 0.0
    %8443 = vmatpush1.msra.mxu0 0.0
    %8444 = vmatprep.subr.mxu0 0.0
    %8445 = vmatpush1.msra.mxu0 0.0
    %8446 = vmatprep.subr.mxu0 0.0
    %8447 = vmatpush1.msra.mxu0 0.0
    %8448 = vmatprep.subr.mxu0 0.0
    %8449 = vmatpush1.msra.mxu0 0.0
    %8450 = vmatprep.subr.mxu0 0.0
    %8451 = vmatpush1.msra.mxu0 0.0
    %8452 = vmatprep.subr.mxu0 0.0
    %8453 = vmatpush1.msra.mxu0 0.0
    %8454 = vmatprep.subr.mxu0 0.0
    %8455 = vmatpush1.msra.mxu0 0.0
    %8456 = vmatprep.subr.mxu0 0.0
    %8457 = vmatpush1.msra.mxu0 0.0
    %8458 = vmatprep.subr.mxu0 0.0
    %8459 = vmatpush1.msra.mxu0 0.0
    %8460 = vmatprep.subr.mxu0 0.0
    %8461 = vmatpush1.msra.mxu0 0.0
    %8462 = vmatprep.subr.mxu0 0.0
    %8463 = vmatpush1.msra.mxu0 0.0
    %8464 = vmatprep.subr.mxu0 0.0
    %8465 = vmatpush1.msra.mxu0 0.0
    %8466 = vmatprep.subr.mxu0 0.0
    %8467 = vmatpush1.msra.mxu0 0.0
    %8468 = vmatprep.subr.mxu0 0.0
    %8469 = vmatpush1.msra.mxu0 0.0
    %8470 = vmatprep.subr.mxu0 0.0
    %8471 = vmatpush1.msra.mxu0 0.0
    %8472 = vmatprep.mubr.f32.mxu0 0.0
    %v8473 = vand.u32 %v8103, 4294901760
    %8474 = vmatmul.mubr.f32.gmra.mrb[0].mxu0 %v8473
    %v8475 = vpop.f32.mrb[0].mxu0
    %v8476 = vadd.f32 %v8402, %v8475
    %v8477 = vpop.f32.mrb[0].mxu0
    %8478 = vdwg.mxu0
    %8479 = vmatprep.subr.mxu0 0.0
    %v8480 = vand.u32 %v8100, 4294901760
    %8481 = vmatpush1.msra.mxu0 %v8480
    %8482 = vmatprep.subr.mxu0 0.0
    %8483 = vmatpush1.msra.mxu0 0.0
    %8484 = vmatprep.subr.mxu0 0.0
    %8485 = vmatpush1.msra.mxu0 0.0
    %8486 = vmatprep.subr.mxu0 0.0
    %8487 = vmatpush1.msra.mxu0 0.0
    %8488 = vmatprep.subr.mxu0 0.0
    %8489 = vmatpush1.msra.mxu0 0.0
    %8490 = vmatprep.subr.mxu0 0.0
    %8491 = vmatpush1.msra.mxu0 0.0
    %8492 = vmatprep.subr.mxu0 0.0
    %8493 = vmatpush1.msra.mxu0 0.0
    %8494 = vmatprep.subr.mxu0 0.0
    %8495 = vmatpush1.msra.mxu0 0.0
    %8496 = vmatprep.subr.mxu0 0.0
    %8497 = vmatpush1.msra.mxu0 0.0
    %8498 = vmatprep.subr.mxu0 0.0
    %8499 = vmatpush1.msra.mxu0 0.0
    %8500 = vmatprep.subr.mxu0 0.0
    %8501 = vmatpush1.msra.mxu0 0.0
    %8502 = vmatprep.subr.mxu0 0.0
    %8503 = vmatpush1.msra.mxu0 0.0
    %8504 = vmatprep.subr.mxu0 0.0
    %8505 = vmatpush1.msra.mxu0 0.0
    %8506 = vmatprep.subr.mxu0 0.0
    %8507 = vmatpush1.msra.mxu0 0.0
    %8508 = vmatprep.subr.mxu0 0.0
    %8509 = vmatpush1.msra.mxu0 0.0
    %8510 = vmatprep.subr.mxu0 0.0
    %8511 = vmatpush1.msra.mxu0 0.0
    %8512 = vmatprep.subr.mxu0 0.0
    %8513 = vmatpush1.msra.mxu0 0.0
    %8514 = vmatprep.subr.mxu0 0.0
    %8515 = vmatpush1.msra.mxu0 0.0
    %8516 = vmatprep.subr.mxu0 0.0
    %8517 = vmatpush1.msra.mxu0 0.0
    %8518 = vmatprep.subr.mxu0 0.0
    %8519 = vmatpush1.msra.mxu0 0.0
    %8520 = vmatprep.subr.mxu0 0.0
    %8521 = vmatpush1.msra.mxu0 0.0
    %8522 = vmatprep.subr.mxu0 0.0
    %8523 = vmatpush1.msra.mxu0 0.0
    %8524 = vmatprep.subr.mxu0 0.0
    %8525 = vmatpush1.msra.mxu0 0.0
    %8526 = vmatprep.subr.mxu0 0.0
    %8527 = vmatpush1.msra.mxu0 0.0
    %8528 = vmatprep.subr.mxu0 0.0
    %8529 = vmatpush1.msra.mxu0 0.0
    %8530 = vmatprep.subr.mxu0 0.0
    %8531 = vmatpush1.msra.mxu0 0.0
    %8532 = vmatprep.subr.mxu0 0.0
    %8533 = vmatpush1.msra.mxu0 0.0
    %8534 = vmatprep.subr.mxu0 0.0
    %8535 = vmatpush1.msra.mxu0 0.0
    %8536 = vmatprep.subr.mxu0 0.0
    %8537 = vmatpush1.msra.mxu0 0.0
    %8538 = vmatprep.subr.mxu0 0.0
    %8539 = vmatpush1.msra.mxu0 0.0
    %8540 = vmatprep.subr.mxu0 0.0
    %8541 = vmatpush1.msra.mxu0 0.0
    %8542 = vmatprep.subr.mxu0 0.0
    %8543 = vmatpush1.msra.mxu0 0.0
    %8544 = vmatprep.mubr.f32.mxu0 0.0
    %v8545 = vand.u32 %v8103, 4294901760
    %8546 = vmatmul.mubr.f32.gmra.mrb[0].mxu0 %v8545
    %v8547 = vpop.f32.mrb[0].mxu0
    %v8548 = vadd.f32 %v8476, %v8547
    %v8549 = vpop.f32.mrb[0].mxu0
    %8550 = vdwg.mxu0
    %8552 = vrot.lane.b32.xlu0 %v8548, 96
    %v8553 = vpop.permute.xlu0 %8552
    %8555 = vst.msk [vmem:[#allocation2 + $0x8] sm:$0xff] %vm4867, %v8553
    %v8556 = vld [vmem:[#allocation2] sm:$0xff]
    %v8557 = vld [vmem:[#allocation2 + $0x8] sm:$0xff]
    %v8558 = vld [vmem:[%s4] sm:$0xff]
    %v8559 = vld [vmem:[%s4 + $0x8] sm:$0xff]
    %v8560 = vld [vmem:[%s4 + $0x10] sm:$0xff]
    %v8561 = vld [vmem:[%s4 + $0x18] sm:$0xff]
    %v8562 = vld [vmem:[%s4 + $0x20] sm:$0xff]
    %v8563 = vld [vmem:[%s4 + $0x28] sm:$0xff]
    %v8564 = vld [vmem:[%s4 + $0x30] sm:$0xff]
    %v8565 = vld [vmem:[%s4 + $0x38] sm:$0xff]
    %v8566 = vld [vmem:[%s4 + $0x40] sm:$0xff]
    %v8567 = vld [vmem:[%s4 + $0x48] sm:$0xff]
    %v8568 = vld [vmem:[%s4 + $0x50] sm:$0xff]
    %v8569 = vld [vmem:[%s4 + $0x58] sm:$0xff]
    %v8570 = vld [vmem:[%s4 + $0x60] sm:$0xff]
    %v8571 = vld [vmem:[%s4 + $0x68] sm:$0xff]
    %v8572 = vld [vmem:[%s4 + $0x70] sm:$0xff]
    %v8573 = vld [vmem:[%s4 + $0x78] sm:$0xff]
    %8574 = vmatprep.subr.mxu0 0.0
    %v8575 = vand.u32 %v8558, 4294901760
    %8576 = vmatpush1.msra.mxu0 %v8575
    %8577 = vmatprep.subr.mxu0 0.0
    %v8578 = vand.u32 %v8559, 4294901760
    %8579 = vmatpush1.msra.mxu0 %v8578
    %8580 = vmatprep.subr.mxu0 0.0
    %v8581 = vand.u32 %v8560, 4294901760
    %8582 = vmatpush1.msra.mxu0 %v8581
    %8583 = vmatprep.subr.mxu0 0.0
    %v8584 = vand.u32 %v8561, 4294901760
    %8585 = vmatpush1.msra.mxu0 %v8584
    %8586 = vmatprep.subr.mxu0 0.0
    %v8587 = vand.u32 %v8562, 4294901760
    %8588 = vmatpush1.msra.mxu0 %v8587
    %8589 = vmatprep.subr.mxu0 0.0
    %v8590 = vand.u32 %v8563, 4294901760
    %8591 = vmatpush1.msra.mxu0 %v8590
    %8592 = vmatprep.subr.mxu0 0.0
    %v8593 = vand.u32 %v8564, 4294901760
    %8594 = vmatpush1.msra.mxu0 %v8593
    %8595 = vmatprep.subr.mxu0 0.0
    %v8596 = vand.u32 %v8565, 4294901760
    %8597 = vmatpush1.msra.mxu0 %v8596
    %8598 = vmatprep.subr.mxu0 0.0
    %v8599 = vand.u32 %v8566, 4294901760
    %8600 = vmatpush1.msra.mxu0 %v8599
    %8601 = vmatprep.subr.mxu0 0.0
    %v8602 = vand.u32 %v8567, 4294901760
    %8603 = vmatpush1.msra.mxu0 %v8602
    %8604 = vmatprep.subr.mxu0 0.0
    %v8605 = vand.u32 %v8568, 4294901760
    %8606 = vmatpush1.msra.mxu0 %v8605
    %8607 = vmatprep.subr.mxu0 0.0
    %v8608 = vand.u32 %v8569, 4294901760
    %8609 = vmatpush1.msra.mxu0 %v8608
    %8610 = vmatprep.subr.mxu0 0.0
    %v8611 = vand.u32 %v8570, 4294901760
    %8612 = vmatpush1.msra.mxu0 %v8611
    %8613 = vmatprep.subr.mxu0 0.0
    %v8614 = vand.u32 %v8571, 4294901760
    %8615 = vmatpush1.msra.mxu0 %v8614
    %8616 = vmatprep.subr.mxu0 0.0
    %v8617 = vand.u32 %v8572, 4294901760
    %8618 = vmatpush1.msra.mxu0 %v8617
    %8619 = vmatprep.subr.mxu0 0.0
    %v8620 = vand.u32 %v8573, 4294901760
    %8621 = vmatpush1.msra.mxu0 %v8620
    %8622 = vmatprep.subr.mxu0 0.0
    %8623 = vmatpush1.msra.mxu0 0.0
    %8624 = vmatprep.subr.mxu0 0.0
    %8625 = vmatpush1.msra.mxu0 0.0
    %8626 = vmatprep.subr.mxu0 0.0
    %8627 = vmatpush1.msra.mxu0 0.0
    %8628 = vmatprep.subr.mxu0 0.0
    %8629 = vmatpush1.msra.mxu0 0.0
    %8630 = vmatprep.subr.mxu0 0.0
    %8631 = vmatpush1.msra.mxu0 0.0
    %8632 = vmatprep.subr.mxu0 0.0
    %8633 = vmatpush1.msra.mxu0 0.0
    %8634 = vmatprep.subr.mxu0 0.0
    %8635 = vmatpush1.msra.mxu0 0.0
    %8636 = vmatprep.subr.mxu0 0.0
    %8637 = vmatpush1.msra.mxu0 0.0
    %8638 = vmatprep.subr.mxu0 0.0
    %8639 = vmatpush1.msra.mxu0 0.0
    %8640 = vmatprep.subr.mxu0 0.0
    %8641 = vmatpush1.msra.mxu0 0.0
    %8642 = vmatprep.subr.mxu0 0.0
    %8643 = vmatpush1.msra.mxu0 0.0
    %8644 = vmatprep.subr.mxu0 0.0
    %8645 = vmatpush1.msra.mxu0 0.0
    %8646 = vmatprep.subr.mxu0 0.0
    %8647 = vmatpush1.msra.mxu0 0.0
    %8648 = vmatprep.subr.mxu0 0.0
    %8649 = vmatpush1.msra.mxu0 0.0
    %8650 = vmatprep.subr.mxu0 0.0
    %8651 = vmatpush1.msra.mxu0 0.0
    %8652 = vmatprep.subr.mxu0 0.0
    %8653 = vmatpush1.msra.mxu0 0.0
    %8654 = vmatprep.mubr.f32.mxu0 0.0
    %v8655 = vand.u32 %v8556, 4294901760
    %v8656 = vsub.f32 %v8556, %v8655
    %v8657 = vand.u32 %v8656, 4294901760
    %v8658 = vsub.f32 %v8656, %v8657
    %v8659 = vand.u32 %v8658, 4294901760
    %8660 = vmatmul.mubr.f32.gmra.mrb[0].mxu0 %v8659
    %v8661 = vpop.f32.mrb[0].mxu0
    %v8662 = vadd.f32 0.0, %v8661
    %v8663 = vpop.f32.mrb[0].mxu0
    %8664 = vmatprep.mubr.f32.mxu0 0.0
    %v8665 = vand.u32 %v8557, 4294901760
    %v8666 = vsub.f32 %v8557, %v8665
    %v8667 = vand.u32 %v8666, 4294901760
    %v8668 = vsub.f32 %v8666, %v8667
    %v8669 = vand.u32 %v8668, 4294901760
    %8670 = vmatmul.mubr.f32.gmra.mrb[0].mxu0 %v8669
    %v8671 = vpop.f32.mrb[0].mxu0
    %v8672 = vadd.f32 0.0, %v8671
    %v8673 = vpop.f32.mrb[0].mxu0
    %8674 = vdwg.mxu0
    %8675 = vmatprep.subr.mxu0 0.0
    %v8676 = vand.u32 %v8558, 4294901760
    %v8677 = vsub.f32 %v8558, %v8676
    %v8678 = vand.u32 %v8677, 4294901760
    %v8679 = vsub.f32 %v8677, %v8678
    %v8680 = vand.u32 %v8679, 4294901760
    %8681 = vmatpush1.msra.mxu0 %v8680
    %8682 = vmatprep.subr.mxu0 0.0
    %v8683 = vand.u32 %v8559, 4294901760
    %v8684 = vsub.f32 %v8559, %v8683
    %v8685 = vand.u32 %v8684, 4294901760
    %v8686 = vsub.f32 %v8684, %v8685
    %v8687 = vand.u32 %v8686, 4294901760
    %8688 = vmatpush1.msra.mxu0 %v8687
    %8689 = vmatprep.subr.mxu0 0.0
    %v8690 = vand.u32 %v8560, 4294901760
    %v8691 = vsub.f32 %v8560, %v8690
    %v8692 = vand.u32 %v8691, 4294901760
    %v8693 = vsub.f32 %v8691, %v8692
    %v8694 = vand.u32 %v8693, 4294901760
    %8695 = vmatpush1.msra.mxu0 %v8694
    %8696 = vmatprep.subr.mxu0 0.0
    %v8697 = vand.u32 %v8561, 4294901760
    %v8698 = vsub.f32 %v8561, %v8697
    %v8699 = vand.u32 %v8698, 4294901760
    %v8700 = vsub.f32 %v8698, %v8699
    %v8701 = vand.u32 %v8700, 4294901760
    %8702 = vmatpush1.msra.mxu0 %v8701
    %8703 = vmatprep.subr.mxu0 0.0
    %v8704 = vand.u32 %v8562, 4294901760
    %v8705 = vsub.f32 %v8562, %v8704
    %v8706 = vand.u32 %v8705, 4294901760
    %v8707 = vsub.f32 %v8705, %v8706
    %v8708 = vand.u32 %v8707, 4294901760
    %8709 = vmatpush1.msra.mxu0 %v8708
    %8710 = vmatprep.subr.mxu0 0.0
    %v8711 = vand.u32 %v8563, 4294901760
    %v8712 = vsub.f32 %v8563, %v8711
    %v8713 = vand.u32 %v8712, 4294901760
    %v8714 = vsub.f32 %v8712, %v8713
    %v8715 = vand.u32 %v8714, 4294901760
    %8716 = vmatpush1.msra.mxu0 %v8715
    %8717 = vmatprep.subr.mxu0 0.0
    %v8718 = vand.u32 %v8564, 4294901760
    %v8719 = vsub.f32 %v8564, %v8718
    %v8720 = vand.u32 %v8719, 4294901760
    %v8721 = vsub.f32 %v8719, %v8720
    %v8722 = vand.u32 %v8721, 4294901760
    %8723 = vmatpush1.msra.mxu0 %v8722
    %8724 = vmatprep.subr.mxu0 0.0
    %v8725 = vand.u32 %v8565, 4294901760
    %v8726 = vsub.f32 %v8565, %v8725
    %v8727 = vand.u32 %v8726, 4294901760
    %v8728 = vsub.f32 %v8726, %v8727
    %v8729 = vand.u32 %v8728, 4294901760
    %8730 = vmatpush1.msra.mxu0 %v8729
    %8731 = vmatprep.subr.mxu0 0.0
    %v8732 = vand.u32 %v8566, 4294901760
    %v8733 = vsub.f32 %v8566, %v8732
    %v8734 = vand.u32 %v8733, 4294901760
    %v8735 = vsub.f32 %v8733, %v8734
    %v8736 = vand.u32 %v8735, 4294901760
    %8737 = vmatpush1.msra.mxu0 %v8736
    %8738 = vmatprep.subr.mxu0 0.0
    %v8739 = vand.u32 %v8567, 4294901760
    %v8740 = vsub.f32 %v8567, %v8739
    %v8741 = vand.u32 %v8740, 4294901760
    %v8742 = vsub.f32 %v8740, %v8741
    %v8743 = vand.u32 %v8742, 4294901760
    %8744 = vmatpush1.msra.mxu0 %v8743
    %8745 = vmatprep.subr.mxu0 0.0
    %v8746 = vand.u32 %v8568, 4294901760
    %v8747 = vsub.f32 %v8568, %v8746
    %v8748 = vand.u32 %v8747, 4294901760
    %v8749 = vsub.f32 %v8747, %v8748
    %v8750 = vand.u32 %v8749, 4294901760
    %8751 = vmatpush1.msra.mxu0 %v8750
    %8752 = vmatprep.subr.mxu0 0.0
    %v8753 = vand.u32 %v8569, 4294901760
    %v8754 = vsub.f32 %v8569, %v8753
    %v8755 = vand.u32 %v8754, 4294901760
    %v8756 = vsub.f32 %v8754, %v8755
    %v8757 = vand.u32 %v8756, 4294901760
    %8758 = vmatpush1.msra.mxu0 %v8757
    %8759 = vmatprep.subr.mxu0 0.0
    %v8760 = vand.u32 %v8570, 4294901760
    %v8761 = vsub.f32 %v8570, %v8760
    %v8762 = vand.u32 %v8761, 4294901760
    %v8763 = vsub.f32 %v8761, %v8762
    %v8764 = vand.u32 %v8763, 4294901760
    %8765 = vmatpush1.msra.mxu0 %v8764
    %8766 = vmatprep.subr.mxu0 0.0
    %v8767 = vand.u32 %v8571, 4294901760
    %v8768 = vsub.f32 %v8571, %v8767
    %v8769 = vand.u32 %v8768, 4294901760
    %v8770 = vsub.f32 %v8768, %v8769
    %v8771 = vand.u32 %v8770, 4294901760
    %8772 = vmatpush1.msra.mxu0 %v8771
    %8773 = vmatprep.subr.mxu0 0.0
    %v8774 = vand.u32 %v8572, 4294901760
    %v8775 = vsub.f32 %v8572, %v8774
    %v8776 = vand.u32 %v8775, 4294901760
    %v8777 = vsub.f32 %v8775, %v8776
    %v8778 = vand.u32 %v8777, 4294901760
    %8779 = vmatpush1.msra.mxu0 %v8778
    %8780 = vmatprep.subr.mxu0 0.0
    %v8781 = vand.u32 %v8573, 4294901760
    %v8782 = vsub.f32 %v8573, %v8781
    %v8783 = vand.u32 %v8782, 4294901760
    %v8784 = vsub.f32 %v8782, %v8783
    %v8785 = vand.u32 %v8784, 4294901760
    %8786 = vmatpush1.msra.mxu0 %v8785
    %8787 = vmatprep.subr.mxu0 0.0
    %8788 = vmatpush1.msra.mxu0 0.0
    %8789 = vmatprep.subr.mxu0 0.0
    %8790 = vmatpush1.msra.mxu0 0.0
    %8791 = vmatprep.subr.mxu0 0.0
    %8792 = vmatpush1.msra.mxu0 0.0
    %8793 = vmatprep.subr.mxu0 0.0
    %8794 = vmatpush1.msra.mxu0 0.0
    %8795 = vmatprep.subr.mxu0 0.0
    %8796 = vmatpush1.msra.mxu0 0.0
    %8797 = vmatprep.subr.mxu0 0.0
    %8798 = vmatpush1.msra.mxu0 0.0
    %8799 = vmatprep.subr.mxu0 0.0
    %8800 = vmatpush1.msra.mxu0 0.0
    %8801 = vmatprep.subr.mxu0 0.0
    %8802 = vmatpush1.msra.mxu0 0.0
    %8803 = vmatprep.subr.mxu0 0.0
    %8804 = vmatpush1.msra.mxu0 0.0
    %8805 = vmatprep.subr.mxu0 0.0
    %8806 = vmatpush1.msra.mxu0 0.0
    %8807 = vmatprep.subr.mxu0 0.0
    %8808 = vmatpush1.msra.mxu0 0.0
    %8809 = vmatprep.subr.mxu0 0.0
    %8810 = vmatpush1.msra.mxu0 0.0
    %8811 = vmatprep.subr.mxu0 0.0
    %8812 = vmatpush1.msra.mxu0 0.0
    %8813 = vmatprep.subr.mxu0 0.0
    %8814 = vmatpush1.msra.mxu0 0.0
    %8815 = vmatprep.subr.mxu0 0.0
    %8816 = vmatpush1.msra.mxu0 0.0
    %8817 = vmatprep.subr.mxu0 0.0
    %8818 = vmatpush1.msra.mxu0 0.0
    %8819 = vmatprep.mubr.f32.mxu0 0.0
    %v8820 = vand.u32 %v8556, 4294901760
    %8821 = vmatmul.mubr.f32.gmra.mrb[0].mxu0 %v8820
    %v8822 = vpop.f32.mrb[0].mxu0
    %v8823 = vadd.f32 %v8662, %v8822
    %v8824 = vpop.f32.mrb[0].mxu0
    %8825 = vmatprep.mubr.f32.mxu0 0.0
    %v8826 = vand.u32 %v8557, 4294901760
    %8827 = vmatmul.mubr.f32.gmra.mrb[0].mxu0 %v8826
    %v8828 = vpop.f32.mrb[0].mxu0
    %v8829 = vadd.f32 %v8672, %v8828
    %v8830 = vpop.f32.mrb[0].mxu0
    %8831 = vdwg.mxu0
    %8832 = vmatprep.subr.mxu0 0.0
    %v8833 = vand.u32 %v8558, 4294901760
    %v8834 = vsub.f32 %v8558, %v8833
    %8835 = vmatpush1.msra.mxu0 %v8834
    %8836 = vmatprep.subr.mxu0 0.0
    %v8837 = vand.u32 %v8559, 4294901760
    %v8838 = vsub.f32 %v8559, %v8837
    %8839 = vmatpush1.msra.mxu0 %v8838
    %8840 = vmatprep.subr.mxu0 0.0
    %v8841 = vand.u32 %v8560, 4294901760
    %v8842 = vsub.f32 %v8560, %v8841
    %8843 = vmatpush1.msra.mxu0 %v8842
    %8844 = vmatprep.subr.mxu0 0.0
    %v8845 = vand.u32 %v8561, 4294901760
    %v8846 = vsub.f32 %v8561, %v8845
    %8847 = vmatpush1.msra.mxu0 %v8846
    %8848 = vmatprep.subr.mxu0 0.0
    %v8849 = vand.u32 %v8562, 4294901760
    %v8850 = vsub.f32 %v8562, %v8849
    %8851 = vmatpush1.msra.mxu0 %v8850
    %8852 = vmatprep.subr.mxu0 0.0
    %v8853 = vand.u32 %v8563, 4294901760
    %v8854 = vsub.f32 %v8563, %v8853
    %8855 = vmatpush1.msra.mxu0 %v8854
    %8856 = vmatprep.subr.mxu0 0.0
    %v8857 = vand.u32 %v8564, 4294901760
    %v8858 = vsub.f32 %v8564, %v8857
    %8859 = vmatpush1.msra.mxu0 %v8858
    %8860 = vmatprep.subr.mxu0 0.0
    %v8861 = vand.u32 %v8565, 4294901760
    %v8862 = vsub.f32 %v8565, %v8861
    %8863 = vmatpush1.msra.mxu0 %v8862
    %8864 = vmatprep.subr.mxu0 0.0
    %v8865 = vand.u32 %v8566, 4294901760
    %v8866 = vsub.f32 %v8566, %v8865
    %8867 = vmatpush1.msra.mxu0 %v8866
    %8868 = vmatprep.subr.mxu0 0.0
    %v8869 = vand.u32 %v8567, 4294901760
    %v8870 = vsub.f32 %v8567, %v8869
    %8871 = vmatpush1.msra.mxu0 %v8870
    %8872 = vmatprep.subr.mxu0 0.0
    %v8873 = vand.u32 %v8568, 4294901760
    %v8874 = vsub.f32 %v8568, %v8873
    %8875 = vmatpush1.msra.mxu0 %v8874
    %8876 = vmatprep.subr.mxu0 0.0
    %v8877 = vand.u32 %v8569, 4294901760
    %v8878 = vsub.f32 %v8569, %v8877
    %8879 = vmatpush1.msra.mxu0 %v8878
    %8880 = vmatprep.subr.mxu0 0.0
    %v8881 = vand.u32 %v8570, 4294901760
    %v8882 = vsub.f32 %v8570, %v8881
    %8883 = vmatpush1.msra.mxu0 %v8882
    %8884 = vmatprep.subr.mxu0 0.0
    %v8885 = vand.u32 %v8571, 4294901760
    %v8886 = vsub.f32 %v8571, %v8885
    %8887 = vmatpush1.msra.mxu0 %v8886
    %8888 = vmatprep.subr.mxu0 0.0
    %v8889 = vand.u32 %v8572, 4294901760
    %v8890 = vsub.f32 %v8572, %v8889
    %8891 = vmatpush1.msra.mxu0 %v8890
    %8892 = vmatprep.subr.mxu0 0.0
    %v8893 = vand.u32 %v8573, 4294901760
    %v8894 = vsub.f32 %v8573, %v8893
    %8895 = vmatpush1.msra.mxu0 %v8894
    %8896 = vmatprep.subr.mxu0 0.0
    %8897 = vmatpush1.msra.mxu0 0.0
    %8898 = vmatprep.subr.mxu0 0.0
    %8899 = vmatpush1.msra.mxu0 0.0
    %8900 = vmatprep.subr.mxu0 0.0
    %8901 = vmatpush1.msra.mxu0 0.0
    %8902 = vmatprep.subr.mxu0 0.0
    %8903 = vmatpush1.msra.mxu0 0.0
    %8904 = vmatprep.subr.mxu0 0.0
    %8905 = vmatpush1.msra.mxu0 0.0
    %8906 = vmatprep.subr.mxu0 0.0
    %8907 = vmatpush1.msra.mxu0 0.0
    %8908 = vmatprep.subr.mxu0 0.0
    %8909 = vmatpush1.msra.mxu0 0.0
    %8910 = vmatprep.subr.mxu0 0.0
    %8911 = vmatpush1.msra.mxu0 0.0
    %8912 = vmatprep.subr.mxu0 0.0
    %8913 = vmatpush1.msra.mxu0 0.0
    %8914 = vmatprep.subr.mxu0 0.0
    %8915 = vmatpush1.msra.mxu0 0.0
    %8916 = vmatprep.subr.mxu0 0.0
    %8917 = vmatpush1.msra.mxu0 0.0
    %8918 = vmatprep.subr.mxu0 0.0
    %8919 = vmatpush1.msra.mxu0 0.0
    %8920 = vmatprep.subr.mxu0 0.0
    %8921 = vmatpush1.msra.mxu0 0.0
    %8922 = vmatprep.subr.mxu0 0.0
    %8923 = vmatpush1.msra.mxu0 0.0
    %8924 = vmatprep.subr.mxu0 0.0
    %8925 = vmatpush1.msra.mxu0 0.0
    %8926 = vmatprep.subr.mxu0 0.0
    %8927 = vmatpush1.msra.mxu0 0.0
    %8928 = vmatprep.mubr.f32.mxu0 0.0
    %v8929 = vand.u32 %v8556, 4294901760
    %v8930 = vsub.f32 %v8556, %v8929
    %8931 = vmatmul.mubr.f32.gmra.mrb[0].mxu0 %v8930
    %v8932 = vpop.f32.mrb[0].mxu0
    %v8933 = vadd.f32 %v8823, %v8932
    %v8934 = vpop.f32.mrb[0].mxu0
    %8935 = vmatprep.mubr.f32.mxu0 0.0
    %v8936 = vand.u32 %v8557, 4294901760
    %v8937 = vsub.f32 %v8557, %v8936
    %8938 = vmatmul.mubr.f32.gmra.mrb[0].mxu0 %v8937
    %v8939 = vpop.f32.mrb[0].mxu0
    %v8940 = vadd.f32 %v8829, %v8939
    %v8941 = vpop.f32.mrb[0].mxu0
    %8942 = vdwg.mxu0
    %8943 = vmatprep.subr.mxu0 0.0
    %v8944 = vand.u32 %v8558, 4294901760
    %8945 = vmatpush1.msra.mxu0 %v8944
    %8946 = vmatprep.subr.mxu0 0.0
    %v8947 = vand.u32 %v8559, 4294901760
    %8948 = vmatpush1.msra.mxu0 %v8947
    %8949 = vmatprep.subr.mxu0 0.0
    %v8950 = vand.u32 %v8560, 4294901760
    %8951 = vmatpush1.msra.mxu0 %v8950
    %8952 = vmatprep.subr.mxu0 0.0
    %v8953 = vand.u32 %v8561, 4294901760
    %8954 = vmatpush1.msra.mxu0 %v8953
    %8955 = vmatprep.subr.mxu0 0.0
    %v8956 = vand.u32 %v8562, 4294901760
    %8957 = vmatpush1.msra.mxu0 %v8956
    %8958 = vmatprep.subr.mxu0 0.0
    %v8959 = vand.u32 %v8563, 4294901760
    %8960 = vmatpush1.msra.mxu0 %v8959
    %8961 = vmatprep.subr.mxu0 0.0
    %v8962 = vand.u32 %v8564, 4294901760
    %8963 = vmatpush1.msra.mxu0 %v8962
    %8964 = vmatprep.subr.mxu0 0.0
    %v8965 = vand.u32 %v8565, 4294901760
    %8966 = vmatpush1.msra.mxu0 %v8965
    %8967 = vmatprep.subr.mxu0 0.0
    %v8968 = vand.u32 %v8566, 4294901760
    %8969 = vmatpush1.msra.mxu0 %v8968
    %8970 = vmatprep.subr.mxu0 0.0
    %v8971 = vand.u32 %v8567, 4294901760
    %8972 = vmatpush1.msra.mxu0 %v8971
    %8973 = vmatprep.subr.mxu0 0.0
    %v8974 = vand.u32 %v8568, 4294901760
    %8975 = vmatpush1.msra.mxu0 %v8974
    %8976 = vmatprep.subr.mxu0 0.0
    %v8977 = vand.u32 %v8569, 4294901760
    %8978 = vmatpush1.msra.mxu0 %v8977
    %8979 = vmatprep.subr.mxu0 0.0
    %v8980 = vand.u32 %v8570, 4294901760
    %8981 = vmatpush1.msra.mxu0 %v8980
    %8982 = vmatprep.subr.mxu0 0.0
    %v8983 = vand.u32 %v8571, 4294901760
    %8984 = vmatpush1.msra.mxu0 %v8983
    %8985 = vmatprep.subr.mxu0 0.0
    %v8986 = vand.u32 %v8572, 4294901760
    %8987 = vmatpush1.msra.mxu0 %v8986
    %8988 = vmatprep.subr.mxu0 0.0
    %v8989 = vand.u32 %v8573, 4294901760
    %8990 = vmatpush1.msra.mxu0 %v8989
    %8991 = vmatprep.subr.mxu0 0.0
    %8992 = vmatpush1.msra.mxu0 0.0
    %8993 = vmatprep.subr.mxu0 0.0
    %8994 = vmatpush1.msra.mxu0 0.0
    %8995 = vmatprep.subr.mxu0 0.0
    %8996 = vmatpush1.msra.mxu0 0.0
    %8997 = vmatprep.subr.mxu0 0.0
    %8998 = vmatpush1.msra.mxu0 0.0
    %8999 = vmatprep.subr.mxu0 0.0
    %9000 = vmatpush1.msra.mxu0 0.0
    %9001 = vmatprep.subr.mxu0 0.0
    %9002 = vmatpush1.msra.mxu0 0.0
    %9003 = vmatprep.subr.mxu0 0.0
    %9004 = vmatpush1.msra.mxu0 0.0
    %9005 = vmatprep.subr.mxu0 0.0
    %9006 = vmatpush1.msra.mxu0 0.0
    %9007 = vmatprep.subr.mxu0 0.0
    %9008 = vmatpush1.msra.mxu0 0.0
    %9009 = vmatprep.subr.mxu0 0.0
    %9010 = vmatpush1.msra.mxu0 0.0
    %9011 = vmatprep.subr.mxu0 0.0
    %9012 = vmatpush1.msra.mxu0 0.0
    %9013 = vmatprep.subr.mxu0 0.0
    %9014 = vmatpush1.msra.mxu0 0.0
    %9015 = vmatprep.subr.mxu0 0.0
    %9016 = vmatpush1.msra.mxu0 0.0
    %9017 = vmatprep.subr.mxu0 0.0
    %9018 = vmatpush1.msra.mxu0 0.0
    %9019 = vmatprep.subr.mxu0 0.0
    %9020 = vmatpush1.msra.mxu0 0.0
    %9021 = vmatprep.subr.mxu0 0.0
    %9022 = vmatpush1.msra.mxu0 0.0
    %9023 = vmatprep.mubr.f32.mxu0 0.0
    %v9024 = vand.u32 %v8556, 4294901760
    %v9025 = vsub.f32 %v8556, %v9024
    %v9026 = vand.u32 %v9025, 4294901760
    %9027 = vmatmul.mubr.f32.gmra.mrb[0].mxu0 %v9026
    %v9028 = vpop.f32.mrb[0].mxu0
    %v9029 = vadd.f32 %v8933, %v9028
    %v9030 = vpop.f32.mrb[0].mxu0
    %9031 = vmatprep.mubr.f32.mxu0 0.0
    %v9032 = vand.u32 %v8557, 4294901760
    %v9033 = vsub.f32 %v8557, %v9032
    %v9034 = vand.u32 %v9033, 4294901760
    %9035 = vmatmul.mubr.f32.gmra.mrb[0].mxu0 %v9034
    %v9036 = vpop.f32.mrb[0].mxu0
    %v9037 = vadd.f32 %v8940, %v9036
    %v9038 = vpop.f32.mrb[0].mxu0
    %9039 = vdwg.mxu0
    %9040 = vmatprep.subr.mxu0 0.0
    %v9041 = vand.u32 %v8558, 4294901760
    %v9042 = vsub.f32 %v8558, %v9041
    %v9043 = vand.u32 %v9042, 4294901760
    %9044 = vmatpush1.msra.mxu0 %v9043
    %9045 = vmatprep.subr.mxu0 0.0
    %v9046 = vand.u32 %v8559, 4294901760
    %v9047 = vsub.f32 %v8559, %v9046
    %v9048 = vand.u32 %v9047, 4294901760
    %9049 = vmatpush1.msra.mxu0 %v9048
    %9050 = vmatprep.subr.mxu0 0.0
    %v9051 = vand.u32 %v8560, 4294901760
    %v9052 = vsub.f32 %v8560, %v9051
    %v9053 = vand.u32 %v9052, 4294901760
    %9054 = vmatpush1.msra.mxu0 %v9053
    %9055 = vmatprep.subr.mxu0 0.0
    %v9056 = vand.u32 %v8561, 4294901760
    %v9057 = vsub.f32 %v8561, %v9056
    %v9058 = vand.u32 %v9057, 4294901760
    %9059 = vmatpush1.msra.mxu0 %v9058
    %9060 = vmatprep.subr.mxu0 0.0
    %v9061 = vand.u32 %v8562, 4294901760
    %v9062 = vsub.f32 %v8562, %v9061
    %v9063 = vand.u32 %v9062, 4294901760
    %9064 = vmatpush1.msra.mxu0 %v9063
    %9065 = vmatprep.subr.mxu0 0.0
    %v9066 = vand.u32 %v8563, 4294901760
    %v9067 = vsub.f32 %v8563, %v9066
    %v9068 = vand.u32 %v9067, 4294901760
    %9069 = vmatpush1.msra.mxu0 %v9068
    %9070 = vmatprep.subr.mxu0 0.0
    %v9071 = vand.u32 %v8564, 4294901760
    %v9072 = vsub.f32 %v8564, %v9071
    %v9073 = vand.u32 %v9072, 4294901760
    %9074 = vmatpush1.msra.mxu0 %v9073
    %9075 = vmatprep.subr.mxu0 0.0
    %v9076 = vand.u32 %v8565, 4294901760
    %v9077 = vsub.f32 %v8565, %v9076
    %v9078 = vand.u32 %v9077, 4294901760
    %9079 = vmatpush1.msra.mxu0 %v9078
    %9080 = vmatprep.subr.mxu0 0.0
    %v9081 = vand.u32 %v8566, 4294901760
    %v9082 = vsub.f32 %v8566, %v9081
    %v9083 = vand.u32 %v9082, 4294901760
    %9084 = vmatpush1.msra.mxu0 %v9083
    %9085 = vmatprep.subr.mxu0 0.0
    %v9086 = vand.u32 %v8567, 4294901760
    %v9087 = vsub.f32 %v8567, %v9086
    %v9088 = vand.u32 %v9087, 4294901760
    %9089 = vmatpush1.msra.mxu0 %v9088
    %9090 = vmatprep.subr.mxu0 0.0
    %v9091 = vand.u32 %v8568, 4294901760
    %v9092 = vsub.f32 %v8568, %v9091
    %v9093 = vand.u32 %v9092, 4294901760
    %9094 = vmatpush1.msra.mxu0 %v9093
    %9095 = vmatprep.subr.mxu0 0.0
    %v9096 = vand.u32 %v8569, 4294901760
    %v9097 = vsub.f32 %v8569, %v9096
    %v9098 = vand.u32 %v9097, 4294901760
    %9099 = vmatpush1.msra.mxu0 %v9098
    %9100 = vmatprep.subr.mxu0 0.0
    %v9101 = vand.u32 %v8570, 4294901760
    %v9102 = vsub.f32 %v8570, %v9101
    %v9103 = vand.u32 %v9102, 4294901760
    %9104 = vmatpush1.msra.mxu0 %v9103
    %9105 = vmatprep.subr.mxu0 0.0
    %v9106 = vand.u32 %v8571, 4294901760
    %v9107 = vsub.f32 %v8571, %v9106
    %v9108 = vand.u32 %v9107, 4294901760
    %9109 = vmatpush1.msra.mxu0 %v9108
    %9110 = vmatprep.subr.mxu0 0.0
    %v9111 = vand.u32 %v8572, 4294901760
    %v9112 = vsub.f32 %v8572, %v9111
    %v9113 = vand.u32 %v9112, 4294901760
    %9114 = vmatpush1.msra.mxu0 %v9113
    %9115 = vmatprep.subr.mxu0 0.0
    %v9116 = vand.u32 %v8573, 4294901760
    %v9117 = vsub.f32 %v8573, %v9116
    %v9118 = vand.u32 %v9117, 4294901760
    %9119 = vmatpush1.msra.mxu0 %v9118
    %9120 = vmatprep.subr.mxu0 0.0
    %9121 = vmatpush1.msra.mxu0 0.0
    %9122 = vmatprep.subr.mxu0 0.0
    %9123 = vmatpush1.msra.mxu0 0.0
    %9124 = vmatprep.subr.mxu0 0.0
    %9125 = vmatpush1.msra.mxu0 0.0
    %9126 = vmatprep.subr.mxu0 0.0
    %9127 = vmatpush1.msra.mxu0 0.0
    %9128 = vmatprep.subr.mxu0 0.0
    %9129 = vmatpush1.msra.mxu0 0.0
    %9130 = vmatprep.subr.mxu0 0.0
    %9131 = vmatpush1.msra.mxu0 0.0
    %9132 = vmatprep.subr.mxu0 0.0
    %9133 = vmatpush1.msra.mxu0 0.0
    %9134 = vmatprep.subr.mxu0 0.0
    %9135 = vmatpush1.msra.mxu0 0.0
    %9136 = vmatprep.subr.mxu0 0.0
    %9137 = vmatpush1.msra.mxu0 0.0
    %9138 = vmatprep.subr.mxu0 0.0
    %9139 = vmatpush1.msra.mxu0 0.0
    %9140 = vmatprep.subr.mxu0 0.0
    %9141 = vmatpush1.msra.mxu0 0.0
    %9142 = vmatprep.subr.mxu0 0.0
    %9143 = vmatpush1.msra.mxu0 0.0
    %9144 = vmatprep.subr.mxu0 0.0
    %9145 = vmatpush1.msra.mxu0 0.0
    %9146 = vmatprep.subr.mxu0 0.0
    %9147 = vmatpush1.msra.mxu0 0.0
    %9148 = vmatprep.subr.mxu0 0.0
    %9149 = vmatpush1.msra.mxu0 0.0
    %9150 = vmatprep.subr.mxu0 0.0
    %9151 = vmatpush1.msra.mxu0 0.0
    %9152 = vmatprep.mubr.f32.mxu0 0.0
    %v9153 = vand.u32 %v8556, 4294901760
    %9154 = vmatmul.mubr.f32.gmra.mrb[0].mxu0 %v9153
    %v9155 = vpop.f32.mrb[0].mxu0
    %v9156 = vadd.f32 %v9029, %v9155
    %v9157 = vpop.f32.mrb[0].mxu0
    %9158 = vmatprep.mubr.f32.mxu0 0.0
    %v9159 = vand.u32 %v8557, 4294901760
    %9160 = vmatmul.mubr.f32.gmra.mrb[0].mxu0 %v9159
    %v9161 = vpop.f32.mrb[0].mxu0
    %v9162 = vadd.f32 %v9037, %v9161
    %v9163 = vpop.f32.mrb[0].mxu0
    %9164 = vdwg.mxu0
    %9165 = vmatprep.subr.mxu0 0.0
    %v9166 = vand.u32 %v8558, 4294901760
    %9167 = vmatpush1.msra.mxu0 %v9166
    %9168 = vmatprep.subr.mxu0 0.0
    %v9169 = vand.u32 %v8559, 4294901760
    %9170 = vmatpush1.msra.mxu0 %v9169
    %9171 = vmatprep.subr.mxu0 0.0
    %v9172 = vand.u32 %v8560, 4294901760
    %9173 = vmatpush1.msra.mxu0 %v9172
    %9174 = vmatprep.subr.mxu0 0.0
    %v9175 = vand.u32 %v8561, 4294901760
    %9176 = vmatpush1.msra.mxu0 %v9175
    %9177 = vmatprep.subr.mxu0 0.0
    %v9178 = vand.u32 %v8562, 4294901760
    %9179 = vmatpush1.msra.mxu0 %v9178
    %9180 = vmatprep.subr.mxu0 0.0
    %v9181 = vand.u32 %v8563, 4294901760
    %9182 = vmatpush1.msra.mxu0 %v9181
    %9183 = vmatprep.subr.mxu0 0.0
    %v9184 = vand.u32 %v8564, 4294901760
    %9185 = vmatpush1.msra.mxu0 %v9184
    %9186 = vmatprep.subr.mxu0 0.0
    %v9187 = vand.u32 %v8565, 4294901760
    %9188 = vmatpush1.msra.mxu0 %v9187
    %9189 = vmatprep.subr.mxu0 0.0
    %v9190 = vand.u32 %v8566, 4294901760
    %9191 = vmatpush1.msra.mxu0 %v9190
    %9192 = vmatprep.subr.mxu0 0.0
    %v9193 = vand.u32 %v8567, 4294901760
    %9194 = vmatpush1.msra.mxu0 %v9193
    %9195 = vmatprep.subr.mxu0 0.0
    %v9196 = vand.u32 %v8568, 4294901760
    %9197 = vmatpush1.msra.mxu0 %v9196
    %9198 = vmatprep.subr.mxu0 0.0
    %v9199 = vand.u32 %v8569, 4294901760
    %9200 = vmatpush1.msra.mxu0 %v9199
    %9201 = vmatprep.subr.mxu0 0.0
    %v9202 = vand.u32 %v8570, 4294901760
    %9203 = vmatpush1.msra.mxu0 %v9202
    %9204 = vmatprep.subr.mxu0 0.0
    %v9205 = vand.u32 %v8571, 4294901760
    %9206 = vmatpush1.msra.mxu0 %v9205
    %9207 = vmatprep.subr.mxu0 0.0
    %v9208 = vand.u32 %v8572, 4294901760
    %9209 = vmatpush1.msra.mxu0 %v9208
    %9210 = vmatprep.subr.mxu0 0.0
    %v9211 = vand.u32 %v8573, 4294901760
    %9212 = vmatpush1.msra.mxu0 %v9211
    %9213 = vmatprep.subr.mxu0 0.0
    %9214 = vmatpush1.msra.mxu0 0.0
    %9215 = vmatprep.subr.mxu0 0.0
    %9216 = vmatpush1.msra.mxu0 0.0
    %9217 = vmatprep.subr.mxu0 0.0
    %9218 = vmatpush1.msra.mxu0 0.0
    %9219 = vmatprep.subr.mxu0 0.0
    %9220 = vmatpush1.msra.mxu0 0.0
    %9221 = vmatprep.subr.mxu0 0.0
    %9222 = vmatpush1.msra.mxu0 0.0
    %9223 = vmatprep.subr.mxu0 0.0
    %9224 = vmatpush1.msra.mxu0 0.0
    %9225 = vmatprep.subr.mxu0 0.0
    %9226 = vmatpush1.msra.mxu0 0.0
    %9227 = vmatprep.subr.mxu0 0.0
    %9228 = vmatpush1.msra.mxu0 0.0
    %9229 = vmatprep.subr.mxu0 0.0
    %9230 = vmatpush1.msra.mxu0 0.0
    %9231 = vmatprep.subr.mxu0 0.0
    %9232 = vmatpush1.msra.mxu0 0.0
    %9233 = vmatprep.subr.mxu0 0.0
    %9234 = vmatpush1.msra.mxu0 0.0
    %9235 = vmatprep.subr.mxu0 0.0
    %9236 = vmatpush1.msra.mxu0 0.0
    %9237 = vmatprep.subr.mxu0 0.0
    %9238 = vmatpush1.msra.mxu0 0.0
    %9239 = vmatprep.subr.mxu0 0.0
    %9240 = vmatpush1.msra.mxu0 0.0
    %9241 = vmatprep.subr.mxu0 0.0
    %9242 = vmatpush1.msra.mxu0 0.0
    %9243 = vmatprep.subr.mxu0 0.0
    %9244 = vmatpush1.msra.mxu0 0.0
    %9245 = vmatprep.mubr.f32.mxu0 0.0
    %v9246 = vand.u32 %v8556, 4294901760
    %9247 = vmatmul.mubr.f32.gmra.mrb[0].mxu0 %v9246
    %v9248 = vpop.f32.mrb[0].mxu0
    %v9249 = vadd.f32 %v9156, %v9248
    %v9250 = vpop.f32.mrb[0].mxu0
    %9251 = vmatprep.mubr.f32.mxu0 0.0
    %v9252 = vand.u32 %v8557, 4294901760
    %9253 = vmatmul.mubr.f32.gmra.mrb[0].mxu0 %v9252
    %v9254 = vpop.f32.mrb[0].mxu0
    %v9255 = vadd.f32 %v9162, %v9254
    %v9256 = vpop.f32.mrb[0].mxu0
    %9257 = vdwg.mxu0
    %9258 = vst.msk [vmem:[#allocation3] sm:$0xff] %vm52, %v9249
    %9259 = vst.msk [vmem:[#allocation3 + $0x8] sm:$0xff] %vm52, %v9255
    // Predicated region
    $region22: #{tpu_custom_call.1} parent=1 // pred_check
      _
    $region23: #{tpu_custom_call.1} parent=1 // pred_check_branch
      %9261 = sbr.rel (0) target = $region25
    $region24: #{tpu_custom_call.1} parent=1 // pred_region
      %s9263 = ssub.s32 256, 256
      %9264 = vsyncadd [#allocation4], %s9263
      %s9265 = sshll.u32 [#allocation3], 4
      %s9266 = int_to_ptr.vmem [resolvable:$true] %s9265
      %9271 = dma.vmem_to_hbm [thread:$0]  %s9266, 256, %s5, [#allocation4], 128, 128, 8
    $region25: #{tpu_custom_call.1} parent=1 // pred_fallthru
      _
    // Predicated region
    $region26: #{tpu_custom_call.1} parent=1 // pred_check
      _
    $region27: #{tpu_custom_call.1} parent=1 // pred_check_branch
      %9273 = sbr.rel (0) target = $region29
    $region28: #{tpu_custom_call.1} parent=1 // pred_region
      %9274 = dma.done [#allocation4], 256
    $region29: #{tpu_custom_call.1} parent=1 // pred_fallthru
      _
    %9275 = vsyncpa [#allocation4], 1

// kernel: multi_head_attention.1
$region0: #{multi_head_attention.1}
  #allocation0 [shape = 'u32[]', space=smem, size = 0x4, offset = 0x4, fixed_abs, tag = 'smem constant byte address 0x4 - core index']
  #allocation1 [shape = 'u32[144,128]{1,0:T(1,128)}', space=vmem, size = 0x12000, scoped, tag = 'internal scratch']
  #allocation2 [shape = 'f32[16,128]{1,0:T(8,128)}', space=vmem, size = 0x2000, scoped, tag = 'scratch operand']
  %s0 = inlined_call_operand.vmem [shape: f32[16,32], index: 0, kind: input, shape index: {}]
  %s1 = inlined_call_operand.vmem [shape: f32[2,8,8], index: 1, kind: input, shape index: {}]
  %s2 = inlined_call_operand.vmem [shape: f32[32,384], index: 2, kind: input, shape index: {}]
  %s3 = inlined_call_operand.vmem [shape: f32[1,384], index: 3, kind: input, shape index: {}]
  %s4 = inlined_call_operand.vmem [shape: f32[128,32], index: 4, kind: input, shape index: {}]
  %s5 = inlined_call_operand.hbm [shape: f32[1,16,32], index: 5, kind: output, shape index: {}]
  %s6 = sld [smem:[#allocation0]]
  $region30: #{multi_head_attention.1} parent=0
    _
  %s8 = ssub.s32 1, %s6
  %s9 = scalar_select 0, %s8, %s6
  $region1: #{multi_head_attention.1} parent=0
    #allocation3 [shape = 'u8[8192]{0}', space=vmem, size = 0x2000, scoped, tag = 'output window, operand 0, single buffered']
    #allocation4 [shape = 's32[1]{0}', space=sflag, size = 0x4, scoped, tag = 'scoped memory for multi_head_attention.1']
    %10 = vsyncpa [#allocation4], 0
    // Predicated region
    $region2: #{multi_head_attention.1} parent=1 // pred_check
      _
    $region3: #{multi_head_attention.1} parent=1 // pred_check_branch
      %12 = sbr.rel (0) target = $region5
    $region4: #{multi_head_attention.1} parent=1 // pred_region
      _
    $region5: #{multi_head_attention.1} parent=1 // pred_fallthru
      _
    // Predicated region
    $region6: #{multi_head_attention.1} parent=1 // pred_check
      _
    $region7: #{multi_head_attention.1} parent=1 // pred_check_branch
      %14 = sbr.rel (0) target = $region9
    $region8: #{multi_head_attention.1} parent=1 // pred_region
      _
    $region9: #{multi_head_attention.1} parent=1 // pred_fallthru
      _
    // Predicated region
    $region10: #{multi_head_attention.1} parent=1 // pred_check
      _
    $region11: #{multi_head_attention.1} parent=1 // pred_check_branch
      %16 = sbr.rel (0) target = $region13
    $region12: #{multi_head_attention.1} parent=1 // pred_region
      _
    $region13: #{multi_head_attention.1} parent=1 // pred_fallthru
      _
    // Predicated region
    $region14: #{multi_head_attention.1} parent=1 // pred_check
      _
    $region15: #{multi_head_attention.1} parent=1 // pred_check_branch
      %18 = sbr.rel (0) target = $region17
    $region16: #{multi_head_attention.1} parent=1 // pred_region
      _
    $region17: #{multi_head_attention.1} parent=1 // pred_fallthru
      _
    // Predicated region
    $region18: #{multi_head_attention.1} parent=1 // pred_check
      _
    $region19: #{multi_head_attention.1} parent=1 // pred_check_branch
      %20 = sbr.rel (0) target = $region21
    $region20: #{multi_head_attention.1} parent=1 // pred_region
      _
    $region21: #{multi_head_attention.1} parent=1 // pred_fallthru
      _
    %v21 = vld [vmem:[%s0] sm:$0xff]
    %v22 = vld [vmem:[%s0 + $0x8] sm:$0xff]
    %v23 = vld [vmem:[%s2] sm:$0xff]
    %v24 = vld [vmem:[%s2 + $0x8] sm:$0xff]
    %v25 = vld [vmem:[%s2 + $0x10] sm:$0xff]
    %v26 = vld [vmem:[%s2 + $0x18] sm:$0xff]
    %v27 = vld [vmem:[%s2 + $0x20] sm:$0xff]
    %v28 = vld [vmem:[%s2 + $0x28] sm:$0xff]
    %v29 = vld [vmem:[%s2 + $0x30] sm:$0xff]
    %v30 = vld [vmem:[%s2 + $0x38] sm:$0xff]
    %v31 = vld [vmem:[%s2 + $0x40] sm:$0xff]
    %v32 = vld [vmem:[%s2 + $0x48] sm:$0xff]
    %v33 = vld [vmem:[%s2 + $0x50] sm:$0xff]
    %v34 = vld [vmem:[%s2 + $0x58] sm:$0xff]
    %v35 = vld [vmem:[%s3] sm:$0x7]
    %v37 = vlaneseq
    %v38 = vshrl.u32 %v37, 7
    %v39 = vsub.s32 0, %v38
    %v40 = vrot.slane %v35, %v39
    %v41 = vlaneseq
    %v42 = vshrl.u32 %v41, 7
    %v43 = vsub.s32 1, %v42
    %v44 = vrot.slane %v35, %v43
    %v45 = vlaneseq
    %v46 = vshrl.u32 %v45, 7
    %v47 = vsub.s32 2, %v46
    %v48 = vrot.slane %v35, %v47
    %vm52 = vcmask 261120
    %v54 = vsel %vm52, %v21, 0
    %v57 = vsel %vm52, %v22, 0
    %59 = vmatprep.subr.mxu0 %v24
    %60 = vmatpush1.msra.mxu0 %v23
    %61 = vmatprep.subr.mxu0 %v27
    %62 = vmatpush1.msra.mxu0 %v26
    %63 = vmatprep.subr.mxu0 %v30
    %64 = vmatpush1.msra.mxu0 %v29
    %65 = vmatprep.subr.mxu0 %v33
    %66 = vmatpush1.msra.mxu0 %v32
    %67 = vmatprep.subr.mxu0 0.0
    %68 = vmatpush1.msra.mxu0 0.0
    %69 = vmatprep.subr.mxu0 0.0
    %70 = vmatpush1.msra.mxu0 0.0
    %71 = vmatprep.subr.mxu0 0.0
    %72 = vmatpush1.msra.mxu0 0.0
    %73 = vmatprep.subr.mxu0 0.0
    %74 = vmatpush1.msra.mxu0 0.0
    %75 = vmatprep.subr.mxu0 0.0
    %76 = vmatpush1.msra.mxu0 0.0
    %77 = vmatprep.subr.mxu0 0.0
    %78 = vmatpush1.msra.mxu0 0.0
    %79 = vmatprep.subr.mxu0 0.0
    %80 = vmatpush1.msra.mxu0 0.0
    %81 = vmatprep.subr.mxu0 0.0
    %82 = vmatpush1.msra.mxu0 0.0
    %83 = vmatprep.subr.mxu0 0.0
    %84 = vmatpush1.msra.mxu0 0.0
    %85 = vmatprep.subr.mxu0 0.0
    %86 = vmatpush1.msra.mxu0 0.0
    %87 = vmatprep.subr.mxu0 0.0
    %88 = vmatpush1.msra.mxu0 0.0
    %89 = vmatprep.subr.mxu0 0.0
    %90 = vmatpush1.msra.mxu0 0.0
    %91 = vmatprep.subr.mxu0 0.0
    %92 = vmatpush1.msra.mxu0 0.0
    %93 = vmatprep.subr.mxu0 0.0
    %94 = vmatpush1.msra.mxu0 0.0
    %95 = vmatprep.subr.mxu0 0.0
    %96 = vmatpush1.msra.mxu0 0.0
    %97 = vmatprep.subr.mxu0 0.0
    %98 = vmatpush1.msra.mxu0 0.0
    %99 = vmatprep.subr.mxu0 0.0
    %100 = vmatpush1.msra.mxu0 0.0
    %101 = vmatprep.subr.mxu0 0.0
    %102 = vmatpush1.msra.mxu0 0.0
    %103 = vmatprep.subr.mxu0 0.0
    %104 = vmatpush1.msra.mxu0 0.0
    %105 = vmatprep.subr.mxu0 0.0
    %106 = vmatpush1.msra.mxu0 0.0
    %107 = vmatprep.subr.mxu0 0.0
    %108 = vmatpush1.msra.mxu0 0.0
    %109 = vmatprep.subr.mxu0 0.0
    %110 = vmatpush1.msra.mxu0 0.0
    %111 = vmatprep.subr.mxu0 0.0
    %112 = vmatpush1.msra.mxu0 0.0
    %113 = vmatprep.subr.mxu0 0.0
    %114 = vmatpush1.msra.mxu0 0.0
    %115 = vmatprep.subr.mxu0 0.0
    %116 = vmatpush1.msra.mxu0 0.0
    %117 = vmatprep.subr.mxu0 0.0
    %118 = vmatpush1.msra.mxu0 0.0
    %119 = vmatprep.subr.mxu0 0.0
    %120 = vmatpush1.msra.mxu0 0.0
    %121 = vmatprep.subr.mxu0 0.0
    %122 = vmatpush1.msra.mxu0 0.0
    %123 = vmatprep.mubr.f32.mxu0 0.0
    %124 = vmatmul.mubr.f32.gmra.mrb[0].mxu0 %v54
    %v125 = vpop.f32.mrb[0].mxu0
    %v126 = vadd.f32 %v40, %v125
    %v127 = vpop.f32.mrb[0].mxu0
    %v128 = vadd.f32 %v44, %v127
    %129 = vmatprep.mubr.f32.mxu0 0.0
    %130 = vmatmul.mubr.f32.gmra.mrb[0].mxu0 %v57
    %v131 = vpop.f32.mrb[0].mxu0
    %v132 = vadd.f32 %v40, %v131
    %v133 = vpop.f32.mrb[0].mxu0
    %v134 = vadd.f32 %v44, %v133
    %135 = vdwg.mxu0
    %136 = vmatprep.subr.mxu0 0.0
    %137 = vmatpush1.msra.mxu0 %v25
    %138 = vmatprep.subr.mxu0 0.0
    %139 = vmatpush1.msra.mxu0 %v28
    %140 = vmatprep.subr.mxu0 0.0
    %141 = vmatpush1.msra.mxu0 %v31
    %142 = vmatprep.subr.mxu0 0.0
    %143 = vmatpush1.msra.mxu0 %v34
    %144 = vmatprep.subr.mxu0 0.0
    %145 = vmatpush1.msra.mxu0 0.0
    %146 = vmatprep.subr.mxu0 0.0
    %147 = vmatpush1.msra.mxu0 0.0
    %148 = vmatprep.subr.mxu0 0.0
    %149 = vmatpush1.msra.mxu0 0.0
    %150 = vmatprep.subr.mxu0 0.0
    %151 = vmatpush1.msra.mxu0 0.0
    %152 = vmatprep.subr.mxu0 0.0
    %153 = vmatpush1.msra.mxu0 0.0
    %154 = vmatprep.subr.mxu0 0.0
    %155 = vmatpush1.msra.mxu0 0.0
    %156 = vmatprep.subr.mxu0 0.0
    %157 = vmatpush1.msra.mxu0 0.0
    %158 = vmatprep.subr.mxu0 0.0
    %159 = vmatpush1.msra.mxu0 0.0
    %160 = vmatprep.subr.mxu0 0.0
    %161 = vmatpush1.msra.mxu0 0.0
    %162 = vmatprep.subr.mxu0 0.0
    %163 = vmatpush1.msra.mxu0 0.0
    %164 = vmatprep.subr.mxu0 0.0
    %165 = vmatpush1.msra.mxu0 0.0
    %166 = vmatprep.subr.mxu0 0.0
    %167 = vmatpush1.msra.mxu0 0.0
    %168 = vmatprep.subr.mxu0 0.0
    %169 = vmatpush1.msra.mxu0 0.0
    %170 = vmatprep.subr.mxu0 0.0
    %171 = vmatpush1.msra.mxu0 0.0
    %172 = vmatprep.subr.mxu0 0.0
    %173 = vmatpush1.msra.mxu0 0.0
    %174 = vmatprep.subr.mxu0 0.0
    %175 = vmatpush1.msra.mxu0 0.0
    %176 = vmatprep.subr.mxu0 0.0
    %177 = vmatpush1.msra.mxu0 0.0
    %178 = vmatprep.subr.mxu0 0.0
    %179 = vmatpush1.msra.mxu0 0.0
    %180 = vmatprep.subr.mxu0 0.0
    %181 = vmatpush1.msra.mxu0 0.0
    %182 = vmatprep.subr.mxu0 0.0
    %183 = vmatpush1.msra.mxu0 0.0
    %184 = vmatprep.subr.mxu0 0.0
    %185 = vmatpush1.msra.mxu0 0.0
    %186 = vmatprep.subr.mxu0 0.0
    %187 = vmatpush1.msra.mxu0 0.0
    %188 = vmatprep.subr.mxu0 0.0
    %189 = vmatpush1.msra.mxu0 0.0
    %190 = vmatprep.subr.mxu0 0.0
    %191 = vmatpush1.msra.mxu0 0.0
    %192 = vmatprep.subr.mxu0 0.0
    %193 = vmatpush1.msra.mxu0 0.0
    %194 = vmatprep.subr.mxu0 0.0
    %195 = vmatpush1.msra.mxu0 0.0
    %196 = vmatprep.subr.mxu0 0.0
    %197 = vmatpush1.msra.mxu0 0.0
    %198 = vmatprep.subr.mxu0 0.0
    %199 = vmatpush1.msra.mxu0 0.0
    %200 = vmatprep.mubr.f32.mxu0 0.0
    %201 = vmatmul.mubr.f32.gmra.mrb[0].mxu0 %v54
    %v202 = vpop.f32.mrb[0].mxu0
    %v203 = vadd.f32 %v48, %v202
    %v204 = vpop.f32.mrb[0].mxu0
    %205 = vmatprep.mubr.f32.mxu0 0.0
    %206 = vmatmul.mubr.f32.gmra.mrb[0].mxu0 %v57
    %v207 = vpop.f32.mrb[0].mxu0
    %v208 = vadd.f32 %v48, %v207
    %v209 = vpop.f32.mrb[0].mxu0
    %210 = vdwg.mxu0
    %v211 = vld [vmem:[%s1] sm:$0xff]
    %vm212 = vcmp.eq.f32.partialorder %v211, 0.0
    %v214 = vsel %vm52, %v126, 0
    %v217 = vsel %vm52, %v128, 0
    %219 = vmatprep.subr.mxu0 0.0
    %220 = vmatpush1.xpose.msra.mxu0 %v217
    %221 = vmatprep.subr.mxu0 0.0
    %222 = vmatpush1.xpose.msra.mxu0 0.0
    %223 = vmatprep.subr.mxu0 0.0
    %224 = vmatpush1.xpose.msra.mxu0 0.0
    %225 = vmatprep.subr.mxu0 0.0
    %226 = vmatpush1.xpose.msra.mxu0 0.0
    %227 = vmatprep.subr.mxu0 0.0
    %228 = vmatpush1.xpose.msra.mxu0 0.0
    %229 = vmatprep.subr.mxu0 0.0
    %230 = vmatpush1.xpose.msra.mxu0 0.0
    %231 = vmatprep.subr.mxu0 0.0
    %232 = vmatpush1.xpose.msra.mxu0 0.0
    %233 = vmatprep.subr.mxu0 0.0
    %234 = vmatpush1.xpose.msra.mxu0 0.0
    %235 = vmatprep.subr.mxu0 0.0
    %236 = vmatpush1.xpose.msra.mxu0 0.0
    %237 = vmatprep.subr.mxu0 0.0
    %238 = vmatpush1.xpose.msra.mxu0 0.0
    %239 = vmatprep.subr.mxu0 0.0
    %240 = vmatpush1.xpose.msra.mxu0 0.0
    %241 = vmatprep.subr.mxu0 0.0
    %242 = vmatpush1.xpose.msra.mxu0 0.0
    %243 = vmatprep.subr.mxu0 0.0
    %244 = vmatpush1.xpose.msra.mxu0 0.0
    %245 = vmatprep.subr.mxu0 0.0
    %246 = vmatpush1.xpose.msra.mxu0 0.0
    %247 = vmatprep.subr.mxu0 0.0
    %248 = vmatpush1.xpose.msra.mxu0 0.0
    %249 = vmatprep.subr.mxu0 0.0
    %250 = vmatpush1.xpose.msra.mxu0 0.0
    %251 = vmatprep.subr.mxu0 0.0
    %252 = vmatpush1.xpose.msra.mxu0 0.0
    %253 = vmatprep.subr.mxu0 0.0
    %254 = vmatpush1.xpose.msra.mxu0 0.0
    %255 = vmatprep.subr.mxu0 0.0
    %256 = vmatpush1.xpose.msra.mxu0 0.0
    %257 = vmatprep.subr.mxu0 0.0
    %258 = vmatpush1.xpose.msra.mxu0 0.0
    %259 = vmatprep.subr.mxu0 0.0
    %260 = vmatpush1.xpose.msra.mxu0 0.0
    %261 = vmatprep.subr.mxu0 0.0
    %262 = vmatpush1.xpose.msra.mxu0 0.0
    %263 = vmatprep.subr.mxu0 0.0
    %264 = vmatpush1.xpose.msra.mxu0 0.0
    %265 = vmatprep.subr.mxu0 0.0
    %266 = vmatpush1.xpose.msra.mxu0 0.0
    %267 = vmatprep.subr.mxu0 0.0
    %268 = vmatpush1.xpose.msra.mxu0 0.0
    %269 = vmatprep.subr.mxu0 0.0
    %270 = vmatpush1.xpose.msra.mxu0 0.0
    %271 = vmatprep.subr.mxu0 0.0
    %272 = vmatpush1.xpose.msra.mxu0 0.0
    %273 = vmatprep.subr.mxu0 0.0
    %274 = vmatpush1.xpose.msra.mxu0 0.0
    %275 = vmatprep.subr.mxu0 0.0
    %276 = vmatpush1.xpose.msra.mxu0 0.0
    %277 = vmatprep.subr.mxu0 0.0
    %278 = vmatpush1.xpose.msra.mxu0 0.0
    %279 = vmatprep.subr.mxu0 0.0
    %280 = vmatpush1.xpose.msra.mxu0 0.0
    %281 = vmatprep.subr.mxu0 0.0
    %282 = vmatpush1.xpose.msra.mxu0 0.0
    %283 = vmatprep.mubr.f32.mxu0 0.0
    %284 = vmatmul.mubr.f32.gmra.mrb[0].mxu0 %v214
    %v285 = vpop.f32.mrb[0].mxu0
    %v286 = vadd.f32 0.0, %v285
    %v287 = vpop.f32.mrb[0].mxu0
    %288 = vdwg.mxu0
    %v289 = vsel %vm212, -1e+09, %v286
    %vm290 = vcmask 64512
    %v291 = vsel %vm290, %v289, -inf
    %292 = vmax.xlane.f32.xlu0 %v291
    %v293 = vpop.xlane.xlu0 %292
    %v294 = vsub.f32 %v289, %v293
    %v295 = vmul.f32 %v294, 1.442695
    %v296 = vpow.pop %v295
    %v297 = vsel %vm290, %v296, 0.0
    %298 = vadd.xlane.f32.xlu0 %v297
    %v299 = vpop.xlane.xlu0 %298
    %v300 = vrcp.pop %v299
    %v301 = vmul.f32 %v296, %v300
    %v303 = vsel %vm290, %v301, 0
    %305 = vmatprep.subr.mxu0 0.0
    %306 = vmatpush1.msra.mxu0 %v203
    %307 = vmatprep.subr.mxu0 0.0
    %308 = vmatpush1.msra.mxu0 0.0
    %309 = vmatprep.subr.mxu0 0.0
    %310 = vmatpush1.msra.mxu0 0.0
    %311 = vmatprep.subr.mxu0 0.0
    %312 = vmatpush1.msra.mxu0 0.0
    %313 = vmatprep.subr.mxu0 0.0
    %314 = vmatpush1.msra.mxu0 0.0
    %315 = vmatprep.subr.mxu0 0.0
    %316 = vmatpush1.msra.mxu0 0.0
    %317 = vmatprep.subr.mxu0 0.0
    %318 = vmatpush1.msra.mxu0 0.0
    %319 = vmatprep.subr.mxu0 0.0
    %320 = vmatpush1.msra.mxu0 0.0
    %321 = vmatprep.subr.mxu0 0.0
    %322 = vmatpush1.msra.mxu0 0.0
    %323 = vmatprep.subr.mxu0 0.0
    %324 = vmatpush1.msra.mxu0 0.0
    %325 = vmatprep.subr.mxu0 0.0
    %326 = vmatpush1.msra.mxu0 0.0
    %327 = vmatprep.subr.mxu0 0.0
    %328 = vmatpush1.msra.mxu0 0.0
    %329 = vmatprep.subr.mxu0 0.0
    %330 = vmatpush1.msra.mxu0 0.0
    %331 = vmatprep.subr.mxu0 0.0
    %332 = vmatpush1.msra.mxu0 0.0
    %333 = vmatprep.subr.mxu0 0.0
    %334 = vmatpush1.msra.mxu0 0.0
    %335 = vmatprep.subr.mxu0 0.0
    %336 = vmatpush1.msra.mxu0 0.0
    %337 = vmatprep.subr.mxu0 0.0
    %338 = vmatpush1.msra.mxu0 0.0
    %339 = vmatprep.subr.mxu0 0.0
    %340 = vmatpush1.msra.mxu0 0.0
    %341 = vmatprep.subr.mxu0 0.0
    %342 = vmatpush1.msra.mxu0 0.0
    %343 = vmatprep.subr.mxu0 0.0
    %344 = vmatpush1.msra.mxu0 0.0
    %345 = vmatprep.subr.mxu0 0.0
    %346 = vmatpush1.msra.mxu0 0.0
    %347 = vmatprep.subr.mxu0 0.0
    %348 = vmatpush1.msra.mxu0 0.0
    %349 = vmatprep.subr.mxu0 0.0
    %350 = vmatpush1.msra.mxu0 0.0
    %351 = vmatprep.subr.mxu0 0.0
    %352 = vmatpush1.msra.mxu0 0.0
    %353 = vmatprep.subr.mxu0 0.0
    %354 = vmatpush1.msra.mxu0 0.0
    %355 = vmatprep.subr.mxu0 0.0
    %356 = vmatpush1.msra.mxu0 0.0
    %357 = vmatprep.subr.mxu0 0.0
    %358 = vmatpush1.msra.mxu0 0.0
    %359 = vmatprep.subr.mxu0 0.0
    %360 = vmatpush1.msra.mxu0 0.0
    %361 = vmatprep.subr.mxu0 0.0
    %362 = vmatpush1.msra.mxu0 0.0
    %363 = vmatprep.subr.mxu0 0.0
    %364 = vmatpush1.msra.mxu0 0.0
    %365 = vmatprep.subr.mxu0 0.0
    %366 = vmatpush1.msra.mxu0 0.0
    %367 = vmatprep.subr.mxu0 0.0
    %368 = vmatpush1.msra.mxu0 0.0
    %369 = vmatprep.mubr.f32.mxu0 0.0
    %370 = vmatmul.mubr.f32.gmra.mrb[0].mxu0 %v303
    %v371 = vpop.f32.mrb[0].mxu0
    %v372 = vadd.f32 0.0, %v371
    %v373 = vpop.f32.mrb[0].mxu0
    %374 = vdwg.mxu0
    %375 = vst.msk [vmem:[#allocation2] sm:$0xff] %vm52, %v372
    %376 = vrot.lane.b32.xlu0 %v126, 96
    %v377 = vpop.permute.xlu0 %376
    %378 = vrot.lane.b32.xlu0 %v128, 96
    %v379 = vpop.permute.xlu0 %378
    %v380 = vsel %vm52, %v377, 0
    %v382 = vsel %vm52, %v379, 0
    %384 = vmatprep.subr.mxu0 0.0
    %385 = vmatpush1.xpose.msra.mxu0 %v382
    %386 = vmatprep.subr.mxu0 0.0
    %387 = vmatpush1.xpose.msra.mxu0 0.0
    %388 = vmatprep.subr.mxu0 0.0
    %389 = vmatpush1.xpose.msra.mxu0 0.0
    %390 = vmatprep.subr.mxu0 0.0
    %391 = vmatpush1.xpose.msra.mxu0 0.0
    %392 = vmatprep.subr.mxu0 0.0
    %393 = vmatpush1.xpose.msra.mxu0 0.0
    %394 = vmatprep.subr.mxu0 0.0
    %395 = vmatpush1.xpose.msra.mxu0 0.0
    %396 = vmatprep.subr.mxu0 0.0
    %397 = vmatpush1.xpose.msra.mxu0 0.0
    %398 = vmatprep.subr.mxu0 0.0
    %399 = vmatpush1.xpose.msra.mxu0 0.0
    %400 = vmatprep.subr.mxu0 0.0
    %401 = vmatpush1.xpose.msra.mxu0 0.0
    %402 = vmatprep.subr.mxu0 0.0
    %403 = vmatpush1.xpose.msra.mxu0 0.0
    %404 = vmatprep.subr.mxu0 0.0
    %405 = vmatpush1.xpose.msra.mxu0 0.0
    %406 = vmatprep.subr.mxu0 0.0
    %407 = vmatpush1.xpose.msra.mxu0 0.0
    %408 = vmatprep.subr.mxu0 0.0
    %409 = vmatpush1.xpose.msra.mxu0 0.0
    %410 = vmatprep.subr.mxu0 0.0
    %411 = vmatpush1.xpose.msra.mxu0 0.0
    %412 = vmatprep.subr.mxu0 0.0
    %413 = vmatpush1.xpose.msra.mxu0 0.0
    %414 = vmatprep.subr.mxu0 0.0
    %415 = vmatpush1.xpose.msra.mxu0 0.0
    %416 = vmatprep.subr.mxu0 0.0
    %417 = vmatpush1.xpose.msra.mxu0 0.0
    %418 = vmatprep.subr.mxu0 0.0
    %419 = vmatpush1.xpose.msra.mxu0 0.0
    %420 = vmatprep.subr.mxu0 0.0
    %421 = vmatpush1.xpose.msra.mxu0 0.0
    %422 = vmatprep.subr.mxu0 0.0
    %423 = vmatpush1.xpose.msra.mxu0 0.0
    %424 = vmatprep.subr.mxu0 0.0
    %425 = vmatpush1.xpose.msra.mxu0 0.0
    %426 = vmatprep.subr.mxu0 0.0
    %427 = vmatpush1.xpose.msra.mxu0 0.0
    %428 = vmatprep.subr.mxu0 0.0
    %429 = vmatpush1.xpose.msra.mxu0 0.0
    %430 = vmatprep.subr.mxu0 0.0
    %431 = vmatpush1.xpose.msra.mxu0 0.0
    %432 = vmatprep.subr.mxu0 0.0
    %433 = vmatpush1.xpose.msra.mxu0 0.0
    %434 = vmatprep.subr.mxu0 0.0
    %435 = vmatpush1.xpose.msra.mxu0 0.0
    %436 = vmatprep.subr.mxu0 0.0
    %437 = vmatpush1.xpose.msra.mxu0 0.0
    %438 = vmatprep.subr.mxu0 0.0
    %439 = vmatpush1.xpose.msra.mxu0 0.0
    %440 = vmatprep.subr.mxu0 0.0
    %441 = vmatpush1.xpose.msra.mxu0 0.0
    %442 = vmatprep.subr.mxu0 0.0
    %443 = vmatpush1.xpose.msra.mxu0 0.0
    %444 = vmatprep.subr.mxu0 0.0
    %445 = vmatpush1.xpose.msra.mxu0 0.0
    %446 = vmatprep.subr.mxu0 0.0
    %447 = vmatpush1.xpose.msra.mxu0 0.0
    %448 = vmatprep.mubr.f32.mxu0 0.0
    %449 = vmatmul.mubr.f32.gmra.mrb[0].mxu0 %v380
    %v450 = vpop.f32.mrb[0].mxu0
    %v451 = vadd.f32 0.0, %v450
    %v452 = vpop.f32.mrb[0].mxu0
    %453 = vdwg.mxu0
    %v454 = vsel %vm212, -1e+09, %v451
    %v455 = vsel %vm290, %v454, -inf
    %456 = vmax.xlane.f32.xlu0 %v455
    %v457 = vpop.xlane.xlu0 %456
    %v458 = vsub.f32 %v454, %v457
    %v459 = vmul.f32 %v458, 1.442695
    %v460 = vpow.pop %v459
    %v461 = vsel %vm290, %v460, 0.0
    %462 = vadd.xlane.f32.xlu0 %v461
    %v463 = vpop.xlane.xlu0 %462
    %v464 = vrcp.pop %v463
    %v465 = vmul.f32 %v460, %v464
    %467 = vrot.lane.b32.xlu0 %v203, 96
    %v468 = vpop.permute.xlu0 %467
    %v471 = vsel %vm290, %v465, 0
    %473 = vmatprep.subr.mxu0 0.0
    %474 = vmatpush1.msra.mxu0 %v468
    %475 = vmatprep.subr.mxu0 0.0
    %476 = vmatpush1.msra.mxu0 0.0
    %477 = vmatprep.subr.mxu0 0.0
    %478 = vmatpush1.msra.mxu0 0.0
    %479 = vmatprep.subr.mxu0 0.0
    %480 = vmatpush1.msra.mxu0 0.0
    %481 = vmatprep.subr.mxu0 0.0
    %482 = vmatpush1.msra.mxu0 0.0
    %483 = vmatprep.subr.mxu0 0.0
    %484 = vmatpush1.msra.mxu0 0.0
    %485 = vmatprep.subr.mxu0 0.0
    %486 = vmatpush1.msra.mxu0 0.0
    %487 = vmatprep.subr.mxu0 0.0
    %488 = vmatpush1.msra.mxu0 0.0
    %489 = vmatprep.subr.mxu0 0.0
    %490 = vmatpush1.msra.mxu0 0.0
    %491 = vmatprep.subr.mxu0 0.0
    %492 = vmatpush1.msra.mxu0 0.0
    %493 = vmatprep.subr.mxu0 0.0
    %494 = vmatpush1.msra.mxu0 0.0
    %495 = vmatprep.subr.mxu0 0.0
    %496 = vmatpush1.msra.mxu0 0.0
    %497 = vmatprep.subr.mxu0 0.0
    %498 = vmatpush1.msra.mxu0 0.0
    %499 = vmatprep.subr.mxu0 0.0
    %500 = vmatpush1.msra.mxu0 0.0
    %501 = vmatprep.subr.mxu0 0.0
    %502 = vmatpush1.msra.mxu0 0.0
    %503 = vmatprep.subr.mxu0 0.0
    %504 = vmatpush1.msra.mxu0 0.0
    %505 = vmatprep.subr.mxu0 0.0
    %506 = vmatpush1.msra.mxu0 0.0
    %507 = vmatprep.subr.mxu0 0.0
    %508 = vmatpush1.msra.mxu0 0.0
    %509 = vmatprep.subr.mxu0 0.0
    %510 = vmatpush1.msra.mxu0 0.0
    %511 = vmatprep.subr.mxu0 0.0
    %512 = vmatpush1.msra.mxu0 0.0
    %513 = vmatprep.subr.mxu0 0.0
    %514 = vmatpush1.msra.mxu0 0.0
    %515 = vmatprep.subr.mxu0 0.0
    %516 = vmatpush1.msra.mxu0 0.0
    %517 = vmatprep.subr.mxu0 0.0
    %518 = vmatpush1.msra.mxu0 0.0
    %519 = vmatprep.subr.mxu0 0.0
    %520 = vmatpush1.msra.mxu0 0.0
    %521 = vmatprep.subr.mxu0 0.0
    %522 = vmatpush1.msra.mxu0 0.0
    %523 = vmatprep.subr.mxu0 0.0
    %524 = vmatpush1.msra.mxu0 0.0
    %525 = vmatprep.subr.mxu0 0.0
    %526 = vmatpush1.msra.mxu0 0.0
    %527 = vmatprep.subr.mxu0 0.0
    %528 = vmatpush1.msra.mxu0 0.0
    %529 = vmatprep.subr.mxu0 0.0
    %530 = vmatpush1.msra.mxu0 0.0
    %531 = vmatprep.subr.mxu0 0.0
    %532 = vmatpush1.msra.mxu0 0.0
    %533 = vmatprep.subr.mxu0 0.0
    %534 = vmatpush1.msra.mxu0 0.0
    %535 = vmatprep.subr.mxu0 0.0
    %536 = vmatpush1.msra.mxu0 0.0
    %537 = vmatprep.mubr.f32.mxu0 0.0
    %538 = vmatmul.mubr.f32.gmra.mrb[0].mxu0 %v471
    %v539 = vpop.f32.mrb[0].mxu0
    %v540 = vadd.f32 0.0, %v539
    %v541 = vpop.f32.mrb[0].mxu0
    %542 = vdwg.mxu0
    %544 = vrot.lane.b32.xlu0 %v540, 32
    %v545 = vpop.permute.xlu0 %544
    %vm547 = vcmask 523520
    %548 = vst.msk [vmem:[#allocation2] sm:$0xff] %vm547, %v545
    %549 = vrot.lane.b32.xlu0 %v126, 64
    %v550 = vpop.permute.xlu0 %549
    %551 = vrot.lane.b32.xlu0 %v128, 64
    %v552 = vpop.permute.xlu0 %551
    %v553 = vsel %vm52, %v550, 0
    %v555 = vsel %vm52, %v552, 0
    %557 = vmatprep.subr.mxu0 0.0
    %558 = vmatpush1.xpose.msra.mxu0 %v555
    %559 = vmatprep.subr.mxu0 0.0
    %560 = vmatpush1.xpose.msra.mxu0 0.0
    %561 = vmatprep.subr.mxu0 0.0
    %562 = vmatpush1.xpose.msra.mxu0 0.0
    %563 = vmatprep.subr.mxu0 0.0
    %564 = vmatpush1.xpose.msra.mxu0 0.0
    %565 = vmatprep.subr.mxu0 0.0
    %566 = vmatpush1.xpose.msra.mxu0 0.0
    %567 = vmatprep.subr.mxu0 0.0
    %568 = vmatpush1.xpose.msra.mxu0 0.0
    %569 = vmatprep.subr.mxu0 0.0
    %570 = vmatpush1.xpose.msra.mxu0 0.0
    %571 = vmatprep.subr.mxu0 0.0
    %572 = vmatpush1.xpose.msra.mxu0 0.0
    %573 = vmatprep.subr.mxu0 0.0
    %574 = vmatpush1.xpose.msra.mxu0 0.0
    %575 = vmatprep.subr.mxu0 0.0
    %576 = vmatpush1.xpose.msra.mxu0 0.0
    %577 = vmatprep.subr.mxu0 0.0
    %578 = vmatpush1.xpose.msra.mxu0 0.0
    %579 = vmatprep.subr.mxu0 0.0
    %580 = vmatpush1.xpose.msra.mxu0 0.0
    %581 = vmatprep.subr.mxu0 0.0
    %582 = vmatpush1.xpose.msra.mxu0 0.0
    %583 = vmatprep.subr.mxu0 0.0
    %584 = vmatpush1.xpose.msra.mxu0 0.0
    %585 = vmatprep.subr.mxu0 0.0
    %586 = vmatpush1.xpose.msra.mxu0 0.0
    %587 = vmatprep.subr.mxu0 0.0
    %588 = vmatpush1.xpose.msra.mxu0 0.0
    %589 = vmatprep.subr.mxu0 0.0
    %590 = vmatpush1.xpose.msra.mxu0 0.0
    %591 = vmatprep.subr.mxu0 0.0
    %592 = vmatpush1.xpose.msra.mxu0 0.0
    %593 = vmatprep.subr.mxu0 0.0
    %594 = vmatpush1.xpose.msra.mxu0 0.0
    %595 = vmatprep.subr.mxu0 0.0
    %596 = vmatpush1.xpose.msra.mxu0 0.0
    %597 = vmatprep.subr.mxu0 0.0
    %598 = vmatpush1.xpose.msra.mxu0 0.0
    %599 = vmatprep.subr.mxu0 0.0
    %600 = vmatpush1.xpose.msra.mxu0 0.0
    %601 = vmatprep.subr.mxu0 0.0
    %602 = vmatpush1.xpose.msra.mxu0 0.0
    %603 = vmatprep.subr.mxu0 0.0
    %604 = vmatpush1.xpose.msra.mxu0 0.0
    %605 = vmatprep.subr.mxu0 0.0
    %606 = vmatpush1.xpose.msra.mxu0 0.0
    %607 = vmatprep.subr.mxu0 0.0
    %608 = vmatpush1.xpose.msra.mxu0 0.0
    %609 = vmatprep.subr.mxu0 0.0
    %610 = vmatpush1.xpose.msra.mxu0 0.0
    %611 = vmatprep.subr.mxu0 0.0
    %612 = vmatpush1.xpose.msra.mxu0 0.0
    %613 = vmatprep.subr.mxu0 0.0
    %614 = vmatpush1.xpose.msra.mxu0 0.0
    %615 = vmatprep.subr.mxu0 0.0
    %616 = vmatpush1.xpose.msra.mxu0 0.0
    %617 = vmatprep.subr.mxu0 0.0
    %618 = vmatpush1.xpose.msra.mxu0 0.0
    %619 = vmatprep.subr.mxu0 0.0
    %620 = vmatpush1.xpose.msra.mxu0 0.0
    %621 = vmatprep.mubr.f32.mxu0 0.0
    %622 = vmatmul.mubr.f32.gmra.mrb[0].mxu0 %v553
    %v623 = vpop.f32.mrb[0].mxu0
    %v624 = vadd.f32 0.0, %v623
    %v625 = vpop.f32.mrb[0].mxu0
    %626 = vdwg.mxu0
    %v627 = vsel %vm212, -1e+09, %v624
    %v628 = vsel %vm290, %v627, -inf
    %629 = vmax.xlane.f32.xlu0 %v628
    %v630 = vpop.xlane.xlu0 %629
    %v631 = vsub.f32 %v627, %v630
    %v632 = vmul.f32 %v631, 1.442695
    %v633 = vpow.pop %v632
    %v634 = vsel %vm290, %v633, 0.0
    %635 = vadd.xlane.f32.xlu0 %v634
    %v636 = vpop.xlane.xlu0 %635
    %v637 = vrcp.pop %v636
    %v638 = vmul.f32 %v633, %v637
    %639 = vrot.lane.b32.xlu0 %v203, 64
    %v640 = vpop.permute.xlu0 %639
    %v643 = vsel %vm290, %v638, 0
    %645 = vmatprep.subr.mxu0 0.0
    %646 = vmatpush1.msra.mxu0 %v640
    %647 = vmatprep.subr.mxu0 0.0
    %648 = vmatpush1.msra.mxu0 0.0
    %649 = vmatprep.subr.mxu0 0.0
    %650 = vmatpush1.msra.mxu0 0.0
    %651 = vmatprep.subr.mxu0 0.0
    %652 = vmatpush1.msra.mxu0 0.0
    %653 = vmatprep.subr.mxu0 0.0
    %654 = vmatpush1.msra.mxu0 0.0
    %655 = vmatprep.subr.mxu0 0.0
    %656 = vmatpush1.msra.mxu0 0.0
    %657 = vmatprep.subr.mxu0 0.0
    %658 = vmatpush1.msra.mxu0 0.0
    %659 = vmatprep.subr.mxu0 0.0
    %660 = vmatpush1.msra.mxu0 0.0
    %661 = vmatprep.subr.mxu0 0.0
    %662 = vmatpush1.msra.mxu0 0.0
    %663 = vmatprep.subr.mxu0 0.0
    %664 = vmatpush1.msra.mxu0 0.0
    %665 = vmatprep.subr.mxu0 0.0
    %666 = vmatpush1.msra.mxu0 0.0
    %667 = vmatprep.subr.mxu0 0.0
    %668 = vmatpush1.msra.mxu0 0.0
    %669 = vmatprep.subr.mxu0 0.0
    %670 = vmatpush1.msra.mxu0 0.0
    %671 = vmatprep.subr.mxu0 0.0
    %672 = vmatpush1.msra.mxu0 0.0
    %673 = vmatprep.subr.mxu0 0.0
    %674 = vmatpush1.msra.mxu0 0.0
    %675 = vmatprep.subr.mxu0 0.0
    %676 = vmatpush1.msra.mxu0 0.0
    %677 = vmatprep.subr.mxu0 0.0
    %678 = vmatpush1.msra.mxu0 0.0
    %679 = vmatprep.subr.mxu0 0.0
    %680 = vmatpush1.msra.mxu0 0.0
    %681 = vmatprep.subr.mxu0 0.0
    %682 = vmatpush1.msra.mxu0 0.0
    %683 = vmatprep.subr.mxu0 0.0
    %684 = vmatpush1.msra.mxu0 0.0
    %685 = vmatprep.subr.mxu0 0.0
    %686 = vmatpush1.msra.mxu0 0.0
    %687 = vmatprep.subr.mxu0 0.0
    %688 = vmatpush1.msra.mxu0 0.0
    %689 = vmatprep.subr.mxu0 0.0
    %690 = vmatpush1.msra.mxu0 0.0
    %691 = vmatprep.subr.mxu0 0.0
    %692 = vmatpush1.msra.mxu0 0.0
    %693 = vmatprep.subr.mxu0 0.0
    %694 = vmatpush1.msra.mxu0 0.0
    %695 = vmatprep.subr.mxu0 0.0
    %696 = vmatpush1.msra.mxu0 0.0
    %697 = vmatprep.subr.mxu0 0.0
    %698 = vmatpush1.msra.mxu0 0.0
    %699 = vmatprep.subr.mxu0 0.0
    %700 = vmatpush1.msra.mxu0 0.0
    %701 = vmatprep.subr.mxu0 0.0
    %702 = vmatpush1.msra.mxu0 0.0
    %703 = vmatprep.subr.mxu0 0.0
    %704 = vmatpush1.msra.mxu0 0.0
    %705 = vmatprep.subr.mxu0 0.0
    %706 = vmatpush1.msra.mxu0 0.0
    %707 = vmatprep.subr.mxu0 0.0
    %708 = vmatpush1.msra.mxu0 0.0
    %709 = vmatprep.mubr.f32.mxu0 0.0
    %710 = vmatmul.mubr.f32.gmra.mrb[0].mxu0 %v643
    %v711 = vpop.f32.mrb[0].mxu0
    %v712 = vadd.f32 0.0, %v711
    %v713 = vpop.f32.mrb[0].mxu0
    %714 = vdwg.mxu0
    %716 = vrot.lane.b32.xlu0 %v712, 64
    %v717 = vpop.permute.xlu0 %716
    %vm719 = vcmask 785920
    %720 = vst.msk [vmem:[#allocation2] sm:$0xff] %vm719, %v717
    %721 = vrot.lane.b32.xlu0 %v126, 32
    %v722 = vpop.permute.xlu0 %721
    %723 = vrot.lane.b32.xlu0 %v128, 32
    %v724 = vpop.permute.xlu0 %723
    %v725 = vsel %vm52, %v722, 0
    %v727 = vsel %vm52, %v724, 0
    %729 = vmatprep.subr.mxu0 0.0
    %730 = vmatpush1.xpose.msra.mxu0 %v727
    %731 = vmatprep.subr.mxu0 0.0
    %732 = vmatpush1.xpose.msra.mxu0 0.0
    %733 = vmatprep.subr.mxu0 0.0
    %734 = vmatpush1.xpose.msra.mxu0 0.0
    %735 = vmatprep.subr.mxu0 0.0
    %736 = vmatpush1.xpose.msra.mxu0 0.0
    %737 = vmatprep.subr.mxu0 0.0
    %738 = vmatpush1.xpose.msra.mxu0 0.0
    %739 = vmatprep.subr.mxu0 0.0
    %740 = vmatpush1.xpose.msra.mxu0 0.0
    %741 = vmatprep.subr.mxu0 0.0
    %742 = vmatpush1.xpose.msra.mxu0 0.0
    %743 = vmatprep.subr.mxu0 0.0
    %744 = vmatpush1.xpose.msra.mxu0 0.0
    %745 = vmatprep.subr.mxu0 0.0
    %746 = vmatpush1.xpose.msra.mxu0 0.0
    %747 = vmatprep.subr.mxu0 0.0
    %748 = vmatpush1.xpose.msra.mxu0 0.0
    %749 = vmatprep.subr.mxu0 0.0
    %750 = vmatpush1.xpose.msra.mxu0 0.0
    %751 = vmatprep.subr.mxu0 0.0
    %752 = vmatpush1.xpose.msra.mxu0 0.0
    %753 = vmatprep.subr.mxu0 0.0
    %754 = vmatpush1.xpose.msra.mxu0 0.0
    %755 = vmatprep.subr.mxu0 0.0
    %756 = vmatpush1.xpose.msra.mxu0 0.0
    %757 = vmatprep.subr.mxu0 0.0
    %758 = vmatpush1.xpose.msra.mxu0 0.0
    %759 = vmatprep.subr.mxu0 0.0
    %760 = vmatpush1.xpose.msra.mxu0 0.0
    %761 = vmatprep.subr.mxu0 0.0
    %762 = vmatpush1.xpose.msra.mxu0 0.0
    %763 = vmatprep.subr.mxu0 0.0
    %764 = vmatpush1.xpose.msra.mxu0 0.0
    %765 = vmatprep.subr.mxu0 0.0
    %766 = vmatpush1.xpose.msra.mxu0 0.0
    %767 = vmatprep.subr.mxu0 0.0
    %768 = vmatpush1.xpose.msra.mxu0 0.0
    %769 = vmatprep.subr.mxu0 0.0
    %770 = vmatpush1.xpose.msra.mxu0 0.0
    %771 = vmatprep.subr.mxu0 0.0
    %772 = vmatpush1.xpose.msra.mxu0 0.0
    %773 = vmatprep.subr.mxu0 0.0
    %774 = vmatpush1.xpose.msra.mxu0 0.0
    %775 = vmatprep.subr.mxu0 0.0
    %776 = vmatpush1.xpose.msra.mxu0 0.0
    %777 = vmatprep.subr.mxu0 0.0
    %778 = vmatpush1.xpose.msra.mxu0 0.0
    %779 = vmatprep.subr.mxu0 0.0
    %780 = vmatpush1.xpose.msra.mxu0 0.0
    %781 = vmatprep.subr.mxu0 0.0
    %782 = vmatpush1.xpose.msra.mxu0 0.0
    %783 = vmatprep.subr.mxu0 0.0
    %784 = vmatpush1.xpose.msra.mxu0 0.0
    %785 = vmatprep.subr.mxu0 0.0
    %786 = vmatpush1.xpose.msra.mxu0 0.0
    %787 = vmatprep.subr.mxu0 0.0
    %788 = vmatpush1.xpose.msra.mxu0 0.0
    %789 = vmatprep.subr.mxu0 0.0
    %790 = vmatpush1.xpose.msra.mxu0 0.0
    %791 = vmatprep.subr.mxu0 0.0
    %792 = vmatpush1.xpose.msra.mxu0 0.0
    %793 = vmatprep.mubr.f32.mxu0 0.0
    %794 = vmatmul.mubr.f32.gmra.mrb[0].mxu0 %v725
    %v795 = vpop.f32.mrb[0].mxu0
    %v796 = vadd.f32 0.0, %v795
    %v797 = vpop.f32.mrb[0].mxu0
    %798 = vdwg.mxu0
    %v799 = vsel %vm212, -1e+09, %v796
    %v800 = vsel %vm290, %v799, -inf
    %801 = vmax.xlane.f32.xlu0 %v800
    %v802 = vpop.xlane.xlu0 %801
    %v803 = vsub.f32 %v799, %v802
    %v804 = vmul.f32 %v803, 1.442695
    %v805 = vpow.pop %v804
    %v806 = vsel %vm290, %v805, 0.0
    %807 = vadd.xlane.f32.xlu0 %v806
    %v808 = vpop.xlane.xlu0 %807
    %v809 = vrcp.pop %v808
    %v810 = vmul.f32 %v805, %v809
    %811 = vrot.lane.b32.xlu0 %v203, 32
    %v812 = vpop.permute.xlu0 %811
    %v815 = vsel %vm290, %v810, 0
    %817 = vmatprep.subr.mxu0 0.0
    %818 = vmatpush1.msra.mxu0 %v812
    %819 = vmatprep.subr.mxu0 0.0
    %820 = vmatpush1.msra.mxu0 0.0
    %821 = vmatprep.subr.mxu0 0.0
    %822 = vmatpush1.msra.mxu0 0.0
    %823 = vmatprep.subr.mxu0 0.0
    %824 = vmatpush1.msra.mxu0 0.0
    %825 = vmatprep.subr.mxu0 0.0
    %826 = vmatpush1.msra.mxu0 0.0
    %827 = vmatprep.subr.mxu0 0.0
    %828 = vmatpush1.msra.mxu0 0.0
    %829 = vmatprep.subr.mxu0 0.0
    %830 = vmatpush1.msra.mxu0 0.0
    %831 = vmatprep.subr.mxu0 0.0
    %832 = vmatpush1.msra.mxu0 0.0
    %833 = vmatprep.subr.mxu0 0.0
    %834 = vmatpush1.msra.mxu0 0.0
    %835 = vmatprep.subr.mxu0 0.0
    %836 = vmatpush1.msra.mxu0 0.0
    %837 = vmatprep.subr.mxu0 0.0
    %838 = vmatpush1.msra.mxu0 0.0
    %839 = vmatprep.subr.mxu0 0.0
    %840 = vmatpush1.msra.mxu0 0.0
    %841 = vmatprep.subr.mxu0 0.0
    %842 = vmatpush1.msra.mxu0 0.0
    %843 = vmatprep.subr.mxu0 0.0
    %844 = vmatpush1.msra.mxu0 0.0
    %845 = vmatprep.subr.mxu0 0.0
    %846 = vmatpush1.msra.mxu0 0.0
    %847 = vmatprep.subr.mxu0 0.0
    %848 = vmatpush1.msra.mxu0 0.0
    %849 = vmatprep.subr.mxu0 0.0
    %850 = vmatpush1.msra.mxu0 0.0
    %851 = vmatprep.subr.mxu0 0.0
    %852 = vmatpush1.msra.mxu0 0.0
    %853 = vmatprep.subr.mxu0 0.0
    %854 = vmatpush1.msra.mxu0 0.0
    %855 = vmatprep.subr.mxu0 0.0
    %856 = vmatpush1.msra.mxu0 0.0
    %857 = vmatprep.subr.mxu0 0.0
    %858 = vmatpush1.msra.mxu0 0.0
    %859 = vmatprep.subr.mxu0 0.0
    %860 = vmatpush1.msra.mxu0 0.0
    %861 = vmatprep.subr.mxu0 0.0
    %862 = vmatpush1.msra.mxu0 0.0
    %863 = vmatprep.subr.mxu0 0.0
    %864 = vmatpush1.msra.mxu0 0.0
    %865 = vmatprep.subr.mxu0 0.0
    %866 = vmatpush1.msra.mxu0 0.0
    %867 = vmatprep.subr.mxu0 0.0
    %868 = vmatpush1.msra.mxu0 0.0
    %869 = vmatprep.subr.mxu0 0.0
    %870 = vmatpush1.msra.mxu0 0.0
    %871 = vmatprep.subr.mxu0 0.0
    %872 = vmatpush1.msra.mxu0 0.0
    %873 = vmatprep.subr.mxu0 0.0
    %874 = vmatpush1.msra.mxu0 0.0
    %875 = vmatprep.subr.mxu0 0.0
    %876 = vmatpush1.msra.mxu0 0.0
    %877 = vmatprep.subr.mxu0 0.0
    %878 = vmatpush1.msra.mxu0 0.0
    %879 = vmatprep.subr.mxu0 0.0
    %880 = vmatpush1.msra.mxu0 0.0
    %881 = vmatprep.mubr.f32.mxu0 0.0
    %882 = vmatmul.mubr.f32.gmra.mrb[0].mxu0 %v815
    %v883 = vpop.f32.mrb[0].mxu0
    %v884 = vadd.f32 0.0, %v883
    %v885 = vpop.f32.mrb[0].mxu0
    %886 = vdwg.mxu0
    %888 = vrot.lane.b32.xlu0 %v884, 96
    %v889 = vpop.permute.xlu0 %888
    %vm891 = vcmask 1048320
    %892 = vst.msk [vmem:[#allocation2] sm:$0xff] %vm891, %v889
    %s893 = scalar_lea.vmem %s1, 8
    %v894 = vld [vmem:[%s893] sm:$0xff]
    %vm895 = vcmp.eq.f32.partialorder %v894, 0.0
    %v897 = vsel %vm52, %v132, 0
    %v900 = vsel %vm52, %v134, 0
    %902 = vmatprep.subr.mxu0 0.0
    %903 = vmatpush1.xpose.msra.mxu0 %v900
    %904 = vmatprep.subr.mxu0 0.0
    %905 = vmatpush1.xpose.msra.mxu0 0.0
    %906 = vmatprep.subr.mxu0 0.0
    %907 = vmatpush1.xpose.msra.mxu0 0.0
    %908 = vmatprep.subr.mxu0 0.0
    %909 = vmatpush1.xpose.msra.mxu0 0.0
    %910 = vmatprep.subr.mxu0 0.0
    %911 = vmatpush1.xpose.msra.mxu0 0.0
    %912 = vmatprep.subr.mxu0 0.0
    %913 = vmatpush1.xpose.msra.mxu0 0.0
    %914 = vmatprep.subr.mxu0 0.0
    %915 = vmatpush1.xpose.msra.mxu0 0.0
    %916 = vmatprep.subr.mxu0 0.0
    %917 = vmatpush1.xpose.msra.mxu0 0.0
    %918 = vmatprep.subr.mxu0 0.0
    %919 = vmatpush1.xpose.msra.mxu0 0.0
    %920 = vmatprep.subr.mxu0 0.0
    %921 = vmatpush1.xpose.msra.mxu0 0.0
    %922 = vmatprep.subr.mxu0 0.0
    %923 = vmatpush1.xpose.msra.mxu0 0.0
    %924 = vmatprep.subr.mxu0 0.0
    %925 = vmatpush1.xpose.msra.mxu0 0.0
    %926 = vmatprep.subr.mxu0 0.0
    %927 = vmatpush1.xpose.msra.mxu0 0.0
    %928 = vmatprep.subr.mxu0 0.0
    %929 = vmatpush1.xpose.msra.mxu0 0.0
    %930 = vmatprep.subr.mxu0 0.0
    %931 = vmatpush1.xpose.msra.mxu0 0.0
    %932 = vmatprep.subr.mxu0 0.0
    %933 = vmatpush1.xpose.msra.mxu0 0.0
    %934 = vmatprep.subr.mxu0 0.0
    %935 = vmatpush1.xpose.msra.mxu0 0.0
    %936 = vmatprep.subr.mxu0 0.0
    %937 = vmatpush1.xpose.msra.mxu0 0.0
    %938 = vmatprep.subr.mxu0 0.0
    %939 = vmatpush1.xpose.msra.mxu0 0.0
    %940 = vmatprep.subr.mxu0 0.0
    %941 = vmatpush1.xpose.msra.mxu0 0.0
    %942 = vmatprep.subr.mxu0 0.0
    %943 = vmatpush1.xpose.msra.mxu0 0.0
    %944 = vmatprep.subr.mxu0 0.0
    %945 = vmatpush1.xpose.msra.mxu0 0.0
    %946 = vmatprep.subr.mxu0 0.0
    %947 = vmatpush1.xpose.msra.mxu0 0.0
    %948 = vmatprep.subr.mxu0 0.0
    %949 = vmatpush1.xpose.msra.mxu0 0.0
    %950 = vmatprep.subr.mxu0 0.0
    %951 = vmatpush1.xpose.msra.mxu0 0.0
    %952 = vmatprep.subr.mxu0 0.0
    %953 = vmatpush1.xpose.msra.mxu0 0.0
    %954 = vmatprep.subr.mxu0 0.0
    %955 = vmatpush1.xpose.msra.mxu0 0.0
    %956 = vmatprep.subr.mxu0 0.0
    %957 = vmatpush1.xpose.msra.mxu0 0.0
    %958 = vmatprep.subr.mxu0 0.0
    %959 = vmatpush1.xpose.msra.mxu0 0.0
    %960 = vmatprep.subr.mxu0 0.0
    %961 = vmatpush1.xpose.msra.mxu0 0.0
    %962 = vmatprep.subr.mxu0 0.0
    %963 = vmatpush1.xpose.msra.mxu0 0.0
    %964 = vmatprep.subr.mxu0 0.0
    %965 = vmatpush1.xpose.msra.mxu0 0.0
    %966 = vmatprep.mubr.f32.mxu0 0.0
    %967 = vmatmul.mubr.f32.gmra.mrb[0].mxu0 %v897
    %v968 = vpop.f32.mrb[0].mxu0
    %v969 = vadd.f32 0.0, %v968
    %v970 = vpop.f32.mrb[0].mxu0
    %971 = vdwg.mxu0
    %v972 = vsel %vm895, -1e+09, %v969
    %v973 = vsel %vm290, %v972, -inf
    %974 = vmax.xlane.f32.xlu0 %v973
    %v975 = vpop.xlane.xlu0 %974
    %v976 = vsub.f32 %v972, %v975
    %v977 = vmul.f32 %v976, 1.442695
    %v978 = vpow.pop %v977
    %v979 = vsel %vm290, %v978, 0.0
    %980 = vadd.xlane.f32.xlu0 %v979
    %v981 = vpop.xlane.xlu0 %980
    %v982 = vrcp.pop %v981
    %v983 = vmul.f32 %v978, %v982
    %v985 = vsel %vm290, %v983, 0
    %987 = vmatprep.subr.mxu0 0.0
    %988 = vmatpush1.msra.mxu0 %v208
    %989 = vmatprep.subr.mxu0 0.0
    %990 = vmatpush1.msra.mxu0 0.0
    %991 = vmatprep.subr.mxu0 0.0
    %992 = vmatpush1.msra.mxu0 0.0
    %993 = vmatprep.subr.mxu0 0.0
    %994 = vmatpush1.msra.mxu0 0.0
    %995 = vmatprep.subr.mxu0 0.0
    %996 = vmatpush1.msra.mxu0 0.0
    %997 = vmatprep.subr.mxu0 0.0
    %998 = vmatpush1.msra.mxu0 0.0
    %999 = vmatprep.subr.mxu0 0.0
    %1000 = vmatpush1.msra.mxu0 0.0
    %1001 = vmatprep.subr.mxu0 0.0
    %1002 = vmatpush1.msra.mxu0 0.0
    %1003 = vmatprep.subr.mxu0 0.0
    %1004 = vmatpush1.msra.mxu0 0.0
    %1005 = vmatprep.subr.mxu0 0.0
    %1006 = vmatpush1.msra.mxu0 0.0
    %1007 = vmatprep.subr.mxu0 0.0
    %1008 = vmatpush1.msra.mxu0 0.0
    %1009 = vmatprep.subr.mxu0 0.0
    %1010 = vmatpush1.msra.mxu0 0.0
    %1011 = vmatprep.subr.mxu0 0.0
    %1012 = vmatpush1.msra.mxu0 0.0
    %1013 = vmatprep.subr.mxu0 0.0
    %1014 = vmatpush1.msra.mxu0 0.0
    %1015 = vmatprep.subr.mxu0 0.0
    %1016 = vmatpush1.msra.mxu0 0.0
    %1017 = vmatprep.subr.mxu0 0.0
    %1018 = vmatpush1.msra.mxu0 0.0
    %1019 = vmatprep.subr.mxu0 0.0
    %1020 = vmatpush1.msra.mxu0 0.0
    %1021 = vmatprep.subr.mxu0 0.0
    %1022 = vmatpush1.msra.mxu0 0.0
    %1023 = vmatprep.subr.mxu0 0.0
    %1024 = vmatpush1.msra.mxu0 0.0
    %1025 = vmatprep.subr.mxu0 0.0
    %1026 = vmatpush1.msra.mxu0 0.0
    %1027 = vmatprep.subr.mxu0 0.0
    %1028 = vmatpush1.msra.mxu0 0.0
    %1029 = vmatprep.subr.mxu0 0.0
    %1030 = vmatpush1.msra.mxu0 0.0
    %1031 = vmatprep.subr.mxu0 0.0
    %1032 = vmatpush1.msra.mxu0 0.0
    %1033 = vmatprep.subr.mxu0 0.0
    %1034 = vmatpush1.msra.mxu0 0.0
    %1035 = vmatprep.subr.mxu0 0.0
    %1036 = vmatpush1.msra.mxu0 0.0
    %1037 = vmatprep.subr.mxu0 0.0
    %1038 = vmatpush1.msra.mxu0 0.0
    %1039 = vmatprep.subr.mxu0 0.0
    %1040 = vmatpush1.msra.mxu0 0.0
    %1041 = vmatprep.subr.mxu0 0.0
    %1042 = vmatpush1.msra.mxu0 0.0
    %1043 = vmatprep.subr.mxu0 0.0
    %1044 = vmatpush1.msra.mxu0 0.0
    %1045 = vmatprep.subr.mxu0 0.0
    %1046 = vmatpush1.msra.mxu0 0.0
    %1047 = vmatprep.subr.mxu0 0.0
    %1048 = vmatpush1.msra.mxu0 0.0
    %1049 = vmatprep.subr.mxu0 0.0
    %1050 = vmatpush1.msra.mxu0 0.0
    %1051 = vmatprep.mubr.f32.mxu0 0.0
    %1052 = vmatmul.mubr.f32.gmra.mrb[0].mxu0 %v985
    %v1053 = vpop.f32.mrb[0].mxu0
    %v1054 = vadd.f32 0.0, %v1053
    %v1055 = vpop.f32.mrb[0].mxu0
    %1056 = vdwg.mxu0
    %1057 = vst.msk [vmem:[#allocation2 + $0x8] sm:$0xff] %vm52, %v1054
    %1058 = vrot.lane.b32.xlu0 %v132, 96
    %v1059 = vpop.permute.xlu0 %1058
    %1060 = vrot.lane.b32.xlu0 %v134, 96
    %v1061 = vpop.permute.xlu0 %1060
    %v1062 = vsel %vm52, %v1059, 0
    %v1064 = vsel %vm52, %v1061, 0
    %1066 = vmatprep.subr.mxu0 0.0
    %1067 = vmatpush1.xpose.msra.mxu0 %v1064
    %1068 = vmatprep.subr.mxu0 0.0
    %1069 = vmatpush1.xpose.msra.mxu0 0.0
    %1070 = vmatprep.subr.mxu0 0.0
    %1071 = vmatpush1.xpose.msra.mxu0 0.0
    %1072 = vmatprep.subr.mxu0 0.0
    %1073 = vmatpush1.xpose.msra.mxu0 0.0
    %1074 = vmatprep.subr.mxu0 0.0
    %1075 = vmatpush1.xpose.msra.mxu0 0.0
    %1076 = vmatprep.subr.mxu0 0.0
    %1077 = vmatpush1.xpose.msra.mxu0 0.0
    %1078 = vmatprep.subr.mxu0 0.0
    %1079 = vmatpush1.xpose.msra.mxu0 0.0
    %1080 = vmatprep.subr.mxu0 0.0
    %1081 = vmatpush1.xpose.msra.mxu0 0.0
    %1082 = vmatprep.subr.mxu0 0.0
    %1083 = vmatpush1.xpose.msra.mxu0 0.0
    %1084 = vmatprep.subr.mxu0 0.0
    %1085 = vmatpush1.xpose.msra.mxu0 0.0
    %1086 = vmatprep.subr.mxu0 0.0
    %1087 = vmatpush1.xpose.msra.mxu0 0.0
    %1088 = vmatprep.subr.mxu0 0.0
    %1089 = vmatpush1.xpose.msra.mxu0 0.0
    %1090 = vmatprep.subr.mxu0 0.0
    %1091 = vmatpush1.xpose.msra.mxu0 0.0
    %1092 = vmatprep.subr.mxu0 0.0
    %1093 = vmatpush1.xpose.msra.mxu0 0.0
    %1094 = vmatprep.subr.mxu0 0.0
    %1095 = vmatpush1.xpose.msra.mxu0 0.0
    %1096 = vmatprep.subr.mxu0 0.0
    %1097 = vmatpush1.xpose.msra.mxu0 0.0
    %1098 = vmatprep.subr.mxu0 0.0
    %1099 = vmatpush1.xpose.msra.mxu0 0.0
    %1100 = vmatprep.subr.mxu0 0.0
    %1101 = vmatpush1.xpose.msra.mxu0 0.0
    %1102 = vmatprep.subr.mxu0 0.0
    %1103 = vmatpush1.xpose.msra.mxu0 0.0
    %1104 = vmatprep.subr.mxu0 0.0
    %1105 = vmatpush1.xpose.msra.mxu0 0.0
    %1106 = vmatprep.subr.mxu0 0.0
    %1107 = vmatpush1.xpose.msra.mxu0 0.0
    %1108 = vmatprep.subr.mxu0 0.0
    %1109 = vmatpush1.xpose.msra.mxu0 0.0
    %1110 = vmatprep.subr.mxu0 0.0
    %1111 = vmatpush1.xpose.msra.mxu0 0.0
    %1112 = vmatprep.subr.mxu0 0.0
    %1113 = vmatpush1.xpose.msra.mxu0 0.0
    %1114 = vmatprep.subr.mxu0 0.0
    %1115 = vmatpush1.xpose.msra.mxu0 0.0
    %1116 = vmatprep.subr.mxu0 0.0
    %1117 = vmatpush1.xpose.msra.mxu0 0.0
    %1118 = vmatprep.subr.mxu0 0.0
    %1119 = vmatpush1.xpose.msra.mxu0 0.0
    %1120 = vmatprep.subr.mxu0 0.0
    %1121 = vmatpush1.xpose.msra.mxu0 0.0
    %1122 = vmatprep.subr.mxu0 0.0
    %1123 = vmatpush1.xpose.msra.mxu0 0.0
    %1124 = vmatprep.subr.mxu0 0.0
    %1125 = vmatpush1.xpose.msra.mxu0 0.0
    %1126 = vmatprep.subr.mxu0 0.0
    %1127 = vmatpush1.xpose.msra.mxu0 0.0
    %1128 = vmatprep.subr.mxu0 0.0
    %1129 = vmatpush1.xpose.msra.mxu0 0.0
    %1130 = vmatprep.mubr.f32.mxu0 0.0
    %1131 = vmatmul.mubr.f32.gmra.mrb[0].mxu0 %v1062
    %v1132 = vpop.f32.mrb[0].mxu0
    %v1133 = vadd.f32 0.0, %v1132
    %v1134 = vpop.f32.mrb[0].mxu0
    %1135 = vdwg.mxu0
    %v1136 = vsel %vm895, -1e+09, %v1133
    %v1137 = vsel %vm290, %v1136, -inf
    %1138 = vmax.xlane.f32.xlu0 %v1137
    %v1139 = vpop.xlane.xlu0 %1138
    %v1140 = vsub.f32 %v1136, %v1139
    %v1141 = vmul.f32 %v1140, 1.442695
    %v1142 = vpow.pop %v1141
    %v1143 = vsel %vm290, %v1142, 0.0
    %1144 = vadd.xlane.f32.xlu0 %v1143
    %v1145 = vpop.xlane.xlu0 %1144
    %v1146 = vrcp.pop %v1145
    %v1147 = vmul.f32 %v1142, %v1146
    %1149 = vrot.lane.b32.xlu0 %v208, 96
    %v1150 = vpop.permute.xlu0 %1149
    %v1153 = vsel %vm290, %v1147, 0
    %1155 = vmatprep.subr.mxu0 0.0
    %1156 = vmatpush1.msra.mxu0 %v1150
    %1157 = vmatprep.subr.mxu0 0.0
    %1158 = vmatpush1.msra.mxu0 0.0
    %1159 = vmatprep.subr.mxu0 0.0
    %1160 = vmatpush1.msra.mxu0 0.0
    %1161 = vmatprep.subr.mxu0 0.0
    %1162 = vmatpush1.msra.mxu0 0.0
    %1163 = vmatprep.subr.mxu0 0.0
    %1164 = vmatpush1.msra.mxu0 0.0
    %1165 = vmatprep.subr.mxu0 0.0
    %1166 = vmatpush1.msra.mxu0 0.0
    %1167 = vmatprep.subr.mxu0 0.0
    %1168 = vmatpush1.msra.mxu0 0.0
    %1169 = vmatprep.subr.mxu0 0.0
    %1170 = vmatpush1.msra.mxu0 0.0
    %1171 = vmatprep.subr.mxu0 0.0
    %1172 = vmatpush1.msra.mxu0 0.0
    %1173 = vmatprep.subr.mxu0 0.0
    %1174 = vmatpush1.msra.mxu0 0.0
    %1175 = vmatprep.subr.mxu0 0.0
    %1176 = vmatpush1.msra.mxu0 0.0
    %1177 = vmatprep.subr.mxu0 0.0
    %1178 = vmatpush1.msra.mxu0 0.0
    %1179 = vmatprep.subr.mxu0 0.0
    %1180 = vmatpush1.msra.mxu0 0.0
    %1181 = vmatprep.subr.mxu0 0.0
    %1182 = vmatpush1.msra.mxu0 0.0
    %1183 = vmatprep.subr.mxu0 0.0
    %1184 = vmatpush1.msra.mxu0 0.0
    %1185 = vmatprep.subr.mxu0 0.0
    %1186 = vmatpush1.msra.mxu0 0.0
    %1187 = vmatprep.subr.mxu0 0.0
    %1188 = vmatpush1.msra.mxu0 0.0
    %1189 = vmatprep.subr.mxu0 0.0
    %1190 = vmatpush1.msra.mxu0 0.0
    %1191 = vmatprep.subr.mxu0 0.0
    %1192 = vmatpush1.msra.mxu0 0.0
    %1193 = vmatprep.subr.mxu0 0.0
    %1194 = vmatpush1.msra.mxu0 0.0
    %1195 = vmatprep.subr.mxu0 0.0
    %1196 = vmatpush1.msra.mxu0 0.0
    %1197 = vmatprep.subr.mxu0 0.0
    %1198 = vmatpush1.msra.mxu0 0.0
    %1199 = vmatprep.subr.mxu0 0.0
    %1200 = vmatpush1.msra.mxu0 0.0
    %1201 = vmatprep.subr.mxu0 0.0
    %1202 = vmatpush1.msra.mxu0 0.0
    %1203 = vmatprep.subr.mxu0 0.0
    %1204 = vmatpush1.msra.mxu0 0.0
    %1205 = vmatprep.subr.mxu0 0.0
    %1206 = vmatpush1.msra.mxu0 0.0
    %1207 = vmatprep.subr.mxu0 0.0
    %1208 = vmatpush1.msra.mxu0 0.0
    %1209 = vmatprep.subr.mxu0 0.0
    %1210 = vmatpush1.msra.mxu0 0.0
    %1211 = vmatprep.subr.mxu0 0.0
    %1212 = vmatpush1.msra.mxu0 0.0
    %1213 = vmatprep.subr.mxu0 0.0
    %1214 = vmatpush1.msra.mxu0 0.0
    %1215 = vmatprep.subr.mxu0 0.0
    %1216 = vmatpush1.msra.mxu0 0.0
    %1217 = vmatprep.subr.mxu0 0.0
    %1218 = vmatpush1.msra.mxu0 0.0
    %1219 = vmatprep.mubr.f32.mxu0 0.0
    %1220 = vmatmul.mubr.f32.gmra.mrb[0].mxu0 %v1153
    %v1221 = vpop.f32.mrb[0].mxu0
    %v1222 = vadd.f32 0.0, %v1221
    %v1223 = vpop.f32.mrb[0].mxu0
    %1224 = vdwg.mxu0
    %1226 = vrot.lane.b32.xlu0 %v1222, 32
    %v1227 = vpop.permute.xlu0 %1226
    %1229 = vst.msk [vmem:[#allocation2 + $0x8] sm:$0xff] %vm547, %v1227
    %1230 = vrot.lane.b32.xlu0 %v132, 64
    %v1231 = vpop.permute.xlu0 %1230
    %1232 = vrot.lane.b32.xlu0 %v134, 64
    %v1233 = vpop.permute.xlu0 %1232
    %v1234 = vsel %vm52, %v1231, 0
    %v1236 = vsel %vm52, %v1233, 0
    %1238 = vmatprep.subr.mxu0 0.0
    %1239 = vmatpush1.xpose.msra.mxu0 %v1236
    %1240 = vmatprep.subr.mxu0 0.0
    %1241 = vmatpush1.xpose.msra.mxu0 0.0
    %1242 = vmatprep.subr.mxu0 0.0
    %1243 = vmatpush1.xpose.msra.mxu0 0.0
    %1244 = vmatprep.subr.mxu0 0.0
    %1245 = vmatpush1.xpose.msra.mxu0 0.0
    %1246 = vmatprep.subr.mxu0 0.0
    %1247 = vmatpush1.xpose.msra.mxu0 0.0
    %1248 = vmatprep.subr.mxu0 0.0
    %1249 = vmatpush1.xpose.msra.mxu0 0.0
    %1250 = vmatprep.subr.mxu0 0.0
    %1251 = vmatpush1.xpose.msra.mxu0 0.0
    %1252 = vmatprep.subr.mxu0 0.0
    %1253 = vmatpush1.xpose.msra.mxu0 0.0
    %1254 = vmatprep.subr.mxu0 0.0
    %1255 = vmatpush1.xpose.msra.mxu0 0.0
    %1256 = vmatprep.subr.mxu0 0.0
    %1257 = vmatpush1.xpose.msra.mxu0 0.0
    %1258 = vmatprep.subr.mxu0 0.0
    %1259 = vmatpush1.xpose.msra.mxu0 0.0
    %1260 = vmatprep.subr.mxu0 0.0
    %1261 = vmatpush1.xpose.msra.mxu0 0.0
    %1262 = vmatprep.subr.mxu0 0.0
    %1263 = vmatpush1.xpose.msra.mxu0 0.0
    %1264 = vmatprep.subr.mxu0 0.0
    %1265 = vmatpush1.xpose.msra.mxu0 0.0
    %1266 = vmatprep.subr.mxu0 0.0
    %1267 = vmatpush1.xpose.msra.mxu0 0.0
    %1268 = vmatprep.subr.mxu0 0.0
    %1269 = vmatpush1.xpose.msra.mxu0 0.0
    %1270 = vmatprep.subr.mxu0 0.0
    %1271 = vmatpush1.xpose.msra.mxu0 0.0
    %1272 = vmatprep.subr.mxu0 0.0
    %1273 = vmatpush1.xpose.msra.mxu0 0.0
    %1274 = vmatprep.subr.mxu0 0.0
    %1275 = vmatpush1.xpose.msra.mxu0 0.0
    %1276 = vmatprep.subr.mxu0 0.0
    %1277 = vmatpush1.xpose.msra.mxu0 0.0
    %1278 = vmatprep.subr.mxu0 0.0
    %1279 = vmatpush1.xpose.msra.mxu0 0.0
    %1280 = vmatprep.subr.mxu0 0.0
    %1281 = vmatpush1.xpose.msra.mxu0 0.0
    %1282 = vmatprep.subr.mxu0 0.0
    %1283 = vmatpush1.xpose.msra.mxu0 0.0
    %1284 = vmatprep.subr.mxu0 0.0
    %1285 = vmatpush1.xpose.msra.mxu0 0.0
    %1286 = vmatprep.subr.mxu0 0.0
    %1287 = vmatpush1.xpose.msra.mxu0 0.0
    %1288 = vmatprep.subr.mxu0 0.0
    %1289 = vmatpush1.xpose.msra.mxu0 0.0
    %1290 = vmatprep.subr.mxu0 0.0
    %1291 = vmatpush1.xpose.msra.mxu0 0.0
    %1292 = vmatprep.subr.mxu0 0.0
    %1293 = vmatpush1.xpose.msra.mxu0 0.0
    %1294 = vmatprep.subr.mxu0 0.0
    %1295 = vmatpush1.xpose.msra.mxu0 0.0
    %1296 = vmatprep.subr.mxu0 0.0
    %1297 = vmatpush1.xpose.msra.mxu0 0.0
    %1298 = vmatprep.subr.mxu0 0.0
    %1299 = vmatpush1.xpose.msra.mxu0 0.0
    %1300 = vmatprep.subr.mxu0 0.0
    %1301 = vmatpush1.xpose.msra.mxu0 0.0
    %1302 = vmatprep.mubr.f32.mxu0 0.0
    %1303 = vmatmul.mubr.f32.gmra.mrb[0].mxu0 %v1234
    %v1304 = vpop.f32.mrb[0].mxu0
    %v1305 = vadd.f32 0.0, %v1304
    %v1306 = vpop.f32.mrb[0].mxu0
    %1307 = vdwg.mxu0
    %v1308 = vsel %vm895, -1e+09, %v1305
    %v1309 = vsel %vm290, %v1308, -inf
    %1310 = vmax.xlane.f32.xlu0 %v1309
    %v1311 = vpop.xlane.xlu0 %1310
    %v1312 = vsub.f32 %v1308, %v1311
    %v1313 = vmul.f32 %v1312, 1.442695
    %v1314 = vpow.pop %v1313
    %v1315 = vsel %vm290, %v1314, 0.0
    %1316 = vadd.xlane.f32.xlu0 %v1315
    %v1317 = vpop.xlane.xlu0 %1316
    %v1318 = vrcp.pop %v1317
    %v1319 = vmul.f32 %v1314, %v1318
    %1320 = vrot.lane.b32.xlu0 %v208, 64
    %v1321 = vpop.permute.xlu0 %1320
    %v1324 = vsel %vm290, %v1319, 0
    %1326 = vmatprep.subr.mxu0 0.0
    %1327 = vmatpush1.msra.mxu0 %v1321
    %1328 = vmatprep.subr.mxu0 0.0
    %1329 = vmatpush1.msra.mxu0 0.0
    %1330 = vmatprep.subr.mxu0 0.0
    %1331 = vmatpush1.msra.mxu0 0.0
    %1332 = vmatprep.subr.mxu0 0.0
    %1333 = vmatpush1.msra.mxu0 0.0
    %1334 = vmatprep.subr.mxu0 0.0
    %1335 = vmatpush1.msra.mxu0 0.0
    %1336 = vmatprep.subr.mxu0 0.0
    %1337 = vmatpush1.msra.mxu0 0.0
    %1338 = vmatprep.subr.mxu0 0.0
    %1339 = vmatpush1.msra.mxu0 0.0
    %1340 = vmatprep.subr.mxu0 0.0
    %1341 = vmatpush1.msra.mxu0 0.0
    %1342 = vmatprep.subr.mxu0 0.0
    %1343 = vmatpush1.msra.mxu0 0.0
    %1344 = vmatprep.subr.mxu0 0.0
    %1345 = vmatpush1.msra.mxu0 0.0
    %1346 = vmatprep.subr.mxu0 0.0
    %1347 = vmatpush1.msra.mxu0 0.0
    %1348 = vmatprep.subr.mxu0 0.0
    %1349 = vmatpush1.msra.mxu0 0.0
    %1350 = vmatprep.subr.mxu0 0.0
    %1351 = vmatpush1.msra.mxu0 0.0
    %1352 = vmatprep.subr.mxu0 0.0
    %1353 = vmatpush1.msra.mxu0 0.0
    %1354 = vmatprep.subr.mxu0 0.0
    %1355 = vmatpush1.msra.mxu0 0.0
    %1356 = vmatprep.subr.mxu0 0.0
    %1357 = vmatpush1.msra.mxu0 0.0
    %1358 = vmatprep.subr.mxu0 0.0
    %1359 = vmatpush1.msra.mxu0 0.0
    %1360 = vmatprep.subr.mxu0 0.0
    %1361 = vmatpush1.msra.mxu0 0.0
    %1362 = vmatprep.subr.mxu0 0.0
    %1363 = vmatpush1.msra.mxu0 0.0
    %1364 = vmatprep.subr.mxu0 0.0
    %1365 = vmatpush1.msra.mxu0 0.0
    %1366 = vmatprep.subr.mxu0 0.0
    %1367 = vmatpush1.msra.mxu0 0.0
    %1368 = vmatprep.subr.mxu0 0.0
    %1369 = vmatpush1.msra.mxu0 0.0
    %1370 = vmatprep.subr.mxu0 0.0
    %1371 = vmatpush1.msra.mxu0 0.0
    %1372 = vmatprep.subr.mxu0 0.0
    %1373 = vmatpush1.msra.mxu0 0.0
    %1374 = vmatprep.subr.mxu0 0.0
    %1375 = vmatpush1.msra.mxu0 0.0
    %1376 = vmatprep.subr.mxu0 0.0
    %1377 = vmatpush1.msra.mxu0 0.0
    %1378 = vmatprep.subr.mxu0 0.0
    %1379 = vmatpush1.msra.mxu0 0.0
    %1380 = vmatprep.subr.mxu0 0.0
    %1381 = vmatpush1.msra.mxu0 0.0
    %1382 = vmatprep.subr.mxu0 0.0
    %1383 = vmatpush1.msra.mxu0 0.0
    %1384 = vmatprep.subr.mxu0 0.0
    %1385 = vmatpush1.msra.mxu0 0.0
    %1386 = vmatprep.subr.mxu0 0.0
    %1387 = vmatpush1.msra.mxu0 0.0
    %1388 = vmatprep.subr.mxu0 0.0
    %1389 = vmatpush1.msra.mxu0 0.0
    %1390 = vmatprep.mubr.f32.mxu0 0.0
    %1391 = vmatmul.mubr.f32.gmra.mrb[0].mxu0 %v1324
    %v1392 = vpop.f32.mrb[0].mxu0
    %v1393 = vadd.f32 0.0, %v1392
    %v1394 = vpop.f32.mrb[0].mxu0
    %1395 = vdwg.mxu0
    %1397 = vrot.lane.b32.xlu0 %v1393, 64
    %v1398 = vpop.permute.xlu0 %1397
    %1400 = vst.msk [vmem:[#allocation2 + $0x8] sm:$0xff] %vm719, %v1398
    %1401 = vrot.lane.b32.xlu0 %v132, 32
    %v1402 = vpop.permute.xlu0 %1401
    %1403 = vrot.lane.b32.xlu0 %v134, 32
    %v1404 = vpop.permute.xlu0 %1403
    %v1405 = vsel %vm52, %v1402, 0
    %v1407 = vsel %vm52, %v1404, 0
    %1409 = vmatprep.subr.mxu0 0.0
    %1410 = vmatpush1.xpose.msra.mxu0 %v1407
    %1411 = vmatprep.subr.mxu0 0.0
    %1412 = vmatpush1.xpose.msra.mxu0 0.0
    %1413 = vmatprep.subr.mxu0 0.0
    %1414 = vmatpush1.xpose.msra.mxu0 0.0
    %1415 = vmatprep.subr.mxu0 0.0
    %1416 = vmatpush1.xpose.msra.mxu0 0.0
    %1417 = vmatprep.subr.mxu0 0.0
    %1418 = vmatpush1.xpose.msra.mxu0 0.0
    %1419 = vmatprep.subr.mxu0 0.0
    %1420 = vmatpush1.xpose.msra.mxu0 0.0
    %1421 = vmatprep.subr.mxu0 0.0
    %1422 = vmatpush1.xpose.msra.mxu0 0.0
    %1423 = vmatprep.subr.mxu0 0.0
    %1424 = vmatpush1.xpose.msra.mxu0 0.0
    %1425 = vmatprep.subr.mxu0 0.0
    %1426 = vmatpush1.xpose.msra.mxu0 0.0
    %1427 = vmatprep.subr.mxu0 0.0
    %1428 = vmatpush1.xpose.msra.mxu0 0.0
    %1429 = vmatprep.subr.mxu0 0.0
    %1430 = vmatpush1.xpose.msra.mxu0 0.0
    %1431 = vmatprep.subr.mxu0 0.0
    %1432 = vmatpush1.xpose.msra.mxu0 0.0
    %1433 = vmatprep.subr.mxu0 0.0
    %1434 = vmatpush1.xpose.msra.mxu0 0.0
    %1435 = vmatprep.subr.mxu0 0.0
    %1436 = vmatpush1.xpose.msra.mxu0 0.0
    %1437 = vmatprep.subr.mxu0 0.0
    %1438 = vmatpush1.xpose.msra.mxu0 0.0
    %1439 = vmatprep.subr.mxu0 0.0
    %1440 = vmatpush1.xpose.msra.mxu0 0.0
    %1441 = vmatprep.subr.mxu0 0.0
    %1442 = vmatpush1.xpose.msra.mxu0 0.0
    %1443 = vmatprep.subr.mxu0 0.0
    %1444 = vmatpush1.xpose.msra.mxu0 0.0
    %1445 = vmatprep.subr.mxu0 0.0
    %1446 = vmatpush1.xpose.msra.mxu0 0.0
    %1447 = vmatprep.subr.mxu0 0.0
    %1448 = vmatpush1.xpose.msra.mxu0 0.0
    %1449 = vmatprep.subr.mxu0 0.0
    %1450 = vmatpush1.xpose.msra.mxu0 0.0
    %1451 = vmatprep.subr.mxu0 0.0
    %1452 = vmatpush1.xpose.msra.mxu0 0.0
    %1453 = vmatprep.subr.mxu0 0.0
    %1454 = vmatpush1.xpose.msra.mxu0 0.0
    %1455 = vmatprep.subr.mxu0 0.0
    %1456 = vmatpush1.xpose.msra.mxu0 0.0
    %1457 = vmatprep.subr.mxu0 0.0
    %1458 = vmatpush1.xpose.msra.mxu0 0.0
    %1459 = vmatprep.subr.mxu0 0.0
    %1460 = vmatpush1.xpose.msra.mxu0 0.0
    %1461 = vmatprep.subr.mxu0 0.0
    %1462 = vmatpush1.xpose.msra.mxu0 0.0
    %1463 = vmatprep.subr.mxu0 0.0
    %1464 = vmatpush1.xpose.msra.mxu0 0.0
    %1465 = vmatprep.subr.mxu0 0.0
    %1466 = vmatpush1.xpose.msra.mxu0 0.0
    %1467 = vmatprep.subr.mxu0 0.0
    %1468 = vmatpush1.xpose.msra.mxu0 0.0
    %1469 = vmatprep.subr.mxu0 0.0
    %1470 = vmatpush1.xpose.msra.mxu0 0.0
    %1471 = vmatprep.subr.mxu0 0.0
    %1472 = vmatpush1.xpose.msra.mxu0 0.0
    %1473 = vmatprep.mubr.f32.mxu0 0.0
    %1474 = vmatmul.mubr.f32.gmra.mrb[0].mxu0 %v1405
    %v1475 = vpop.f32.mrb[0].mxu0
    %v1476 = vadd.f32 0.0, %v1475
    %v1477 = vpop.f32.mrb[0].mxu0
    %1478 = vdwg.mxu0
    %v1479 = vsel %vm895, -1e+09, %v1476
    %v1480 = vsel %vm290, %v1479, -inf
    %1481 = vmax.xlane.f32.xlu0 %v1480
    %v1482 = vpop.xlane.xlu0 %1481
    %v1483 = vsub.f32 %v1479, %v1482
    %v1484 = vmul.f32 %v1483, 1.442695
    %v1485 = vpow.pop %v1484
    %v1486 = vsel %vm290, %v1485, 0.0
    %1487 = vadd.xlane.f32.xlu0 %v1486
    %v1488 = vpop.xlane.xlu0 %1487
    %v1489 = vrcp.pop %v1488
    %v1490 = vmul.f32 %v1485, %v1489
    %1491 = vrot.lane.b32.xlu0 %v208, 32
    %v1492 = vpop.permute.xlu0 %1491
    %v1495 = vsel %vm290, %v1490, 0
    %1497 = vmatprep.subr.mxu0 0.0
    %1498 = vmatpush1.msra.mxu0 %v1492
    %1499 = vmatprep.subr.mxu0 0.0
    %1500 = vmatpush1.msra.mxu0 0.0
    %1501 = vmatprep.subr.mxu0 0.0
    %1502 = vmatpush1.msra.mxu0 0.0
    %1503 = vmatprep.subr.mxu0 0.0
    %1504 = vmatpush1.msra.mxu0 0.0
    %1505 = vmatprep.subr.mxu0 0.0
    %1506 = vmatpush1.msra.mxu0 0.0
    %1507 = vmatprep.subr.mxu0 0.0
    %1508 = vmatpush1.msra.mxu0 0.0
    %1509 = vmatprep.subr.mxu0 0.0
    %1510 = vmatpush1.msra.mxu0 0.0
    %1511 = vmatprep.subr.mxu0 0.0
    %1512 = vmatpush1.msra.mxu0 0.0
    %1513 = vmatprep.subr.mxu0 0.0
    %1514 = vmatpush1.msra.mxu0 0.0
    %1515 = vmatprep.subr.mxu0 0.0
    %1516 = vmatpush1.msra.mxu0 0.0
    %1517 = vmatprep.subr.mxu0 0.0
    %1518 = vmatpush1.msra.mxu0 0.0
    %1519 = vmatprep.subr.mxu0 0.0
    %1520 = vmatpush1.msra.mxu0 0.0
    %1521 = vmatprep.subr.mxu0 0.0
    %1522 = vmatpush1.msra.mxu0 0.0
    %1523 = vmatprep.subr.mxu0 0.0
    %1524 = vmatpush1.msra.mxu0 0.0
    %1525 = vmatprep.subr.mxu0 0.0
    %1526 = vmatpush1.msra.mxu0 0.0
    %1527 = vmatprep.subr.mxu0 0.0
    %1528 = vmatpush1.msra.mxu0 0.0
    %1529 = vmatprep.subr.mxu0 0.0
    %1530 = vmatpush1.msra.mxu0 0.0
    %1531 = vmatprep.subr.mxu0 0.0
    %1532 = vmatpush1.msra.mxu0 0.0
    %1533 = vmatprep.subr.mxu0 0.0
    %1534 = vmatpush1.msra.mxu0 0.0
    %1535 = vmatprep.subr.mxu0 0.0
    %1536 = vmatpush1.msra.mxu0 0.0
    %1537 = vmatprep.subr.mxu0 0.0
    %1538 = vmatpush1.msra.mxu0 0.0
    %1539 = vmatprep.subr.mxu0 0.0
    %1540 = vmatpush1.msra.mxu0 0.0
    %1541 = vmatprep.subr.mxu0 0.0
    %1542 = vmatpush1.msra.mxu0 0.0
    %1543 = vmatprep.subr.mxu0 0.0
    %1544 = vmatpush1.msra.mxu0 0.0
    %1545 = vmatprep.subr.mxu0 0.0
    %1546 = vmatpush1.msra.mxu0 0.0
    %1547 = vmatprep.subr.mxu0 0.0
    %1548 = vmatpush1.msra.mxu0 0.0
    %1549 = vmatprep.subr.mxu0 0.0
    %1550 = vmatpush1.msra.mxu0 0.0
    %1551 = vmatprep.subr.mxu0 0.0
    %1552 = vmatpush1.msra.mxu0 0.0
    %1553 = vmatprep.subr.mxu0 0.0
    %1554 = vmatpush1.msra.mxu0 0.0
    %1555 = vmatprep.subr.mxu0 0.0
    %1556 = vmatpush1.msra.mxu0 0.0
    %1557 = vmatprep.subr.mxu0 0.0
    %1558 = vmatpush1.msra.mxu0 0.0
    %1559 = vmatprep.subr.mxu0 0.0
    %1560 = vmatpush1.msra.mxu0 0.0
    %1561 = vmatprep.mubr.f32.mxu0 0.0
    %1562 = vmatmul.mubr.f32.gmra.mrb[0].mxu0 %v1495
    %v1563 = vpop.f32.mrb[0].mxu0
    %v1564 = vadd.f32 0.0, %v1563
    %v1565 = vpop.f32.mrb[0].mxu0
    %1566 = vdwg.mxu0
    %1568 = vrot.lane.b32.xlu0 %v1564, 96
    %v1569 = vpop.permute.xlu0 %1568
    %1571 = vst.msk [vmem:[#allocation2 + $0x8] sm:$0xff] %vm891, %v1569
    %v1572 = vld [vmem:[#allocation2] sm:$0xff]
    %v1573 = vld [vmem:[#allocation2 + $0x8] sm:$0xff]
    %v1574 = vld [vmem:[%s4] sm:$0xff]
    %v1575 = vld [vmem:[%s4 + $0x8] sm:$0xff]
    %v1576 = vld [vmem:[%s4 + $0x10] sm:$0xff]
    %v1577 = vld [vmem:[%s4 + $0x18] sm:$0xff]
    %v1578 = vld [vmem:[%s4 + $0x20] sm:$0xff]
    %v1579 = vld [vmem:[%s4 + $0x28] sm:$0xff]
    %v1580 = vld [vmem:[%s4 + $0x30] sm:$0xff]
    %v1581 = vld [vmem:[%s4 + $0x38] sm:$0xff]
    %v1582 = vld [vmem:[%s4 + $0x40] sm:$0xff]
    %v1583 = vld [vmem:[%s4 + $0x48] sm:$0xff]
    %v1584 = vld [vmem:[%s4 + $0x50] sm:$0xff]
    %v1585 = vld [vmem:[%s4 + $0x58] sm:$0xff]
    %v1586 = vld [vmem:[%s4 + $0x60] sm:$0xff]
    %v1587 = vld [vmem:[%s4 + $0x68] sm:$0xff]
    %v1588 = vld [vmem:[%s4 + $0x70] sm:$0xff]
    %v1589 = vld [vmem:[%s4 + $0x78] sm:$0xff]
    %1590 = vmatprep.subr.mxu0 0.0
    %1591 = vmatpush1.msra.mxu0 %v1574
    %1592 = vmatprep.subr.mxu0 0.0
    %1593 = vmatpush1.msra.mxu0 %v1575
    %1594 = vmatprep.subr.mxu0 0.0
    %1595 = vmatpush1.msra.mxu0 %v1576
    %1596 = vmatprep.subr.mxu0 0.0
    %1597 = vmatpush1.msra.mxu0 %v1577
    %1598 = vmatprep.subr.mxu0 0.0
    %1599 = vmatpush1.msra.mxu0 %v1578
    %1600 = vmatprep.subr.mxu0 0.0
    %1601 = vmatpush1.msra.mxu0 %v1579
    %1602 = vmatprep.subr.mxu0 0.0
    %1603 = vmatpush1.msra.mxu0 %v1580
    %1604 = vmatprep.subr.mxu0 0.0
    %1605 = vmatpush1.msra.mxu0 %v1581
    %1606 = vmatprep.subr.mxu0 0.0
    %1607 = vmatpush1.msra.mxu0 %v1582
    %1608 = vmatprep.subr.mxu0 0.0
    %1609 = vmatpush1.msra.mxu0 %v1583
    %1610 = vmatprep.subr.mxu0 0.0
    %1611 = vmatpush1.msra.mxu0 %v1584
    %1612 = vmatprep.subr.mxu0 0.0
    %1613 = vmatpush1.msra.mxu0 %v1585
    %1614 = vmatprep.subr.mxu0 0.0
    %1615 = vmatpush1.msra.mxu0 %v1586
    %1616 = vmatprep.subr.mxu0 0.0
    %1617 = vmatpush1.msra.mxu0 %v1587
    %1618 = vmatprep.subr.mxu0 0.0
    %1619 = vmatpush1.msra.mxu0 %v1588
    %1620 = vmatprep.subr.mxu0 0.0
    %1621 = vmatpush1.msra.mxu0 %v1589
    %1622 = vmatprep.subr.mxu0 0.0
    %1623 = vmatpush1.msra.mxu0 0.0
    %1624 = vmatprep.subr.mxu0 0.0
    %1625 = vmatpush1.msra.mxu0 0.0
    %1626 = vmatprep.subr.mxu0 0.0
    %1627 = vmatpush1.msra.mxu0 0.0
    %1628 = vmatprep.subr.mxu0 0.0
    %1629 = vmatpush1.msra.mxu0 0.0
    %1630 = vmatprep.subr.mxu0 0.0
    %1631 = vmatpush1.msra.mxu0 0.0
    %1632 = vmatprep.subr.mxu0 0.0
    %1633 = vmatpush1.msra.mxu0 0.0
    %1634 = vmatprep.subr.mxu0 0.0
    %1635 = vmatpush1.msra.mxu0 0.0
    %1636 = vmatprep.subr.mxu0 0.0
    %1637 = vmatpush1.msra.mxu0 0.0
    %1638 = vmatprep.subr.mxu0 0.0
    %1639 = vmatpush1.msra.mxu0 0.0
    %1640 = vmatprep.subr.mxu0 0.0
    %1641 = vmatpush1.msra.mxu0 0.0
    %1642 = vmatprep.subr.mxu0 0.0
    %1643 = vmatpush1.msra.mxu0 0.0
    %1644 = vmatprep.subr.mxu0 0.0
    %1645 = vmatpush1.msra.mxu0 0.0
    %1646 = vmatprep.subr.mxu0 0.0
    %1647 = vmatpush1.msra.mxu0 0.0
    %1648 = vmatprep.subr.mxu0 0.0
    %1649 = vmatpush1.msra.mxu0 0.0
    %1650 = vmatprep.subr.mxu0 0.0
    %1651 = vmatpush1.msra.mxu0 0.0
    %1652 = vmatprep.subr.mxu0 0.0
    %1653 = vmatpush1.msra.mxu0 0.0
    %1654 = vmatprep.mubr.f32.mxu0 0.0
    %1655 = vmatmul.mubr.f32.gmra.mrb[0].mxu0 %v1572
    %v1656 = vpop.f32.mrb[0].mxu0
    %v1657 = vadd.f32 0.0, %v1656
    %v1658 = vpop.f32.mrb[0].mxu0
    %1659 = vmatprep.mubr.f32.mxu0 0.0
    %1660 = vmatmul.mubr.f32.gmra.mrb[0].mxu0 %v1573
    %v1661 = vpop.f32.mrb[0].mxu0
    %v1662 = vadd.f32 0.0, %v1661
    %v1663 = vpop.f32.mrb[0].mxu0
    %1664 = vdwg.mxu0
    %1665 = vst.msk [vmem:[#allocation3] sm:$0xff] %vm52, %v1657
    %1666 = vst.msk [vmem:[#allocation3 + $0x8] sm:$0xff] %vm52, %v1662
    // Predicated region
    $region22: #{multi_head_attention.1} parent=1 // pred_check
      _
    $region23: #{multi_head_attention.1} parent=1 // pred_check_branch
      %1668 = sbr.rel (0) target = $region25
    $region24: #{multi_head_attention.1} parent=1 // pred_region
      %s1670 = ssub.s32 256, 256
      %1671 = vsyncadd [#allocation4], %s1670
      %s1672 = sshll.u32 [#allocation3], 4
      %s1673 = int_to_ptr.vmem [resolvable:$true] %s1672
      %1678 = dma.vmem_to_hbm [thread:$0]  %s1673, 256, %s5, [#allocation4], 128, 128, 8
    $region25: #{multi_head_attention.1} parent=1 // pred_fallthru
      _
    // Predicated region
    $region26: #{multi_head_attention.1} parent=1 // pred_check
      _
    $region27: #{multi_head_attention.1} parent=1 // pred_check_branch
      %1680 = sbr.rel (0) target = $region29
    $region28: #{multi_head_attention.1} parent=1 // pred_region
      %1681 = dma.done [#allocation4], 256
    $region29: #{multi_head_attention.1} parent=1 // pred_fallthru
      _
    %1682 = vsyncpa [#allocation4], 1

</llo_original>
